<compile_context>
chip_gen: v6e
topology: v6e:2x2x1
jax: 0.10.0
libtpu: 0.0.40
codegen_flags: <defaults>
</compile_context>

<pallas_src>
import functools
import math

import jax
import jax.numpy as jnp
from jax import lax
from jax.experimental import pallas as pl
from jax.experimental.pallas import tpu as pltpu

PADDING_VALUE = 0
SOS_IDX = 1
NEG_INF = -1e9
LN_EPS = 1e-5


# ----------------------------- Pallas kernels ------------------------------

def _attn_block_kernel(*refs, nhead, causal, has_mask):
    """Fused MHA block: QKV proj -> per-head attention -> out proj -> +residual -> LayerNorm."""
    if has_mask:
        (xq_ref, xkv_ref, wq_ref, bq_ref, wk_ref, bk_ref, wv_ref, bv_ref,
         wo_ref, bo_ref, lng_ref, lnb_ref, kpm_ref, o_ref) = refs
    else:
        (xq_ref, xkv_ref, wq_ref, bq_ref, wk_ref, bk_ref, wv_ref, bv_ref,
         wo_ref, bo_ref, lng_ref, lnb_ref, o_ref) = refs
        kpm_ref = None

    xq = xq_ref[0]                       # (Sq, D)
    xkv = xkv_ref[0]                     # (Sk, D)
    Sq, D = xq.shape
    Sk = xkv.shape[0]

    # Additive attention bias built in-kernel — no (B*H, S, S) mask DMA.
    bias = None
    if has_mask:
        bias = jnp.broadcast_to(kpm_ref[0], (Sq, Sk))      # key-padding: (1,Sk)->(Sq,Sk)
    if causal:
        qi = lax.broadcasted_iota(jnp.int32, (Sq, Sk), 0)
        ki = lax.broadcasted_iota(jnp.int32, (Sq, Sk), 1)
        base = bias if bias is not None else jnp.zeros((Sq, Sk), jnp.float32)
        bias = jnp.where(ki > qi, jnp.float32(NEG_INF), base)

    nt = (((1,), (1,)), ((), ()))        # contract last dims: q @ k^T without transpose
    acc = jnp.zeros((Sq, D), jnp.float32)
    for h in range(nhead):               # static unroll; per-head weight slabs, no lane slicing
        q_h = jnp.dot(xq, wq_ref[h], preferred_element_type=jnp.float32) + bq_ref[h]   # (Sq,Dh)
        k_h = jnp.dot(xkv, wk_ref[h], preferred_element_type=jnp.float32) + bk_ref[h]  # (Sk,Dh)
        v_h = jnp.dot(xkv, wv_ref[h], preferred_element_type=jnp.float32) + bv_ref[h]  # (Sk,Dh)
        s = lax.dot_general(q_h, k_h, nt, preferred_element_type=jnp.float32)          # (Sq,Sk)
        if bias is not None:
            s = s + bias
        s = s - jnp.max(s, axis=-1, keepdims=True)
        p = jnp.exp(s)
        p = p * pl.reciprocal(jnp.sum(p, axis=-1, keepdims=True), approx=True)
        o_h = jnp.dot(p, v_h, preferred_element_type=jnp.float32)                      # (Sq,Dh)
        acc = acc + jnp.dot(o_h, wo_ref[h], preferred_element_type=jnp.float32)        # (Sq,D)

    # residual + output-projection bias + post-norm (all fused; residual is xq itself)
    y = xq + acc + bo_ref[...]
    mu = jnp.mean(y, axis=-1, keepdims=True)
    var = jnp.mean((y - mu) ** 2, axis=-1, keepdims=True)
    y = (y - mu) * lax.rsqrt(var + LN_EPS)
    o_ref[0] = (y * lng_ref[...] + lnb_ref[...]).astype(o_ref.dtype)


def _ffn_block_kernel(x_ref, w1_ref, b1_ref, w2_ref, b2_ref, g_ref, bt_ref, o_ref):
    """Fused FFN block: relu(x@w1+b1)@w2+b2, residual add, LayerNorm."""
    x = x_ref[...]
    h = jnp.dot(x, w1_ref[...], preferred_element_type=jnp.float32) + b1_ref[...]
    h = jnp.maximum(h, 0.0)
    y = x + jnp.dot(h, w2_ref[...], preferred_element_type=jnp.float32) + b2_ref[...]
    mu = jnp.mean(y, axis=-1, keepdims=True)
    var = jnp.mean((y - mu) ** 2, axis=-1, keepdims=True)
    y = (y - mu) * lax.rsqrt(var + LN_EPS)
    o_ref[...] = (y * g_ref[...] + bt_ref[...]).astype(o_ref.dtype)


def _inproj_pe_kernel(x_ref, w_ref, b_ref, pe_ref, o_ref):
    """Input feature projection with sinusoidal positional encoding added in the epilogue."""
    y = jnp.dot(x_ref[...], w_ref[...], preferred_element_type=jnp.float32)
    o_ref[...] = (y + b_ref[...] + pe_ref[...]).astype(o_ref.dtype)


def _outproj_kernel(x_ref, w_ref, b_ref, o_ref):
    """Logits projection; N is pre-padded to a multiple of 128 for lane-dense stores."""
    y = jnp.dot(x_ref[...], w_ref[...], preferred_element_type=jnp.float32) + b_ref[...]
    o_ref[...] = y.astype(o_ref.dtype)


# ----------------------------- kernel wrappers ------------------------------

def pallas_attention_block(x_q, x_kv, ap, ln_g, ln_b, kpm_add=None, causal=False):
    """x_q: (B,Sq,D) query/residual stream, x_kv: (B,Sk,D), kpm_add: (B,1,Sk) additive or None."""
    B, Sq, D = x_q.shape
    Sk = x_kv.shape[1]
    H = ap["wq"].shape[0]
    Dh = D // H
    has_mask = kpm_add is not None
    kernel = functools.partial(_attn_block_kernel, nhead=H, causal=causal, has_mask=has_mask)

    in_specs = [
        pl.BlockSpec((1, Sq, D), lambda i: (i, 0, 0)),
        pl.BlockSpec((1, Sk, D), lambda i: (i, 0, 0)),
        pl.BlockSpec((H, D, Dh), lambda i: (0, 0, 0)),
        pl.BlockSpec((H, 1, Dh), lambda i: (0, 0, 0)),
        pl.BlockSpec((H, D, Dh), lambda i: (0, 0, 0)),
        pl.BlockSpec((H, 1, Dh), lambda i: (0, 0, 0)),
        pl.BlockSpec((H, D, Dh), lambda i: (0, 0, 0)),
        pl.BlockSpec((H, 1, Dh), lambda i: (0, 0, 0)),
        pl.BlockSpec((H, Dh, D), lambda i: (0, 0, 0)),
        pl.BlockSpec((1, D), lambda i: (0, 0)),
        pl.BlockSpec((1, D), lambda i: (0, 0)),
        pl.BlockSpec((1, D), lambda i: (0, 0)),
    ]
    args = [x_q, x_kv, ap["wq"], ap["bq"], ap["wk"], ap["bk"], ap["wv"], ap["bv"],
            ap["wo"], ap["bo"], ln_g.reshape(1, D), ln_b.reshape(1, D)]
    if has_mask:
        in_specs.append(pl.BlockSpec((1, 1, Sk), lambda i: (i, 0, 0)))
        args.append(kpm_add)

    return pl.pallas_call(
        kernel,
        out_shape=jax.ShapeDtypeStruct((B, Sq, D), jnp.float32),
        grid=(B,),
        in_specs=in_specs,
        out_specs=pl.BlockSpec((1, Sq, D), lambda i: (i, 0, 0)),
        compiler_params=pltpu.CompilerParams(dimension_semantics=("parallel",)),
    )(*args)


def pallas_ffn_block(x2d, w1, b1, w2, b2, g, bt, rows):
    """x2d: (M, D) -> LayerNorm(x + relu(x@w1+b1)@w2+b2), M tiled by `rows` (parallel grid)."""
    M, D = x2d.shape
    F = w1.shape[1]
    return pl.pallas_call(
        _ffn_block_kernel,
        out_shape=jax.ShapeDtypeStruct((M, D), jnp.float32),
        grid=(M // rows,),
        in_specs=[
            pl.BlockSpec((rows, D), lambda i: (i, 0)),
            pl.BlockSpec((D, F), lambda i: (0, 0)),
            pl.BlockSpec((1, F), lambda i: (0, 0)),
            pl.BlockSpec((F, D), lambda i: (0, 0)),
            pl.BlockSpec((1, D), lambda i: (0, 0)),
            pl.BlockSpec((1, D), lambda i: (0, 0)),
            pl.BlockSpec((1, D), lambda i: (0, 0)),
        ],
        out_specs=pl.BlockSpec((rows, D), lambda i: (i, 0)),
        compiler_params=pltpu.CompilerParams(dimension_semantics=("parallel",)),
    )(x2d, w1, b1.reshape(1, F), w2, b2.reshape(1, D), g.reshape(1, D), bt.reshape(1, D))


def pallas_inproj_pe(x2d, w, b, pe, rows):
    """x2d: (M, Din) -> x2d @ w + b + pe (pe: (rows, D), shared across batch tiles)."""
    M, Din = x2d.shape
    D = w.shape[1]
    return pl.pallas_call(
        _inproj_pe_kernel,
        out_shape=jax.ShapeDtypeStruct((M, D), jnp.float32),
        grid=(M // rows,),
        in_specs=[
            pl.BlockSpec((rows, Din), lambda i: (i, 0)),
            pl.BlockSpec((Din, D), lambda i: (0, 0)),
            pl.BlockSpec((1, D), lambda i: (0, 0)),
            pl.BlockSpec((rows, D), lambda i: (0, 0)),
        ],
        out_specs=pl.BlockSpec((rows, D), lambda i: (i, 0)),
        compiler_params=pltpu.CompilerParams(dimension_semantics=("parallel",)),
    )(x2d, w, b.reshape(1, D), pe)


def pallas_outproj(x2d, w_pad, b_pad, rows):
    """x2d: (M, D) @ (D, Npad) + b; Npad is a multiple of 128 (lane-dense unmasked stores)."""
    M, D = x2d.shape
    N = w_pad.shape[1]
    return pl.pallas_call(
        _outproj_kernel,
        out_shape=jax.ShapeDtypeStruct((M, N), jnp.float32),
        grid=(M // rows,),
        in_specs=[
            pl.BlockSpec((rows, D), lambda i: (i, 0)),
            pl.BlockSpec((D, N), lambda i: (0, 0)),
            pl.BlockSpec((1, N), lambda i: (0, 0)),
        ],
        out_specs=pl.BlockSpec((rows, N), lambda i: (i, 0)),
        compiler_params=pltpu.CompilerParams(dimension_semantics=("parallel",)),
    )(x2d, w_pad, b_pad.reshape(1, N))


# ----------------------------- model building blocks ------------------------

def sinusoidal_pe(seq_len, d_model):
    # built from trace-time constants -> constant-folded by XLA (no runtime sin/cos pass)
    pos = jnp.arange(seq_len, dtype=jnp.float32)[:, None]
    i = jnp.arange(0, d_model, 2, dtype=jnp.float32)
    div = jnp.exp(-math.log(10000.0) * i / d_model)
    pe = jnp.zeros((seq_len, d_model), dtype=jnp.float32)
    pe = pe.at[:, 0::2].set(jnp.sin(pos * div))
    pe = pe.at[:, 1::2].set(jnp.cos(pos * div))
    return pe


def encoder_layer(p, x, kpm_add):
    B, S, D = x.shape
    x = pallas_attention_block(x, x, p["self_attn"], p["ln1_g"], p["ln1_b"],
                               kpm_add=kpm_add, causal=False)
    x = pallas_ffn_block(x.reshape(B * S, D), p["ff1_w"], p["ff1_b"],
                         p["ff2_w"], p["ff2_b"], p["ln2_g"], p["ln2_b"], rows=S)
    return x.reshape(B, S, D)


def decoder_layer(p, x, memory, tgt_kpm_add):
    B, S, D = x.shape
    # masked self-attention: causal mask built in-kernel, key-padding passed as (B,1,S)
    x = pallas_attention_block(x, x, p["self_attn"], p["ln1_g"], p["ln1_b"],
                               kpm_add=tgt_kpm_add, causal=True)
    # cross-attention to encoder memory: no memory mask in reference forward -> no mask input
    x = pallas_attention_block(x, memory, p["cross_attn"], p["ln2_g"], p["ln2_b"],
                               kpm_add=None, causal=False)
    x = pallas_ffn_block(x.reshape(B * S, D), p["ff1_w"], p["ff1_b"],
                         p["ff2_w"], p["ff2_b"], p["ln3_g"], p["ln3_b"], rows=S)
    return x.reshape(B, S, D)


def encoder_forward(p, word_emb, pros, ac, src_pad_mask, cfg):
    B, S, _ = word_emb.shape
    D = cfg["d_model"]
    x = jnp.concatenate([word_emb, pros, ac], axis=-1)                 # glue (tiny)
    pe = sinusoidal_pe(S, D)
    x = pallas_inproj_pe(x.reshape(B * S, -1), p["in_proj_w"], p["in_proj_b"], pe, rows=S)
    x = x.reshape(B, S, D)
    # additive key-padding bias, (B, 1, S) — expanded to (Sq, Sk) inside the kernel
    kpm_add = jnp.where(src_pad_mask, jnp.float32(NEG_INF), jnp.float32(0.0))[:, None, :]
    for layer in p["layers"]:
        x = encoder_layer(layer, x, kpm_add)
    return x


def decoder_forward(p, memory, decoder_inputs, word_emb, tgt_pad_mask, cfg):
    B, S = decoder_inputs.shape
    D = cfg["d_model"]
    tok = jnp.take(p["tok_emb"], decoder_inputs, axis=0)               # embedding gather (glue)
    x = jnp.concatenate([tok, word_emb], axis=-1)
    pe = sinusoidal_pe(S, D)
    x = pallas_inproj_pe(x.reshape(B * S, -1), p["in_proj_w"], p["in_proj_b"], pe, rows=S)
    x = x.reshape(B, S, D)
    tgt_kpm_add = jnp.where(tgt_pad_mask, jnp.float32(NEG_INF), jnp.float32(0.0))[:, None, :]
    for layer in p["layers"]:
        x = decoder_layer(layer, x, memory, tgt_kpm_add)
    logits_pad = pallas_outproj(x.reshape(B * S, D), p["out_w_pad"], p["out_b_pad"], rows=S)
    return logits_pad[:, :cfg["vocab"]].reshape(B, S, cfg["vocab"])    # slice padded lanes in JAX


def seq2seq_forward(params, word_embeddings, prosodic_features, raw_acoustic_features,
                    labels, lengths, cfg):
    # mirrors PyTorch Seq2Seq.forward (lengths accepted but unused, as in the reference)
    src_key_padding_mask = labels == PADDING_VALUE
    memory = encoder_forward(params["encoder"], word_embeddings, prosodic_features,
                             raw_acoustic_features, src_key_padding_mask, cfg)
    B, S = labels.shape
    sos = jnp.full((B, 1), SOS_IDX, dtype=labels.dtype)
    decoder_inputs = jnp.concatenate([sos, labels[:, :-1]], axis=1)
    tgt_key_padding_mask = decoder_inputs == PADDING_VALUE             # create_padding_mask
    # generate_causal_mask is realized in-kernel (causal=True) — no (S,S) triu materialized
    return decoder_forward(params["decoder"], memory, decoder_inputs, word_embeddings,
                           tgt_key_padding_mask, cfg)


# ----------------------------- deterministic params -------------------------

def _w(key, shape):
    return 0.02 * jax.random.normal(key, shape, dtype=jnp.float32)


def _attn_params(key, d_model, nhead):
    """Per-head weight layout used by the fused kernel. Equivalent to standard (D,D) mats:
       wq/wk/wv stored as (H, D, Dh) column blocks; wo as (H, Dh, D) row blocks.
       The 1/sqrt(Dh) attention scale is folded into wq (and bq, which is zero)."""
    Dh = d_model // nhead
    scale = 1.0 / math.sqrt(Dh)
    ks = jax.random.split(key, 4)

    def col_blocks(w):  # (D, D) -> (H, D, Dh)
        return w.reshape(d_model, nhead, Dh).transpose(1, 0, 2)

    return {
        "wq": col_blocks(_w(ks[0], (d_model, d_model)) * scale),
        "bq": jnp.zeros((nhead, 1, Dh), jnp.float32),
        "wk": col_blocks(_w(ks[1], (d_model, d_model))),
        "bk": jnp.zeros((nhead, 1, Dh), jnp.float32),
        "wv": col_blocks(_w(ks[2], (d_model, d_model))),
        "bv": jnp.zeros((nhead, 1, Dh), jnp.float32),
        "wo": _w(ks[3], (d_model, d_model)).reshape(nhead, Dh, d_model),
        "bo": jnp.zeros((1, d_model), jnp.float32),
    }


def _enc_layer_params(key, cfg):
    D, F, H = cfg["d_model"], cfg["d_ff"], cfg["nhead"]
    ks = jax.random.split(key, 3)
    return {
        "self_attn": _attn_params(ks[0], D, H),
        "ff1_w": _w(ks[1], (D, F)), "ff1_b": jnp.zeros((F,), jnp.float32),
        "ff2_w": _w(ks[2], (F, D)), "ff2_b": jnp.zeros((D,), jnp.float32),
        "ln1_g": jnp.ones((D,), jnp.float32), "ln1_b": jnp.zeros((D,), jnp.float32),
        "ln2_g": jnp.ones((D,), jnp.float32), "ln2_b": jnp.zeros((D,), jnp.float32),
    }


def _dec_layer_params(key, cfg):
    D, F, H = cfg["d_model"], cfg["d_ff"], cfg["nhead"]
    ks = jax.random.split(key, 4)
    return {
        "self_attn": _attn_params(ks[0], D, H),
        "cross_attn": _attn_params(ks[1], D, H),
        "ff1_w": _w(ks[2], (D, F)), "ff1_b": jnp.zeros((F,), jnp.float32),
        "ff2_w": _w(ks[3], (F, D)), "ff2_b": jnp.zeros((D,), jnp.float32),
        "ln1_g": jnp.ones((D,), jnp.float32), "ln1_b": jnp.zeros((D,), jnp.float32),
        "ln2_g": jnp.ones((D,), jnp.float32), "ln2_b": jnp.zeros((D,), jnp.float32),
        "ln3_g": jnp.ones((D,), jnp.float32), "ln3_b": jnp.zeros((D,), jnp.float32),
    }


def init_params(key, cfg):
    D = cfg["d_model"]
    k_enc, k_dec = jax.random.split(key)
    ke = jax.random.split(k_enc, cfg["n_enc_layers"] + 1)
    kd = jax.random.split(k_dec, cfg["n_dec_layers"] + 3)
    enc_in = cfg["emb_dim"] + cfg["pros_dim"] + cfg["ac_dim"]
    dec_in = D + cfg["emb_dim"]

    encoder = {
        "in_proj_w": _w(ke[0], (enc_in, D)), "in_proj_b": jnp.zeros((D,), jnp.float32),
        "layers": [_enc_layer_params(ke[1 + i], cfg) for i in range(cfg["n_enc_layers"])],
    }

    vocab = cfg["vocab"]
    n_pad = ((vocab + 127) // 128) * 128     # lane-dense logits projection (pad N to 128k)
    out_w = _w(kd[2], (D, vocab))
    out_b = jnp.zeros((vocab,), jnp.float32)
    decoder = {
        "tok_emb": _w(kd[0], (vocab, D)),
        "in_proj_w": _w(kd[1], (dec_in, D)), "in_proj_b": jnp.zeros((D,), jnp.float32),
        "out_w_pad": jnp.pad(out_w, ((0, 0), (0, n_pad - vocab))),
        "out_b_pad": jnp.pad(out_b, (0, n_pad - vocab)),
        "layers": [_dec_layer_params(kd[3 + i], cfg) for i in range(cfg["n_dec_layers"])],
    }
    return {"encoder": encoder, "decoder": decoder}


# ----------------------------- main -----------------------------------------

if __name__ == "__main__":
    cfg = dict(emb_dim=32, pros_dim=6, ac_dim=10, d_model=32, nhead=4, d_ff=64,
               n_enc_layers=2, n_dec_layers=2, vocab=5)
    B, S = 2, 8

    key = jax.random.PRNGKey(0)
    k_p, k_w, k_pr, k_ac, k_lab = jax.random.split(key, 5)

    params = init_params(k_p, cfg)

    word_embeddings = jax.random.normal(k_w, (B, S, cfg["emb_dim"]), dtype=jnp.float32)
    prosodic_features = jax.random.normal(k_pr, (B, S, cfg["pros_dim"]), dtype=jnp.float32)
    raw_acoustic_features = jax.random.normal(k_ac, (B, S, cfg["ac_dim"]), dtype=jnp.float32)
    lengths = jnp.array([8, 6], dtype=jnp.int32)
    labels = jax.random.randint(k_lab, (B, S), 1, cfg["vocab"], dtype=jnp.int32)
    valid = (jnp.arange(S)[None, :] < lengths[:, None]).astype(jnp.int32)
    labels = labels * valid   # trailing positions are PADDING_VALUE (0)

    fwd = jax.jit(functools.partial(seq2seq_forward, cfg=cfg))
    out = fwd(params, word_embeddings, prosodic_features, raw_acoustic_features, labels, lengths)
    out = jax.block_until_ready(out)

    assert out.shape == (B, S, cfg["vocab"])
    assert bool(jnp.all(jnp.isfinite(out)))
    print("KERNEL_OK")
</pallas_src>

<mosaic_0001>
module attributes {stable_mosaic.version = 11 : i64} {
  func.func @_inproj_pe_kernel(%arg0: i32, %arg1: memref<8x64xf32, #tpu.memory_space<vmem>>, %arg2: memref<64x32xf32, #tpu.memory_space<vmem>>, %arg3: memref<1x32xf32, #tpu.memory_space<vmem>>, %arg4: memref<8x32xf32, #tpu.memory_space<vmem>>, %arg5: memref<8x32xf32, #tpu.memory_space<vmem>>) attributes {dimension_semantics = [#tpu.dimension_semantics<parallel>], iteration_bounds = array<i64: 2>, scalar_prefetch = 0 : i64, scratch_operands = 0 : i64, tpu.core_type = #tpu.core_type<tc>, window_params = [{transform_indices = @transform_0, window_bounds = array<i64: 8, 64>}, {pipeline_mode = #tpu.pipeline_mode<synchronous>, transform_indices = @transform_1, window_bounds = array<i64: 64, 32>}, {pipeline_mode = #tpu.pipeline_mode<synchronous>, transform_indices = @transform_2, window_bounds = array<i64: 1, 32>}, {pipeline_mode = #tpu.pipeline_mode<synchronous>, transform_indices = @transform_3, window_bounds = array<i64: 8, 32>}, {transform_indices = @transform_4, window_bounds = array<i64: 8, 32>}]} {
    %c0 = arith.constant 0 : index
    %c0_0 = arith.constant 0 : index
    %0 = vector.load %arg1[%c0, %c0_0] : memref<8x64xf32, #tpu.memory_space<vmem>>, vector<8x64xf32>
    %c0_1 = arith.constant 0 : index
    %c0_2 = arith.constant 0 : index
    %1 = vector.load %arg2[%c0_1, %c0_2] : memref<64x32xf32, #tpu.memory_space<vmem>>, vector<64x32xf32>
    %cst = arith.constant dense<0.000000e+00> : vector<8x32xf32>
    %2 = tpu.matmul %0, %1, %cst {dimension_numbers = #tpu.dot_dimension_numbers<[1], [0], [0], [1], [0, 0, 1, 1], [], []>} : vector<8x64xf32>, vector<64x32xf32>, vector<8x32xf32> -> vector<8x32xf32>
    %c0_3 = arith.constant 0 : index
    %c0_4 = arith.constant 0 : index
    %3 = vector.load %arg3[%c0_3, %c0_4] : memref<1x32xf32, #tpu.memory_space<vmem>>, vector<1x32xf32>
    %4 = vector.broadcast %3 : vector<1x32xf32> to vector<8x32xf32>
    %5 = arith.addf %2, %4 : vector<8x32xf32>
    %c0_5 = arith.constant 0 : index
    %c0_6 = arith.constant 0 : index
    %6 = vector.load %arg4[%c0_5, %c0_6] : memref<8x32xf32, #tpu.memory_space<vmem>>, vector<8x32xf32>
    %7 = arith.addf %5, %6 : vector<8x32xf32>
    %c0_7 = arith.constant 0 : index
    %c0_8 = arith.constant 0 : index
    %8 = vector.load %arg5[%c0_7, %c0_8] : memref<8x32xf32, #tpu.memory_space<vmem>>, vector<8x32xf32>
    tpu.vector_store %arg5[%c0_7, %c0_8], %7 {strides = array<i32>} : memref<8x32xf32, #tpu.memory_space<vmem>>, vector<8x32xf32>,
    return
  }
  func.func @transform_0(%arg0: i32) -> (i32, i32) {
    %c0_i32 = arith.constant 0 : i32
    %c0_i32_0 = arith.constant 0 : i32
    return %arg0, %c0_i32 : i32, i32
  }
  func.func @transform_1(%arg0: i32) -> (i32, i32) {
    %c0_i32 = arith.constant 0 : i32
    %c0_i32_0 = arith.constant 0 : i32
    %c0_i32_1 = arith.constant 0 : i32
    return %c0_i32, %c0_i32_0 : i32, i32
  }
  func.func @transform_2(%arg0: i32) -> (i32, i32) {
    %c0_i32 = arith.constant 0 : i32
    %c0_i32_0 = arith.constant 0 : i32
    %c0_i32_1 = arith.constant 0 : i32
    return %c0_i32, %c0_i32_0 : i32, i32
  }
  func.func @transform_3(%arg0: i32) -> (i32, i32) {
    %c0_i32 = arith.constant 0 : i32
    %c0_i32_0 = arith.constant 0 : i32
    %c0_i32_1 = arith.constant 0 : i32
    return %c0_i32, %c0_i32_0 : i32, i32
  }
  func.func @transform_4(%arg0: i32) -> (i32, i32) {
    %c0_i32 = arith.constant 0 : i32
    %c0_i32_0 = arith.constant 0 : i32
    return %arg0, %c0_i32 : i32, i32
  }
}

module attributes {stable_mosaic.version = 11 : i64} {
  func.func @_attn_block_kernel(%arg0: i32, %arg1: memref<1x8x32xf32, #tpu.memory_space<vmem>>, %arg2: memref<1x8x32xf32, #tpu.memory_space<vmem>>, %arg3: memref<4x32x8xf32, #tpu.memory_space<vmem>>, %arg4: memref<4x1x8xf32, #tpu.memory_space<vmem>>, %arg5: memref<4x32x8xf32, #tpu.memory_space<vmem>>, %arg6: memref<4x1x8xf32, #tpu.memory_space<vmem>>, %arg7: memref<4x32x8xf32, #tpu.memory_space<vmem>>, %arg8: memref<4x1x8xf32, #tpu.memory_space<vmem>>, %arg9: memref<4x8x32xf32, #tpu.memory_space<vmem>>, %arg10: memref<1x32xf32, #tpu.memory_space<vmem>>, %arg11: memref<1x32xf32, #tpu.memory_space<vmem>>, %arg12: memref<1x32xf32, #tpu.memory_space<vmem>>, %arg13: memref<1x1x8xf32, #tpu.memory_space<vmem>>, %arg14: memref<1x8x32xf32, #tpu.memory_space<vmem>>) attributes {dimension_semantics = [#tpu.dimension_semantics<parallel>], iteration_bounds = array<i64: 2>, scalar_prefetch = 0 : i64, scratch_operands = 0 : i64, tpu.core_type = #tpu.core_type<tc>, window_params = [{transform_indices = @transform_0, window_bounds = array<i64: 1, 8, 32>}, {transform_indices = @transform_1, window_bounds = array<i64: 1, 8, 32>}, {pipeline_mode = #tpu.pipeline_mode<synchronous>, transform_indices = @transform_2, window_bounds = array<i64: 4, 32, 8>}, {pipeline_mode = #tpu.pipeline_mode<synchronous>, transform_indices = @transform_3, window_bounds = array<i64: 4, 1, 8>}, {pipeline_mode = #tpu.pipeline_mode<synchronous>, transform_indices = @transform_4, window_bounds = array<i64: 4, 32, 8>}, {pipeline_mode = #tpu.pipeline_mode<synchronous>, transform_indices = @transform_5, window_bounds = array<i64: 4, 1, 8>}, {pipeline_mode = #tpu.pipeline_mode<synchronous>, transform_indices = @transform_6, window_bounds = array<i64: 4, 32, 8>}, {pipeline_mode = #tpu.pipeline_mode<synchronous>, transform_indices = @transform_7, window_bounds = array<i64: 4, 1, 8>}, {pipeline_mode = #tpu.pipeline_mode<synchronous>, transform_indices = @transform_8, window_bounds = array<i64: 4, 8, 32>}, {pipeline_mode = #tpu.pipeline_mode<synchronous>, transform_indices = @transform_9, window_bounds = array<i64: 1, 32>}, {pipeline_mode = #tpu.pipeline_mode<synchronous>, transform_indices = @transform_10, window_bounds = array<i64: 1, 32>}, {pipeline_mode = #tpu.pipeline_mode<synchronous>, transform_indices = @transform_11, window_bounds = array<i64: 1, 32>}, {transform_indices = @transform_12, window_bounds = array<i64: 1, 1, 8>}, {transform_indices = @transform_13, window_bounds = array<i64: 1, 8, 32>}]} {
    %c0 = arith.constant 0 : index
    %c0_0 = arith.constant 0 : index
    %c0_1 = arith.constant 0 : index
    %0 = vector.load %arg1[%c0, %c0_0, %c0_1] : memref<1x8x32xf32, #tpu.memory_space<vmem>>, vector<1x8x32xf32>
    %1 = vector.shape_cast %0 : vector<1x8x32xf32> to vector<8x32xf32>
    %c0_2 = arith.constant 0 : index
    %c0_3 = arith.constant 0 : index
    %c0_4 = arith.constant 0 : index
    %2 = vector.load %arg2[%c0_2, %c0_3, %c0_4] : memref<1x8x32xf32, #tpu.memory_space<vmem>>, vector<1x8x32xf32>
    %3 = vector.shape_cast %2 : vector<1x8x32xf32> to vector<8x32xf32>
    %c0_5 = arith.constant 0 : index
    %c0_6 = arith.constant 0 : index
    %c0_7 = arith.constant 0 : index
    %4 = vector.load %arg13[%c0_5, %c0_6, %c0_7] : memref<1x1x8xf32, #tpu.memory_space<vmem>>, vector<1x1x8xf32>
    %5 = vector.shape_cast %4 : vector<1x1x8xf32> to vector<1x8xf32>
    %6 = vector.shape_cast %5 : vector<1x8xf32> to vector<1x8xf32>
    %7 = vector.broadcast %6 : vector<1x8xf32> to vector<8x8xf32>
    %8 = tpu.iota {dimensions = array<i32: 0>} : vector<8x8xi32>
    %9 = tpu.iota {dimensions = array<i32: 1>} : vector<8x8xi32>
    %10 = arith.cmpi sgt, %9, %8 : vector<8x8xi32>
    %cst = arith.constant -1.000000e+09 : f32
    %11 = vector.broadcast %cst : f32 to vector<8x8xf32>
    %12 = arith.select %10, %11, %7 : vector<8x8xi1>, vector<8x8xf32>
    %cst_8 = arith.constant 0.000000e+00 : f32
    %13 = vector.broadcast %cst_8 : f32 to vector<8x32xf32>
    %c0_9 = arith.constant 0 : index
    %c0_10 = arith.constant 0 : index
    %c0_11 = arith.constant 0 : index
    %14 = vector.load %arg3[%c0_9, %c0_10, %c0_11] : memref<4x32x8xf32, #tpu.memory_space<vmem>>, vector<1x32x8xf32>
    %15 = vector.shape_cast %14 : vector<1x32x8xf32> to vector<32x8xf32>
    %cst_12 = arith.constant dense<0.000000e+00> : vector<8x8xf32>
    %16 = tpu.matmul %1, %15, %cst_12 {dimension_numbers = #tpu.dot_dimension_numbers<[1], [0], [0], [1], [0, 0, 1, 1], [], []>} : vector<8x32xf32>, vector<32x8xf32>, vector<8x8xf32> -> vector<8x8xf32>
    %c0_13 = arith.constant 0 : index
    %c0_14 = arith.constant 0 : index
    %c0_15 = arith.constant 0 : index
    %17 = vector.load %arg4[%c0_13, %c0_14, %c0_15] : memref<4x1x8xf32, #tpu.memory_space<vmem>>, vector<1x1x8xf32>
    %18 = vector.shape_cast %17 : vector<1x1x8xf32> to vector<1x8xf32>
    %19 = vector.broadcast %18 : vector<1x8xf32> to vector<8x8xf32>
    %20 = arith.addf %16, %19 : vector<8x8xf32>
    %c0_16 = arith.constant 0 : index
    %c0_17 = arith.constant 0 : index
    %c0_18 = arith.constant 0 : index
    %21 = vector.load %arg5[%c0_16, %c0_17, %c0_18] : memref<4x32x8xf32, #tpu.memory_space<vmem>>, vector<1x32x8xf32>
    %22 = vector.shape_cast %21 : vector<1x32x8xf32> to vector<32x8xf32>
    %cst_19 = arith.constant dense<0.000000e+00> : vector<8x8xf32>
    %23 = tpu.matmul %3, %22, %cst_19 {dimension_numbers = #tpu.dot_dimension_numbers<[1], [0], [0], [1], [0, 0, 1, 1], [], []>} : vector<8x32xf32>, vector<32x8xf32>, vector<8x8xf32> -> vector<8x8xf32>
    %c0_20 = arith.constant 0 : index
    %c0_21 = arith.constant 0 : index
    %c0_22 = arith.constant 0 : index
    %24 = vector.load %arg6[%c0_20, %c0_21, %c0_22] : memref<4x1x8xf32, #tpu.memory_space<vmem>>, vector<1x1x8xf32>
    %25 = vector.shape_cast %24 : vector<1x1x8xf32> to vector<1x8xf32>
    %26 = vector.broadcast %25 : vector<1x8xf32> to vector<8x8xf32>
    %27 = arith.addf %23, %26 : vector<8x8xf32>
    %c0_23 = arith.constant 0 : index
    %c0_24 = arith.constant 0 : index
    %c0_25 = arith.constant 0 : index
    %28 = vector.load %arg7[%c0_23, %c0_24, %c0_25] : memref<4x32x8xf32, #tpu.memory_space<vmem>>, vector<1x32x8xf32>
    %29 = vector.shape_cast %28 : vector<1x32x8xf32> to vector<32x8xf32>
    %cst_26 = arith.constant dense<0.000000e+00> : vector<8x8xf32>
    %30 = tpu.matmul %3, %29, %cst_26 {dimension_numbers = #tpu.dot_dimension_numbers<[1], [0], [0], [1], [0, 0, 1, 1], [], []>} : vector<8x32xf32>, vector<32x8xf32>, vector<8x8xf32> -> vector<8x8xf32>
    %c0_27 = arith.constant 0 : index
    %c0_28 = arith.constant 0 : index
    %c0_29 = arith.constant 0 : index
    %31 = vector.load %arg8[%c0_27, %c0_28, %c0_29] : memref<4x1x8xf32, #tpu.memory_space<vmem>>, vector<1x1x8xf32>
    %32 = vector.shape_cast %31 : vector<1x1x8xf32> to vector<1x8xf32>
    %33 = vector.broadcast %32 : vector<1x8xf32> to vector<8x8xf32>
    %34 = arith.addf %30, %33 : vector<8x8xf32>
    %cst_30 = arith.constant dense<0.000000e+00> : vector<8x8xf32>
    %35 = tpu.matmul %20, %27, %cst_30 {dimension_numbers = #tpu.dot_dimension_numbers<[1], [1], [0], [0], [0, 0, 1, 0], [], []>} : vector<8x8xf32>, vector<8x8xf32>, vector<8x8xf32> -> vector<8x8xf32>
    %36 = arith.addf %35, %12 : vector<8x8xf32>
    %cst_31 = arith.constant dense<0xFF800000> : vector<8xf32>
    %37 = vector.multi_reduction <maximumf>, %36, %cst_31 [1] : vector<8x8xf32> to vector<8xf32>
    %38 = vector.shape_cast %37 : vector<8xf32> to vector<8x1xf32>
    %39 = vector.broadcast %38 : vector<8x1xf32> to vector<8x8xf32>
    %40 = arith.subf %36, %39 : vector<8x8xf32>
    %41 = math.exp %40 : vector<8x8xf32>
    %cst_32 = arith.constant dense<0.000000e+00> : vector<8xf32>
    %42 = vector.multi_reduction <add>, %41, %cst_32 [1] : vector<8x8xf32> to vector<8xf32>
    %43 = vector.shape_cast %42 : vector<8xf32> to vector<8x1xf32>
    %44 = tpu.reciprocal %43 {approx = true} : vector<8x1xf32> -> vector<8x1xf32>
    %45 = vector.broadcast %44 : vector<8x1xf32> to vector<8x8xf32>
    %46 = arith.mulf %41, %45 : vector<8x8xf32>
    %cst_33 = arith.constant dense<0.000000e+00> : vector<8x8xf32>
    %47 = tpu.matmul %46, %34, %cst_33 {dimension_numbers = #tpu.dot_dimension_numbers<[1], [0], [0], [1], [0, 0, 1, 1], [], []>} : vector<8x8xf32>, vector<8x8xf32>, vector<8x8xf32> -> vector<8x8xf32>
    %c0_34 = arith.constant 0 : index
    %c0_35 = arith.constant 0 : index
    %c0_36 = arith.constant 0 : index
    %48 = vector.load %arg9[%c0_34, %c0_35, %c0_36] : memref<4x8x32xf32, #tpu.memory_space<vmem>>, vector<1x8x32xf32>
    %49 = vector.shape_cast %48 : vector<1x8x32xf32> to vector<8x32xf32>
    %cst_37 = arith.constant dense<0.000000e+00> : vector<8x32xf32>
    %50 = tpu.matmul %47, %49, %cst_37 {dimension_numbers = #tpu.dot_dimension_numbers<[1], [0], [0], [1], [0, 0, 1, 1], [], []>} : vector<8x8xf32>, vector<8x32xf32>, vector<8x32xf32> -> vector<8x32xf32>
    %51 = arith.addf %13, %50 : vector<8x32xf32>
    %c1 = arith.constant 1 : index
    %c0_38 = arith.constant 0 : index
    %c0_39 = arith.constant 0 : index
    %52 = vector.load %arg3[%c1, %c0_38, %c0_39] : memref<4x32x8xf32, #tpu.memory_space<vmem>>, vector<1x32x8xf32>
    %53 = vector.shape_cast %52 : vector<1x32x8xf32> to vector<32x8xf32>
    %cst_40 = arith.constant dense<0.000000e+00> : vector<8x8xf32>
    %54 = tpu.matmul %1, %53, %cst_40 {dimension_numbers = #tpu.dot_dimension_numbers<[1], [0], [0], [1], [0, 0, 1, 1], [], []>} : vector<8x32xf32>, vector<32x8xf32>, vector<8x8xf32> -> vector<8x8xf32>
    %c1_41 = arith.constant 1 : index
    %c0_42 = arith.constant 0 : index
    %c0_43 = arith.constant 0 : index
    %55 = vector.load %arg4[%c1_41, %c0_42, %c0_43] : memref<4x1x8xf32, #tpu.memory_space<vmem>>, vector<1x1x8xf32>
    %56 = vector.shape_cast %55 : vector<1x1x8xf32> to vector<1x8xf32>
    %57 = vector.broadcast %56 : vector<1x8xf32> to vector<8x8xf32>
    %58 = arith.addf %54, %57 : vector<8x8xf32>
    %c1_44 = arith.constant 1 : index
    %c0_45 = arith.constant 0 : index
    %c0_46 = arith.constant 0 : index
    %59 = vector.load %arg5[%c1_44, %c0_45, %c0_46] : memref<4x32x8xf32, #tpu.memory_space<vmem>>, vector<1x32x8xf32>
    %60 = vector.shape_cast %59 : vector<1x32x8xf32> to vector<32x8xf32>
    %cst_47 = arith.constant dense<0.000000e+00> : vector<8x8xf32>
    %61 = tpu.matmul %3, %60, %cst_47 {dimension_numbers = #tpu.dot_dimension_numbers<[1], [0], [0], [1], [0, 0, 1, 1], [], []>} : vector<8x32xf32>, vector<32x8xf32>, vector<8x8xf32> -> vector<8x8xf32>
    %c1_48 = arith.constant 1 : index
    %c0_49 = arith.constant 0 : index
    %c0_50 = arith.constant 0 : index
    %62 = vector.load %arg6[%c1_48, %c0_49, %c0_50] : memref<4x1x8xf32, #tpu.memory_space<vmem>>, vector<1x1x8xf32>
    %63 = vector.shape_cast %62 : vector<1x1x8xf32> to vector<1x8xf32>
    %64 = vector.broadcast %63 : vector<1x8xf32> to vector<8x8xf32>
    %65 = arith.addf %61, %64 : vector<8x8xf32>
    %c1_51 = arith.constant 1 : index
    %c0_52 = arith.constant 0 : index
    %c0_53 = arith.constant 0 : index
    %66 = vector.load %arg7[%c1_51, %c0_52, %c0_53] : memref<4x32x8xf32, #tpu.memory_space<vmem>>, vector<1x32x8xf32>
    %67 = vector.shape_cast %66 : vector<1x32x8xf32> to vector<32x8xf32>
    %cst_54 = arith.constant dense<0.000000e+00> : vector<8x8xf32>
    %68 = tpu.matmul %3, %67, %cst_54 {dimension_numbers = #tpu.dot_dimension_numbers<[1], [0], [0], [1], [0, 0, 1, 1], [], []>} : vector<8x32xf32>, vector<32x8xf32>, vector<8x8xf32> -> vector<8x8xf32>
    %c1_55 = arith.constant 1 : index
    %c0_56 = arith.constant 0 : index
    %c0_57 = arith.constant 0 : index
    %69 = vector.load %arg8[%c1_55, %c0_56, %c0_57] : memref<4x1x8xf32, #tpu.memory_space<vmem>>, vector<1x1x8xf32>
    %70 = vector.shape_cast %69 : vector<1x1x8xf32> to vector<1x8xf32>
    %71 = vector.broadcast %70 : vector<1x8xf32> to vector<8x8xf32>
    %72 = arith.addf %68, %71 : vector<8x8xf32>
    %cst_58 = arith.constant dense<0.000000e+00> : vector<8x8xf32>
    %73 = tpu.matmul %58, %65, %cst_58 {dimension_numbers = #tpu.dot_dimension_numbers<[1], [1], [0], [0], [0, 0, 1, 0], [], []>} : vector<8x8xf32>, vector<8x8xf32>, vector<8x8xf32> -> vector<8x8xf32>
    %74 = arith.addf %73, %12 : vector<8x8xf32>
    %cst_59 = arith.constant dense<0xFF800000> : vector<8xf32>
    %75 = vector.multi_reduction <maximumf>, %74, %cst_59 [1] : vector<8x8xf32> to vector<8xf32>
    %76 = vector.shape_cast %75 : vector<8xf32> to vector<8x1xf32>
    %77 = vector.broadcast %76 : vector<8x1xf32> to vector<8x8xf32>
    %78 = arith.subf %74, %77 : vector<8x8xf32>
    %79 = math.exp %78 : vector<8x8xf32>
    %cst_60 = arith.constant dense<0.000000e+00> : vector<8xf32>
    %80 = vector.multi_reduction <add>, %79, %cst_60 [1] : vector<8x8xf32> to vector<8xf32>
    %81 = vector.shape_cast %80 : vector<8xf32> to vector<8x1xf32>
    %82 = tpu.reciprocal %81 {approx = true} : vector<8x1xf32> -> vector<8x1xf32>
    %83 = vector.broadcast %82 : vector<8x1xf32> to vector<8x8xf32>
    %84 = arith.mulf %79, %83 : vector<8x8xf32>
    %cst_61 = arith.constant dense<0.000000e+00> : vector<8x8xf32>
    %85 = tpu.matmul %84, %72, %cst_61 {dimension_numbers = #tpu.dot_dimension_numbers<[1], [0], [0], [1], [0, 0, 1, 1], [], []>} : vector<8x8xf32>, vector<8x8xf32>, vector<8x8xf32> -> vector<8x8xf32>
    %c1_62 = arith.constant 1 : index
    %c0_63 = arith.constant 0 : index
    %c0_64 = arith.constant 0 : index
    %86 = vector.load %arg9[%c1_62, %c0_63, %c0_64] : memref<4x8x32xf32, #tpu.memory_space<vmem>>, vector<1x8x32xf32>
    %87 = vector.shape_cast %86 : vector<1x8x32xf32> to vector<8x32xf32>
    %cst_65 = arith.constant dense<0.000000e+00> : vector<8x32xf32>
    %88 = tpu.matmul %85, %87, %cst_65 {dimension_numbers = #tpu.dot_dimension_numbers<[1], [0], [0], [1], [0, 0, 1, 1], [], []>} : vector<8x8xf32>, vector<8x32xf32>, vector<8x32xf32> -> vector<8x32xf32>
    %89 = arith.addf %51, %88 : vector<8x32xf32>
    %c2 = arith.constant 2 : index
    %c0_66 = arith.constant 0 : index
    %c0_67 = arith.constant 0 : index
    %90 = vector.load %arg3[%c2, %c0_66, %c0_67] : memref<4x32x8xf32, #tpu.memory_space<vmem>>, vector<1x32x8xf32>
    %91 = vector.shape_cast %90 : vector<1x32x8xf32> to vector<32x8xf32>
    %cst_68 = arith.constant dense<0.000000e+00> : vector<8x8xf32>
    %92 = tpu.matmul %1, %91, %cst_68 {dimension_numbers = #tpu.dot_dimension_numbers<[1], [0], [0], [1], [0, 0, 1, 1], [], []>} : vector<8x32xf32>, vector<32x8xf32>, vector<8x8xf32> -> vector<8x8xf32>
    %c2_69 = arith.constant 2 : index
    %c0_70 = arith.constant 0 : index
    %c0_71 = arith.constant 0 : index
    %93 = vector.load %arg4[%c2_69, %c0_70, %c0_71] : memref<4x1x8xf32, #tpu.memory_space<vmem>>, vector<1x1x8xf32>
    %94 = vector.shape_cast %93 : vector<1x1x8xf32> to vector<1x8xf32>
    %95 = vector.broadcast %94 : vector<1x8xf32> to vector<8x8xf32>
    %96 = arith.addf %92, %95 : vector<8x8xf32>
    %c2_72 = arith.constant 2 : index
    %c0_73 = arith.constant 0 : index
    %c0_74 = arith.constant 0 : index
    %97 = vector.load %arg5[%c2_72, %c0_73, %c0_74] : memref<4x32x8xf32, #tpu.memory_space<vmem>>, vector<1x32x8xf32>
    %98 = vector.shape_cast %97 : vector<1x32x8xf32> to vector<32x8xf32>
    %cst_75 = arith.constant dense<0.000000e+00> : vector<8x8xf32>
    %99 = tpu.matmul %3, %98, %cst_75 {dimension_numbers = #tpu.dot_dimension_numbers<[1], [0], [0], [1], [0, 0, 1, 1], [], []>} : vector<8x32xf32>, vector<32x8xf32>, vector<8x8xf32> -> vector<8x8xf32>
    %c2_76 = arith.constant 2 : index
    %c0_77 = arith.constant 0 : index
    %c0_78 = arith.constant 0 : index
    %100 = vector.load %arg6[%c2_76, %c0_77, %c0_78] : memref<4x1x8xf32, #tpu.memory_space<vmem>>, vector<1x1x8xf32>
    %101 = vector.shape_cast %100 : vector<1x1x8xf32> to vector<1x8xf32>
    %102 = vector.broadcast %101 : vector<1x8xf32> to vector<8x8xf32>
    %103 = arith.addf %99, %102 : vector<8x8xf32>
    %c2_79 = arith.constant 2 : index
    %c0_80 = arith.constant 0 : index
    %c0_81 = arith.constant 0 : index
    %104 = vector.load %arg7[%c2_79, %c0_80, %c0_81] : memref<4x32x8xf32, #tpu.memory_space<vmem>>, vector<1x32x8xf32>
    %105 = vector.shape_cast %104 : vector<1x32x8xf32> to vector<32x8xf32>
    %cst_82 = arith.constant dense<0.000000e+00> : vector<8x8xf32>
    %106 = tpu.matmul %3, %105, %cst_82 {dimension_numbers = #tpu.dot_dimension_numbers<[1], [0], [0], [1], [0, 0, 1, 1], [], []>} : vector<8x32xf32>, vector<32x8xf32>, vector<8x8xf32> -> vector<8x8xf32>
    %c2_83 = arith.constant 2 : index
    %c0_84 = arith.constant 0 : index
    %c0_85 = arith.constant 0 : index
    %107 = vector.load %arg8[%c2_83, %c0_84, %c0_85] : memref<4x1x8xf32, #tpu.memory_space<vmem>>, vector<1x1x8xf32>
    %108 = vector.shape_cast %107 : vector<1x1x8xf32> to vector<1x8xf32>
    %109 = vector.broadcast %108 : vector<1x8xf32> to vector<8x8xf32>
    %110 = arith.addf %106, %109 : vector<8x8xf32>
    %cst_86 = arith.constant dense<0.000000e+00> : vector<8x8xf32>
    %111 = tpu.matmul %96, %103, %cst_86 {dimension_numbers = #tpu.dot_dimension_numbers<[1], [1], [0], [0], [0, 0, 1, 0], [], []>} : vector<8x8xf32>, vector<8x8xf32>, vector<8x8xf32> -> vector<8x8xf32>
    %112 = arith.addf %111, %12 : vector<8x8xf32>
    %cst_87 = arith.constant dense<0xFF800000> : vector<8xf32>
    %113 = vector.multi_reduction <maximumf>, %112, %cst_87 [1] : vector<8x8xf32> to vector<8xf32>
    %114 = vector.shape_cast %113 : vector<8xf32> to vector<8x1xf32>
    %115 = vector.broadcast %114 : vector<8x1xf32> to vector<8x8xf32>
    %116 = arith.subf %112, %115 : vector<8x8xf32>
    %117 = math.exp %116 : vector<8x8xf32>
    %cst_88 = arith.constant dense<0.000000e+00> : vector<8xf32>
    %118 = vector.multi_reduction <add>, %117, %cst_88 [1] : vector<8x8xf32> to vector<8xf32>
    %119 = vector.shape_cast %118 : vector<8xf32> to vector<8x1xf32>
    %120 = tpu.reciprocal %119 {approx = true} : vector<8x1xf32> -> vector<8x1xf32>
    %121 = vector.broadcast %120 : vector<8x1xf32> to vector<8x8xf32>
    %122 = arith.mulf %117, %121 : vector<8x8xf32>
    %cst_89 = arith.constant dense<0.000000e+00> : vector<8x8xf32>
    %123 = tpu.matmul %122, %110, %cst_89 {dimension_numbers = #tpu.dot_dimension_numbers<[1], [0], [0], [1], [0, 0, 1, 1], [], []>} : vector<8x8xf32>, vector<8x8xf32>, vector<8x8xf32> -> vector<8x8xf32>
    %c2_90 = arith.constant 2 : index
    %c0_91 = arith.constant 0 : index
    %c0_92 = arith.constant 0 : index
    %124 = vector.load %arg9[%c2_90, %c0_91, %c0_92] : memref<4x8x32xf32, #tpu.memory_space<vmem>>, vector<1x8x32xf32>
    %125 = vector.shape_cast %124 : vector<1x8x32xf32> to vector<8x32xf32>
    %cst_93 = arith.constant dense<0.000000e+00> : vector<8x32xf32>
    %126 = tpu.matmul %123, %125, %cst_93 {dimension_numbers = #tpu.dot_dimension_numbers<[1], [0], [0], [1], [0, 0, 1, 1], [], []>} : vector<8x8xf32>, vector<8x32xf32>, vector<8x32xf32> -> vector<8x32xf32>
    %127 = arith.addf %89, %126 : vector<8x32xf32>
    %c3 = arith.constant 3 : index
    %c0_94 = arith.constant 0 : index
    %c0_95 = arith.constant 0 : index
    %128 = vector.load %arg3[%c3, %c0_94, %c0_95] : memref<4x32x8xf32, #tpu.memory_space<vmem>>, vector<1x32x8xf32>
    %129 = vector.shape_cast %128 : vector<1x32x8xf32> to vector<32x8xf32>
    %cst_96 = arith.constant dense<0.000000e+00> : vector<8x8xf32>
    %130 = tpu.matmul %1, %129, %cst_96 {dimension_numbers = #tpu.dot_dimension_numbers<[1], [0], [0], [1], [0, 0, 1, 1], [], []>} : vector<8x32xf32>, vector<32x8xf32>, vector<8x8xf32> -> vector<8x8xf32>
    %c3_97 = arith.constant 3 : index
    %c0_98 = arith.constant 0 : index
    %c0_99 = arith.constant 0 : index
    %131 = vector.load %arg4[%c3_97, %c0_98, %c0_99] : memref<4x1x8xf32, #tpu.memory_space<vmem>>, vector<1x1x8xf32>
    %132 = vector.shape_cast %131 : vector<1x1x8xf32> to vector<1x8xf32>
    %133 = vector.broadcast %132 : vector<1x8xf32> to vector<8x8xf32>
    %134 = arith.addf %130, %133 : vector<8x8xf32>
    %c3_100 = arith.constant 3 : index
    %c0_101 = arith.constant 0 : index
    %c0_102 = arith.constant 0 : index
    %135 = vector.load %arg5[%c3_100, %c0_101, %c0_102] : memref<4x32x8xf32, #tpu.memory_space<vmem>>, vector<1x32x8xf32>
    %136 = vector.shape_cast %135 : vector<1x32x8xf32> to vector<32x8xf32>
    %cst_103 = arith.constant dense<0.000000e+00> : vector<8x8xf32>
    %137 = tpu.matmul %3, %136, %cst_103 {dimension_numbers = #tpu.dot_dimension_numbers<[1], [0], [0], [1], [0, 0, 1, 1], [], []>} : vector<8x32xf32>, vector<32x8xf32>, vector<8x8xf32> -> vector<8x8xf32>
    %c3_104 = arith.constant 3 : index
    %c0_105 = arith.constant 0 : index
    %c0_106 = arith.constant 0 : index
    %138 = vector.load %arg6[%c3_104, %c0_105, %c0_106] : memref<4x1x8xf32, #tpu.memory_space<vmem>>, vector<1x1x8xf32>
    %139 = vector.shape_cast %138 : vector<1x1x8xf32> to vector<1x8xf32>
    %140 = vector.broadcast %139 : vector<1x8xf32> to vector<8x8xf32>
    %141 = arith.addf %137, %140 : vector<8x8xf32>
    %c3_107 = arith.constant 3 : index
    %c0_108 = arith.constant 0 : index
    %c0_109 = arith.constant 0 : index
    %142 = vector.load %arg7[%c3_107, %c0_108, %c0_109] : memref<4x32x8xf32, #tpu.memory_space<vmem>>, vector<1x32x8xf32>
    %143 = vector.shape_cast %142 : vector<1x32x8xf32> to vector<32x8xf32>
    %cst_110 = arith.constant dense<0.000000e+00> : vector<8x8xf32>
    %144 = tpu.matmul %3, %143, %cst_110 {dimension_numbers = #tpu.dot_dimension_numbers<[1], [0], [0], [1], [0, 0, 1, 1], [], []>} : vector<8x32xf32>, vector<32x8xf32>, vector<8x8xf32> -> vector<8x8xf32>
    %c3_111 = arith.constant 3 : index
    %c0_112 = arith.constant 0 : index
    %c0_113 = arith.constant 0 : index
    %145 = vector.load %arg8[%c3_111, %c0_112, %c0_113] : memref<4x1x8xf32, #tpu.memory_space<vmem>>, vector<1x1x8xf32>
    %146 = vector.shape_cast %145 : vector<1x1x8xf32> to vector<1x8xf32>
    %147 = vector.broadcast %146 : vector<1x8xf32> to vector<8x8xf32>
    %148 = arith.addf %144, %147 : vector<8x8xf32>
    %cst_114 = arith.constant dense<0.000000e+00> : vector<8x8xf32>
    %149 = tpu.matmul %134, %141, %cst_114 {dimension_numbers = #tpu.dot_dimension_numbers<[1], [1], [0], [0], [0, 0, 1, 0], [], []>} : vector<8x8xf32>, vector<8x8xf32>, vector<8x8xf32> -> vector<8x8xf32>
    %150 = arith.addf %149, %12 : vector<8x8xf32>
    %cst_115 = arith.constant dense<0xFF800000> : vector<8xf32>
    %151 = vector.multi_reduction <maximumf>, %150, %cst_115 [1] : vector<8x8xf32> to vector<8xf32>
    %152 = vector.shape_cast %151 : vector<8xf32> to vector<8x1xf32>
    %153 = vector.broadcast %152 : vector<8x1xf32> to vector<8x8xf32>
    %154 = arith.subf %150, %153 : vector<8x8xf32>
    %155 = math.exp %154 : vector<8x8xf32>
    %cst_116 = arith.constant dense<0.000000e+00> : vector<8xf32>
    %156 = vector.multi_reduction <add>, %155, %cst_116 [1] : vector<8x8xf32> to vector<8xf32>
    %157 = vector.shape_cast %156 : vector<8xf32> to vector<8x1xf32>
    %158 = tpu.reciprocal %157 {approx = true} : vector<8x1xf32> -> vector<8x1xf32>
    %159 = vector.broadcast %158 : vector<8x1xf32> to vector<8x8xf32>
    %160 = arith.mulf %155, %159 : vector<8x8xf32>
    %cst_117 = arith.constant dense<0.000000e+00> : vector<8x8xf32>
    %161 = tpu.matmul %160, %148, %cst_117 {dimension_numbers = #tpu.dot_dimension_numbers<[1], [0], [0], [1], [0, 0, 1, 1], [], []>} : vector<8x8xf32>, vector<8x8xf32>, vector<8x8xf32> -> vector<8x8xf32>
    %c3_118 = arith.constant 3 : index
    %c0_119 = arith.constant 0 : index
    %c0_120 = arith.constant 0 : index
    %162 = vector.load %arg9[%c3_118, %c0_119, %c0_120] : memref<4x8x32xf32, #tpu.memory_space<vmem>>, vector<1x8x32xf32>
    %163 = vector.shape_cast %162 : vector<1x8x32xf32> to vector<8x32xf32>
    %cst_121 = arith.constant dense<0.000000e+00> : vector<8x32xf32>
    %164 = tpu.matmul %161, %163, %cst_121 {dimension_numbers = #tpu.dot_dimension_numbers<[1], [0], [0], [1], [0, 0, 1, 1], [], []>} : vector<8x8xf32>, vector<8x32xf32>, vector<8x32xf32> -> vector<8x32xf32>
    %165 = arith.addf %127, %164 : vector<8x32xf32>
    %166 = arith.addf %1, %165 : vector<8x32xf32>
    %c0_122 = arith.constant 0 : index
    %c0_123 = arith.constant 0 : index
    %167 = vector.load %arg10[%c0_122, %c0_123] : memref<1x32xf32, #tpu.memory_space<vmem>>, vector<1x32xf32>
    %168 = vector.broadcast %167 : vector<1x32xf32> to vector<8x32xf32>
    %169 = arith.addf %166, %168 : vector<8x32xf32>
    %cst_124 = arith.constant dense<0.000000e+00> : vector<8xf32>
    %170 = vector.multi_reduction <add>, %169, %cst_124 [1] : vector<8x32xf32> to vector<8xf32>
    %171 = vector.shape_cast %170 : vector<8xf32> to vector<8x1xf32>
    %cst_125 = arith.constant 3.200000e+01 : f32
    %172 = vector.broadcast %cst_125 : f32 to vector<8x1xf32>
    %173 = arith.divf %171, %172 : vector<8x1xf32>
    %174 = vector.broadcast %173 : vector<8x1xf32> to vector<8x32xf32>
    %175 = arith.subf %169, %174 : vector<8x32xf32>
    %176 = arith.mulf %175, %175 : vector<8x32xf32>
    %cst_126 = arith.constant dense<0.000000e+00> : vector<8xf32>
    %177 = vector.multi_reduction <add>, %176, %cst_126 [1] : vector<8x32xf32> to vector<8xf32>
    %178 = vector.shape_cast %177 : vector<8xf32> to vector<8x1xf32>
    %cst_127 = arith.constant 3.200000e+01 : f32
    %179 = vector.broadcast %cst_127 : f32 to vector<8x1xf32>
    %180 = arith.divf %178, %179 : vector<8x1xf32>
    %181 = vector.broadcast %173 : vector<8x1xf32> to vector<8x32xf32>
    %182 = arith.subf %169, %181 : vector<8x32xf32>
    %cst_128 = arith.constant 9.99999974E-6 : f32
    %183 = vector.broadcast %cst_128 : f32 to vector<8x1xf32>
    %184 = arith.addf %180, %183 : vector<8x1xf32>
    %185 = math.rsqrt %184 : vector<8x1xf32>
    %186 = vector.broadcast %185 : vector<8x1xf32> to vector<8x32xf32>
    %187 = arith.mulf %182, %186 : vector<8x32xf32>
    %c0_129 = arith.constant 0 : index
    %c0_130 = arith.constant 0 : index
    %188 = vector.load %arg11[%c0_129, %c0_130] : memref<1x32xf32, #tpu.memory_space<vmem>>, vector<1x32xf32>
    %189 = vector.broadcast %188 : vector<1x32xf32> to vector<8x32xf32>
    %190 = arith.mulf %187, %189 : vector<8x32xf32>
    %c0_131 = arith.constant 0 : index
    %c0_132 = arith.constant 0 : index
    %191 = vector.load %arg12[%c0_131, %c0_132] : memref<1x32xf32, #tpu.memory_space<vmem>>, vector<1x32xf32>
    %192 = vector.broadcast %191 : vector<1x32xf32> to vector<8x32xf32>
    %193 = arith.addf %190, %192 : vector<8x32xf32>
    %c0_133 = arith.constant 0 : index
    %c0_134 = arith.constant 0 : index
    %c0_135 = arith.constant 0 : index
    %194 = vector.load %arg14[%c0_133, %c0_134, %c0_135] : memref<1x8x32xf32, #tpu.memory_space<vmem>>, vector<1x8x32xf32>
    %195 = vector.shape_cast %194 : vector<1x8x32xf32> to vector<8x32xf32>
    %196 = vector.shape_cast %193 : vector<8x32xf32> to vector<1x8x32xf32>
    tpu.vector_store %arg14[%c0_133, %c0_134, %c0_135], %196 {strides = array<i32>} : memref<1x8x32xf32, #tpu.memory_space<vmem>>, vector<1x8x32xf32>,
    return
  }
  func.func @transform_0(%arg0: i32) -> (i32, i32, i32) {
    %c0_i32 = arith.constant 0 : i32
    %c0_i32_0 = arith.constant 0 : i32
    %c0_i32_1 = arith.constant 0 : i32
    return %arg0, %c0_i32, %c0_i32_0 : i32, i32, i32
  }
  func.func @transform_1(%arg0: i32) -> (i32, i32, i32) {
    %c0_i32 = arith.constant 0 : i32
    %c0_i32_0 = arith.constant 0 : i32
    %c0_i32_1 = arith.constant 0 : i32
    return %arg0, %c0_i32, %c0_i32_0 : i32, i32, i32
  }
  func.func @transform_2(%arg0: i32) -> (i32, i32, i32) {
    %c0_i32 = arith.constant 0 : i32
    %c0_i32_0 = arith.constant 0 : i32
    %c0_i32_1 = arith.constant 0 : i32
    %c0_i32_2 = arith.constant 0 : i32
    return %c0_i32, %c0_i32_0, %c0_i32_1 : i32, i32, i32
  }
  func.func @transform_3(%arg0: i32) -> (i32, i32, i32) {
    %c0_i32 = arith.constant 0 : i32
    %c0_i32_0 = arith.constant 0 : i32
    %c0_i32_1 = arith.constant 0 : i32
    %c0_i32_2 = arith.constant 0 : i32
    return %c0_i32, %c0_i32_0, %c0_i32_1 : i32, i32, i32
  }
  func.func @transform_4(%arg0: i32) -> (i32, i32, i32) {
    %c0_i32 = arith.constant 0 : i32
    %c0_i32_0 = arith.constant 0 : i32
    %c0_i32_1 = arith.constant 0 : i32
    %c0_i32_2 = arith.constant 0 : i32
    return %c0_i32, %c0_i32_0, %c0_i32_1 : i32, i32, i32
  }
  func.func @transform_5(%arg0: i32) -> (i32, i32, i32) {
    %c0_i32 = arith.constant 0 : i32
    %c0_i32_0 = arith.constant 0 : i32
    %c0_i32_1 = arith.constant 0 : i32
    %c0_i32_2 = arith.constant 0 : i32
    return %c0_i32, %c0_i32_0, %c0_i32_1 : i32, i32, i32
  }
  func.func @transform_6(%arg0: i32) -> (i32, i32, i32) {
    %c0_i32 = arith.constant 0 : i32
    %c0_i32_0 = arith.constant 0 : i32
    %c0_i32_1 = arith.constant 0 : i32
    %c0_i32_2 = arith.constant 0 : i32
    return %c0_i32, %c0_i32_0, %c0_i32_1 : i32, i32, i32
  }
  func.func @transform_7(%arg0: i32) -> (i32, i32, i32) {
    %c0_i32 = arith.constant 0 : i32
    %c0_i32_0 = arith.constant 0 : i32
    %c0_i32_1 = arith.constant 0 : i32
    %c0_i32_2 = arith.constant 0 : i32
    return %c0_i32, %c0_i32_0, %c0_i32_1 : i32, i32, i32
  }
  func.func @transform_8(%arg0: i32) -> (i32, i32, i32) {
    %c0_i32 = arith.constant 0 : i32
    %c0_i32_0 = arith.constant 0 : i32
    %c0_i32_1 = arith.constant 0 : i32
    %c0_i32_2 = arith.constant 0 : i32
    return %c0_i32, %c0_i32_0, %c0_i32_1 : i32, i32, i32
  }
  func.func @transform_9(%arg0: i32) -> (i32, i32) {
    %c0_i32 = arith.constant 0 : i32
    %c0_i32_0 = arith.constant 0 : i32
    %c0_i32_1 = arith.constant 0 : i32
    return %c0_i32, %c0_i32_0 : i32, i32
  }
  func.func @transform_10(%arg0: i32) -> (i32, i32) {
    %c0_i32 = arith.constant 0 : i32
    %c0_i32_0 = arith.constant 0 : i32
    %c0_i32_1 = arith.constant 0 : i32
    return %c0_i32, %c0_i32_0 : i32, i32
  }
  func.func @transform_11(%arg0: i32) -> (i32, i32) {
    %c0_i32 = arith.constant 0 : i32
    %c0_i32_0 = arith.constant 0 : i32
    %c0_i32_1 = arith.constant 0 : i32
    return %c0_i32, %c0_i32_0 : i32, i32
  }
  func.func @transform_12(%arg0: i32) -> (i32, i32, i32) {
    %c0_i32 = arith.constant 0 : i32
    %c0_i32_0 = arith.constant 0 : i32
    %c0_i32_1 = arith.constant 0 : i32
    return %arg0, %c0_i32, %c0_i32_0 : i32, i32, i32
  }
  func.func @transform_13(%arg0: i32) -> (i32, i32, i32) {
    %c0_i32 = arith.constant 0 : i32
    %c0_i32_0 = arith.constant 0 : i32
    %c0_i32_1 = arith.constant 0 : i32
    return %arg0, %c0_i32, %c0_i32_0 : i32, i32, i32
  }
}

module attributes {stable_mosaic.version = 11 : i64} {
  func.func @_inproj_pe_kernel(%arg0: i32, %arg1: memref<8x48xf32, #tpu.memory_space<vmem>>, %arg2: memref<48x32xf32, #tpu.memory_space<vmem>>, %arg3: memref<1x32xf32, #tpu.memory_space<vmem>>, %arg4: memref<8x32xf32, #tpu.memory_space<vmem>>, %arg5: memref<8x32xf32, #tpu.memory_space<vmem>>) attributes {dimension_semantics = [#tpu.dimension_semantics<parallel>], iteration_bounds = array<i64: 2>, scalar_prefetch = 0 : i64, scratch_operands = 0 : i64, tpu.core_type = #tpu.core_type<tc>, window_params = [{transform_indices = @transform_0, window_bounds = array<i64: 8, 48>}, {pipeline_mode = #tpu.pipeline_mode<synchronous>, transform_indices = @transform_1, window_bounds = array<i64: 48, 32>}, {pipeline_mode = #tpu.pipeline_mode<synchronous>, transform_indices = @transform_2, window_bounds = array<i64: 1, 32>}, {pipeline_mode = #tpu.pipeline_mode<synchronous>, transform_indices = @transform_3, window_bounds = array<i64: 8, 32>}, {transform_indices = @transform_4, window_bounds = array<i64: 8, 32>}]} {
    %c0 = arith.constant 0 : index
    %c0_0 = arith.constant 0 : index
    %0 = vector.load %arg1[%c0, %c0_0] : memref<8x48xf32, #tpu.memory_space<vmem>>, vector<8x48xf32>
    %c0_1 = arith.constant 0 : index
    %c0_2 = arith.constant 0 : index
    %1 = vector.load %arg2[%c0_1, %c0_2] : memref<48x32xf32, #tpu.memory_space<vmem>>, vector<48x32xf32>
    %cst = arith.constant dense<0.000000e+00> : vector<8x32xf32>
    %2 = tpu.matmul %0, %1, %cst {dimension_numbers = #tpu.dot_dimension_numbers<[1], [0], [0], [1], [0, 0, 1, 1], [], []>} : vector<8x48xf32>, vector<48x32xf32>, vector<8x32xf32> -> vector<8x32xf32>
    %c0_3 = arith.constant 0 : index
    %c0_4 = arith.constant 0 : index
    %3 = vector.load %arg3[%c0_3, %c0_4] : memref<1x32xf32, #tpu.memory_space<vmem>>, vector<1x32xf32>
    %4 = vector.broadcast %3 : vector<1x32xf32> to vector<8x32xf32>
    %5 = arith.addf %2, %4 : vector<8x32xf32>
    %c0_5 = arith.constant 0 : index
    %c0_6 = arith.constant 0 : index
    %6 = vector.load %arg4[%c0_5, %c0_6] : memref<8x32xf32, #tpu.memory_space<vmem>>, vector<8x32xf32>
    %7 = arith.addf %5, %6 : vector<8x32xf32>
    %c0_7 = arith.constant 0 : index
    %c0_8 = arith.constant 0 : index
    %8 = vector.load %arg5[%c0_7, %c0_8] : memref<8x32xf32, #tpu.memory_space<vmem>>, vector<8x32xf32>
    tpu.vector_store %arg5[%c0_7, %c0_8], %7 {strides = array<i32>} : memref<8x32xf32, #tpu.memory_space<vmem>>, vector<8x32xf32>,
    return
  }
  func.func @transform_0(%arg0: i32) -> (i32, i32) {
    %c0_i32 = arith.constant 0 : i32
    %c0_i32_0 = arith.constant 0 : i32
    return %arg0, %c0_i32 : i32, i32
  }
  func.func @transform_1(%arg0: i32) -> (i32, i32) {
    %c0_i32 = arith.constant 0 : i32
    %c0_i32_0 = arith.constant 0 : i32
    %c0_i32_1 = arith.constant 0 : i32
    return %c0_i32, %c0_i32_0 : i32, i32
  }
  func.func @transform_2(%arg0: i32) -> (i32, i32) {
    %c0_i32 = arith.constant 0 : i32
    %c0_i32_0 = arith.constant 0 : i32
    %c0_i32_1 = arith.constant 0 : i32
    return %c0_i32, %c0_i32_0 : i32, i32
  }
  func.func @transform_3(%arg0: i32) -> (i32, i32) {
    %c0_i32 = arith.constant 0 : i32
    %c0_i32_0 = arith.constant 0 : i32
    %c0_i32_1 = arith.constant 0 : i32
    return %c0_i32, %c0_i32_0 : i32, i32
  }
  func.func @transform_4(%arg0: i32) -> (i32, i32) {
    %c0_i32 = arith.constant 0 : i32
    %c0_i32_0 = arith.constant 0 : i32
    return %arg0, %c0_i32 : i32, i32
  }
}

module attributes {stable_mosaic.version = 11 : i64} {
  func.func @_attn_block_kernel(%arg0: i32, %arg1: memref<1x8x32xf32, #tpu.memory_space<vmem>>, %arg2: memref<1x8x32xf32, #tpu.memory_space<vmem>>, %arg3: memref<4x32x8xf32, #tpu.memory_space<vmem>>, %arg4: memref<4x1x8xf32, #tpu.memory_space<vmem>>, %arg5: memref<4x32x8xf32, #tpu.memory_space<vmem>>, %arg6: memref<4x1x8xf32, #tpu.memory_space<vmem>>, %arg7: memref<4x32x8xf32, #tpu.memory_space<vmem>>, %arg8: memref<4x1x8xf32, #tpu.memory_space<vmem>>, %arg9: memref<4x8x32xf32, #tpu.memory_space<vmem>>, %arg10: memref<1x32xf32, #tpu.memory_space<vmem>>, %arg11: memref<1x32xf32, #tpu.memory_space<vmem>>, %arg12: memref<1x32xf32, #tpu.memory_space<vmem>>, %arg13: memref<1x1x8xf32, #tpu.memory_space<vmem>>, %arg14: memref<1x8x32xf32, #tpu.memory_space<vmem>>) attributes {dimension_semantics = [#tpu.dimension_semantics<parallel>], iteration_bounds = array<i64: 2>, scalar_prefetch = 0 : i64, scratch_operands = 0 : i64, tpu.core_type = #tpu.core_type<tc>, window_params = [{transform_indices = @transform_0, window_bounds = array<i64: 1, 8, 32>}, {transform_indices = @transform_1, window_bounds = array<i64: 1, 8, 32>}, {pipeline_mode = #tpu.pipeline_mode<synchronous>, transform_indices = @transform_2, window_bounds = array<i64: 4, 32, 8>}, {pipeline_mode = #tpu.pipeline_mode<synchronous>, transform_indices = @transform_3, window_bounds = array<i64: 4, 1, 8>}, {pipeline_mode = #tpu.pipeline_mode<synchronous>, transform_indices = @transform_4, window_bounds = array<i64: 4, 32, 8>}, {pipeline_mode = #tpu.pipeline_mode<synchronous>, transform_indices = @transform_5, window_bounds = array<i64: 4, 1, 8>}, {pipeline_mode = #tpu.pipeline_mode<synchronous>, transform_indices = @transform_6, window_bounds = array<i64: 4, 32, 8>}, {pipeline_mode = #tpu.pipeline_mode<synchronous>, transform_indices = @transform_7, window_bounds = array<i64: 4, 1, 8>}, {pipeline_mode = #tpu.pipeline_mode<synchronous>, transform_indices = @transform_8, window_bounds = array<i64: 4, 8, 32>}, {pipeline_mode = #tpu.pipeline_mode<synchronous>, transform_indices = @transform_9, window_bounds = array<i64: 1, 32>}, {pipeline_mode = #tpu.pipeline_mode<synchronous>, transform_indices = @transform_10, window_bounds = array<i64: 1, 32>}, {pipeline_mode = #tpu.pipeline_mode<synchronous>, transform_indices = @transform_11, window_bounds = array<i64: 1, 32>}, {transform_indices = @transform_12, window_bounds = array<i64: 1, 1, 8>}, {transform_indices = @transform_13, window_bounds = array<i64: 1, 8, 32>}]} {
    %c0 = arith.constant 0 : index
    %c0_0 = arith.constant 0 : index
    %c0_1 = arith.constant 0 : index
    %0 = vector.load %arg1[%c0, %c0_0, %c0_1] : memref<1x8x32xf32, #tpu.memory_space<vmem>>, vector<1x8x32xf32>
    %1 = vector.shape_cast %0 : vector<1x8x32xf32> to vector<8x32xf32>
    %c0_2 = arith.constant 0 : index
    %c0_3 = arith.constant 0 : index
    %c0_4 = arith.constant 0 : index
    %2 = vector.load %arg2[%c0_2, %c0_3, %c0_4] : memref<1x8x32xf32, #tpu.memory_space<vmem>>, vector<1x8x32xf32>
    %3 = vector.shape_cast %2 : vector<1x8x32xf32> to vector<8x32xf32>
    %c0_5 = arith.constant 0 : index
    %c0_6 = arith.constant 0 : index
    %c0_7 = arith.constant 0 : index
    %4 = vector.load %arg13[%c0_5, %c0_6, %c0_7] : memref<1x1x8xf32, #tpu.memory_space<vmem>>, vector<1x1x8xf32>
    %5 = vector.shape_cast %4 : vector<1x1x8xf32> to vector<1x8xf32>
    %6 = vector.shape_cast %5 : vector<1x8xf32> to vector<1x8xf32>
    %7 = vector.broadcast %6 : vector<1x8xf32> to vector<8x8xf32>
    %cst = arith.constant 0.000000e+00 : f32
    %8 = vector.broadcast %cst : f32 to vector<8x32xf32>
    %c0_8 = arith.constant 0 : index
    %c0_9 = arith.constant 0 : index
    %c0_10 = arith.constant 0 : index
    %9 = vector.load %arg3[%c0_8, %c0_9, %c0_10] : memref<4x32x8xf32, #tpu.memory_space<vmem>>, vector<1x32x8xf32>
    %10 = vector.shape_cast %9 : vector<1x32x8xf32> to vector<32x8xf32>
    %cst_11 = arith.constant dense<0.000000e+00> : vector<8x8xf32>
    %11 = tpu.matmul %1, %10, %cst_11 {dimension_numbers = #tpu.dot_dimension_numbers<[1], [0], [0], [1], [0, 0, 1, 1], [], []>} : vector<8x32xf32>, vector<32x8xf32>, vector<8x8xf32> -> vector<8x8xf32>
    %c0_12 = arith.constant 0 : index
    %c0_13 = arith.constant 0 : index
    %c0_14 = arith.constant 0 : index
    %12 = vector.load %arg4[%c0_12, %c0_13, %c0_14] : memref<4x1x8xf32, #tpu.memory_space<vmem>>, vector<1x1x8xf32>
    %13 = vector.shape_cast %12 : vector<1x1x8xf32> to vector<1x8xf32>
    %14 = vector.broadcast %13 : vector<1x8xf32> to vector<8x8xf32>
    %15 = arith.addf %11, %14 : vector<8x8xf32>
    %c0_15 = arith.constant 0 : index
    %c0_16 = arith.constant 0 : index
    %c0_17 = arith.constant 0 : index
    %16 = vector.load %arg5[%c0_15, %c0_16, %c0_17] : memref<4x32x8xf32, #tpu.memory_space<vmem>>, vector<1x32x8xf32>
    %17 = vector.shape_cast %16 : vector<1x32x8xf32> to vector<32x8xf32>
    %cst_18 = arith.constant dense<0.000000e+00> : vector<8x8xf32>
    %18 = tpu.matmul %3, %17, %cst_18 {dimension_numbers = #tpu.dot_dimension_numbers<[1], [0], [0], [1], [0, 0, 1, 1], [], []>} : vector<8x32xf32>, vector<32x8xf32>, vector<8x8xf32> -> vector<8x8xf32>
    %c0_19 = arith.constant 0 : index
    %c0_20 = arith.constant 0 : index
    %c0_21 = arith.constant 0 : index
    %19 = vector.load %arg6[%c0_19, %c0_20, %c0_21] : memref<4x1x8xf32, #tpu.memory_space<vmem>>, vector<1x1x8xf32>
    %20 = vector.shape_cast %19 : vector<1x1x8xf32> to vector<1x8xf32>
    %21 = vector.broadcast %20 : vector<1x8xf32> to vector<8x8xf32>
    %22 = arith.addf %18, %21 : vector<8x8xf32>
    %c0_22 = arith.constant 0 : index
    %c0_23 = arith.constant 0 : index
    %c0_24 = arith.constant 0 : index
    %23 = vector.load %arg7[%c0_22, %c0_23, %c0_24] : memref<4x32x8xf32, #tpu.memory_space<vmem>>, vector<1x32x8xf32>
    %24 = vector.shape_cast %23 : vector<1x32x8xf32> to vector<32x8xf32>
    %cst_25 = arith.constant dense<0.000000e+00> : vector<8x8xf32>
    %25 = tpu.matmul %3, %24, %cst_25 {dimension_numbers = #tpu.dot_dimension_numbers<[1], [0], [0], [1], [0, 0, 1, 1], [], []>} : vector<8x32xf32>, vector<32x8xf32>, vector<8x8xf32> -> vector<8x8xf32>
    %c0_26 = arith.constant 0 : index
    %c0_27 = arith.constant 0 : index
    %c0_28 = arith.constant 0 : index
    %26 = vector.load %arg8[%c0_26, %c0_27, %c0_28] : memref<4x1x8xf32, #tpu.memory_space<vmem>>, vector<1x1x8xf32>
    %27 = vector.shape_cast %26 : vector<1x1x8xf32> to vector<1x8xf32>
    %28 = vector.broadcast %27 : vector<1x8xf32> to vector<8x8xf32>
    %29 = arith.addf %25, %28 : vector<8x8xf32>
    %cst_29 = arith.constant dense<0.000000e+00> : vector<8x8xf32>
    %30 = tpu.matmul %15, %22, %cst_29 {dimension_numbers = #tpu.dot_dimension_numbers<[1], [1], [0], [0], [0, 0, 1, 0], [], []>} : vector<8x8xf32>, vector<8x8xf32>, vector<8x8xf32> -> vector<8x8xf32>
    %31 = arith.addf %30, %7 : vector<8x8xf32>
    %cst_30 = arith.constant dense<0xFF800000> : vector<8xf32>
    %32 = vector.multi_reduction <maximumf>, %31, %cst_30 [1] : vector<8x8xf32> to vector<8xf32>
    %33 = vector.shape_cast %32 : vector<8xf32> to vector<8x1xf32>
    %34 = vector.broadcast %33 : vector<8x1xf32> to vector<8x8xf32>
    %35 = arith.subf %31, %34 : vector<8x8xf32>
    %36 = math.exp %35 : vector<8x8xf32>
    %cst_31 = arith.constant dense<0.000000e+00> : vector<8xf32>
    %37 = vector.multi_reduction <add>, %36, %cst_31 [1] : vector<8x8xf32> to vector<8xf32>
    %38 = vector.shape_cast %37 : vector<8xf32> to vector<8x1xf32>
    %39 = tpu.reciprocal %38 {approx = true} : vector<8x1xf32> -> vector<8x1xf32>
    %40 = vector.broadcast %39 : vector<8x1xf32> to vector<8x8xf32>
    %41 = arith.mulf %36, %40 : vector<8x8xf32>
    %cst_32 = arith.constant dense<0.000000e+00> : vector<8x8xf32>
    %42 = tpu.matmul %41, %29, %cst_32 {dimension_numbers = #tpu.dot_dimension_numbers<[1], [0], [0], [1], [0, 0, 1, 1], [], []>} : vector<8x8xf32>, vector<8x8xf32>, vector<8x8xf32> -> vector<8x8xf32>
    %c0_33 = arith.constant 0 : index
    %c0_34 = arith.constant 0 : index
    %c0_35 = arith.constant 0 : index
    %43 = vector.load %arg9[%c0_33, %c0_34, %c0_35] : memref<4x8x32xf32, #tpu.memory_space<vmem>>, vector<1x8x32xf32>
    %44 = vector.shape_cast %43 : vector<1x8x32xf32> to vector<8x32xf32>
    %cst_36 = arith.constant dense<0.000000e+00> : vector<8x32xf32>
    %45 = tpu.matmul %42, %44, %cst_36 {dimension_numbers = #tpu.dot_dimension_numbers<[1], [0], [0], [1], [0, 0, 1, 1], [], []>} : vector<8x8xf32>, vector<8x32xf32>, vector<8x32xf32> -> vector<8x32xf32>
    %46 = arith.addf %8, %45 : vector<8x32xf32>
    %c1 = arith.constant 1 : index
    %c0_37 = arith.constant 0 : index
    %c0_38 = arith.constant 0 : index
    %47 = vector.load %arg3[%c1, %c0_37, %c0_38] : memref<4x32x8xf32, #tpu.memory_space<vmem>>, vector<1x32x8xf32>
    %48 = vector.shape_cast %47 : vector<1x32x8xf32> to vector<32x8xf32>
    %cst_39 = arith.constant dense<0.000000e+00> : vector<8x8xf32>
    %49 = tpu.matmul %1, %48, %cst_39 {dimension_numbers = #tpu.dot_dimension_numbers<[1], [0], [0], [1], [0, 0, 1, 1], [], []>} : vector<8x32xf32>, vector<32x8xf32>, vector<8x8xf32> -> vector<8x8xf32>
    %c1_40 = arith.constant 1 : index
    %c0_41 = arith.constant 0 : index
    %c0_42 = arith.constant 0 : index
    %50 = vector.load %arg4[%c1_40, %c0_41, %c0_42] : memref<4x1x8xf32, #tpu.memory_space<vmem>>, vector<1x1x8xf32>
    %51 = vector.shape_cast %50 : vector<1x1x8xf32> to vector<1x8xf32>
    %52 = vector.broadcast %51 : vector<1x8xf32> to vector<8x8xf32>
    %53 = arith.addf %49, %52 : vector<8x8xf32>
    %c1_43 = arith.constant 1 : index
    %c0_44 = arith.constant 0 : index
    %c0_45 = arith.constant 0 : index
    %54 = vector.load %arg5[%c1_43, %c0_44, %c0_45] : memref<4x32x8xf32, #tpu.memory_space<vmem>>, vector<1x32x8xf32>
    %55 = vector.shape_cast %54 : vector<1x32x8xf32> to vector<32x8xf32>
    %cst_46 = arith.constant dense<0.000000e+00> : vector<8x8xf32>
    %56 = tpu.matmul %3, %55, %cst_46 {dimension_numbers = #tpu.dot_dimension_numbers<[1], [0], [0], [1], [0, 0, 1, 1], [], []>} : vector<8x32xf32>, vector<32x8xf32>, vector<8x8xf32> -> vector<8x8xf32>
    %c1_47 = arith.constant 1 : index
    %c0_48 = arith.constant 0 : index
    %c0_49 = arith.constant 0 : index
    %57 = vector.load %arg6[%c1_47, %c0_48, %c0_49] : memref<4x1x8xf32, #tpu.memory_space<vmem>>, vector<1x1x8xf32>
    %58 = vector.shape_cast %57 : vector<1x1x8xf32> to vector<1x8xf32>
    %59 = vector.broadcast %58 : vector<1x8xf32> to vector<8x8xf32>
    %60 = arith.addf %56, %59 : vector<8x8xf32>
    %c1_50 = arith.constant 1 : index
    %c0_51 = arith.constant 0 : index
    %c0_52 = arith.constant 0 : index
    %61 = vector.load %arg7[%c1_50, %c0_51, %c0_52] : memref<4x32x8xf32, #tpu.memory_space<vmem>>, vector<1x32x8xf32>
    %62 = vector.shape_cast %61 : vector<1x32x8xf32> to vector<32x8xf32>
    %cst_53 = arith.constant dense<0.000000e+00> : vector<8x8xf32>
    %63 = tpu.matmul %3, %62, %cst_53 {dimension_numbers = #tpu.dot_dimension_numbers<[1], [0], [0], [1], [0, 0, 1, 1], [], []>} : vector<8x32xf32>, vector<32x8xf32>, vector<8x8xf32> -> vector<8x8xf32>
    %c1_54 = arith.constant 1 : index
    %c0_55 = arith.constant 0 : index
    %c0_56 = arith.constant 0 : index
    %64 = vector.load %arg8[%c1_54, %c0_55, %c0_56] : memref<4x1x8xf32, #tpu.memory_space<vmem>>, vector<1x1x8xf32>
    %65 = vector.shape_cast %64 : vector<1x1x8xf32> to vector<1x8xf32>
    %66 = vector.broadcast %65 : vector<1x8xf32> to vector<8x8xf32>
    %67 = arith.addf %63, %66 : vector<8x8xf32>
    %cst_57 = arith.constant dense<0.000000e+00> : vector<8x8xf32>
    %68 = tpu.matmul %53, %60, %cst_57 {dimension_numbers = #tpu.dot_dimension_numbers<[1], [1], [0], [0], [0, 0, 1, 0], [], []>} : vector<8x8xf32>, vector<8x8xf32>, vector<8x8xf32> -> vector<8x8xf32>
    %69 = arith.addf %68, %7 : vector<8x8xf32>
    %cst_58 = arith.constant dense<0xFF800000> : vector<8xf32>
    %70 = vector.multi_reduction <maximumf>, %69, %cst_58 [1] : vector<8x8xf32> to vector<8xf32>
    %71 = vector.shape_cast %70 : vector<8xf32> to vector<8x1xf32>
    %72 = vector.broadcast %71 : vector<8x1xf32> to vector<8x8xf32>
    %73 = arith.subf %69, %72 : vector<8x8xf32>
    %74 = math.exp %73 : vector<8x8xf32>
    %cst_59 = arith.constant dense<0.000000e+00> : vector<8xf32>
    %75 = vector.multi_reduction <add>, %74, %cst_59 [1] : vector<8x8xf32> to vector<8xf32>
    %76 = vector.shape_cast %75 : vector<8xf32> to vector<8x1xf32>
    %77 = tpu.reciprocal %76 {approx = true} : vector<8x1xf32> -> vector<8x1xf32>
    %78 = vector.broadcast %77 : vector<8x1xf32> to vector<8x8xf32>
    %79 = arith.mulf %74, %78 : vector<8x8xf32>
    %cst_60 = arith.constant dense<0.000000e+00> : vector<8x8xf32>
    %80 = tpu.matmul %79, %67, %cst_60 {dimension_numbers = #tpu.dot_dimension_numbers<[1], [0], [0], [1], [0, 0, 1, 1], [], []>} : vector<8x8xf32>, vector<8x8xf32>, vector<8x8xf32> -> vector<8x8xf32>
    %c1_61 = arith.constant 1 : index
    %c0_62 = arith.constant 0 : index
    %c0_63 = arith.constant 0 : index
    %81 = vector.load %arg9[%c1_61, %c0_62, %c0_63] : memref<4x8x32xf32, #tpu.memory_space<vmem>>, vector<1x8x32xf32>
    %82 = vector.shape_cast %81 : vector<1x8x32xf32> to vector<8x32xf32>
    %cst_64 = arith.constant dense<0.000000e+00> : vector<8x32xf32>
    %83 = tpu.matmul %80, %82, %cst_64 {dimension_numbers = #tpu.dot_dimension_numbers<[1], [0], [0], [1], [0, 0, 1, 1], [], []>} : vector<8x8xf32>, vector<8x32xf32>, vector<8x32xf32> -> vector<8x32xf32>
    %84 = arith.addf %46, %83 : vector<8x32xf32>
    %c2 = arith.constant 2 : index
    %c0_65 = arith.constant 0 : index
    %c0_66 = arith.constant 0 : index
    %85 = vector.load %arg3[%c2, %c0_65, %c0_66] : memref<4x32x8xf32, #tpu.memory_space<vmem>>, vector<1x32x8xf32>
    %86 = vector.shape_cast %85 : vector<1x32x8xf32> to vector<32x8xf32>
    %cst_67 = arith.constant dense<0.000000e+00> : vector<8x8xf32>
    %87 = tpu.matmul %1, %86, %cst_67 {dimension_numbers = #tpu.dot_dimension_numbers<[1], [0], [0], [1], [0, 0, 1, 1], [], []>} : vector<8x32xf32>, vector<32x8xf32>, vector<8x8xf32> -> vector<8x8xf32>
    %c2_68 = arith.constant 2 : index
    %c0_69 = arith.constant 0 : index
    %c0_70 = arith.constant 0 : index
    %88 = vector.load %arg4[%c2_68, %c0_69, %c0_70] : memref<4x1x8xf32, #tpu.memory_space<vmem>>, vector<1x1x8xf32>
    %89 = vector.shape_cast %88 : vector<1x1x8xf32> to vector<1x8xf32>
    %90 = vector.broadcast %89 : vector<1x8xf32> to vector<8x8xf32>
    %91 = arith.addf %87, %90 : vector<8x8xf32>
    %c2_71 = arith.constant 2 : index
    %c0_72 = arith.constant 0 : index
    %c0_73 = arith.constant 0 : index
    %92 = vector.load %arg5[%c2_71, %c0_72, %c0_73] : memref<4x32x8xf32, #tpu.memory_space<vmem>>, vector<1x32x8xf32>
    %93 = vector.shape_cast %92 : vector<1x32x8xf32> to vector<32x8xf32>
    %cst_74 = arith.constant dense<0.000000e+00> : vector<8x8xf32>
    %94 = tpu.matmul %3, %93, %cst_74 {dimension_numbers = #tpu.dot_dimension_numbers<[1], [0], [0], [1], [0, 0, 1, 1], [], []>} : vector<8x32xf32>, vector<32x8xf32>, vector<8x8xf32> -> vector<8x8xf32>
    %c2_75 = arith.constant 2 : index
    %c0_76 = arith.constant 0 : index
    %c0_77 = arith.constant 0 : index
    %95 = vector.load %arg6[%c2_75, %c0_76, %c0_77] : memref<4x1x8xf32, #tpu.memory_space<vmem>>, vector<1x1x8xf32>
    %96 = vector.shape_cast %95 : vector<1x1x8xf32> to vector<1x8xf32>
    %97 = vector.broadcast %96 : vector<1x8xf32> to vector<8x8xf32>
    %98 = arith.addf %94, %97 : vector<8x8xf32>
    %c2_78 = arith.constant 2 : index
    %c0_79 = arith.constant 0 : index
    %c0_80 = arith.constant 0 : index
    %99 = vector.load %arg7[%c2_78, %c0_79, %c0_80] : memref<4x32x8xf32, #tpu.memory_space<vmem>>, vector<1x32x8xf32>
    %100 = vector.shape_cast %99 : vector<1x32x8xf32> to vector<32x8xf32>
    %cst_81 = arith.constant dense<0.000000e+00> : vector<8x8xf32>
    %101 = tpu.matmul %3, %100, %cst_81 {dimension_numbers = #tpu.dot_dimension_numbers<[1], [0], [0], [1], [0, 0, 1, 1], [], []>} : vector<8x32xf32>, vector<32x8xf32>, vector<8x8xf32> -> vector<8x8xf32>
    %c2_82 = arith.constant 2 : index
    %c0_83 = arith.constant 0 : index
    %c0_84 = arith.constant 0 : index
    %102 = vector.load %arg8[%c2_82, %c0_83, %c0_84] : memref<4x1x8xf32, #tpu.memory_space<vmem>>, vector<1x1x8xf32>
    %103 = vector.shape_cast %102 : vector<1x1x8xf32> to vector<1x8xf32>
    %104 = vector.broadcast %103 : vector<1x8xf32> to vector<8x8xf32>
    %105 = arith.addf %101, %104 : vector<8x8xf32>
    %cst_85 = arith.constant dense<0.000000e+00> : vector<8x8xf32>
    %106 = tpu.matmul %91, %98, %cst_85 {dimension_numbers = #tpu.dot_dimension_numbers<[1], [1], [0], [0], [0, 0, 1, 0], [], []>} : vector<8x8xf32>, vector<8x8xf32>, vector<8x8xf32> -> vector<8x8xf32>
    %107 = arith.addf %106, %7 : vector<8x8xf32>
    %cst_86 = arith.constant dense<0xFF800000> : vector<8xf32>
    %108 = vector.multi_reduction <maximumf>, %107, %cst_86 [1] : vector<8x8xf32> to vector<8xf32>
    %109 = vector.shape_cast %108 : vector<8xf32> to vector<8x1xf32>
    %110 = vector.broadcast %109 : vector<8x1xf32> to vector<8x8xf32>
    %111 = arith.subf %107, %110 : vector<8x8xf32>
    %112 = math.exp %111 : vector<8x8xf32>
    %cst_87 = arith.constant dense<0.000000e+00> : vector<8xf32>
    %113 = vector.multi_reduction <add>, %112, %cst_87 [1] : vector<8x8xf32> to vector<8xf32>
    %114 = vector.shape_cast %113 : vector<8xf32> to vector<8x1xf32>
    %115 = tpu.reciprocal %114 {approx = true} : vector<8x1xf32> -> vector<8x1xf32>
    %116 = vector.broadcast %115 : vector<8x1xf32> to vector<8x8xf32>
    %117 = arith.mulf %112, %116 : vector<8x8xf32>
    %cst_88 = arith.constant dense<0.000000e+00> : vector<8x8xf32>
    %118 = tpu.matmul %117, %105, %cst_88 {dimension_numbers = #tpu.dot_dimension_numbers<[1], [0], [0], [1], [0, 0, 1, 1], [], []>} : vector<8x8xf32>, vector<8x8xf32>, vector<8x8xf32> -> vector<8x8xf32>
    %c2_89 = arith.constant 2 : index
    %c0_90 = arith.constant 0 : index
    %c0_91 = arith.constant 0 : index
    %119 = vector.load %arg9[%c2_89, %c0_90, %c0_91] : memref<4x8x32xf32, #tpu.memory_space<vmem>>, vector<1x8x32xf32>
    %120 = vector.shape_cast %119 : vector<1x8x32xf32> to vector<8x32xf32>
    %cst_92 = arith.constant dense<0.000000e+00> : vector<8x32xf32>
    %121 = tpu.matmul %118, %120, %cst_92 {dimension_numbers = #tpu.dot_dimension_numbers<[1], [0], [0], [1], [0, 0, 1, 1], [], []>} : vector<8x8xf32>, vector<8x32xf32>, vector<8x32xf32> -> vector<8x32xf32>
    %122 = arith.addf %84, %121 : vector<8x32xf32>
    %c3 = arith.constant 3 : index
    %c0_93 = arith.constant 0 : index
    %c0_94 = arith.constant 0 : index
    %123 = vector.load %arg3[%c3, %c0_93, %c0_94] : memref<4x32x8xf32, #tpu.memory_space<vmem>>, vector<1x32x8xf32>
    %124 = vector.shape_cast %123 : vector<1x32x8xf32> to vector<32x8xf32>
    %cst_95 = arith.constant dense<0.000000e+00> : vector<8x8xf32>
    %125 = tpu.matmul %1, %124, %cst_95 {dimension_numbers = #tpu.dot_dimension_numbers<[1], [0], [0], [1], [0, 0, 1, 1], [], []>} : vector<8x32xf32>, vector<32x8xf32>, vector<8x8xf32> -> vector<8x8xf32>
    %c3_96 = arith.constant 3 : index
    %c0_97 = arith.constant 0 : index
    %c0_98 = arith.constant 0 : index
    %126 = vector.load %arg4[%c3_96, %c0_97, %c0_98] : memref<4x1x8xf32, #tpu.memory_space<vmem>>, vector<1x1x8xf32>
    %127 = vector.shape_cast %126 : vector<1x1x8xf32> to vector<1x8xf32>
    %128 = vector.broadcast %127 : vector<1x8xf32> to vector<8x8xf32>
    %129 = arith.addf %125, %128 : vector<8x8xf32>
    %c3_99 = arith.constant 3 : index
    %c0_100 = arith.constant 0 : index
    %c0_101 = arith.constant 0 : index
    %130 = vector.load %arg5[%c3_99, %c0_100, %c0_101] : memref<4x32x8xf32, #tpu.memory_space<vmem>>, vector<1x32x8xf32>
    %131 = vector.shape_cast %130 : vector<1x32x8xf32> to vector<32x8xf32>
    %cst_102 = arith.constant dense<0.000000e+00> : vector<8x8xf32>
    %132 = tpu.matmul %3, %131, %cst_102 {dimension_numbers = #tpu.dot_dimension_numbers<[1], [0], [0], [1], [0, 0, 1, 1], [], []>} : vector<8x32xf32>, vector<32x8xf32>, vector<8x8xf32> -> vector<8x8xf32>
    %c3_103 = arith.constant 3 : index
    %c0_104 = arith.constant 0 : index
    %c0_105 = arith.constant 0 : index
    %133 = vector.load %arg6[%c3_103, %c0_104, %c0_105] : memref<4x1x8xf32, #tpu.memory_space<vmem>>, vector<1x1x8xf32>
    %134 = vector.shape_cast %133 : vector<1x1x8xf32> to vector<1x8xf32>
    %135 = vector.broadcast %134 : vector<1x8xf32> to vector<8x8xf32>
    %136 = arith.addf %132, %135 : vector<8x8xf32>
    %c3_106 = arith.constant 3 : index
    %c0_107 = arith.constant 0 : index
    %c0_108 = arith.constant 0 : index
    %137 = vector.load %arg7[%c3_106, %c0_107, %c0_108] : memref<4x32x8xf32, #tpu.memory_space<vmem>>, vector<1x32x8xf32>
    %138 = vector.shape_cast %137 : vector<1x32x8xf32> to vector<32x8xf32>
    %cst_109 = arith.constant dense<0.000000e+00> : vector<8x8xf32>
    %139 = tpu.matmul %3, %138, %cst_109 {dimension_numbers = #tpu.dot_dimension_numbers<[1], [0], [0], [1], [0, 0, 1, 1], [], []>} : vector<8x32xf32>, vector<32x8xf32>, vector<8x8xf32> -> vector<8x8xf32>
    %c3_110 = arith.constant 3 : index
    %c0_111 = arith.constant 0 : index
    %c0_112 = arith.constant 0 : index
    %140 = vector.load %arg8[%c3_110, %c0_111, %c0_112] : memref<4x1x8xf32, #tpu.memory_space<vmem>>, vector<1x1x8xf32>
    %141 = vector.shape_cast %140 : vector<1x1x8xf32> to vector<1x8xf32>
    %142 = vector.broadcast %141 : vector<1x8xf32> to vector<8x8xf32>
    %143 = arith.addf %139, %142 : vector<8x8xf32>
    %cst_113 = arith.constant dense<0.000000e+00> : vector<8x8xf32>
    %144 = tpu.matmul %129, %136, %cst_113 {dimension_numbers = #tpu.dot_dimension_numbers<[1], [1], [0], [0], [0, 0, 1, 0], [], []>} : vector<8x8xf32>, vector<8x8xf32>, vector<8x8xf32> -> vector<8x8xf32>
    %145 = arith.addf %144, %7 : vector<8x8xf32>
    %cst_114 = arith.constant dense<0xFF800000> : vector<8xf32>
    %146 = vector.multi_reduction <maximumf>, %145, %cst_114 [1] : vector<8x8xf32> to vector<8xf32>
    %147 = vector.shape_cast %146 : vector<8xf32> to vector<8x1xf32>
    %148 = vector.broadcast %147 : vector<8x1xf32> to vector<8x8xf32>
    %149 = arith.subf %145, %148 : vector<8x8xf32>
    %150 = math.exp %149 : vector<8x8xf32>
    %cst_115 = arith.constant dense<0.000000e+00> : vector<8xf32>
    %151 = vector.multi_reduction <add>, %150, %cst_115 [1] : vector<8x8xf32> to vector<8xf32>
    %152 = vector.shape_cast %151 : vector<8xf32> to vector<8x1xf32>
    %153 = tpu.reciprocal %152 {approx = true} : vector<8x1xf32> -> vector<8x1xf32>
    %154 = vector.broadcast %153 : vector<8x1xf32> to vector<8x8xf32>
    %155 = arith.mulf %150, %154 : vector<8x8xf32>
    %cst_116 = arith.constant dense<0.000000e+00> : vector<8x8xf32>
    %156 = tpu.matmul %155, %143, %cst_116 {dimension_numbers = #tpu.dot_dimension_numbers<[1], [0], [0], [1], [0, 0, 1, 1], [], []>} : vector<8x8xf32>, vector<8x8xf32>, vector<8x8xf32> -> vector<8x8xf32>
    %c3_117 = arith.constant 3 : index
    %c0_118 = arith.constant 0 : index
    %c0_119 = arith.constant 0 : index
    %157 = vector.load %arg9[%c3_117, %c0_118, %c0_119] : memref<4x8x32xf32, #tpu.memory_space<vmem>>, vector<1x8x32xf32>
    %158 = vector.shape_cast %157 : vector<1x8x32xf32> to vector<8x32xf32>
    %cst_120 = arith.constant dense<0.000000e+00> : vector<8x32xf32>
    %159 = tpu.matmul %156, %158, %cst_120 {dimension_numbers = #tpu.dot_dimension_numbers<[1], [0], [0], [1], [0, 0, 1, 1], [], []>} : vector<8x8xf32>, vector<8x32xf32>, vector<8x32xf32> -> vector<8x32xf32>
    %160 = arith.addf %122, %159 : vector<8x32xf32>
    %161 = arith.addf %1, %160 : vector<8x32xf32>
    %c0_121 = arith.constant 0 : index
    %c0_122 = arith.constant 0 : index
    %162 = vector.load %arg10[%c0_121, %c0_122] : memref<1x32xf32, #tpu.memory_space<vmem>>, vector<1x32xf32>
    %163 = vector.broadcast %162 : vector<1x32xf32> to vector<8x32xf32>
    %164 = arith.addf %161, %163 : vector<8x32xf32>
    %cst_123 = arith.constant dense<0.000000e+00> : vector<8xf32>
    %165 = vector.multi_reduction <add>, %164, %cst_123 [1] : vector<8x32xf32> to vector<8xf32>
    %166 = vector.shape_cast %165 : vector<8xf32> to vector<8x1xf32>
    %cst_124 = arith.constant 3.200000e+01 : f32
    %167 = vector.broadcast %cst_124 : f32 to vector<8x1xf32>
    %168 = arith.divf %166, %167 : vector<8x1xf32>
    %169 = vector.broadcast %168 : vector<8x1xf32> to vector<8x32xf32>
    %170 = arith.subf %164, %169 : vector<8x32xf32>
    %171 = arith.mulf %170, %170 : vector<8x32xf32>
    %cst_125 = arith.constant dense<0.000000e+00> : vector<8xf32>
    %172 = vector.multi_reduction <add>, %171, %cst_125 [1] : vector<8x32xf32> to vector<8xf32>
    %173 = vector.shape_cast %172 : vector<8xf32> to vector<8x1xf32>
    %cst_126 = arith.constant 3.200000e+01 : f32
    %174 = vector.broadcast %cst_126 : f32 to vector<8x1xf32>
    %175 = arith.divf %173, %174 : vector<8x1xf32>
    %176 = vector.broadcast %168 : vector<8x1xf32> to vector<8x32xf32>
    %177 = arith.subf %164, %176 : vector<8x32xf32>
    %cst_127 = arith.constant 9.99999974E-6 : f32
    %178 = vector.broadcast %cst_127 : f32 to vector<8x1xf32>
    %179 = arith.addf %175, %178 : vector<8x1xf32>
    %180 = math.rsqrt %179 : vector<8x1xf32>
    %181 = vector.broadcast %180 : vector<8x1xf32> to vector<8x32xf32>
    %182 = arith.mulf %177, %181 : vector<8x32xf32>
    %c0_128 = arith.constant 0 : index
    %c0_129 = arith.constant 0 : index
    %183 = vector.load %arg11[%c0_128, %c0_129] : memref<1x32xf32, #tpu.memory_space<vmem>>, vector<1x32xf32>
    %184 = vector.broadcast %183 : vector<1x32xf32> to vector<8x32xf32>
    %185 = arith.mulf %182, %184 : vector<8x32xf32>
    %c0_130 = arith.constant 0 : index
    %c0_131 = arith.constant 0 : index
    %186 = vector.load %arg12[%c0_130, %c0_131] : memref<1x32xf32, #tpu.memory_space<vmem>>, vector<1x32xf32>
    %187 = vector.broadcast %186 : vector<1x32xf32> to vector<8x32xf32>
    %188 = arith.addf %185, %187 : vector<8x32xf32>
    %c0_132 = arith.constant 0 : index
    %c0_133 = arith.constant 0 : index
    %c0_134 = arith.constant 0 : index
    %189 = vector.load %arg14[%c0_132, %c0_133, %c0_134] : memref<1x8x32xf32, #tpu.memory_space<vmem>>, vector<1x8x32xf32>
    %190 = vector.shape_cast %189 : vector<1x8x32xf32> to vector<8x32xf32>
    %191 = vector.shape_cast %188 : vector<8x32xf32> to vector<1x8x32xf32>
    tpu.vector_store %arg14[%c0_132, %c0_133, %c0_134], %191 {strides = array<i32>} : memref<1x8x32xf32, #tpu.memory_space<vmem>>, vector<1x8x32xf32>,
    return
  }
  func.func @transform_0(%arg0: i32) -> (i32, i32, i32) {
    %c0_i32 = arith.constant 0 : i32
    %c0_i32_0 = arith.constant 0 : i32
    %c0_i32_1 = arith.constant 0 : i32
    return %arg0, %c0_i32, %c0_i32_0 : i32, i32, i32
  }
  func.func @transform_1(%arg0: i32) -> (i32, i32, i32) {
    %c0_i32 = arith.constant 0 : i32
    %c0_i32_0 = arith.constant 0 : i32
    %c0_i32_1 = arith.constant 0 : i32
    return %arg0, %c0_i32, %c0_i32_0 : i32, i32, i32
  }
  func.func @transform_2(%arg0: i32) -> (i32, i32, i32) {
    %c0_i32 = arith.constant 0 : i32
    %c0_i32_0 = arith.constant 0 : i32
    %c0_i32_1 = arith.constant 0 : i32
    %c0_i32_2 = arith.constant 0 : i32
    return %c0_i32, %c0_i32_0, %c0_i32_1 : i32, i32, i32
  }
  func.func @transform_3(%arg0: i32) -> (i32, i32, i32) {
    %c0_i32 = arith.constant 0 : i32
    %c0_i32_0 = arith.constant 0 : i32
    %c0_i32_1 = arith.constant 0 : i32
    %c0_i32_2 = arith.constant 0 : i32
    return %c0_i32, %c0_i32_0, %c0_i32_1 : i32, i32, i32
  }
  func.func @transform_4(%arg0: i32) -> (i32, i32, i32) {
    %c0_i32 = arith.constant 0 : i32
    %c0_i32_0 = arith.constant 0 : i32
    %c0_i32_1 = arith.constant 0 : i32
    %c0_i32_2 = arith.constant 0 : i32
    return %c0_i32, %c0_i32_0, %c0_i32_1 : i32, i32, i32
  }
  func.func @transform_5(%arg0: i32) -> (i32, i32, i32) {
    %c0_i32 = arith.constant 0 : i32
    %c0_i32_0 = arith.constant 0 : i32
    %c0_i32_1 = arith.constant 0 : i32
    %c0_i32_2 = arith.constant 0 : i32
    return %c0_i32, %c0_i32_0, %c0_i32_1 : i32, i32, i32
  }
  func.func @transform_6(%arg0: i32) -> (i32, i32, i32) {
    %c0_i32 = arith.constant 0 : i32
    %c0_i32_0 = arith.constant 0 : i32
    %c0_i32_1 = arith.constant 0 : i32
    %c0_i32_2 = arith.constant 0 : i32
    return %c0_i32, %c0_i32_0, %c0_i32_1 : i32, i32, i32
  }
  func.func @transform_7(%arg0: i32) -> (i32, i32, i32) {
    %c0_i32 = arith.constant 0 : i32
    %c0_i32_0 = arith.constant 0 : i32
    %c0_i32_1 = arith.constant 0 : i32
    %c0_i32_2 = arith.constant 0 : i32
    return %c0_i32, %c0_i32_0, %c0_i32_1 : i32, i32, i32
  }
  func.func @transform_8(%arg0: i32) -> (i32, i32, i32) {
    %c0_i32 = arith.constant 0 : i32
    %c0_i32_0 = arith.constant 0 : i32
    %c0_i32_1 = arith.constant 0 : i32
    %c0_i32_2 = arith.constant 0 : i32
    return %c0_i32, %c0_i32_0, %c0_i32_1 : i32, i32, i32
  }
  func.func @transform_9(%arg0: i32) -> (i32, i32) {
    %c0_i32 = arith.constant 0 : i32
    %c0_i32_0 = arith.constant 0 : i32
    %c0_i32_1 = arith.constant 0 : i32
    return %c0_i32, %c0_i32_0 : i32, i32
  }
  func.func @transform_10(%arg0: i32) -> (i32, i32) {
    %c0_i32 = arith.constant 0 : i32
    %c0_i32_0 = arith.constant 0 : i32
    %c0_i32_1 = arith.constant 0 : i32
    return %c0_i32, %c0_i32_0 : i32, i32
  }
  func.func @transform_11(%arg0: i32) -> (i32, i32) {
    %c0_i32 = arith.constant 0 : i32
    %c0_i32_0 = arith.constant 0 : i32
    %c0_i32_1 = arith.constant 0 : i32
    return %c0_i32, %c0_i32_0 : i32, i32
  }
  func.func @transform_12(%arg0: i32) -> (i32, i32, i32) {
    %c0_i32 = arith.constant 0 : i32
    %c0_i32_0 = arith.constant 0 : i32
    %c0_i32_1 = arith.constant 0 : i32
    return %arg0, %c0_i32, %c0_i32_0 : i32, i32, i32
  }
  func.func @transform_13(%arg0: i32) -> (i32, i32, i32) {
    %c0_i32 = arith.constant 0 : i32
    %c0_i32_0 = arith.constant 0 : i32
    %c0_i32_1 = arith.constant 0 : i32
    return %arg0, %c0_i32, %c0_i32_0 : i32, i32, i32
  }
}

module attributes {stable_mosaic.version = 11 : i64} {
  func.func @_ffn_block_kernel(%arg0: i32, %arg1: memref<8x32xf32, #tpu.memory_space<vmem>>, %arg2: memref<32x64xf32, #tpu.memory_space<vmem>>, %arg3: memref<1x64xf32, #tpu.memory_space<vmem>>, %arg4: memref<64x32xf32, #tpu.memory_space<vmem>>, %arg5: memref<1x32xf32, #tpu.memory_space<vmem>>, %arg6: memref<1x32xf32, #tpu.memory_space<vmem>>, %arg7: memref<1x32xf32, #tpu.memory_space<vmem>>, %arg8: memref<8x32xf32, #tpu.memory_space<vmem>>) attributes {dimension_semantics = [#tpu.dimension_semantics<parallel>], iteration_bounds = array<i64: 2>, scalar_prefetch = 0 : i64, scratch_operands = 0 : i64, tpu.core_type = #tpu.core_type<tc>, window_params = [{transform_indices = @transform_0, window_bounds = array<i64: 8, 32>}, {pipeline_mode = #tpu.pipeline_mode<synchronous>, transform_indices = @transform_1, window_bounds = array<i64: 32, 64>}, {pipeline_mode = #tpu.pipeline_mode<synchronous>, transform_indices = @transform_2, window_bounds = array<i64: 1, 64>}, {pipeline_mode = #tpu.pipeline_mode<synchronous>, transform_indices = @transform_3, window_bounds = array<i64: 64, 32>}, {pipeline_mode = #tpu.pipeline_mode<synchronous>, transform_indices = @transform_4, window_bounds = array<i64: 1, 32>}, {pipeline_mode = #tpu.pipeline_mode<synchronous>, transform_indices = @transform_5, window_bounds = array<i64: 1, 32>}, {pipeline_mode = #tpu.pipeline_mode<synchronous>, transform_indices = @transform_6, window_bounds = array<i64: 1, 32>}, {transform_indices = @transform_7, window_bounds = array<i64: 8, 32>}]} {
    %c0 = arith.constant 0 : index
    %c0_0 = arith.constant 0 : index
    %0 = vector.load %arg1[%c0, %c0_0] : memref<8x32xf32, #tpu.memory_space<vmem>>, vector<8x32xf32>
    %c0_1 = arith.constant 0 : index
    %c0_2 = arith.constant 0 : index
    %1 = vector.load %arg2[%c0_1, %c0_2] : memref<32x64xf32, #tpu.memory_space<vmem>>, vector<32x64xf32>
    %cst = arith.constant dense<0.000000e+00> : vector<8x64xf32>
    %2 = tpu.matmul %0, %1, %cst {dimension_numbers = #tpu.dot_dimension_numbers<[1], [0], [0], [1], [0, 0, 1, 1], [], []>} : vector<8x32xf32>, vector<32x64xf32>, vector<8x64xf32> -> vector<8x64xf32>
    %c0_3 = arith.constant 0 : index
    %c0_4 = arith.constant 0 : index
    %3 = vector.load %arg3[%c0_3, %c0_4] : memref<1x64xf32, #tpu.memory_space<vmem>>, vector<1x64xf32>
    %4 = vector.broadcast %3 : vector<1x64xf32> to vector<8x64xf32>
    %5 = arith.addf %2, %4 : vector<8x64xf32>
    %cst_5 = arith.constant 0.000000e+00 : f32
    %6 = vector.broadcast %cst_5 : f32 to vector<8x64xf32>
    %7 = arith.maximumf %5, %6 : vector<8x64xf32>
    %c0_6 = arith.constant 0 : index
    %c0_7 = arith.constant 0 : index
    %8 = vector.load %arg4[%c0_6, %c0_7] : memref<64x32xf32, #tpu.memory_space<vmem>>, vector<64x32xf32>
    %cst_8 = arith.constant dense<0.000000e+00> : vector<8x32xf32>
    %9 = tpu.matmul %7, %8, %cst_8 {dimension_numbers = #tpu.dot_dimension_numbers<[1], [0], [0], [1], [0, 0, 1, 1], [], []>} : vector<8x64xf32>, vector<64x32xf32>, vector<8x32xf32> -> vector<8x32xf32>
    %10 = arith.addf %0, %9 : vector<8x32xf32>
    %c0_9 = arith.constant 0 : index
    %c0_10 = arith.constant 0 : index
    %11 = vector.load %arg5[%c0_9, %c0_10] : memref<1x32xf32, #tpu.memory_space<vmem>>, vector<1x32xf32>
    %12 = vector.broadcast %11 : vector<1x32xf32> to vector<8x32xf32>
    %13 = arith.addf %10, %12 : vector<8x32xf32>
    %cst_11 = arith.constant dense<0.000000e+00> : vector<8xf32>
    %14 = vector.multi_reduction <add>, %13, %cst_11 [1] : vector<8x32xf32> to vector<8xf32>
    %15 = vector.shape_cast %14 : vector<8xf32> to vector<8x1xf32>
    %cst_12 = arith.constant 3.200000e+01 : f32
    %16 = vector.broadcast %cst_12 : f32 to vector<8x1xf32>
    %17 = arith.divf %15, %16 : vector<8x1xf32>
    %18 = vector.broadcast %17 : vector<8x1xf32> to vector<8x32xf32>
    %19 = arith.subf %13, %18 : vector<8x32xf32>
    %20 = arith.mulf %19, %19 : vector<8x32xf32>
    %cst_13 = arith.constant dense<0.000000e+00> : vector<8xf32>
    %21 = vector.multi_reduction <add>, %20, %cst_13 [1] : vector<8x32xf32> to vector<8xf32>
    %22 = vector.shape_cast %21 : vector<8xf32> to vector<8x1xf32>
    %cst_14 = arith.constant 3.200000e+01 : f32
    %23 = vector.broadcast %cst_14 : f32 to vector<8x1xf32>
    %24 = arith.divf %22, %23 : vector<8x1xf32>
    %25 = vector.broadcast %17 : vector<8x1xf32> to vector<8x32xf32>
    %26 = arith.subf %13, %25 : vector<8x32xf32>
    %cst_15 = arith.constant 9.99999974E-6 : f32
    %27 = vector.broadcast %cst_15 : f32 to vector<8x1xf32>
    %28 = arith.addf %24, %27 : vector<8x1xf32>
    %29 = math.rsqrt %28 : vector<8x1xf32>
    %30 = vector.broadcast %29 : vector<8x1xf32> to vector<8x32xf32>
    %31 = arith.mulf %26, %30 : vector<8x32xf32>
    %c0_16 = arith.constant 0 : index
    %c0_17 = arith.constant 0 : index
    %32 = vector.load %arg6[%c0_16, %c0_17] : memref<1x32xf32, #tpu.memory_space<vmem>>, vector<1x32xf32>
    %33 = vector.broadcast %32 : vector<1x32xf32> to vector<8x32xf32>
    %34 = arith.mulf %31, %33 : vector<8x32xf32>
    %c0_18 = arith.constant 0 : index
    %c0_19 = arith.constant 0 : index
    %35 = vector.load %arg7[%c0_18, %c0_19] : memref<1x32xf32, #tpu.memory_space<vmem>>, vector<1x32xf32>
    %36 = vector.broadcast %35 : vector<1x32xf32> to vector<8x32xf32>
    %37 = arith.addf %34, %36 : vector<8x32xf32>
    %c0_20 = arith.constant 0 : index
    %c0_21 = arith.constant 0 : index
    %38 = vector.load %arg8[%c0_20, %c0_21] : memref<8x32xf32, #tpu.memory_space<vmem>>, vector<8x32xf32>
    tpu.vector_store %arg8[%c0_20, %c0_21], %37 {strides = array<i32>} : memref<8x32xf32, #tpu.memory_space<vmem>>, vector<8x32xf32>,
    return
  }
  func.func @transform_0(%arg0: i32) -> (i32, i32) {
    %c0_i32 = arith.constant 0 : i32
    %c0_i32_0 = arith.constant 0 : i32
    return %arg0, %c0_i32 : i32, i32
  }
  func.func @transform_1(%arg0: i32) -> (i32, i32) {
    %c0_i32 = arith.constant 0 : i32
    %c0_i32_0 = arith.constant 0 : i32
    %c0_i32_1 = arith.constant 0 : i32
    return %c0_i32, %c0_i32_0 : i32, i32
  }
  func.func @transform_2(%arg0: i32) -> (i32, i32) {
    %c0_i32 = arith.constant 0 : i32
    %c0_i32_0 = arith.constant 0 : i32
    %c0_i32_1 = arith.constant 0 : i32
    return %c0_i32, %c0_i32_0 : i32, i32
  }
  func.func @transform_3(%arg0: i32) -> (i32, i32) {
    %c0_i32 = arith.constant 0 : i32
    %c0_i32_0 = arith.constant 0 : i32
    %c0_i32_1 = arith.constant 0 : i32
    return %c0_i32, %c0_i32_0 : i32, i32
  }
  func.func @transform_4(%arg0: i32) -> (i32, i32) {
    %c0_i32 = arith.constant 0 : i32
    %c0_i32_0 = arith.constant 0 : i32
    %c0_i32_1 = arith.constant 0 : i32
    return %c0_i32, %c0_i32_0 : i32, i32
  }
  func.func @transform_5(%arg0: i32) -> (i32, i32) {
    %c0_i32 = arith.constant 0 : i32
    %c0_i32_0 = arith.constant 0 : i32
    %c0_i32_1 = arith.constant 0 : i32
    return %c0_i32, %c0_i32_0 : i32, i32
  }
  func.func @transform_6(%arg0: i32) -> (i32, i32) {
    %c0_i32 = arith.constant 0 : i32
    %c0_i32_0 = arith.constant 0 : i32
    %c0_i32_1 = arith.constant 0 : i32
    return %c0_i32, %c0_i32_0 : i32, i32
  }
  func.func @transform_7(%arg0: i32) -> (i32, i32) {
    %c0_i32 = arith.constant 0 : i32
    %c0_i32_0 = arith.constant 0 : i32
    return %arg0, %c0_i32 : i32, i32
  }
}

module attributes {stable_mosaic.version = 11 : i64} {
  func.func @_outproj_kernel(%arg0: i32, %arg1: memref<8x32xf32, #tpu.memory_space<vmem>>, %arg2: memref<32x128xf32, #tpu.memory_space<vmem>>, %arg3: memref<1x128xf32, #tpu.memory_space<vmem>>, %arg4: memref<8x128xf32, #tpu.memory_space<vmem>>) attributes {dimension_semantics = [#tpu.dimension_semantics<parallel>], iteration_bounds = array<i64: 2>, scalar_prefetch = 0 : i64, scratch_operands = 0 : i64, tpu.core_type = #tpu.core_type<tc>, window_params = [{transform_indices = @transform_0, window_bounds = array<i64: 8, 32>}, {pipeline_mode = #tpu.pipeline_mode<synchronous>, transform_indices = @transform_1, window_bounds = array<i64: 32, 128>}, {pipeline_mode = #tpu.pipeline_mode<synchronous>, transform_indices = @transform_2, window_bounds = array<i64: 1, 128>}, {transform_indices = @transform_3, window_bounds = array<i64: 8, 128>}]} {
    %c0 = arith.constant 0 : index
    %c0_0 = arith.constant 0 : index
    %0 = vector.load %arg1[%c0, %c0_0] : memref<8x32xf32, #tpu.memory_space<vmem>>, vector<8x32xf32>
    %c0_1 = arith.constant 0 : index
    %c0_2 = arith.constant 0 : index
    %1 = vector.load %arg2[%c0_1, %c0_2] : memref<32x128xf32, #tpu.memory_space<vmem>>, vector<32x128xf32>
    %cst = arith.constant dense<0.000000e+00> : vector<8x128xf32>
    %2 = tpu.matmul %0, %1, %cst {dimension_numbers = #tpu.dot_dimension_numbers<[1], [0], [0], [1], [0, 0, 1, 1], [], []>} : vector<8x32xf32>, vector<32x128xf32>, vector<8x128xf32> -> vector<8x128xf32>
    %c0_3 = arith.constant 0 : index
    %c0_4 = arith.constant 0 : index
    %3 = vector.load %arg3[%c0_3, %c0_4] : memref<1x128xf32, #tpu.memory_space<vmem>>, vector<1x128xf32>
    %4 = vector.broadcast %3 : vector<1x128xf32> to vector<8x128xf32>
    %5 = arith.addf %2, %4 : vector<8x128xf32>
    %c0_5 = arith.constant 0 : index
    %c0_6 = arith.constant 0 : index
    %6 = vector.load %arg4[%c0_5, %c0_6] : memref<8x128xf32, #tpu.memory_space<vmem>>, vector<8x128xf32>
    tpu.vector_store %arg4[%c0_5, %c0_6], %5 {strides = array<i32>} : memref<8x128xf32, #tpu.memory_space<vmem>>, vector<8x128xf32>,
    return
  }
  func.func @transform_0(%arg0: i32) -> (i32, i32) {
    %c0_i32 = arith.constant 0 : i32
    %c0_i32_0 = arith.constant 0 : i32
    return %arg0, %c0_i32 : i32, i32
  }
  func.func @transform_1(%arg0: i32) -> (i32, i32) {
    %c0_i32 = arith.constant 0 : i32
    %c0_i32_0 = arith.constant 0 : i32
    %c0_i32_1 = arith.constant 0 : i32
    return %c0_i32, %c0_i32_0 : i32, i32
  }
  func.func @transform_2(%arg0: i32) -> (i32, i32) {
    %c0_i32 = arith.constant 0 : i32
    %c0_i32_0 = arith.constant 0 : i32
    %c0_i32_1 = arith.constant 0 : i32
    return %c0_i32, %c0_i32_0 : i32, i32
  }
  func.func @transform_3(%arg0: i32) -> (i32, i32) {
    %c0_i32 = arith.constant 0 : i32
    %c0_i32_0 = arith.constant 0 : i32
    return %arg0, %c0_i32 : i32, i32
  }
}

module attributes {stable_mosaic.version = 11 : i64} {
  func.func @_attn_block_kernel(%arg0: i32, %arg1: memref<1x8x32xf32, #tpu.memory_space<vmem>>, %arg2: memref<1x8x32xf32, #tpu.memory_space<vmem>>, %arg3: memref<4x32x8xf32, #tpu.memory_space<vmem>>, %arg4: memref<4x1x8xf32, #tpu.memory_space<vmem>>, %arg5: memref<4x32x8xf32, #tpu.memory_space<vmem>>, %arg6: memref<4x1x8xf32, #tpu.memory_space<vmem>>, %arg7: memref<4x32x8xf32, #tpu.memory_space<vmem>>, %arg8: memref<4x1x8xf32, #tpu.memory_space<vmem>>, %arg9: memref<4x8x32xf32, #tpu.memory_space<vmem>>, %arg10: memref<1x32xf32, #tpu.memory_space<vmem>>, %arg11: memref<1x32xf32, #tpu.memory_space<vmem>>, %arg12: memref<1x32xf32, #tpu.memory_space<vmem>>, %arg13: memref<1x8x32xf32, #tpu.memory_space<vmem>>) attributes {dimension_semantics = [#tpu.dimension_semantics<parallel>], iteration_bounds = array<i64: 2>, scalar_prefetch = 0 : i64, scratch_operands = 0 : i64, tpu.core_type = #tpu.core_type<tc>, window_params = [{transform_indices = @transform_0, window_bounds = array<i64: 1, 8, 32>}, {transform_indices = @transform_1, window_bounds = array<i64: 1, 8, 32>}, {pipeline_mode = #tpu.pipeline_mode<synchronous>, transform_indices = @transform_2, window_bounds = array<i64: 4, 32, 8>}, {pipeline_mode = #tpu.pipeline_mode<synchronous>, transform_indices = @transform_3, window_bounds = array<i64: 4, 1, 8>}, {pipeline_mode = #tpu.pipeline_mode<synchronous>, transform_indices = @transform_4, window_bounds = array<i64: 4, 32, 8>}, {pipeline_mode = #tpu.pipeline_mode<synchronous>, transform_indices = @transform_5, window_bounds = array<i64: 4, 1, 8>}, {pipeline_mode = #tpu.pipeline_mode<synchronous>, transform_indices = @transform_6, window_bounds = array<i64: 4, 32, 8>}, {pipeline_mode = #tpu.pipeline_mode<synchronous>, transform_indices = @transform_7, window_bounds = array<i64: 4, 1, 8>}, {pipeline_mode = #tpu.pipeline_mode<synchronous>, transform_indices = @transform_8, window_bounds = array<i64: 4, 8, 32>}, {pipeline_mode = #tpu.pipeline_mode<synchronous>, transform_indices = @transform_9, window_bounds = array<i64: 1, 32>}, {pipeline_mode = #tpu.pipeline_mode<synchronous>, transform_indices = @transform_10, window_bounds = array<i64: 1, 32>}, {pipeline_mode = #tpu.pipeline_mode<synchronous>, transform_indices = @transform_11, window_bounds = array<i64: 1, 32>}, {transform_indices = @transform_12, window_bounds = array<i64: 1, 8, 32>}]} {
    %c0 = arith.constant 0 : index
    %c0_0 = arith.constant 0 : index
    %c0_1 = arith.constant 0 : index
    %0 = vector.load %arg1[%c0, %c0_0, %c0_1] : memref<1x8x32xf32, #tpu.memory_space<vmem>>, vector<1x8x32xf32>
    %1 = vector.shape_cast %0 : vector<1x8x32xf32> to vector<8x32xf32>
    %c0_2 = arith.constant 0 : index
    %c0_3 = arith.constant 0 : index
    %c0_4 = arith.constant 0 : index
    %2 = vector.load %arg2[%c0_2, %c0_3, %c0_4] : memref<1x8x32xf32, #tpu.memory_space<vmem>>, vector<1x8x32xf32>
    %3 = vector.shape_cast %2 : vector<1x8x32xf32> to vector<8x32xf32>
    %cst = arith.constant 0.000000e+00 : f32
    %4 = vector.broadcast %cst : f32 to vector<8x32xf32>
    %c0_5 = arith.constant 0 : index
    %c0_6 = arith.constant 0 : index
    %c0_7 = arith.constant 0 : index
    %5 = vector.load %arg3[%c0_5, %c0_6, %c0_7] : memref<4x32x8xf32, #tpu.memory_space<vmem>>, vector<1x32x8xf32>
    %6 = vector.shape_cast %5 : vector<1x32x8xf32> to vector<32x8xf32>
    %cst_8 = arith.constant dense<0.000000e+00> : vector<8x8xf32>
    %7 = tpu.matmul %1, %6, %cst_8 {dimension_numbers = #tpu.dot_dimension_numbers<[1], [0], [0], [1], [0, 0, 1, 1], [], []>} : vector<8x32xf32>, vector<32x8xf32>, vector<8x8xf32> -> vector<8x8xf32>
    %c0_9 = arith.constant 0 : index
    %c0_10 = arith.constant 0 : index
    %c0_11 = arith.constant 0 : index
    %8 = vector.load %arg4[%c0_9, %c0_10, %c0_11] : memref<4x1x8xf32, #tpu.memory_space<vmem>>, vector<1x1x8xf32>
    %9 = vector.shape_cast %8 : vector<1x1x8xf32> to vector<1x8xf32>
    %10 = vector.broadcast %9 : vector<1x8xf32> to vector<8x8xf32>
    %11 = arith.addf %7, %10 : vector<8x8xf32>
    %c0_12 = arith.constant 0 : index
    %c0_13 = arith.constant 0 : index
    %c0_14 = arith.constant 0 : index
    %12 = vector.load %arg5[%c0_12, %c0_13, %c0_14] : memref<4x32x8xf32, #tpu.memory_space<vmem>>, vector<1x32x8xf32>
    %13 = vector.shape_cast %12 : vector<1x32x8xf32> to vector<32x8xf32>
    %cst_15 = arith.constant dense<0.000000e+00> : vector<8x8xf32>
    %14 = tpu.matmul %3, %13, %cst_15 {dimension_numbers = #tpu.dot_dimension_numbers<[1], [0], [0], [1], [0, 0, 1, 1], [], []>} : vector<8x32xf32>, vector<32x8xf32>, vector<8x8xf32> -> vector<8x8xf32>
    %c0_16 = arith.constant 0 : index
    %c0_17 = arith.constant 0 : index
    %c0_18 = arith.constant 0 : index
    %15 = vector.load %arg6[%c0_16, %c0_17, %c0_18] : memref<4x1x8xf32, #tpu.memory_space<vmem>>, vector<1x1x8xf32>
    %16 = vector.shape_cast %15 : vector<1x1x8xf32> to vector<1x8xf32>
    %17 = vector.broadcast %16 : vector<1x8xf32> to vector<8x8xf32>
    %18 = arith.addf %14, %17 : vector<8x8xf32>
    %c0_19 = arith.constant 0 : index
    %c0_20 = arith.constant 0 : index
    %c0_21 = arith.constant 0 : index
    %19 = vector.load %arg7[%c0_19, %c0_20, %c0_21] : memref<4x32x8xf32, #tpu.memory_space<vmem>>, vector<1x32x8xf32>
    %20 = vector.shape_cast %19 : vector<1x32x8xf32> to vector<32x8xf32>
    %cst_22 = arith.constant dense<0.000000e+00> : vector<8x8xf32>
    %21 = tpu.matmul %3, %20, %cst_22 {dimension_numbers = #tpu.dot_dimension_numbers<[1], [0], [0], [1], [0, 0, 1, 1], [], []>} : vector<8x32xf32>, vector<32x8xf32>, vector<8x8xf32> -> vector<8x8xf32>
    %c0_23 = arith.constant 0 : index
    %c0_24 = arith.constant 0 : index
    %c0_25 = arith.constant 0 : index
    %22 = vector.load %arg8[%c0_23, %c0_24, %c0_25] : memref<4x1x8xf32, #tpu.memory_space<vmem>>, vector<1x1x8xf32>
    %23 = vector.shape_cast %22 : vector<1x1x8xf32> to vector<1x8xf32>
    %24 = vector.broadcast %23 : vector<1x8xf32> to vector<8x8xf32>
    %25 = arith.addf %21, %24 : vector<8x8xf32>
    %cst_26 = arith.constant dense<0.000000e+00> : vector<8x8xf32>
    %26 = tpu.matmul %11, %18, %cst_26 {dimension_numbers = #tpu.dot_dimension_numbers<[1], [1], [0], [0], [0, 0, 1, 0], [], []>} : vector<8x8xf32>, vector<8x8xf32>, vector<8x8xf32> -> vector<8x8xf32>
    %cst_27 = arith.constant dense<0xFF800000> : vector<8xf32>
    %27 = vector.multi_reduction <maximumf>, %26, %cst_27 [1] : vector<8x8xf32> to vector<8xf32>
    %28 = vector.shape_cast %27 : vector<8xf32> to vector<8x1xf32>
    %29 = vector.broadcast %28 : vector<8x1xf32> to vector<8x8xf32>
    %30 = arith.subf %26, %29 : vector<8x8xf32>
    %31 = math.exp %30 : vector<8x8xf32>
    %cst_28 = arith.constant dense<0.000000e+00> : vector<8xf32>
    %32 = vector.multi_reduction <add>, %31, %cst_28 [1] : vector<8x8xf32> to vector<8xf32>
    %33 = vector.shape_cast %32 : vector<8xf32> to vector<8x1xf32>
    %34 = tpu.reciprocal %33 {approx = true} : vector<8x1xf32> -> vector<8x1xf32>
    %35 = vector.broadcast %34 : vector<8x1xf32> to vector<8x8xf32>
    %36 = arith.mulf %31, %35 : vector<8x8xf32>
    %cst_29 = arith.constant dense<0.000000e+00> : vector<8x8xf32>
    %37 = tpu.matmul %36, %25, %cst_29 {dimension_numbers = #tpu.dot_dimension_numbers<[1], [0], [0], [1], [0, 0, 1, 1], [], []>} : vector<8x8xf32>, vector<8x8xf32>, vector<8x8xf32> -> vector<8x8xf32>
    %c0_30 = arith.constant 0 : index
    %c0_31 = arith.constant 0 : index
    %c0_32 = arith.constant 0 : index
    %38 = vector.load %arg9[%c0_30, %c0_31, %c0_32] : memref<4x8x32xf32, #tpu.memory_space<vmem>>, vector<1x8x32xf32>
    %39 = vector.shape_cast %38 : vector<1x8x32xf32> to vector<8x32xf32>
    %cst_33 = arith.constant dense<0.000000e+00> : vector<8x32xf32>
    %40 = tpu.matmul %37, %39, %cst_33 {dimension_numbers = #tpu.dot_dimension_numbers<[1], [0], [0], [1], [0, 0, 1, 1], [], []>} : vector<8x8xf32>, vector<8x32xf32>, vector<8x32xf32> -> vector<8x32xf32>
    %41 = arith.addf %4, %40 : vector<8x32xf32>
    %c1 = arith.constant 1 : index
    %c0_34 = arith.constant 0 : index
    %c0_35 = arith.constant 0 : index
    %42 = vector.load %arg3[%c1, %c0_34, %c0_35] : memref<4x32x8xf32, #tpu.memory_space<vmem>>, vector<1x32x8xf32>
    %43 = vector.shape_cast %42 : vector<1x32x8xf32> to vector<32x8xf32>
    %cst_36 = arith.constant dense<0.000000e+00> : vector<8x8xf32>
    %44 = tpu.matmul %1, %43, %cst_36 {dimension_numbers = #tpu.dot_dimension_numbers<[1], [0], [0], [1], [0, 0, 1, 1], [], []>} : vector<8x32xf32>, vector<32x8xf32>, vector<8x8xf32> -> vector<8x8xf32>
    %c1_37 = arith.constant 1 : index
    %c0_38 = arith.constant 0 : index
    %c0_39 = arith.constant 0 : index
    %45 = vector.load %arg4[%c1_37, %c0_38, %c0_39] : memref<4x1x8xf32, #tpu.memory_space<vmem>>, vector<1x1x8xf32>
    %46 = vector.shape_cast %45 : vector<1x1x8xf32> to vector<1x8xf32>
    %47 = vector.broadcast %46 : vector<1x8xf32> to vector<8x8xf32>
    %48 = arith.addf %44, %47 : vector<8x8xf32>
    %c1_40 = arith.constant 1 : index
    %c0_41 = arith.constant 0 : index
    %c0_42 = arith.constant 0 : index
    %49 = vector.load %arg5[%c1_40, %c0_41, %c0_42] : memref<4x32x8xf32, #tpu.memory_space<vmem>>, vector<1x32x8xf32>
    %50 = vector.shape_cast %49 : vector<1x32x8xf32> to vector<32x8xf32>
    %cst_43 = arith.constant dense<0.000000e+00> : vector<8x8xf32>
    %51 = tpu.matmul %3, %50, %cst_43 {dimension_numbers = #tpu.dot_dimension_numbers<[1], [0], [0], [1], [0, 0, 1, 1], [], []>} : vector<8x32xf32>, vector<32x8xf32>, vector<8x8xf32> -> vector<8x8xf32>
    %c1_44 = arith.constant 1 : index
    %c0_45 = arith.constant 0 : index
    %c0_46 = arith.constant 0 : index
    %52 = vector.load %arg6[%c1_44, %c0_45, %c0_46] : memref<4x1x8xf32, #tpu.memory_space<vmem>>, vector<1x1x8xf32>
    %53 = vector.shape_cast %52 : vector<1x1x8xf32> to vector<1x8xf32>
    %54 = vector.broadcast %53 : vector<1x8xf32> to vector<8x8xf32>
    %55 = arith.addf %51, %54 : vector<8x8xf32>
    %c1_47 = arith.constant 1 : index
    %c0_48 = arith.constant 0 : index
    %c0_49 = arith.constant 0 : index
    %56 = vector.load %arg7[%c1_47, %c0_48, %c0_49] : memref<4x32x8xf32, #tpu.memory_space<vmem>>, vector<1x32x8xf32>
    %57 = vector.shape_cast %56 : vector<1x32x8xf32> to vector<32x8xf32>
    %cst_50 = arith.constant dense<0.000000e+00> : vector<8x8xf32>
    %58 = tpu.matmul %3, %57, %cst_50 {dimension_numbers = #tpu.dot_dimension_numbers<[1], [0], [0], [1], [0, 0, 1, 1], [], []>} : vector<8x32xf32>, vector<32x8xf32>, vector<8x8xf32> -> vector<8x8xf32>
    %c1_51 = arith.constant 1 : index
    %c0_52 = arith.constant 0 : index
    %c0_53 = arith.constant 0 : index
    %59 = vector.load %arg8[%c1_51, %c0_52, %c0_53] : memref<4x1x8xf32, #tpu.memory_space<vmem>>, vector<1x1x8xf32>
    %60 = vector.shape_cast %59 : vector<1x1x8xf32> to vector<1x8xf32>
    %61 = vector.broadcast %60 : vector<1x8xf32> to vector<8x8xf32>
    %62 = arith.addf %58, %61 : vector<8x8xf32>
    %cst_54 = arith.constant dense<0.000000e+00> : vector<8x8xf32>
    %63 = tpu.matmul %48, %55, %cst_54 {dimension_numbers = #tpu.dot_dimension_numbers<[1], [1], [0], [0], [0, 0, 1, 0], [], []>} : vector<8x8xf32>, vector<8x8xf32>, vector<8x8xf32> -> vector<8x8xf32>
    %cst_55 = arith.constant dense<0xFF800000> : vector<8xf32>
    %64 = vector.multi_reduction <maximumf>, %63, %cst_55 [1] : vector<8x8xf32> to vector<8xf32>
    %65 = vector.shape_cast %64 : vector<8xf32> to vector<8x1xf32>
    %66 = vector.broadcast %65 : vector<8x1xf32> to vector<8x8xf32>
    %67 = arith.subf %63, %66 : vector<8x8xf32>
    %68 = math.exp %67 : vector<8x8xf32>
    %cst_56 = arith.constant dense<0.000000e+00> : vector<8xf32>
    %69 = vector.multi_reduction <add>, %68, %cst_56 [1] : vector<8x8xf32> to vector<8xf32>
    %70 = vector.shape_cast %69 : vector<8xf32> to vector<8x1xf32>
    %71 = tpu.reciprocal %70 {approx = true} : vector<8x1xf32> -> vector<8x1xf32>
    %72 = vector.broadcast %71 : vector<8x1xf32> to vector<8x8xf32>
    %73 = arith.mulf %68, %72 : vector<8x8xf32>
    %cst_57 = arith.constant dense<0.000000e+00> : vector<8x8xf32>
    %74 = tpu.matmul %73, %62, %cst_57 {dimension_numbers = #tpu.dot_dimension_numbers<[1], [0], [0], [1], [0, 0, 1, 1], [], []>} : vector<8x8xf32>, vector<8x8xf32>, vector<8x8xf32> -> vector<8x8xf32>
    %c1_58 = arith.constant 1 : index
    %c0_59 = arith.constant 0 : index
    %c0_60 = arith.constant 0 : index
    %75 = vector.load %arg9[%c1_58, %c0_59, %c0_60] : memref<4x8x32xf32, #tpu.memory_space<vmem>>, vector<1x8x32xf32>
    %76 = vector.shape_cast %75 : vector<1x8x32xf32> to vector<8x32xf32>
    %cst_61 = arith.constant dense<0.000000e+00> : vector<8x32xf32>
    %77 = tpu.matmul %74, %76, %cst_61 {dimension_numbers = #tpu.dot_dimension_numbers<[1], [0], [0], [1], [0, 0, 1, 1], [], []>} : vector<8x8xf32>, vector<8x32xf32>, vector<8x32xf32> -> vector<8x32xf32>
    %78 = arith.addf %41, %77 : vector<8x32xf32>
    %c2 = arith.constant 2 : index
    %c0_62 = arith.constant 0 : index
    %c0_63 = arith.constant 0 : index
    %79 = vector.load %arg3[%c2, %c0_62, %c0_63] : memref<4x32x8xf32, #tpu.memory_space<vmem>>, vector<1x32x8xf32>
    %80 = vector.shape_cast %79 : vector<1x32x8xf32> to vector<32x8xf32>
    %cst_64 = arith.constant dense<0.000000e+00> : vector<8x8xf32>
    %81 = tpu.matmul %1, %80, %cst_64 {dimension_numbers = #tpu.dot_dimension_numbers<[1], [0], [0], [1], [0, 0, 1, 1], [], []>} : vector<8x32xf32>, vector<32x8xf32>, vector<8x8xf32> -> vector<8x8xf32>
    %c2_65 = arith.constant 2 : index
    %c0_66 = arith.constant 0 : index
    %c0_67 = arith.constant 0 : index
    %82 = vector.load %arg4[%c2_65, %c0_66, %c0_67] : memref<4x1x8xf32, #tpu.memory_space<vmem>>, vector<1x1x8xf32>
    %83 = vector.shape_cast %82 : vector<1x1x8xf32> to vector<1x8xf32>
    %84 = vector.broadcast %83 : vector<1x8xf32> to vector<8x8xf32>
    %85 = arith.addf %81, %84 : vector<8x8xf32>
    %c2_68 = arith.constant 2 : index
    %c0_69 = arith.constant 0 : index
    %c0_70 = arith.constant 0 : index
    %86 = vector.load %arg5[%c2_68, %c0_69, %c0_70] : memref<4x32x8xf32, #tpu.memory_space<vmem>>, vector<1x32x8xf32>
    %87 = vector.shape_cast %86 : vector<1x32x8xf32> to vector<32x8xf32>
    %cst_71 = arith.constant dense<0.000000e+00> : vector<8x8xf32>
    %88 = tpu.matmul %3, %87, %cst_71 {dimension_numbers = #tpu.dot_dimension_numbers<[1], [0], [0], [1], [0, 0, 1, 1], [], []>} : vector<8x32xf32>, vector<32x8xf32>, vector<8x8xf32> -> vector<8x8xf32>
    %c2_72 = arith.constant 2 : index
    %c0_73 = arith.constant 0 : index
    %c0_74 = arith.constant 0 : index
    %89 = vector.load %arg6[%c2_72, %c0_73, %c0_74] : memref<4x1x8xf32, #tpu.memory_space<vmem>>, vector<1x1x8xf32>
    %90 = vector.shape_cast %89 : vector<1x1x8xf32> to vector<1x8xf32>
    %91 = vector.broadcast %90 : vector<1x8xf32> to vector<8x8xf32>
    %92 = arith.addf %88, %91 : vector<8x8xf32>
    %c2_75 = arith.constant 2 : index
    %c0_76 = arith.constant 0 : index
    %c0_77 = arith.constant 0 : index
    %93 = vector.load %arg7[%c2_75, %c0_76, %c0_77] : memref<4x32x8xf32, #tpu.memory_space<vmem>>, vector<1x32x8xf32>
    %94 = vector.shape_cast %93 : vector<1x32x8xf32> to vector<32x8xf32>
    %cst_78 = arith.constant dense<0.000000e+00> : vector<8x8xf32>
    %95 = tpu.matmul %3, %94, %cst_78 {dimension_numbers = #tpu.dot_dimension_numbers<[1], [0], [0], [1], [0, 0, 1, 1], [], []>} : vector<8x32xf32>, vector<32x8xf32>, vector<8x8xf32> -> vector<8x8xf32>
    %c2_79 = arith.constant 2 : index
    %c0_80 = arith.constant 0 : index
    %c0_81 = arith.constant 0 : index
    %96 = vector.load %arg8[%c2_79, %c0_80, %c0_81] : memref<4x1x8xf32, #tpu.memory_space<vmem>>, vector<1x1x8xf32>
    %97 = vector.shape_cast %96 : vector<1x1x8xf32> to vector<1x8xf32>
    %98 = vector.broadcast %97 : vector<1x8xf32> to vector<8x8xf32>
    %99 = arith.addf %95, %98 : vector<8x8xf32>
    %cst_82 = arith.constant dense<0.000000e+00> : vector<8x8xf32>
    %100 = tpu.matmul %85, %92, %cst_82 {dimension_numbers = #tpu.dot_dimension_numbers<[1], [1], [0], [0], [0, 0, 1, 0], [], []>} : vector<8x8xf32>, vector<8x8xf32>, vector<8x8xf32> -> vector<8x8xf32>
    %cst_83 = arith.constant dense<0xFF800000> : vector<8xf32>
    %101 = vector.multi_reduction <maximumf>, %100, %cst_83 [1] : vector<8x8xf32> to vector<8xf32>
    %102 = vector.shape_cast %101 : vector<8xf32> to vector<8x1xf32>
    %103 = vector.broadcast %102 : vector<8x1xf32> to vector<8x8xf32>
    %104 = arith.subf %100, %103 : vector<8x8xf32>
    %105 = math.exp %104 : vector<8x8xf32>
    %cst_84 = arith.constant dense<0.000000e+00> : vector<8xf32>
    %106 = vector.multi_reduction <add>, %105, %cst_84 [1] : vector<8x8xf32> to vector<8xf32>
    %107 = vector.shape_cast %106 : vector<8xf32> to vector<8x1xf32>
    %108 = tpu.reciprocal %107 {approx = true} : vector<8x1xf32> -> vector<8x1xf32>
    %109 = vector.broadcast %108 : vector<8x1xf32> to vector<8x8xf32>
    %110 = arith.mulf %105, %109 : vector<8x8xf32>
    %cst_85 = arith.constant dense<0.000000e+00> : vector<8x8xf32>
    %111 = tpu.matmul %110, %99, %cst_85 {dimension_numbers = #tpu.dot_dimension_numbers<[1], [0], [0], [1], [0, 0, 1, 1], [], []>} : vector<8x8xf32>, vector<8x8xf32>, vector<8x8xf32> -> vector<8x8xf32>
    %c2_86 = arith.constant 2 : index
    %c0_87 = arith.constant 0 : index
    %c0_88 = arith.constant 0 : index
    %112 = vector.load %arg9[%c2_86, %c0_87, %c0_88] : memref<4x8x32xf32, #tpu.memory_space<vmem>>, vector<1x8x32xf32>
    %113 = vector.shape_cast %112 : vector<1x8x32xf32> to vector<8x32xf32>
    %cst_89 = arith.constant dense<0.000000e+00> : vector<8x32xf32>
    %114 = tpu.matmul %111, %113, %cst_89 {dimension_numbers = #tpu.dot_dimension_numbers<[1], [0], [0], [1], [0, 0, 1, 1], [], []>} : vector<8x8xf32>, vector<8x32xf32>, vector<8x32xf32> -> vector<8x32xf32>
    %115 = arith.addf %78, %114 : vector<8x32xf32>
    %c3 = arith.constant 3 : index
    %c0_90 = arith.constant 0 : index
    %c0_91 = arith.constant 0 : index
    %116 = vector.load %arg3[%c3, %c0_90, %c0_91] : memref<4x32x8xf32, #tpu.memory_space<vmem>>, vector<1x32x8xf32>
    %117 = vector.shape_cast %116 : vector<1x32x8xf32> to vector<32x8xf32>
    %cst_92 = arith.constant dense<0.000000e+00> : vector<8x8xf32>
    %118 = tpu.matmul %1, %117, %cst_92 {dimension_numbers = #tpu.dot_dimension_numbers<[1], [0], [0], [1], [0, 0, 1, 1], [], []>} : vector<8x32xf32>, vector<32x8xf32>, vector<8x8xf32> -> vector<8x8xf32>
    %c3_93 = arith.constant 3 : index
    %c0_94 = arith.constant 0 : index
    %c0_95 = arith.constant 0 : index
    %119 = vector.load %arg4[%c3_93, %c0_94, %c0_95] : memref<4x1x8xf32, #tpu.memory_space<vmem>>, vector<1x1x8xf32>
    %120 = vector.shape_cast %119 : vector<1x1x8xf32> to vector<1x8xf32>
    %121 = vector.broadcast %120 : vector<1x8xf32> to vector<8x8xf32>
    %122 = arith.addf %118, %121 : vector<8x8xf32>
    %c3_96 = arith.constant 3 : index
    %c0_97 = arith.constant 0 : index
    %c0_98 = arith.constant 0 : index
    %123 = vector.load %arg5[%c3_96, %c0_97, %c0_98] : memref<4x32x8xf32, #tpu.memory_space<vmem>>, vector<1x32x8xf32>
    %124 = vector.shape_cast %123 : vector<1x32x8xf32> to vector<32x8xf32>
    %cst_99 = arith.constant dense<0.000000e+00> : vector<8x8xf32>
    %125 = tpu.matmul %3, %124, %cst_99 {dimension_numbers = #tpu.dot_dimension_numbers<[1], [0], [0], [1], [0, 0, 1, 1], [], []>} : vector<8x32xf32>, vector<32x8xf32>, vector<8x8xf32> -> vector<8x8xf32>
    %c3_100 = arith.constant 3 : index
    %c0_101 = arith.constant 0 : index
    %c0_102 = arith.constant 0 : index
    %126 = vector.load %arg6[%c3_100, %c0_101, %c0_102] : memref<4x1x8xf32, #tpu.memory_space<vmem>>, vector<1x1x8xf32>
    %127 = vector.shape_cast %126 : vector<1x1x8xf32> to vector<1x8xf32>
    %128 = vector.broadcast %127 : vector<1x8xf32> to vector<8x8xf32>
    %129 = arith.addf %125, %128 : vector<8x8xf32>
    %c3_103 = arith.constant 3 : index
    %c0_104 = arith.constant 0 : index
    %c0_105 = arith.constant 0 : index
    %130 = vector.load %arg7[%c3_103, %c0_104, %c0_105] : memref<4x32x8xf32, #tpu.memory_space<vmem>>, vector<1x32x8xf32>
    %131 = vector.shape_cast %130 : vector<1x32x8xf32> to vector<32x8xf32>
    %cst_106 = arith.constant dense<0.000000e+00> : vector<8x8xf32>
    %132 = tpu.matmul %3, %131, %cst_106 {dimension_numbers = #tpu.dot_dimension_numbers<[1], [0], [0], [1], [0, 0, 1, 1], [], []>} : vector<8x32xf32>, vector<32x8xf32>, vector<8x8xf32> -> vector<8x8xf32>
    %c3_107 = arith.constant 3 : index
    %c0_108 = arith.constant 0 : index
    %c0_109 = arith.constant 0 : index
    %133 = vector.load %arg8[%c3_107, %c0_108, %c0_109] : memref<4x1x8xf32, #tpu.memory_space<vmem>>, vector<1x1x8xf32>
    %134 = vector.shape_cast %133 : vector<1x1x8xf32> to vector<1x8xf32>
    %135 = vector.broadcast %134 : vector<1x8xf32> to vector<8x8xf32>
    %136 = arith.addf %132, %135 : vector<8x8xf32>
    %cst_110 = arith.constant dense<0.000000e+00> : vector<8x8xf32>
    %137 = tpu.matmul %122, %129, %cst_110 {dimension_numbers = #tpu.dot_dimension_numbers<[1], [1], [0], [0], [0, 0, 1, 0], [], []>} : vector<8x8xf32>, vector<8x8xf32>, vector<8x8xf32> -> vector<8x8xf32>
    %cst_111 = arith.constant dense<0xFF800000> : vector<8xf32>
    %138 = vector.multi_reduction <maximumf>, %137, %cst_111 [1] : vector<8x8xf32> to vector<8xf32>
    %139 = vector.shape_cast %138 : vector<8xf32> to vector<8x1xf32>
    %140 = vector.broadcast %139 : vector<8x1xf32> to vector<8x8xf32>
    %141 = arith.subf %137, %140 : vector<8x8xf32>
    %142 = math.exp %141 : vector<8x8xf32>
    %cst_112 = arith.constant dense<0.000000e+00> : vector<8xf32>
    %143 = vector.multi_reduction <add>, %142, %cst_112 [1] : vector<8x8xf32> to vector<8xf32>
    %144 = vector.shape_cast %143 : vector<8xf32> to vector<8x1xf32>
    %145 = tpu.reciprocal %144 {approx = true} : vector<8x1xf32> -> vector<8x1xf32>
    %146 = vector.broadcast %145 : vector<8x1xf32> to vector<8x8xf32>
    %147 = arith.mulf %142, %146 : vector<8x8xf32>
    %cst_113 = arith.constant dense<0.000000e+00> : vector<8x8xf32>
    %148 = tpu.matmul %147, %136, %cst_113 {dimension_numbers = #tpu.dot_dimension_numbers<[1], [0], [0], [1], [0, 0, 1, 1], [], []>} : vector<8x8xf32>, vector<8x8xf32>, vector<8x8xf32> -> vector<8x8xf32>
    %c3_114 = arith.constant 3 : index
    %c0_115 = arith.constant 0 : index
    %c0_116 = arith.constant 0 : index
    %149 = vector.load %arg9[%c3_114, %c0_115, %c0_116] : memref<4x8x32xf32, #tpu.memory_space<vmem>>, vector<1x8x32xf32>
    %150 = vector.shape_cast %149 : vector<1x8x32xf32> to vector<8x32xf32>
    %cst_117 = arith.constant dense<0.000000e+00> : vector<8x32xf32>
    %151 = tpu.matmul %148, %150, %cst_117 {dimension_numbers = #tpu.dot_dimension_numbers<[1], [0], [0], [1], [0, 0, 1, 1], [], []>} : vector<8x8xf32>, vector<8x32xf32>, vector<8x32xf32> -> vector<8x32xf32>
    %152 = arith.addf %115, %151 : vector<8x32xf32>
    %153 = arith.addf %1, %152 : vector<8x32xf32>
    %c0_118 = arith.constant 0 : index
    %c0_119 = arith.constant 0 : index
    %154 = vector.load %arg10[%c0_118, %c0_119] : memref<1x32xf32, #tpu.memory_space<vmem>>, vector<1x32xf32>
    %155 = vector.broadcast %154 : vector<1x32xf32> to vector<8x32xf32>
    %156 = arith.addf %153, %155 : vector<8x32xf32>
    %cst_120 = arith.constant dense<0.000000e+00> : vector<8xf32>
    %157 = vector.multi_reduction <add>, %156, %cst_120 [1] : vector<8x32xf32> to vector<8xf32>
    %158 = vector.shape_cast %157 : vector<8xf32> to vector<8x1xf32>
    %cst_121 = arith.constant 3.200000e+01 : f32
    %159 = vector.broadcast %cst_121 : f32 to vector<8x1xf32>
    %160 = arith.divf %158, %159 : vector<8x1xf32>
    %161 = vector.broadcast %160 : vector<8x1xf32> to vector<8x32xf32>
    %162 = arith.subf %156, %161 : vector<8x32xf32>
    %163 = arith.mulf %162, %162 : vector<8x32xf32>
    %cst_122 = arith.constant dense<0.000000e+00> : vector<8xf32>
    %164 = vector.multi_reduction <add>, %163, %cst_122 [1] : vector<8x32xf32> to vector<8xf32>
    %165 = vector.shape_cast %164 : vector<8xf32> to vector<8x1xf32>
    %cst_123 = arith.constant 3.200000e+01 : f32
    %166 = vector.broadcast %cst_123 : f32 to vector<8x1xf32>
    %167 = arith.divf %165, %166 : vector<8x1xf32>
    %168 = vector.broadcast %160 : vector<8x1xf32> to vector<8x32xf32>
    %169 = arith.subf %156, %168 : vector<8x32xf32>
    %cst_124 = arith.constant 9.99999974E-6 : f32
    %170 = vector.broadcast %cst_124 : f32 to vector<8x1xf32>
    %171 = arith.addf %167, %170 : vector<8x1xf32>
    %172 = math.rsqrt %171 : vector<8x1xf32>
    %173 = vector.broadcast %172 : vector<8x1xf32> to vector<8x32xf32>
    %174 = arith.mulf %169, %173 : vector<8x32xf32>
    %c0_125 = arith.constant 0 : index
    %c0_126 = arith.constant 0 : index
    %175 = vector.load %arg11[%c0_125, %c0_126] : memref<1x32xf32, #tpu.memory_space<vmem>>, vector<1x32xf32>
    %176 = vector.broadcast %175 : vector<1x32xf32> to vector<8x32xf32>
    %177 = arith.mulf %174, %176 : vector<8x32xf32>
    %c0_127 = arith.constant 0 : index
    %c0_128 = arith.constant 0 : index
    %178 = vector.load %arg12[%c0_127, %c0_128] : memref<1x32xf32, #tpu.memory_space<vmem>>, vector<1x32xf32>
    %179 = vector.broadcast %178 : vector<1x32xf32> to vector<8x32xf32>
    %180 = arith.addf %177, %179 : vector<8x32xf32>
    %c0_129 = arith.constant 0 : index
    %c0_130 = arith.constant 0 : index
    %c0_131 = arith.constant 0 : index
    %181 = vector.load %arg13[%c0_129, %c0_130, %c0_131] : memref<1x8x32xf32, #tpu.memory_space<vmem>>, vector<1x8x32xf32>
    %182 = vector.shape_cast %181 : vector<1x8x32xf32> to vector<8x32xf32>
    %183 = vector.shape_cast %180 : vector<8x32xf32> to vector<1x8x32xf32>
    tpu.vector_store %arg13[%c0_129, %c0_130, %c0_131], %183 {strides = array<i32>} : memref<1x8x32xf32, #tpu.memory_space<vmem>>, vector<1x8x32xf32>,
    return
  }
  func.func @transform_0(%arg0: i32) -> (i32, i32, i32) {
    %c0_i32 = arith.constant 0 : i32
    %c0_i32_0 = arith.constant 0 : i32
    %c0_i32_1 = arith.constant 0 : i32
    return %arg0, %c0_i32, %c0_i32_0 : i32, i32, i32
  }
  func.func @transform_1(%arg0: i32) -> (i32, i32, i32) {
    %c0_i32 = arith.constant 0 : i32
    %c0_i32_0 = arith.constant 0 : i32
    %c0_i32_1 = arith.constant 0 : i32
    return %arg0, %c0_i32, %c0_i32_0 : i32, i32, i32
  }
  func.func @transform_2(%arg0: i32) -> (i32, i32, i32) {
    %c0_i32 = arith.constant 0 : i32
    %c0_i32_0 = arith.constant 0 : i32
    %c0_i32_1 = arith.constant 0 : i32
    %c0_i32_2 = arith.constant 0 : i32
    return %c0_i32, %c0_i32_0, %c0_i32_1 : i32, i32, i32
  }
  func.func @transform_3(%arg0: i32) -> (i32, i32, i32) {
    %c0_i32 = arith.constant 0 : i32
    %c0_i32_0 = arith.constant 0 : i32
    %c0_i32_1 = arith.constant 0 : i32
    %c0_i32_2 = arith.constant 0 : i32
    return %c0_i32, %c0_i32_0, %c0_i32_1 : i32, i32, i32
  }
  func.func @transform_4(%arg0: i32) -> (i32, i32, i32) {
    %c0_i32 = arith.constant 0 : i32
    %c0_i32_0 = arith.constant 0 : i32
    %c0_i32_1 = arith.constant 0 : i32
    %c0_i32_2 = arith.constant 0 : i32
    return %c0_i32, %c0_i32_0, %c0_i32_1 : i32, i32, i32
  }
  func.func @transform_5(%arg0: i32) -> (i32, i32, i32) {
    %c0_i32 = arith.constant 0 : i32
    %c0_i32_0 = arith.constant 0 : i32
    %c0_i32_1 = arith.constant 0 : i32
    %c0_i32_2 = arith.constant 0 : i32
    return %c0_i32, %c0_i32_0, %c0_i32_1 : i32, i32, i32
  }
  func.func @transform_6(%arg0: i32) -> (i32, i32, i32) {
    %c0_i32 = arith.constant 0 : i32
    %c0_i32_0 = arith.constant 0 : i32
    %c0_i32_1 = arith.constant 0 : i32
    %c0_i32_2 = arith.constant 0 : i32
    return %c0_i32, %c0_i32_0, %c0_i32_1 : i32, i32, i32
  }
  func.func @transform_7(%arg0: i32) -> (i32, i32, i32) {
    %c0_i32 = arith.constant 0 : i32
    %c0_i32_0 = arith.constant 0 : i32
    %c0_i32_1 = arith.constant 0 : i32
    %c0_i32_2 = arith.constant 0 : i32
    return %c0_i32, %c0_i32_0, %c0_i32_1 : i32, i32, i32
  }
  func.func @transform_8(%arg0: i32) -> (i32, i32, i32) {
    %c0_i32 = arith.constant 0 : i32
    %c0_i32_0 = arith.constant 0 : i32
    %c0_i32_1 = arith.constant 0 : i32
    %c0_i32_2 = arith.constant 0 : i32
    return %c0_i32, %c0_i32_0, %c0_i32_1 : i32, i32, i32
  }
  func.func @transform_9(%arg0: i32) -> (i32, i32) {
    %c0_i32 = arith.constant 0 : i32
    %c0_i32_0 = arith.constant 0 : i32
    %c0_i32_1 = arith.constant 0 : i32
    return %c0_i32, %c0_i32_0 : i32, i32
  }
  func.func @transform_10(%arg0: i32) -> (i32, i32) {
    %c0_i32 = arith.constant 0 : i32
    %c0_i32_0 = arith.constant 0 : i32
    %c0_i32_1 = arith.constant 0 : i32
    return %c0_i32, %c0_i32_0 : i32, i32
  }
  func.func @transform_11(%arg0: i32) -> (i32, i32) {
    %c0_i32 = arith.constant 0 : i32
    %c0_i32_0 = arith.constant 0 : i32
    %c0_i32_1 = arith.constant 0 : i32
    return %c0_i32, %c0_i32_0 : i32, i32
  }
  func.func @transform_12(%arg0: i32) -> (i32, i32, i32) {
    %c0_i32 = arith.constant 0 : i32
    %c0_i32_0 = arith.constant 0 : i32
    %c0_i32_1 = arith.constant 0 : i32
    return %arg0, %c0_i32, %c0_i32_0 : i32, i32, i32
  }
}

</mosaic_0001>

<llo_original>
// kernel: seq2seq_forward.18
$region0: #{seq2seq_forward.18}
  #allocation0 [shape = 'u32[]', space=smem, size = 0x4, offset = 0x4, fixed_abs, tag = 'smem constant byte address 0x4 - core index']
  #allocation1 [shape = 'u32[144,128]{1,0:T(1,128)}', space=vmem, size = 0x12000, scoped, tag = 'internal scratch']
  %s0 = inlined_call_operand.vmem [shape: f32[16,64], index: 0, kind: input, shape index: {}]
  %s1 = inlined_call_operand.vmem [shape: f32[64,32], index: 1, kind: input, shape index: {}]
  %s2 = inlined_call_operand.vmem [shape: f32[1,32], index: 2, kind: input, shape index: {}]
  %s3 = inlined_call_operand.vmem [shape: f32[8,32], index: 3, kind: input, shape index: {}]
  %s4 = inlined_call_operand.vmem [shape: f32[16,32], index: 4, kind: output, shape index: {}]
  %s5 = sld [smem:[#allocation0]]
  $region49: #{seq2seq_forward.18} parent=0
    _
  %s7 = ssub.s32 1, %s5
  %s8 = scalar_select 0, %s7, %s5
  loop: start=0, step=1, limit=4
  $region2: #{seq2seq_forward.18} parent=0 // loop_pre_header
    _
  $region3: #{seq2seq_forward.18} parent=0 // loop_header
    %s10 = sphi 0, %s14
    %p11 = scmp.ge.s32.totalorder %s10, 4
    %s20 = sphi 0, %s22
    %s23 = sphi 0, %s20
    %s24 = sphi 0, %s23
    %s40 = sphi 0, %s24
    %s44 = sphi 0, %s44
    %s46 = sphi 0, %s44
    %s47 = sphi 0, %s46
    %s61 = sphi 0, %s47
    %s65 = sphi 0, %s65
    %s67 = sphi 0, %s65
    %s68 = sphi 0, %s67
    %s82 = sphi 0, %s68
    %s86 = sphi 0, %s86
    %s88 = sphi 0, %s86
    %s89 = sphi 0, %s88
    %s103 = sphi 0, %s89
    %s109 = sphi 0, %s111
    %s112 = sphi 0, %s109
    %s113 = sphi 0, %s112
    %s129 = sphi 0, %s113
  $region4: #{seq2seq_forward.18} parent=0 // loop_header_branch
    %13 = sbr.rel (%p11) target = $region8
  $region5: #{seq2seq_forward.18} parent=0 // loop_body
    %s15 = ssub.s32 %s10, 1
    %s16 = ssub.s32 %s10, 2
    %s17 = sadd.s32 %s10, 1
    %s18 = ssub.s32 %s10, %s17
    %p19 = scmp.eq.s32.totalorder %s18, 0
    %s21 = sadd.s32 %s20, 1
    %s22 = scalar_select %p19, %s20, %s21
    %p25 = pneg %p19
    %p26 = scmp.eq.s32.totalorder %s10, 1
    %p27 = por %p25, %p26
    %p28 = scmp.ne.s32.totalorder %s20, %s23
    %p29 = scmp.eq.s32.totalorder %s10, 0
    %p30 = por %p28, %p29
    %p31 = scmp.ne.s32.totalorder %s20, %s23
    %p32 = scmp.eq.s32.totalorder %s15, 1
    %p33 = por %p31, %p32
    %p34 = scmp.ne.s32.totalorder %s23, %s24
    %p35 = scmp.eq.s32.totalorder %s15, 0
    %p36 = por %p34, %p35
    %p37 = scmp.ne.s32.totalorder %s23, %s24
    %p38 = scmp.eq.s32.totalorder %s16, 1
    %p39 = por %p37, %p38
    %p41 = scmp.ne.s32.totalorder %s24, %s40
    %p42 = scmp.eq.s32.totalorder %s16, 0
    %p43 = por %p41, %p42
    %s45 = sadd.s32 %s44, 1
    %p48 = scmp.eq.s32.totalorder %s10, 1
    %p49 = scmp.ne.s32.totalorder %s44, %s46
    %p50 = scmp.eq.s32.totalorder %s10, 0
    %p51 = por %p49, %p50
    %p52 = scmp.ne.s32.totalorder %s44, %s46
    %p53 = scmp.eq.s32.totalorder %s15, 1
    %p54 = por %p52, %p53
    %p55 = scmp.ne.s32.totalorder %s46, %s47
    %p56 = scmp.eq.s32.totalorder %s15, 0
    %p57 = por %p55, %p56
    %p58 = scmp.ne.s32.totalorder %s46, %s47
    %p59 = scmp.eq.s32.totalorder %s16, 1
    %p60 = por %p58, %p59
    %p62 = scmp.ne.s32.totalorder %s47, %s61
    %p63 = scmp.eq.s32.totalorder %s16, 0
    %p64 = por %p62, %p63
    %s66 = sadd.s32 %s65, 1
    %p69 = scmp.eq.s32.totalorder %s10, 1
    %p70 = scmp.ne.s32.totalorder %s65, %s67
    %p71 = scmp.eq.s32.totalorder %s10, 0
    %p72 = por %p70, %p71
    %p73 = scmp.ne.s32.totalorder %s65, %s67
    %p74 = scmp.eq.s32.totalorder %s15, 1
    %p75 = por %p73, %p74
    %p76 = scmp.ne.s32.totalorder %s67, %s68
    %p77 = scmp.eq.s32.totalorder %s15, 0
    %p78 = por %p76, %p77
    %p79 = scmp.ne.s32.totalorder %s67, %s68
    %p80 = scmp.eq.s32.totalorder %s16, 1
    %p81 = por %p79, %p80
    %p83 = scmp.ne.s32.totalorder %s68, %s82
    %p84 = scmp.eq.s32.totalorder %s16, 0
    %p85 = por %p83, %p84
    %s87 = sadd.s32 %s86, 1
    %p90 = scmp.eq.s32.totalorder %s10, 1
    %p91 = scmp.ne.s32.totalorder %s86, %s88
    %p92 = scmp.eq.s32.totalorder %s10, 0
    %p93 = por %p91, %p92
    %p94 = scmp.ne.s32.totalorder %s86, %s88
    %p95 = scmp.eq.s32.totalorder %s15, 1
    %p96 = por %p94, %p95
    %p97 = scmp.ne.s32.totalorder %s88, %s89
    %p98 = scmp.eq.s32.totalorder %s15, 0
    %p99 = por %p97, %p98
    %p100 = scmp.ne.s32.totalorder %s88, %s89
    %p101 = scmp.eq.s32.totalorder %s16, 1
    %p102 = por %p100, %p101
    %p104 = scmp.ne.s32.totalorder %s89, %s103
    %p105 = scmp.eq.s32.totalorder %s16, 0
    %p106 = por %p104, %p105
    %s107 = ssub.s32 %s10, %s17
    %p108 = scmp.eq.s32.totalorder %s107, 0
    %s110 = sadd.s32 %s109, 1
    %s111 = scalar_select %p108, %s109, %s110
    %p114 = pneg %p108
    %p115 = scmp.eq.s32.totalorder %s10, 1
    %p116 = por %p114, %p115
    %p117 = scmp.ne.s32.totalorder %s109, %s112
    %p118 = scmp.eq.s32.totalorder %s10, 0
    %p119 = por %p117, %p118
    %p120 = scmp.ne.s32.totalorder %s109, %s112
    %p121 = scmp.eq.s32.totalorder %s15, 1
    %p122 = por %p120, %p121
    %p123 = scmp.ne.s32.totalorder %s112, %s113
    %p124 = scmp.eq.s32.totalorder %s15, 0
    %p125 = por %p123, %p124
    %p126 = scmp.ne.s32.totalorder %s112, %s113
    %p127 = scmp.eq.s32.totalorder %s16, 1
    %p128 = por %p126, %p127
    %p130 = scmp.ne.s32.totalorder %s113, %s129
    %p131 = scmp.eq.s32.totalorder %s16, 0
    %p132 = por %p130, %p131
    %p133 = scmp.le.s32.totalorder 1, %s10
    %p134 = scmp.lt.s32.totalorder %s10, 3
    %p135 = pnand %p133, %p134
    %p136 = pneg %p135
    // Predicated region
    $region9: #{seq2seq_forward.18} parent=5 // pred_check
      _
    $region10: #{seq2seq_forward.18} parent=5 // pred_check_branch
      %138 = sbr.rel (%p135) target = $region12
    $region11: #{seq2seq_forward.18} parent=5 // pred_region
      %s139 = ssub.s32 %s10, 1
      // Predicated region
      $region13: #{seq2seq_forward.18} parent=11 // pred_check
        %p140 = pneg %p57
      $region14: #{seq2seq_forward.18} parent=11 // pred_check_branch
        %142 = sbr.rel (%p140) target = $region16
      $region15: #{seq2seq_forward.18} parent=11 // pred_region
        _
      $region16: #{seq2seq_forward.18} parent=11 // pred_fallthru
        _
      // Predicated region
      $region17: #{seq2seq_forward.18} parent=11 // pred_check
        %p143 = pneg %p78
      $region18: #{seq2seq_forward.18} parent=11 // pred_check_branch
        %145 = sbr.rel (%p143) target = $region20
      $region19: #{seq2seq_forward.18} parent=11 // pred_region
        _
      $region20: #{seq2seq_forward.18} parent=11 // pred_fallthru
        _
      // Predicated region
      $region21: #{seq2seq_forward.18} parent=11 // pred_check
        %p146 = pneg %p99
      $region22: #{seq2seq_forward.18} parent=11 // pred_check_branch
        %148 = sbr.rel (%p146) target = $region24
      $region23: #{seq2seq_forward.18} parent=11 // pred_region
        _
      $region24: #{seq2seq_forward.18} parent=11 // pred_fallthru
        _
    $region12: #{seq2seq_forward.18} parent=5 // pred_fallthru
      _
    %p149 = scmp.lt.s32.totalorder %s10, 2
    // Predicated region
    $region25: #{seq2seq_forward.18} parent=5 // pred_check
      %p150 = pneg %p149
    $region26: #{seq2seq_forward.18} parent=5 // pred_check_branch
      %152 = sbr.rel (%p150) target = $region28
    $region27: #{seq2seq_forward.18} parent=5 // pred_region
      // Predicated region
      $region29: #{seq2seq_forward.18} parent=27 // pred_check
        %p153 = pneg %p30
      $region30: #{seq2seq_forward.18} parent=27 // pred_check_branch
        %155 = sbr.rel (%p153) target = $region32
      $region31: #{seq2seq_forward.18} parent=27 // pred_region
        %p156 = scmp.lt.s32.totalorder %s10, 1
        %s157 = scalar_select %p156, %s10, 1
        %s158 = smul.addr %s157, 8
        %s159 = scalar_lea.vmem %s0, %s158
      $region32: #{seq2seq_forward.18} parent=27 // pred_fallthru
        _
    $region28: #{seq2seq_forward.18} parent=5 // pred_fallthru
      _
    %p160 = scmp.le.s32.totalorder 1, %s10
    %p161 = scmp.lt.s32.totalorder %s10, 3
    %p162 = pnand %p160, %p161
    %p163 = pneg %p162
    // Predicated region
    $region33: #{seq2seq_forward.18} parent=5 // pred_check
      _
    $region34: #{seq2seq_forward.18} parent=5 // pred_check_branch
      %165 = sbr.rel (%p162) target = $region36
    $region35: #{seq2seq_forward.18} parent=5 // pred_region
      %s166 = ssub.s32 %s10, 1
      %p167 = scmp.lt.s32.totalorder %s15, 1
      %s168 = scalar_select %p167, %s15, 1
      %s169 = smul.addr %s168, 8
      %s170 = scalar_lea.vmem %s0, %s169
      %p171 = pneg %p36
      %p172 = pneg %p33
      %p173 = pneg %p57
      %p174 = pneg %p54
      %p175 = pneg %p78
      %p176 = pneg %p75
      %p177 = pneg %p99
      %p178 = pneg %p96
      %p179 = pneg %p125
      %p180 = pneg %p122
      %p181 = scmp.lt.s32.totalorder %s15, 1
      %s182 = scalar_select %p181, %s15, 1
      %s183 = smul.addr %s182, 8
      %s184 = scalar_lea.vmem %s4, %s183
      %p185 = scmp.lt.s32.totalorder %s15, 1
      %s186 = scalar_select %p185, %s15, 1
      %s187 = smul.addr %s186, 8
      %s188 = scalar_lea.vmem %s0, %s187
      %p189 = scmp.lt.s32.totalorder %s15, 1
      %s190 = scalar_select %p189, %s15, 1
      %s191 = smul.addr %s190, 8
      %s192 = scalar_lea.vmem %s4, %s191
      %v193 = vld [vmem:[%s188] sm:$0xff]
      %v194 = vld [vmem:[%s1] sm:$0xff]
      %v195 = vld [vmem:[%s1 + $0x8] sm:$0xff]
      %v196 = vld [vmem:[%s1 + $0x10] sm:$0xff]
      %v197 = vld [vmem:[%s1 + $0x18] sm:$0xff]
      %v198 = vld [vmem:[%s1 + $0x20] sm:$0xff]
      %v199 = vld [vmem:[%s1 + $0x28] sm:$0xff]
      %v200 = vld [vmem:[%s1 + $0x30] sm:$0xff]
      %v201 = vld [vmem:[%s1 + $0x38] sm:$0xff]
      %v202 = vld [vmem:[%s2] sm:$0x1]
      %v204 = vlaneseq
      %v205 = vshrl.u32 %v204, 7
      %v206 = vsub.s32 0, %v205
      %v207 = vrot.slane %v202, %v206
      %vm209 = vcmask 523264
      %v211 = vsel %vm209, %v193, 0
      %213 = vmatprep.subr.mxu0 0.0
      %214 = vmatpush1.msra.mxu0 0.0
      %215 = vmatprep.subr.mxu0 0.0
      %216 = vmatpush1.msra.mxu0 0.0
      %217 = vmatprep.subr.mxu0 0.0
      %218 = vmatpush1.msra.mxu0 0.0
      %219 = vmatprep.subr.mxu0 0.0
      %220 = vmatpush1.msra.mxu0 0.0
      %221 = vmatprep.subr.mxu0 0.0
      %222 = vmatpush1.msra.mxu0 0.0
      %223 = vmatprep.subr.mxu0 0.0
      %224 = vmatpush1.msra.mxu0 0.0
      %225 = vmatprep.subr.mxu0 0.0
      %226 = vmatpush1.msra.mxu0 0.0
      %227 = vmatprep.subr.mxu0 0.0
      %228 = vmatpush1.msra.mxu0 0.0
      %229 = vmatprep.subr.mxu0 0.0
      %230 = vmatpush1.msra.mxu0 %v201
      %231 = vmatprep.subr.mxu0 0.0
      %232 = vmatpush1.msra.mxu0 %v200
      %233 = vmatprep.subr.mxu0 0.0
      %234 = vmatpush1.msra.mxu0 %v199
      %235 = vmatprep.subr.mxu0 0.0
      %236 = vmatpush1.msra.mxu0 %v198
      %237 = vmatprep.subr.mxu0 0.0
      %238 = vmatpush1.msra.mxu0 %v197
      %239 = vmatprep.subr.mxu0 0.0
      %240 = vmatpush1.msra.mxu0 %v196
      %241 = vmatprep.subr.mxu0 0.0
      %242 = vmatpush1.msra.mxu0 %v195
      %243 = vmatprep.subr.mxu0 0.0
      %244 = vmatpush1.msra.mxu0 %v194
      %245 = vmatprep.subr.mxu0 0.0
      %246 = vmatpush2.msra.mxu0 0.0
      %247 = vmatprep.subr.mxu0 0.0
      %248 = vmatpush2.msra.mxu0 0.0
      %249 = vmatprep.subr.mxu0 0.0
      %250 = vmatpush2.msra.mxu0 0.0
      %251 = vmatprep.subr.mxu0 0.0
      %252 = vmatpush2.msra.mxu0 0.0
      %253 = vmatprep.subr.mxu0 0.0
      %254 = vmatpush2.msra.mxu0 0.0
      %255 = vmatprep.subr.mxu0 0.0
      %256 = vmatpush2.msra.mxu0 0.0
      %257 = vmatprep.subr.mxu0 0.0
      %258 = vmatpush2.msra.mxu0 0.0
      %259 = vmatprep.subr.mxu0 0.0
      %260 = vmatpush2.msra.mxu0 0.0
      %261 = vmatprep.subr.mxu0 0.0
      %262 = vmatpush2.msra.mxu0 0.0
      %263 = vmatprep.subr.mxu0 0.0
      %264 = vmatpush2.msra.mxu0 0.0
      %265 = vmatprep.subr.mxu0 0.0
      %266 = vmatpush2.msra.mxu0 0.0
      %267 = vmatprep.subr.mxu0 0.0
      %268 = vmatpush2.msra.mxu0 0.0
      %269 = vmatprep.subr.mxu0 0.0
      %270 = vmatpush2.msra.mxu0 0.0
      %271 = vmatprep.subr.mxu0 0.0
      %272 = vmatpush2.msra.mxu0 0.0
      %273 = vmatprep.subr.mxu0 0.0
      %274 = vmatpush2.msra.mxu0 0.0
      %275 = vmatprep.subr.mxu0 0.0
      %276 = vmatpush2.msra.mxu0 0.0
      %277 = vmatprep.mubr.f32.mxu0 0.0
      %278 = vmatmul.mubr.f32.gmra.mxu0 %v211
      %v279 = vpop.f32.mrf.mxu0
      %v280 = vadd.f32 %v207, %v279
      %v281 = vpop.f32.mrf.mxu0
      %282 = vdwg.mxu0
      %v283 = vld [vmem:[%s3] sm:$0xff]
      %v284 = vadd.f32 %v280, %v283
      %vm285 = vcmask 261120
      %286 = vst.msk [vmem:[%s192] sm:$0xff] %vm285, %v284
      %p287 = scmp.lt.s32.totalorder %s15, 1
      %s288 = scalar_select %p287, %s15, 1
      %s289 = smul.addr %s288, 8
      %s290 = scalar_lea.vmem %s4, %s289
      // Predicated region
      $region37: #{seq2seq_forward.18} parent=35 // pred_check
        %p291 = pneg %p122
      $region38: #{seq2seq_forward.18} parent=35 // pred_check_branch
        %293 = sbr.rel (%p291) target = $region40
      $region39: #{seq2seq_forward.18} parent=35 // pred_region
        _
      $region40: #{seq2seq_forward.18} parent=35 // pred_fallthru
        _
    $region36: #{seq2seq_forward.18} parent=5 // pred_fallthru
      _
    %p294 = scmp.le.s32.totalorder 2, %s10
    // Predicated region
    $region41: #{seq2seq_forward.18} parent=5 // pred_check
      %p295 = pneg %p294
    $region42: #{seq2seq_forward.18} parent=5 // pred_check_branch
      %297 = sbr.rel (%p295) target = $region44
    $region43: #{seq2seq_forward.18} parent=5 // pred_region
      %s298 = ssub.s32 %s10, 2
      // Predicated region
      $region45: #{seq2seq_forward.18} parent=43 // pred_check
        %p299 = pneg %p128
      $region46: #{seq2seq_forward.18} parent=43 // pred_check_branch
        %301 = sbr.rel (%p299) target = $region48
      $region47: #{seq2seq_forward.18} parent=43 // pred_region
        %p302 = scmp.lt.s32.totalorder %s16, 1
        %s303 = scalar_select %p302, %s16, 1
        %s304 = smul.addr %s303, 8
        %s305 = scalar_lea.vmem %s4, %s304
      $region48: #{seq2seq_forward.18} parent=43 // pred_fallthru
        _
    $region44: #{seq2seq_forward.18} parent=5 // pred_fallthru
      _
  $region6: #{seq2seq_forward.18} parent=0 // loop_footer
    %s14 = sadd.s32 1, %s10
  $region7: #{seq2seq_forward.18} parent=0 // loop_footer_branch
    %9 = sbr.rel target = $region3
  $region8: #{seq2seq_forward.18} parent=0 // loop_exit
    _

// kernel: seq2seq_forward.13
$region0: #{seq2seq_forward.13}
  #allocation0 [shape = 'u32[]', space=smem, size = 0x4, offset = 0x4, fixed_abs, tag = 'smem constant byte address 0x4 - core index']
  #allocation1 [shape = 'u32[144,128]{1,0:T(1,128)}', space=vmem, size = 0x12000, scoped, tag = 'internal scratch']
  %s0 = inlined_call_operand.vmem [shape: f32[16,48], index: 0, kind: input, shape index: {}]
  %s1 = inlined_call_operand.vmem [shape: f32[48,32], index: 1, kind: input, shape index: {}]
  %s2 = inlined_call_operand.vmem [shape: f32[1,32], index: 2, kind: input, shape index: {}]
  %s3 = inlined_call_operand.vmem [shape: f32[8,32], index: 3, kind: input, shape index: {}]
  %s4 = inlined_call_operand.vmem [shape: f32[16,32], index: 4, kind: output, shape index: {}]
  %s5 = sld [smem:[#allocation0]]
  $region49: #{seq2seq_forward.13} parent=0
    _
  %s7 = ssub.s32 1, %s5
  %s8 = scalar_select 0, %s7, %s5
  loop: start=0, step=1, limit=4
  $region2: #{seq2seq_forward.13} parent=0 // loop_pre_header
    _
  $region3: #{seq2seq_forward.13} parent=0 // loop_header
    %s10 = sphi 0, %s14
    %p11 = scmp.ge.s32.totalorder %s10, 4
    %s20 = sphi 0, %s22
    %s23 = sphi 0, %s20
    %s24 = sphi 0, %s23
    %s40 = sphi 0, %s24
    %s44 = sphi 0, %s44
    %s46 = sphi 0, %s44
    %s47 = sphi 0, %s46
    %s61 = sphi 0, %s47
    %s65 = sphi 0, %s65
    %s67 = sphi 0, %s65
    %s68 = sphi 0, %s67
    %s82 = sphi 0, %s68
    %s86 = sphi 0, %s86
    %s88 = sphi 0, %s86
    %s89 = sphi 0, %s88
    %s103 = sphi 0, %s89
    %s109 = sphi 0, %s111
    %s112 = sphi 0, %s109
    %s113 = sphi 0, %s112
    %s129 = sphi 0, %s113
  $region4: #{seq2seq_forward.13} parent=0 // loop_header_branch
    %13 = sbr.rel (%p11) target = $region8
  $region5: #{seq2seq_forward.13} parent=0 // loop_body
    %s15 = ssub.s32 %s10, 1
    %s16 = ssub.s32 %s10, 2
    %s17 = sadd.s32 %s10, 1
    %s18 = ssub.s32 %s10, %s17
    %p19 = scmp.eq.s32.totalorder %s18, 0
    %s21 = sadd.s32 %s20, 1
    %s22 = scalar_select %p19, %s20, %s21
    %p25 = pneg %p19
    %p26 = scmp.eq.s32.totalorder %s10, 1
    %p27 = por %p25, %p26
    %p28 = scmp.ne.s32.totalorder %s20, %s23
    %p29 = scmp.eq.s32.totalorder %s10, 0
    %p30 = por %p28, %p29
    %p31 = scmp.ne.s32.totalorder %s20, %s23
    %p32 = scmp.eq.s32.totalorder %s15, 1
    %p33 = por %p31, %p32
    %p34 = scmp.ne.s32.totalorder %s23, %s24
    %p35 = scmp.eq.s32.totalorder %s15, 0
    %p36 = por %p34, %p35
    %p37 = scmp.ne.s32.totalorder %s23, %s24
    %p38 = scmp.eq.s32.totalorder %s16, 1
    %p39 = por %p37, %p38
    %p41 = scmp.ne.s32.totalorder %s24, %s40
    %p42 = scmp.eq.s32.totalorder %s16, 0
    %p43 = por %p41, %p42
    %s45 = sadd.s32 %s44, 1
    %p48 = scmp.eq.s32.totalorder %s10, 1
    %p49 = scmp.ne.s32.totalorder %s44, %s46
    %p50 = scmp.eq.s32.totalorder %s10, 0
    %p51 = por %p49, %p50
    %p52 = scmp.ne.s32.totalorder %s44, %s46
    %p53 = scmp.eq.s32.totalorder %s15, 1
    %p54 = por %p52, %p53
    %p55 = scmp.ne.s32.totalorder %s46, %s47
    %p56 = scmp.eq.s32.totalorder %s15, 0
    %p57 = por %p55, %p56
    %p58 = scmp.ne.s32.totalorder %s46, %s47
    %p59 = scmp.eq.s32.totalorder %s16, 1
    %p60 = por %p58, %p59
    %p62 = scmp.ne.s32.totalorder %s47, %s61
    %p63 = scmp.eq.s32.totalorder %s16, 0
    %p64 = por %p62, %p63
    %s66 = sadd.s32 %s65, 1
    %p69 = scmp.eq.s32.totalorder %s10, 1
    %p70 = scmp.ne.s32.totalorder %s65, %s67
    %p71 = scmp.eq.s32.totalorder %s10, 0
    %p72 = por %p70, %p71
    %p73 = scmp.ne.s32.totalorder %s65, %s67
    %p74 = scmp.eq.s32.totalorder %s15, 1
    %p75 = por %p73, %p74
    %p76 = scmp.ne.s32.totalorder %s67, %s68
    %p77 = scmp.eq.s32.totalorder %s15, 0
    %p78 = por %p76, %p77
    %p79 = scmp.ne.s32.totalorder %s67, %s68
    %p80 = scmp.eq.s32.totalorder %s16, 1
    %p81 = por %p79, %p80
    %p83 = scmp.ne.s32.totalorder %s68, %s82
    %p84 = scmp.eq.s32.totalorder %s16, 0
    %p85 = por %p83, %p84
    %s87 = sadd.s32 %s86, 1
    %p90 = scmp.eq.s32.totalorder %s10, 1
    %p91 = scmp.ne.s32.totalorder %s86, %s88
    %p92 = scmp.eq.s32.totalorder %s10, 0
    %p93 = por %p91, %p92
    %p94 = scmp.ne.s32.totalorder %s86, %s88
    %p95 = scmp.eq.s32.totalorder %s15, 1
    %p96 = por %p94, %p95
    %p97 = scmp.ne.s32.totalorder %s88, %s89
    %p98 = scmp.eq.s32.totalorder %s15, 0
    %p99 = por %p97, %p98
    %p100 = scmp.ne.s32.totalorder %s88, %s89
    %p101 = scmp.eq.s32.totalorder %s16, 1
    %p102 = por %p100, %p101
    %p104 = scmp.ne.s32.totalorder %s89, %s103
    %p105 = scmp.eq.s32.totalorder %s16, 0
    %p106 = por %p104, %p105
    %s107 = ssub.s32 %s10, %s17
    %p108 = scmp.eq.s32.totalorder %s107, 0
    %s110 = sadd.s32 %s109, 1
    %s111 = scalar_select %p108, %s109, %s110
    %p114 = pneg %p108
    %p115 = scmp.eq.s32.totalorder %s10, 1
    %p116 = por %p114, %p115
    %p117 = scmp.ne.s32.totalorder %s109, %s112
    %p118 = scmp.eq.s32.totalorder %s10, 0
    %p119 = por %p117, %p118
    %p120 = scmp.ne.s32.totalorder %s109, %s112
    %p121 = scmp.eq.s32.totalorder %s15, 1
    %p122 = por %p120, %p121
    %p123 = scmp.ne.s32.totalorder %s112, %s113
    %p124 = scmp.eq.s32.totalorder %s15, 0
    %p125 = por %p123, %p124
    %p126 = scmp.ne.s32.totalorder %s112, %s113
    %p127 = scmp.eq.s32.totalorder %s16, 1
    %p128 = por %p126, %p127
    %p130 = scmp.ne.s32.totalorder %s113, %s129
    %p131 = scmp.eq.s32.totalorder %s16, 0
    %p132 = por %p130, %p131
    %p133 = scmp.le.s32.totalorder 1, %s10
    %p134 = scmp.lt.s32.totalorder %s10, 3
    %p135 = pnand %p133, %p134
    %p136 = pneg %p135
    // Predicated region
    $region9: #{seq2seq_forward.13} parent=5 // pred_check
      _
    $region10: #{seq2seq_forward.13} parent=5 // pred_check_branch
      %138 = sbr.rel (%p135) target = $region12
    $region11: #{seq2seq_forward.13} parent=5 // pred_region
      %s139 = ssub.s32 %s10, 1
      // Predicated region
      $region13: #{seq2seq_forward.13} parent=11 // pred_check
        %p140 = pneg %p57
      $region14: #{seq2seq_forward.13} parent=11 // pred_check_branch
        %142 = sbr.rel (%p140) target = $region16
      $region15: #{seq2seq_forward.13} parent=11 // pred_region
        _
      $region16: #{seq2seq_forward.13} parent=11 // pred_fallthru
        _
      // Predicated region
      $region17: #{seq2seq_forward.13} parent=11 // pred_check
        %p143 = pneg %p78
      $region18: #{seq2seq_forward.13} parent=11 // pred_check_branch
        %145 = sbr.rel (%p143) target = $region20
      $region19: #{seq2seq_forward.13} parent=11 // pred_region
        _
      $region20: #{seq2seq_forward.13} parent=11 // pred_fallthru
        _
      // Predicated region
      $region21: #{seq2seq_forward.13} parent=11 // pred_check
        %p146 = pneg %p99
      $region22: #{seq2seq_forward.13} parent=11 // pred_check_branch
        %148 = sbr.rel (%p146) target = $region24
      $region23: #{seq2seq_forward.13} parent=11 // pred_region
        _
      $region24: #{seq2seq_forward.13} parent=11 // pred_fallthru
        _
    $region12: #{seq2seq_forward.13} parent=5 // pred_fallthru
      _
    %p149 = scmp.lt.s32.totalorder %s10, 2
    // Predicated region
    $region25: #{seq2seq_forward.13} parent=5 // pred_check
      %p150 = pneg %p149
    $region26: #{seq2seq_forward.13} parent=5 // pred_check_branch
      %152 = sbr.rel (%p150) target = $region28
    $region27: #{seq2seq_forward.13} parent=5 // pred_region
      // Predicated region
      $region29: #{seq2seq_forward.13} parent=27 // pred_check
        %p153 = pneg %p30
      $region30: #{seq2seq_forward.13} parent=27 // pred_check_branch
        %155 = sbr.rel (%p153) target = $region32
      $region31: #{seq2seq_forward.13} parent=27 // pred_region
        %p156 = scmp.lt.s32.totalorder %s10, 1
        %s157 = scalar_select %p156, %s10, 1
        %s158 = smul.addr %s157, 8
        %s159 = scalar_lea.vmem %s0, %s158
      $region32: #{seq2seq_forward.13} parent=27 // pred_fallthru
        _
    $region28: #{seq2seq_forward.13} parent=5 // pred_fallthru
      _
    %p160 = scmp.le.s32.totalorder 1, %s10
    %p161 = scmp.lt.s32.totalorder %s10, 3
    %p162 = pnand %p160, %p161
    %p163 = pneg %p162
    // Predicated region
    $region33: #{seq2seq_forward.13} parent=5 // pred_check
      _
    $region34: #{seq2seq_forward.13} parent=5 // pred_check_branch
      %165 = sbr.rel (%p162) target = $region36
    $region35: #{seq2seq_forward.13} parent=5 // pred_region
      %s166 = ssub.s32 %s10, 1
      %p167 = scmp.lt.s32.totalorder %s15, 1
      %s168 = scalar_select %p167, %s15, 1
      %s169 = smul.addr %s168, 8
      %s170 = scalar_lea.vmem %s0, %s169
      %p171 = pneg %p36
      %p172 = pneg %p33
      %p173 = pneg %p57
      %p174 = pneg %p54
      %p175 = pneg %p78
      %p176 = pneg %p75
      %p177 = pneg %p99
      %p178 = pneg %p96
      %p179 = pneg %p125
      %p180 = pneg %p122
      %p181 = scmp.lt.s32.totalorder %s15, 1
      %s182 = scalar_select %p181, %s15, 1
      %s183 = smul.addr %s182, 8
      %s184 = scalar_lea.vmem %s4, %s183
      %p185 = scmp.lt.s32.totalorder %s15, 1
      %s186 = scalar_select %p185, %s15, 1
      %s187 = smul.addr %s186, 8
      %s188 = scalar_lea.vmem %s0, %s187
      %p189 = scmp.lt.s32.totalorder %s15, 1
      %s190 = scalar_select %p189, %s15, 1
      %s191 = smul.addr %s190, 8
      %s192 = scalar_lea.vmem %s4, %s191
      %v193 = vld [vmem:[%s188] sm:$0xff]
      %v194 = vld [vmem:[%s1] sm:$0xff]
      %v195 = vld [vmem:[%s1 + $0x8] sm:$0xff]
      %v196 = vld [vmem:[%s1 + $0x10] sm:$0xff]
      %v197 = vld [vmem:[%s1 + $0x18] sm:$0xff]
      %v198 = vld [vmem:[%s1 + $0x20] sm:$0xff]
      %v199 = vld [vmem:[%s1 + $0x28] sm:$0xff]
      %v200 = vld [vmem:[%s2] sm:$0x1]
      %v202 = vlaneseq
      %v203 = vshrl.u32 %v202, 7
      %v204 = vsub.s32 0, %v203
      %v205 = vrot.slane %v200, %v204
      %vm207 = vcmask 392192
      %v209 = vsel %vm207, %v193, 0
      %211 = vmatprep.subr.mxu0 0.0
      %212 = vmatpush1.msra.mxu0 0.0
      %213 = vmatprep.subr.mxu0 0.0
      %214 = vmatpush1.msra.mxu0 0.0
      %215 = vmatprep.subr.mxu0 0.0
      %216 = vmatpush1.msra.mxu0 0.0
      %217 = vmatprep.subr.mxu0 0.0
      %218 = vmatpush1.msra.mxu0 0.0
      %219 = vmatprep.subr.mxu0 0.0
      %220 = vmatpush1.msra.mxu0 0.0
      %221 = vmatprep.subr.mxu0 0.0
      %222 = vmatpush1.msra.mxu0 0.0
      %223 = vmatprep.subr.mxu0 0.0
      %224 = vmatpush1.msra.mxu0 0.0
      %225 = vmatprep.subr.mxu0 0.0
      %226 = vmatpush1.msra.mxu0 0.0
      %227 = vmatprep.subr.mxu0 0.0
      %228 = vmatpush1.msra.mxu0 0.0
      %229 = vmatprep.subr.mxu0 0.0
      %230 = vmatpush1.msra.mxu0 0.0
      %231 = vmatprep.subr.mxu0 0.0
      %232 = vmatpush1.msra.mxu0 %v199
      %233 = vmatprep.subr.mxu0 0.0
      %234 = vmatpush1.msra.mxu0 %v198
      %235 = vmatprep.subr.mxu0 0.0
      %236 = vmatpush1.msra.mxu0 %v197
      %237 = vmatprep.subr.mxu0 0.0
      %238 = vmatpush1.msra.mxu0 %v196
      %239 = vmatprep.subr.mxu0 0.0
      %240 = vmatpush1.msra.mxu0 %v195
      %241 = vmatprep.subr.mxu0 0.0
      %242 = vmatpush1.msra.mxu0 %v194
      %243 = vmatprep.subr.mxu0 0.0
      %244 = vmatpush2.msra.mxu0 0.0
      %245 = vmatprep.subr.mxu0 0.0
      %246 = vmatpush2.msra.mxu0 0.0
      %247 = vmatprep.subr.mxu0 0.0
      %248 = vmatpush2.msra.mxu0 0.0
      %249 = vmatprep.subr.mxu0 0.0
      %250 = vmatpush2.msra.mxu0 0.0
      %251 = vmatprep.subr.mxu0 0.0
      %252 = vmatpush2.msra.mxu0 0.0
      %253 = vmatprep.subr.mxu0 0.0
      %254 = vmatpush2.msra.mxu0 0.0
      %255 = vmatprep.subr.mxu0 0.0
      %256 = vmatpush2.msra.mxu0 0.0
      %257 = vmatprep.subr.mxu0 0.0
      %258 = vmatpush2.msra.mxu0 0.0
      %259 = vmatprep.subr.mxu0 0.0
      %260 = vmatpush2.msra.mxu0 0.0
      %261 = vmatprep.subr.mxu0 0.0
      %262 = vmatpush2.msra.mxu0 0.0
      %263 = vmatprep.subr.mxu0 0.0
      %264 = vmatpush2.msra.mxu0 0.0
      %265 = vmatprep.subr.mxu0 0.0
      %266 = vmatpush2.msra.mxu0 0.0
      %267 = vmatprep.subr.mxu0 0.0
      %268 = vmatpush2.msra.mxu0 0.0
      %269 = vmatprep.subr.mxu0 0.0
      %270 = vmatpush2.msra.mxu0 0.0
      %271 = vmatprep.subr.mxu0 0.0
      %272 = vmatpush2.msra.mxu0 0.0
      %273 = vmatprep.subr.mxu0 0.0
      %274 = vmatpush2.msra.mxu0 0.0
      %275 = vmatprep.mubr.f32.mxu0 0.0
      %276 = vmatmul.mubr.f32.gmra.mxu0 %v209
      %v277 = vpop.f32.mrf.mxu0
      %v278 = vadd.f32 %v205, %v277
      %v279 = vpop.f32.mrf.mxu0
      %280 = vdwg.mxu0
      %v281 = vld [vmem:[%s3] sm:$0xff]
      %v282 = vadd.f32 %v278, %v281
      %vm283 = vcmask 261120
      %284 = vst.msk [vmem:[%s192] sm:$0xff] %vm283, %v282
      %p285 = scmp.lt.s32.totalorder %s15, 1
      %s286 = scalar_select %p285, %s15, 1
      %s287 = smul.addr %s286, 8
      %s288 = scalar_lea.vmem %s4, %s287
      // Predicated region
      $region37: #{seq2seq_forward.13} parent=35 // pred_check
        %p289 = pneg %p122
      $region38: #{seq2seq_forward.13} parent=35 // pred_check_branch
        %291 = sbr.rel (%p289) target = $region40
      $region39: #{seq2seq_forward.13} parent=35 // pred_region
        _
      $region40: #{seq2seq_forward.13} parent=35 // pred_fallthru
        _
    $region36: #{seq2seq_forward.13} parent=5 // pred_fallthru
      _
    %p292 = scmp.le.s32.totalorder 2, %s10
    // Predicated region
    $region41: #{seq2seq_forward.13} parent=5 // pred_check
      %p293 = pneg %p292
    $region42: #{seq2seq_forward.13} parent=5 // pred_check_branch
      %295 = sbr.rel (%p293) target = $region44
    $region43: #{seq2seq_forward.13} parent=5 // pred_region
      %s296 = ssub.s32 %s10, 2
      // Predicated region
      $region45: #{seq2seq_forward.13} parent=43 // pred_check
        %p297 = pneg %p128
      $region46: #{seq2seq_forward.13} parent=43 // pred_check_branch
        %299 = sbr.rel (%p297) target = $region48
      $region47: #{seq2seq_forward.13} parent=43 // pred_region
        %p300 = scmp.lt.s32.totalorder %s16, 1
        %s301 = scalar_select %p300, %s16, 1
        %s302 = smul.addr %s301, 8
        %s303 = scalar_lea.vmem %s4, %s302
      $region48: #{seq2seq_forward.13} parent=43 // pred_fallthru
        _
    $region44: #{seq2seq_forward.13} parent=5 // pred_fallthru
      _
  $region6: #{seq2seq_forward.13} parent=0 // loop_footer
    %s14 = sadd.s32 1, %s10
  $region7: #{seq2seq_forward.13} parent=0 // loop_footer_branch
    %9 = sbr.rel target = $region3
  $region8: #{seq2seq_forward.13} parent=0 // loop_exit
    _

// kernel: seq2seq_forward.19
$region0: #{seq2seq_forward.19}
  #allocation0 [shape = 'u32[]', space=smem, size = 0x4, offset = 0x4, fixed_abs, tag = 'smem constant byte address 0x4 - core index']
  #allocation1 [shape = 'u32[144,128]{1,0:T(1,128)}', space=vmem, size = 0x12000, scoped, tag = 'internal scratch']
  %s0 = inlined_call_operand.vmem [shape: f32[2,8,32], index: 0, kind: input, shape index: {}, may-alias: {0,1}]
  %s1 = inlined_call_operand.vmem [shape: f32[2,8,32], index: 1, kind: input, shape index: {}, may-alias: {0,1}]
  %s2 = inlined_call_operand.vmem [shape: f32[4,32,8], index: 2, kind: input, shape index: {}]
  %s3 = inlined_call_operand.vmem [shape: f32[4,1,8], index: 3, kind: input, shape index: {}]
  %s4 = inlined_call_operand.vmem [shape: f32[4,32,8], index: 4, kind: input, shape index: {}]
  %s5 = inlined_call_operand.vmem [shape: f32[4,1,8], index: 5, kind: input, shape index: {}]
  %s6 = inlined_call_operand.vmem [shape: f32[4,32,8], index: 6, kind: input, shape index: {}]
  %s7 = inlined_call_operand.vmem [shape: f32[4,1,8], index: 7, kind: input, shape index: {}]
  %s8 = inlined_call_operand.vmem [shape: f32[4,8,32], index: 8, kind: input, shape index: {}]
  %s9 = inlined_call_operand.vmem [shape: f32[1,32], index: 9, kind: input, shape index: {}]
  %s10 = inlined_call_operand.vmem [shape: f32[1,32], index: 10, kind: input, shape index: {}]
  %s11 = inlined_call_operand.vmem [shape: f32[1,32], index: 11, kind: input, shape index: {}]
  %s12 = inlined_call_operand.vmem [shape: f32[2,1,8], index: 12, kind: input, shape index: {}]
  %s13 = inlined_call_operand.vmem [shape: f32[2,8,32], index: 13, kind: output, shape index: {}]
  %s14 = sld [smem:[#allocation0]]
  $region85: #{seq2seq_forward.19} parent=0
    _
  %s16 = ssub.s32 1, %s14
  %s17 = scalar_select 0, %s16, %s14
  loop: start=0, step=1, limit=4
  $region2: #{seq2seq_forward.19} parent=0 // loop_pre_header
    _
  $region3: #{seq2seq_forward.19} parent=0 // loop_header
    %s19 = sphi 0, %s23
    %p20 = scmp.ge.s32.totalorder %s19, 4
    %s29 = sphi 0, %s31
    %s32 = sphi 0, %s29
    %s33 = sphi 0, %s32
    %s49 = sphi 0, %s33
    %s55 = sphi 0, %s57
    %s58 = sphi 0, %s55
    %s59 = sphi 0, %s58
    %s75 = sphi 0, %s59
    %s79 = sphi 0, %s79
    %s81 = sphi 0, %s79
    %s82 = sphi 0, %s81
    %s96 = sphi 0, %s82
    %s100 = sphi 0, %s100
    %s102 = sphi 0, %s100
    %s103 = sphi 0, %s102
    %s117 = sphi 0, %s103
    %s121 = sphi 0, %s121
    %s123 = sphi 0, %s121
    %s124 = sphi 0, %s123
    %s138 = sphi 0, %s124
    %s142 = sphi 0, %s142
    %s144 = sphi 0, %s142
    %s145 = sphi 0, %s144
    %s159 = sphi 0, %s145
    %s163 = sphi 0, %s163
    %s165 = sphi 0, %s163
    %s166 = sphi 0, %s165
    %s180 = sphi 0, %s166
    %s184 = sphi 0, %s184
    %s186 = sphi 0, %s184
    %s187 = sphi 0, %s186
    %s201 = sphi 0, %s187
    %s205 = sphi 0, %s205
    %s207 = sphi 0, %s205
    %s208 = sphi 0, %s207
    %s222 = sphi 0, %s208
    %s226 = sphi 0, %s226
    %s228 = sphi 0, %s226
    %s229 = sphi 0, %s228
    %s243 = sphi 0, %s229
    %s247 = sphi 0, %s247
    %s249 = sphi 0, %s247
    %s250 = sphi 0, %s249
    %s264 = sphi 0, %s250
    %s268 = sphi 0, %s268
    %s270 = sphi 0, %s268
    %s271 = sphi 0, %s270
    %s285 = sphi 0, %s271
    %s291 = sphi 0, %s293
    %s294 = sphi 0, %s291
    %s295 = sphi 0, %s294
    %s311 = sphi 0, %s295
    %s317 = sphi 0, %s319
    %s320 = sphi 0, %s317
    %s321 = sphi 0, %s320
    %s337 = sphi 0, %s321
  $region4: #{seq2seq_forward.19} parent=0 // loop_header_branch
    %22 = sbr.rel (%p20) target = $region8
  $region5: #{seq2seq_forward.19} parent=0 // loop_body
    %s24 = ssub.s32 %s19, 1
    %s25 = ssub.s32 %s19, 2
    %s26 = sadd.s32 %s19, 1
    %s27 = ssub.s32 %s19, %s26
    %p28 = scmp.eq.s32.totalorder %s27, 0
    %s30 = sadd.s32 %s29, 1
    %s31 = scalar_select %p28, %s29, %s30
    %p34 = pneg %p28
    %p35 = scmp.eq.s32.totalorder %s19, 1
    %p36 = por %p34, %p35
    %p37 = scmp.ne.s32.totalorder %s29, %s32
    %p38 = scmp.eq.s32.totalorder %s19, 0
    %p39 = por %p37, %p38
    %p40 = scmp.ne.s32.totalorder %s29, %s32
    %p41 = scmp.eq.s32.totalorder %s24, 1
    %p42 = por %p40, %p41
    %p43 = scmp.ne.s32.totalorder %s32, %s33
    %p44 = scmp.eq.s32.totalorder %s24, 0
    %p45 = por %p43, %p44
    %p46 = scmp.ne.s32.totalorder %s32, %s33
    %p47 = scmp.eq.s32.totalorder %s25, 1
    %p48 = por %p46, %p47
    %p50 = scmp.ne.s32.totalorder %s33, %s49
    %p51 = scmp.eq.s32.totalorder %s25, 0
    %p52 = por %p50, %p51
    %s53 = ssub.s32 %s19, %s26
    %p54 = scmp.eq.s32.totalorder %s53, 0
    %s56 = sadd.s32 %s55, 1
    %s57 = scalar_select %p54, %s55, %s56
    %p60 = pneg %p54
    %p61 = scmp.eq.s32.totalorder %s19, 1
    %p62 = por %p60, %p61
    %p63 = scmp.ne.s32.totalorder %s55, %s58
    %p64 = scmp.eq.s32.totalorder %s19, 0
    %p65 = por %p63, %p64
    %p66 = scmp.ne.s32.totalorder %s55, %s58
    %p67 = scmp.eq.s32.totalorder %s24, 1
    %p68 = por %p66, %p67
    %p69 = scmp.ne.s32.totalorder %s58, %s59
    %p70 = scmp.eq.s32.totalorder %s24, 0
    %p71 = por %p69, %p70
    %p72 = scmp.ne.s32.totalorder %s58, %s59
    %p73 = scmp.eq.s32.totalorder %s25, 1
    %p74 = por %p72, %p73
    %p76 = scmp.ne.s32.totalorder %s59, %s75
    %p77 = scmp.eq.s32.totalorder %s25, 0
    %p78 = por %p76, %p77
    %s80 = sadd.s32 %s79, 1
    %p83 = scmp.eq.s32.totalorder %s19, 1
    %p84 = scmp.ne.s32.totalorder %s79, %s81
    %p85 = scmp.eq.s32.totalorder %s19, 0
    %p86 = por %p84, %p85
    %p87 = scmp.ne.s32.totalorder %s79, %s81
    %p88 = scmp.eq.s32.totalorder %s24, 1
    %p89 = por %p87, %p88
    %p90 = scmp.ne.s32.totalorder %s81, %s82
    %p91 = scmp.eq.s32.totalorder %s24, 0
    %p92 = por %p90, %p91
    %p93 = scmp.ne.s32.totalorder %s81, %s82
    %p94 = scmp.eq.s32.totalorder %s25, 1
    %p95 = por %p93, %p94
    %p97 = scmp.ne.s32.totalorder %s82, %s96
    %p98 = scmp.eq.s32.totalorder %s25, 0
    %p99 = por %p97, %p98
    %s101 = sadd.s32 %s100, 1
    %p104 = scmp.eq.s32.totalorder %s19, 1
    %p105 = scmp.ne.s32.totalorder %s100, %s102
    %p106 = scmp.eq.s32.totalorder %s19, 0
    %p107 = por %p105, %p106
    %p108 = scmp.ne.s32.totalorder %s100, %s102
    %p109 = scmp.eq.s32.totalorder %s24, 1
    %p110 = por %p108, %p109
    %p111 = scmp.ne.s32.totalorder %s102, %s103
    %p112 = scmp.eq.s32.totalorder %s24, 0
    %p113 = por %p111, %p112
    %p114 = scmp.ne.s32.totalorder %s102, %s103
    %p115 = scmp.eq.s32.totalorder %s25, 1
    %p116 = por %p114, %p115
    %p118 = scmp.ne.s32.totalorder %s103, %s117
    %p119 = scmp.eq.s32.totalorder %s25, 0
    %p120 = por %p118, %p119
    %s122 = sadd.s32 %s121, 1
    %p125 = scmp.eq.s32.totalorder %s19, 1
    %p126 = scmp.ne.s32.totalorder %s121, %s123
    %p127 = scmp.eq.s32.totalorder %s19, 0
    %p128 = por %p126, %p127
    %p129 = scmp.ne.s32.totalorder %s121, %s123
    %p130 = scmp.eq.s32.totalorder %s24, 1
    %p131 = por %p129, %p130
    %p132 = scmp.ne.s32.totalorder %s123, %s124
    %p133 = scmp.eq.s32.totalorder %s24, 0
    %p134 = por %p132, %p133
    %p135 = scmp.ne.s32.totalorder %s123, %s124
    %p136 = scmp.eq.s32.totalorder %s25, 1
    %p137 = por %p135, %p136
    %p139 = scmp.ne.s32.totalorder %s124, %s138
    %p140 = scmp.eq.s32.totalorder %s25, 0
    %p141 = por %p139, %p140
    %s143 = sadd.s32 %s142, 1
    %p146 = scmp.eq.s32.totalorder %s19, 1
    %p147 = scmp.ne.s32.totalorder %s142, %s144
    %p148 = scmp.eq.s32.totalorder %s19, 0
    %p149 = por %p147, %p148
    %p150 = scmp.ne.s32.totalorder %s142, %s144
    %p151 = scmp.eq.s32.totalorder %s24, 1
    %p152 = por %p150, %p151
    %p153 = scmp.ne.s32.totalorder %s144, %s145
    %p154 = scmp.eq.s32.totalorder %s24, 0
    %p155 = por %p153, %p154
    %p156 = scmp.ne.s32.totalorder %s144, %s145
    %p157 = scmp.eq.s32.totalorder %s25, 1
    %p158 = por %p156, %p157
    %p160 = scmp.ne.s32.totalorder %s145, %s159
    %p161 = scmp.eq.s32.totalorder %s25, 0
    %p162 = por %p160, %p161
    %s164 = sadd.s32 %s163, 1
    %p167 = scmp.eq.s32.totalorder %s19, 1
    %p168 = scmp.ne.s32.totalorder %s163, %s165
    %p169 = scmp.eq.s32.totalorder %s19, 0
    %p170 = por %p168, %p169
    %p171 = scmp.ne.s32.totalorder %s163, %s165
    %p172 = scmp.eq.s32.totalorder %s24, 1
    %p173 = por %p171, %p172
    %p174 = scmp.ne.s32.totalorder %s165, %s166
    %p175 = scmp.eq.s32.totalorder %s24, 0
    %p176 = por %p174, %p175
    %p177 = scmp.ne.s32.totalorder %s165, %s166
    %p178 = scmp.eq.s32.totalorder %s25, 1
    %p179 = por %p177, %p178
    %p181 = scmp.ne.s32.totalorder %s166, %s180
    %p182 = scmp.eq.s32.totalorder %s25, 0
    %p183 = por %p181, %p182
    %s185 = sadd.s32 %s184, 1
    %p188 = scmp.eq.s32.totalorder %s19, 1
    %p189 = scmp.ne.s32.totalorder %s184, %s186
    %p190 = scmp.eq.s32.totalorder %s19, 0
    %p191 = por %p189, %p190
    %p192 = scmp.ne.s32.totalorder %s184, %s186
    %p193 = scmp.eq.s32.totalorder %s24, 1
    %p194 = por %p192, %p193
    %p195 = scmp.ne.s32.totalorder %s186, %s187
    %p196 = scmp.eq.s32.totalorder %s24, 0
    %p197 = por %p195, %p196
    %p198 = scmp.ne.s32.totalorder %s186, %s187
    %p199 = scmp.eq.s32.totalorder %s25, 1
    %p200 = por %p198, %p199
    %p202 = scmp.ne.s32.totalorder %s187, %s201
    %p203 = scmp.eq.s32.totalorder %s25, 0
    %p204 = por %p202, %p203
    %s206 = sadd.s32 %s205, 1
    %p209 = scmp.eq.s32.totalorder %s19, 1
    %p210 = scmp.ne.s32.totalorder %s205, %s207
    %p211 = scmp.eq.s32.totalorder %s19, 0
    %p212 = por %p210, %p211
    %p213 = scmp.ne.s32.totalorder %s205, %s207
    %p214 = scmp.eq.s32.totalorder %s24, 1
    %p215 = por %p213, %p214
    %p216 = scmp.ne.s32.totalorder %s207, %s208
    %p217 = scmp.eq.s32.totalorder %s24, 0
    %p218 = por %p216, %p217
    %p219 = scmp.ne.s32.totalorder %s207, %s208
    %p220 = scmp.eq.s32.totalorder %s25, 1
    %p221 = por %p219, %p220
    %p223 = scmp.ne.s32.totalorder %s208, %s222
    %p224 = scmp.eq.s32.totalorder %s25, 0
    %p225 = por %p223, %p224
    %s227 = sadd.s32 %s226, 1
    %p230 = scmp.eq.s32.totalorder %s19, 1
    %p231 = scmp.ne.s32.totalorder %s226, %s228
    %p232 = scmp.eq.s32.totalorder %s19, 0
    %p233 = por %p231, %p232
    %p234 = scmp.ne.s32.totalorder %s226, %s228
    %p235 = scmp.eq.s32.totalorder %s24, 1
    %p236 = por %p234, %p235
    %p237 = scmp.ne.s32.totalorder %s228, %s229
    %p238 = scmp.eq.s32.totalorder %s24, 0
    %p239 = por %p237, %p238
    %p240 = scmp.ne.s32.totalorder %s228, %s229
    %p241 = scmp.eq.s32.totalorder %s25, 1
    %p242 = por %p240, %p241
    %p244 = scmp.ne.s32.totalorder %s229, %s243
    %p245 = scmp.eq.s32.totalorder %s25, 0
    %p246 = por %p244, %p245
    %s248 = sadd.s32 %s247, 1
    %p251 = scmp.eq.s32.totalorder %s19, 1
    %p252 = scmp.ne.s32.totalorder %s247, %s249
    %p253 = scmp.eq.s32.totalorder %s19, 0
    %p254 = por %p252, %p253
    %p255 = scmp.ne.s32.totalorder %s247, %s249
    %p256 = scmp.eq.s32.totalorder %s24, 1
    %p257 = por %p255, %p256
    %p258 = scmp.ne.s32.totalorder %s249, %s250
    %p259 = scmp.eq.s32.totalorder %s24, 0
    %p260 = por %p258, %p259
    %p261 = scmp.ne.s32.totalorder %s249, %s250
    %p262 = scmp.eq.s32.totalorder %s25, 1
    %p263 = por %p261, %p262
    %p265 = scmp.ne.s32.totalorder %s250, %s264
    %p266 = scmp.eq.s32.totalorder %s25, 0
    %p267 = por %p265, %p266
    %s269 = sadd.s32 %s268, 1
    %p272 = scmp.eq.s32.totalorder %s19, 1
    %p273 = scmp.ne.s32.totalorder %s268, %s270
    %p274 = scmp.eq.s32.totalorder %s19, 0
    %p275 = por %p273, %p274
    %p276 = scmp.ne.s32.totalorder %s268, %s270
    %p277 = scmp.eq.s32.totalorder %s24, 1
    %p278 = por %p276, %p277
    %p279 = scmp.ne.s32.totalorder %s270, %s271
    %p280 = scmp.eq.s32.totalorder %s24, 0
    %p281 = por %p279, %p280
    %p282 = scmp.ne.s32.totalorder %s270, %s271
    %p283 = scmp.eq.s32.totalorder %s25, 1
    %p284 = por %p282, %p283
    %p286 = scmp.ne.s32.totalorder %s271, %s285
    %p287 = scmp.eq.s32.totalorder %s25, 0
    %p288 = por %p286, %p287
    %s289 = ssub.s32 %s19, %s26
    %p290 = scmp.eq.s32.totalorder %s289, 0
    %s292 = sadd.s32 %s291, 1
    %s293 = scalar_select %p290, %s291, %s292
    %p296 = pneg %p290
    %p297 = scmp.eq.s32.totalorder %s19, 1
    %p298 = por %p296, %p297
    %p299 = scmp.ne.s32.totalorder %s291, %s294
    %p300 = scmp.eq.s32.totalorder %s19, 0
    %p301 = por %p299, %p300
    %p302 = scmp.ne.s32.totalorder %s291, %s294
    %p303 = scmp.eq.s32.totalorder %s24, 1
    %p304 = por %p302, %p303
    %p305 = scmp.ne.s32.totalorder %s294, %s295
    %p306 = scmp.eq.s32.totalorder %s24, 0
    %p307 = por %p305, %p306
    %p308 = scmp.ne.s32.totalorder %s294, %s295
    %p309 = scmp.eq.s32.totalorder %s25, 1
    %p310 = por %p308, %p309
    %p312 = scmp.ne.s32.totalorder %s295, %s311
    %p313 = scmp.eq.s32.totalorder %s25, 0
    %p314 = por %p312, %p313
    %s315 = ssub.s32 %s19, %s26
    %p316 = scmp.eq.s32.totalorder %s315, 0
    %s318 = sadd.s32 %s317, 1
    %s319 = scalar_select %p316, %s317, %s318
    %p322 = pneg %p316
    %p323 = scmp.eq.s32.totalorder %s19, 1
    %p324 = por %p322, %p323
    %p325 = scmp.ne.s32.totalorder %s317, %s320
    %p326 = scmp.eq.s32.totalorder %s19, 0
    %p327 = por %p325, %p326
    %p328 = scmp.ne.s32.totalorder %s317, %s320
    %p329 = scmp.eq.s32.totalorder %s24, 1
    %p330 = por %p328, %p329
    %p331 = scmp.ne.s32.totalorder %s320, %s321
    %p332 = scmp.eq.s32.totalorder %s24, 0
    %p333 = por %p331, %p332
    %p334 = scmp.ne.s32.totalorder %s320, %s321
    %p335 = scmp.eq.s32.totalorder %s25, 1
    %p336 = por %p334, %p335
    %p338 = scmp.ne.s32.totalorder %s321, %s337
    %p339 = scmp.eq.s32.totalorder %s25, 0
    %p340 = por %p338, %p339
    %p341 = scmp.le.s32.totalorder 1, %s19
    %p342 = scmp.lt.s32.totalorder %s19, 3
    %p343 = pnand %p341, %p342
    %p344 = pneg %p343
    // Predicated region
    $region9: #{seq2seq_forward.19} parent=5 // pred_check
      _
    $region10: #{seq2seq_forward.19} parent=5 // pred_check_branch
      %346 = sbr.rel (%p343) target = $region12
    $region11: #{seq2seq_forward.19} parent=5 // pred_region
      %s347 = ssub.s32 %s19, 1
      // Predicated region
      $region13: #{seq2seq_forward.19} parent=11 // pred_check
        %p348 = pneg %p92
      $region14: #{seq2seq_forward.19} parent=11 // pred_check_branch
        %350 = sbr.rel (%p348) target = $region16
      $region15: #{seq2seq_forward.19} parent=11 // pred_region
        _
      $region16: #{seq2seq_forward.19} parent=11 // pred_fallthru
        _
      // Predicated region
      $region17: #{seq2seq_forward.19} parent=11 // pred_check
        %p351 = pneg %p113
      $region18: #{seq2seq_forward.19} parent=11 // pred_check_branch
        %353 = sbr.rel (%p351) target = $region20
      $region19: #{seq2seq_forward.19} parent=11 // pred_region
        _
      $region20: #{seq2seq_forward.19} parent=11 // pred_fallthru
        _
      // Predicated region
      $region21: #{seq2seq_forward.19} parent=11 // pred_check
        %p354 = pneg %p134
      $region22: #{seq2seq_forward.19} parent=11 // pred_check_branch
        %356 = sbr.rel (%p354) target = $region24
      $region23: #{seq2seq_forward.19} parent=11 // pred_region
        _
      $region24: #{seq2seq_forward.19} parent=11 // pred_fallthru
        _
      // Predicated region
      $region25: #{seq2seq_forward.19} parent=11 // pred_check
        %p357 = pneg %p155
      $region26: #{seq2seq_forward.19} parent=11 // pred_check_branch
        %359 = sbr.rel (%p357) target = $region28
      $region27: #{seq2seq_forward.19} parent=11 // pred_region
        _
      $region28: #{seq2seq_forward.19} parent=11 // pred_fallthru
        _
      // Predicated region
      $region29: #{seq2seq_forward.19} parent=11 // pred_check
        %p360 = pneg %p176
      $region30: #{seq2seq_forward.19} parent=11 // pred_check_branch
        %362 = sbr.rel (%p360) target = $region32
      $region31: #{seq2seq_forward.19} parent=11 // pred_region
        _
      $region32: #{seq2seq_forward.19} parent=11 // pred_fallthru
        _
      // Predicated region
      $region33: #{seq2seq_forward.19} parent=11 // pred_check
        %p363 = pneg %p197
      $region34: #{seq2seq_forward.19} parent=11 // pred_check_branch
        %365 = sbr.rel (%p363) target = $region36
      $region35: #{seq2seq_forward.19} parent=11 // pred_region
        _
      $region36: #{seq2seq_forward.19} parent=11 // pred_fallthru
        _
      // Predicated region
      $region37: #{seq2seq_forward.19} parent=11 // pred_check
        %p366 = pneg %p218
      $region38: #{seq2seq_forward.19} parent=11 // pred_check_branch
        %368 = sbr.rel (%p366) target = $region40
      $region39: #{seq2seq_forward.19} parent=11 // pred_region
        _
      $region40: #{seq2seq_forward.19} parent=11 // pred_fallthru
        _
      // Predicated region
      $region41: #{seq2seq_forward.19} parent=11 // pred_check
        %p369 = pneg %p239
      $region42: #{seq2seq_forward.19} parent=11 // pred_check_branch
        %371 = sbr.rel (%p369) target = $region44
      $region43: #{seq2seq_forward.19} parent=11 // pred_region
        _
      $region44: #{seq2seq_forward.19} parent=11 // pred_fallthru
        _
      // Predicated region
      $region45: #{seq2seq_forward.19} parent=11 // pred_check
        %p372 = pneg %p260
      $region46: #{seq2seq_forward.19} parent=11 // pred_check_branch
        %374 = sbr.rel (%p372) target = $region48
      $region47: #{seq2seq_forward.19} parent=11 // pred_region
        _
      $region48: #{seq2seq_forward.19} parent=11 // pred_fallthru
        _
      // Predicated region
      $region49: #{seq2seq_forward.19} parent=11 // pred_check
        %p375 = pneg %p281
      $region50: #{seq2seq_forward.19} parent=11 // pred_check_branch
        %377 = sbr.rel (%p375) target = $region52
      $region51: #{seq2seq_forward.19} parent=11 // pred_region
        _
      $region52: #{seq2seq_forward.19} parent=11 // pred_fallthru
        _
    $region12: #{seq2seq_forward.19} parent=5 // pred_fallthru
      _
    %p378 = scmp.lt.s32.totalorder %s19, 2
    // Predicated region
    $region53: #{seq2seq_forward.19} parent=5 // pred_check
      %p379 = pneg %p378
    $region54: #{seq2seq_forward.19} parent=5 // pred_check_branch
      %381 = sbr.rel (%p379) target = $region56
    $region55: #{seq2seq_forward.19} parent=5 // pred_region
      // Predicated region
      $region57: #{seq2seq_forward.19} parent=55 // pred_check
        %p382 = pneg %p39
      $region58: #{seq2seq_forward.19} parent=55 // pred_check_branch
        %384 = sbr.rel (%p382) target = $region60
      $region59: #{seq2seq_forward.19} parent=55 // pred_region
        %p385 = scmp.lt.s32.totalorder %s19, 1
        %s386 = scalar_select %p385, %s19, 1
        %s387 = smul.addr %s386, 8
        %s388 = scalar_lea.vmem %s0, %s387
      $region60: #{seq2seq_forward.19} parent=55 // pred_fallthru
        _
      // Predicated region
      $region61: #{seq2seq_forward.19} parent=55 // pred_check
        %p389 = pneg %p65
      $region62: #{seq2seq_forward.19} parent=55 // pred_check_branch
        %391 = sbr.rel (%p389) target = $region64
      $region63: #{seq2seq_forward.19} parent=55 // pred_region
        %p392 = scmp.lt.s32.totalorder %s19, 1
        %s393 = scalar_select %p392, %s19, 1
        %s394 = smul.addr %s393, 8
        %s395 = scalar_lea.vmem %s1, %s394
      $region64: #{seq2seq_forward.19} parent=55 // pred_fallthru
        _
      // Predicated region
      $region65: #{seq2seq_forward.19} parent=55 // pred_check
        %p396 = pneg %p301
      $region66: #{seq2seq_forward.19} parent=55 // pred_check_branch
        %398 = sbr.rel (%p396) target = $region68
      $region67: #{seq2seq_forward.19} parent=55 // pred_region
        %p399 = scmp.lt.s32.totalorder %s19, 1
        %s400 = scalar_select %p399, %s19, 1
        %s401 = scalar_lea.vmem %s12, %s400
      $region68: #{seq2seq_forward.19} parent=55 // pred_fallthru
        _
    $region56: #{seq2seq_forward.19} parent=5 // pred_fallthru
      _
    %p402 = scmp.le.s32.totalorder 1, %s19
    %p403 = scmp.lt.s32.totalorder %s19, 3
    %p404 = pnand %p402, %p403
    %p405 = pneg %p404
    // Predicated region
    $region69: #{seq2seq_forward.19} parent=5 // pred_check
      _
    $region70: #{seq2seq_forward.19} parent=5 // pred_check_branch
      %407 = sbr.rel (%p404) target = $region72
    $region71: #{seq2seq_forward.19} parent=5 // pred_region
      %s408 = ssub.s32 %s19, 1
      %p409 = scmp.lt.s32.totalorder %s24, 1
      %s410 = scalar_select %p409, %s24, 1
      %s411 = smul.addr %s410, 8
      %s412 = scalar_lea.vmem %s0, %s411
      %p413 = pneg %p45
      %p414 = pneg %p42
      %p415 = scmp.lt.s32.totalorder %s24, 1
      %s416 = scalar_select %p415, %s24, 1
      %s417 = smul.addr %s416, 8
      %s418 = scalar_lea.vmem %s1, %s417
      %p419 = pneg %p71
      %p420 = pneg %p68
      %p421 = pneg %p92
      %p422 = pneg %p89
      %p423 = pneg %p113
      %p424 = pneg %p110
      %p425 = pneg %p134
      %p426 = pneg %p131
      %p427 = pneg %p155
      %p428 = pneg %p152
      %p429 = pneg %p176
      %p430 = pneg %p173
      %p431 = pneg %p197
      %p432 = pneg %p194
      %p433 = pneg %p218
      %p434 = pneg %p215
      %p435 = pneg %p239
      %p436 = pneg %p236
      %p437 = pneg %p260
      %p438 = pneg %p257
      %p439 = pneg %p281
      %p440 = pneg %p278
      %p441 = scmp.lt.s32.totalorder %s24, 1
      %s442 = scalar_select %p441, %s24, 1
      %s443 = scalar_lea.vmem %s12, %s442
      %p444 = pneg %p307
      %p445 = pneg %p304
      %p446 = pneg %p333
      %p447 = pneg %p330
      %p448 = scmp.lt.s32.totalorder %s24, 1
      %s449 = scalar_select %p448, %s24, 1
      %s450 = smul.addr %s449, 8
      %s451 = scalar_lea.vmem %s13, %s450
      %p452 = scmp.lt.s32.totalorder %s24, 1
      %s453 = scalar_select %p452, %s24, 1
      %s454 = smul.addr %s453, 8
      %s455 = scalar_lea.vmem %s0, %s454
      %p456 = scmp.lt.s32.totalorder %s24, 1
      %s457 = scalar_select %p456, %s24, 1
      %s458 = smul.addr %s457, 8
      %s459 = scalar_lea.vmem %s1, %s458
      %p460 = scmp.lt.s32.totalorder %s24, 1
      %s461 = scalar_select %p460, %s24, 1
      %s462 = scalar_lea.vmem %s12, %s461
      %p463 = scmp.lt.s32.totalorder %s24, 1
      %s464 = scalar_select %p463, %s24, 1
      %s465 = smul.addr %s464, 8
      %s466 = scalar_lea.vmem %s13, %s465
      %v467 = vld [vmem:[%s455] sm:$0xff]
      %v468 = vld [vmem:[%s459] sm:$0xff]
      %v469 = vld [vmem:[%s462] sm:$0x1]
      %v471 = vlaneseq
      %v472 = vshrl.u32 %v471, 7
      %v473 = vsub.s32 0, %v472
      %v474 = vrot.slane %v469, %v473
      %v476 = vlaneseq
      %v477 = vshrl.u32 %v476, 7
      %v478 = vlaneseq
      %v479 = vand.u32 %v478, 127
      %vm480 = vcmp.gt.s32.totalorder %v479, %v477
      %v481 = vsel %vm480, -1e+09, %v474
      %v482 = vld [vmem:[%s2] sm:$0xff]
      %v483 = vld [vmem:[%s2 + $0x8] sm:$0xff]
      %v484 = vld [vmem:[%s2 + $0x10] sm:$0xff]
      %v485 = vld [vmem:[%s2 + $0x18] sm:$0xff]
      %v486 = vld [vmem:[%s3] sm:$0x1]
      %v488 = vlaneseq
      %v489 = vshrl.u32 %v488, 7
      %v490 = vsub.s32 0, %v489
      %v491 = vrot.slane %v486, %v490
      %vm493 = vcmask 261120
      %v495 = vsel %vm493, %v467, 0
      %497 = vmatprep.subr.mxu0 0.0
      %498 = vmatpush1.msra.mxu0 0.0
      %499 = vmatprep.subr.mxu0 0.0
      %500 = vmatpush1.msra.mxu0 0.0
      %501 = vmatprep.subr.mxu0 0.0
      %502 = vmatpush1.msra.mxu0 0.0
      %503 = vmatprep.subr.mxu0 0.0
      %504 = vmatpush1.msra.mxu0 0.0
      %505 = vmatprep.subr.mxu0 0.0
      %506 = vmatpush1.msra.mxu0 0.0
      %507 = vmatprep.subr.mxu0 0.0
      %508 = vmatpush1.msra.mxu0 0.0
      %509 = vmatprep.subr.mxu0 0.0
      %510 = vmatpush1.msra.mxu0 0.0
      %511 = vmatprep.subr.mxu0 0.0
      %512 = vmatpush1.msra.mxu0 0.0
      %513 = vmatprep.subr.mxu0 0.0
      %514 = vmatpush1.msra.mxu0 0.0
      %515 = vmatprep.subr.mxu0 0.0
      %516 = vmatpush1.msra.mxu0 0.0
      %517 = vmatprep.subr.mxu0 0.0
      %518 = vmatpush1.msra.mxu0 0.0
      %519 = vmatprep.subr.mxu0 0.0
      %520 = vmatpush1.msra.mxu0 0.0
      %521 = vmatprep.subr.mxu0 0.0
      %522 = vmatpush1.msra.mxu0 %v485
      %523 = vmatprep.subr.mxu0 0.0
      %524 = vmatpush1.msra.mxu0 %v484
      %525 = vmatprep.subr.mxu0 0.0
      %526 = vmatpush1.msra.mxu0 %v483
      %527 = vmatprep.subr.mxu0 0.0
      %528 = vmatpush1.msra.mxu0 %v482
      %529 = vmatprep.subr.mxu0 0.0
      %530 = vmatpush2.msra.mxu0 0.0
      %531 = vmatprep.subr.mxu0 0.0
      %532 = vmatpush2.msra.mxu0 0.0
      %533 = vmatprep.subr.mxu0 0.0
      %534 = vmatpush2.msra.mxu0 0.0
      %535 = vmatprep.subr.mxu0 0.0
      %536 = vmatpush2.msra.mxu0 0.0
      %537 = vmatprep.subr.mxu0 0.0
      %538 = vmatpush2.msra.mxu0 0.0
      %539 = vmatprep.subr.mxu0 0.0
      %540 = vmatpush2.msra.mxu0 0.0
      %541 = vmatprep.subr.mxu0 0.0
      %542 = vmatpush2.msra.mxu0 0.0
      %543 = vmatprep.subr.mxu0 0.0
      %544 = vmatpush2.msra.mxu0 0.0
      %545 = vmatprep.subr.mxu0 0.0
      %546 = vmatpush2.msra.mxu0 0.0
      %547 = vmatprep.subr.mxu0 0.0
      %548 = vmatpush2.msra.mxu0 0.0
      %549 = vmatprep.subr.mxu0 0.0
      %550 = vmatpush2.msra.mxu0 0.0
      %551 = vmatprep.subr.mxu0 0.0
      %552 = vmatpush2.msra.mxu0 0.0
      %553 = vmatprep.subr.mxu0 0.0
      %554 = vmatpush2.msra.mxu0 0.0
      %555 = vmatprep.subr.mxu0 0.0
      %556 = vmatpush2.msra.mxu0 0.0
      %557 = vmatprep.subr.mxu0 0.0
      %558 = vmatpush2.msra.mxu0 0.0
      %559 = vmatprep.subr.mxu0 0.0
      %560 = vmatpush2.msra.mxu0 0.0
      %561 = vmatprep.mubr.f32.mxu0 0.0
      %562 = vmatmul.mubr.f32.gmra.mxu0 %v495
      %v563 = vpop.f32.mrf.mxu0
      %v564 = vadd.f32 %v491, %v563
      %v565 = vpop.f32.mrf.mxu0
      %566 = vdwg.mxu0
      %v567 = vld [vmem:[%s4] sm:$0xff]
      %v568 = vld [vmem:[%s4 + $0x8] sm:$0xff]
      %v569 = vld [vmem:[%s4 + $0x10] sm:$0xff]
      %v570 = vld [vmem:[%s4 + $0x18] sm:$0xff]
      %v571 = vld [vmem:[%s5] sm:$0x1]
      %v573 = vlaneseq
      %v574 = vshrl.u32 %v573, 7
      %v575 = vsub.s32 0, %v574
      %v576 = vrot.slane %v571, %v575
      %v579 = vsel %vm493, %v468, 0
      %581 = vmatprep.subr.mxu0 0.0
      %582 = vmatpush1.msra.mxu0 0.0
      %583 = vmatprep.subr.mxu0 0.0
      %584 = vmatpush1.msra.mxu0 0.0
      %585 = vmatprep.subr.mxu0 0.0
      %586 = vmatpush1.msra.mxu0 0.0
      %587 = vmatprep.subr.mxu0 0.0
      %588 = vmatpush1.msra.mxu0 0.0
      %589 = vmatprep.subr.mxu0 0.0
      %590 = vmatpush1.msra.mxu0 0.0
      %591 = vmatprep.subr.mxu0 0.0
      %592 = vmatpush1.msra.mxu0 0.0
      %593 = vmatprep.subr.mxu0 0.0
      %594 = vmatpush1.msra.mxu0 0.0
      %595 = vmatprep.subr.mxu0 0.0
      %596 = vmatpush1.msra.mxu0 0.0
      %597 = vmatprep.subr.mxu0 0.0
      %598 = vmatpush1.msra.mxu0 0.0
      %599 = vmatprep.subr.mxu0 0.0
      %600 = vmatpush1.msra.mxu0 0.0
      %601 = vmatprep.subr.mxu0 0.0
      %602 = vmatpush1.msra.mxu0 0.0
      %603 = vmatprep.subr.mxu0 0.0
      %604 = vmatpush1.msra.mxu0 0.0
      %605 = vmatprep.subr.mxu0 0.0
      %606 = vmatpush1.msra.mxu0 %v570
      %607 = vmatprep.subr.mxu0 0.0
      %608 = vmatpush1.msra.mxu0 %v569
      %609 = vmatprep.subr.mxu0 0.0
      %610 = vmatpush1.msra.mxu0 %v568
      %611 = vmatprep.subr.mxu0 0.0
      %612 = vmatpush1.msra.mxu0 %v567
      %613 = vmatprep.subr.mxu0 0.0
      %614 = vmatpush2.msra.mxu0 0.0
      %615 = vmatprep.subr.mxu0 0.0
      %616 = vmatpush2.msra.mxu0 0.0
      %617 = vmatprep.subr.mxu0 0.0
      %618 = vmatpush2.msra.mxu0 0.0
      %619 = vmatprep.subr.mxu0 0.0
      %620 = vmatpush2.msra.mxu0 0.0
      %621 = vmatprep.subr.mxu0 0.0
      %622 = vmatpush2.msra.mxu0 0.0
      %623 = vmatprep.subr.mxu0 0.0
      %624 = vmatpush2.msra.mxu0 0.0
      %625 = vmatprep.subr.mxu0 0.0
      %626 = vmatpush2.msra.mxu0 0.0
      %627 = vmatprep.subr.mxu0 0.0
      %628 = vmatpush2.msra.mxu0 0.0
      %629 = vmatprep.subr.mxu0 0.0
      %630 = vmatpush2.msra.mxu0 0.0
      %631 = vmatprep.subr.mxu0 0.0
      %632 = vmatpush2.msra.mxu0 0.0
      %633 = vmatprep.subr.mxu0 0.0
      %634 = vmatpush2.msra.mxu0 0.0
      %635 = vmatprep.subr.mxu0 0.0
      %636 = vmatpush2.msra.mxu0 0.0
      %637 = vmatprep.subr.mxu0 0.0
      %638 = vmatpush2.msra.mxu0 0.0
      %639 = vmatprep.subr.mxu0 0.0
      %640 = vmatpush2.msra.mxu0 0.0
      %641 = vmatprep.subr.mxu0 0.0
      %642 = vmatpush2.msra.mxu0 0.0
      %643 = vmatprep.subr.mxu0 0.0
      %644 = vmatpush2.msra.mxu0 0.0
      %645 = vmatprep.mubr.f32.mxu0 0.0
      %646 = vmatmul.mubr.f32.gmra.mxu0 %v579
      %v647 = vpop.f32.mrf.mxu0
      %v648 = vadd.f32 %v576, %v647
      %v649 = vpop.f32.mrf.mxu0
      %650 = vdwg.mxu0
      %v651 = vld [vmem:[%s6] sm:$0xff]
      %v652 = vld [vmem:[%s6 + $0x8] sm:$0xff]
      %v653 = vld [vmem:[%s6 + $0x10] sm:$0xff]
      %v654 = vld [vmem:[%s6 + $0x18] sm:$0xff]
      %v655 = vld [vmem:[%s7] sm:$0x1]
      %v657 = vlaneseq
      %v658 = vshrl.u32 %v657, 7
      %v659 = vsub.s32 0, %v658
      %v660 = vrot.slane %v655, %v659
      %662 = vmatprep.subr.mxu0 0.0
      %663 = vmatpush1.msra.mxu0 0.0
      %664 = vmatprep.subr.mxu0 0.0
      %665 = vmatpush1.msra.mxu0 0.0
      %666 = vmatprep.subr.mxu0 0.0
      %667 = vmatpush1.msra.mxu0 0.0
      %668 = vmatprep.subr.mxu0 0.0
      %669 = vmatpush1.msra.mxu0 0.0
      %670 = vmatprep.subr.mxu0 0.0
      %671 = vmatpush1.msra.mxu0 0.0
      %672 = vmatprep.subr.mxu0 0.0
      %673 = vmatpush1.msra.mxu0 0.0
      %674 = vmatprep.subr.mxu0 0.0
      %675 = vmatpush1.msra.mxu0 0.0
      %676 = vmatprep.subr.mxu0 0.0
      %677 = vmatpush1.msra.mxu0 0.0
      %678 = vmatprep.subr.mxu0 0.0
      %679 = vmatpush1.msra.mxu0 0.0
      %680 = vmatprep.subr.mxu0 0.0
      %681 = vmatpush1.msra.mxu0 0.0
      %682 = vmatprep.subr.mxu0 0.0
      %683 = vmatpush1.msra.mxu0 0.0
      %684 = vmatprep.subr.mxu0 0.0
      %685 = vmatpush1.msra.mxu0 0.0
      %686 = vmatprep.subr.mxu0 0.0
      %687 = vmatpush1.msra.mxu0 %v654
      %688 = vmatprep.subr.mxu0 0.0
      %689 = vmatpush1.msra.mxu0 %v653
      %690 = vmatprep.subr.mxu0 0.0
      %691 = vmatpush1.msra.mxu0 %v652
      %692 = vmatprep.subr.mxu0 0.0
      %693 = vmatpush1.msra.mxu0 %v651
      %694 = vmatprep.subr.mxu0 0.0
      %695 = vmatpush2.msra.mxu0 0.0
      %696 = vmatprep.subr.mxu0 0.0
      %697 = vmatpush2.msra.mxu0 0.0
      %698 = vmatprep.subr.mxu0 0.0
      %699 = vmatpush2.msra.mxu0 0.0
      %700 = vmatprep.subr.mxu0 0.0
      %701 = vmatpush2.msra.mxu0 0.0
      %702 = vmatprep.subr.mxu0 0.0
      %703 = vmatpush2.msra.mxu0 0.0
      %704 = vmatprep.subr.mxu0 0.0
      %705 = vmatpush2.msra.mxu0 0.0
      %706 = vmatprep.subr.mxu0 0.0
      %707 = vmatpush2.msra.mxu0 0.0
      %708 = vmatprep.subr.mxu0 0.0
      %709 = vmatpush2.msra.mxu0 0.0
      %710 = vmatprep.subr.mxu0 0.0
      %711 = vmatpush2.msra.mxu0 0.0
      %712 = vmatprep.subr.mxu0 0.0
      %713 = vmatpush2.msra.mxu0 0.0
      %714 = vmatprep.subr.mxu0 0.0
      %715 = vmatpush2.msra.mxu0 0.0
      %716 = vmatprep.subr.mxu0 0.0
      %717 = vmatpush2.msra.mxu0 0.0
      %718 = vmatprep.subr.mxu0 0.0
      %719 = vmatpush2.msra.mxu0 0.0
      %720 = vmatprep.subr.mxu0 0.0
      %721 = vmatpush2.msra.mxu0 0.0
      %722 = vmatprep.subr.mxu0 0.0
      %723 = vmatpush2.msra.mxu0 0.0
      %724 = vmatprep.subr.mxu0 0.0
      %725 = vmatpush2.msra.mxu0 0.0
      %726 = vmatprep.mubr.f32.mxu0 0.0
      %727 = vmatmul.mubr.f32.gmra.mxu0 %v579
      %v728 = vpop.f32.mrf.mxu0
      %v729 = vadd.f32 %v660, %v728
      %v730 = vpop.f32.mrf.mxu0
      %731 = vdwg.mxu0
      %vm732 = vcmask 64512
      %v734 = vsel %vm732, %v564, 0
      %v737 = vsel %vm732, %v648, 0
      %739 = vmatprep.subr.mxu0 0.0
      %740 = vmatpush1.xpose.msra.mxu0 0.0
      %741 = vmatprep.subr.mxu0 0.0
      %742 = vmatpush1.xpose.msra.mxu0 0.0
      %743 = vmatprep.subr.mxu0 0.0
      %744 = vmatpush1.xpose.msra.mxu0 0.0
      %745 = vmatprep.subr.mxu0 0.0
      %746 = vmatpush1.xpose.msra.mxu0 0.0
      %747 = vmatprep.subr.mxu0 0.0
      %748 = vmatpush1.xpose.msra.mxu0 0.0
      %749 = vmatprep.subr.mxu0 0.0
      %750 = vmatpush1.xpose.msra.mxu0 0.0
      %751 = vmatprep.subr.mxu0 0.0
      %752 = vmatpush1.xpose.msra.mxu0 0.0
      %753 = vmatprep.subr.mxu0 0.0
      %754 = vmatpush1.xpose.msra.mxu0 0.0
      %755 = vmatprep.subr.mxu0 0.0
      %756 = vmatpush1.xpose.msra.mxu0 0.0
      %757 = vmatprep.subr.mxu0 0.0
      %758 = vmatpush1.xpose.msra.mxu0 0.0
      %759 = vmatprep.subr.mxu0 0.0
      %760 = vmatpush1.xpose.msra.mxu0 0.0
      %761 = vmatprep.subr.mxu0 0.0
      %762 = vmatpush1.xpose.msra.mxu0 0.0
      %763 = vmatprep.subr.mxu0 0.0
      %764 = vmatpush1.xpose.msra.mxu0 0.0
      %765 = vmatprep.subr.mxu0 0.0
      %766 = vmatpush1.xpose.msra.mxu0 0.0
      %767 = vmatprep.subr.mxu0 0.0
      %768 = vmatpush1.xpose.msra.mxu0 0.0
      %769 = vmatprep.subr.mxu0 0.0
      %770 = vmatpush1.xpose.msra.mxu0 %v737
      %771 = vmatprep.subr.mxu0 0.0
      %772 = vmatpush2.xpose.msra.mxu0 0.0
      %773 = vmatprep.subr.mxu0 0.0
      %774 = vmatpush2.xpose.msra.mxu0 0.0
      %775 = vmatprep.subr.mxu0 0.0
      %776 = vmatpush2.xpose.msra.mxu0 0.0
      %777 = vmatprep.subr.mxu0 0.0
      %778 = vmatpush2.xpose.msra.mxu0 0.0
      %779 = vmatprep.subr.mxu0 0.0
      %780 = vmatpush2.xpose.msra.mxu0 0.0
      %781 = vmatprep.subr.mxu0 0.0
      %782 = vmatpush2.xpose.msra.mxu0 0.0
      %783 = vmatprep.subr.mxu0 0.0
      %784 = vmatpush2.xpose.msra.mxu0 0.0
      %785 = vmatprep.subr.mxu0 0.0
      %786 = vmatpush2.xpose.msra.mxu0 0.0
      %787 = vmatprep.subr.mxu0 0.0
      %788 = vmatpush2.xpose.msra.mxu0 0.0
      %789 = vmatprep.subr.mxu0 0.0
      %790 = vmatpush2.xpose.msra.mxu0 0.0
      %791 = vmatprep.subr.mxu0 0.0
      %792 = vmatpush2.xpose.msra.mxu0 0.0
      %793 = vmatprep.subr.mxu0 0.0
      %794 = vmatpush2.xpose.msra.mxu0 0.0
      %795 = vmatprep.subr.mxu0 0.0
      %796 = vmatpush2.xpose.msra.mxu0 0.0
      %797 = vmatprep.subr.mxu0 0.0
      %798 = vmatpush2.xpose.msra.mxu0 0.0
      %799 = vmatprep.subr.mxu0 0.0
      %800 = vmatpush2.xpose.msra.mxu0 0.0
      %801 = vmatprep.subr.mxu0 0.0
      %802 = vmatpush2.xpose.msra.mxu0 0.0
      %803 = vmatprep.mubr.f32.mxu0 0.0
      %804 = vmatmul.mubr.f32.gmra.mxu0 %v734
      %v805 = vpop.f32.mrf.mxu0
      %v806 = vadd.f32 %v481, %v805
      %v807 = vpop.f32.mrf.mxu0
      %808 = vdwg.mxu0
      %v809 = vsel %vm732, %v806, -inf
      %810 = vmax.xlane.f32.xlu0 %v809
      %v811 = vpop.xlane.xlu0 %810
      %v812 = vsub.f32 %v806, %v811
      %v813 = vmul.f32 %v812, 1.442695
      %v814 = vpow.pop %v813
      %v815 = vsel %vm732, %v814, 0.0
      %816 = vadd.xlane.f32.xlu0 %v815
      %v817 = vpop.xlane.xlu0 %816
      %v818 = vrcp.pop %v817
      %v819 = vmul.f32 %v814, %v818
      %v821 = vsel %vm732, %v819, 0
      %823 = vmatprep.subr.mxu0 0.0
      %824 = vmatpush1.msra.mxu0 0.0
      %825 = vmatprep.subr.mxu0 0.0
      %826 = vmatpush1.msra.mxu0 0.0
      %827 = vmatprep.subr.mxu0 0.0
      %828 = vmatpush1.msra.mxu0 0.0
      %829 = vmatprep.subr.mxu0 0.0
      %830 = vmatpush1.msra.mxu0 0.0
      %831 = vmatprep.subr.mxu0 0.0
      %832 = vmatpush1.msra.mxu0 0.0
      %833 = vmatprep.subr.mxu0 0.0
      %834 = vmatpush1.msra.mxu0 0.0
      %835 = vmatprep.subr.mxu0 0.0
      %836 = vmatpush1.msra.mxu0 0.0
      %837 = vmatprep.subr.mxu0 0.0
      %838 = vmatpush1.msra.mxu0 0.0
      %839 = vmatprep.subr.mxu0 0.0
      %840 = vmatpush1.msra.mxu0 0.0
      %841 = vmatprep.subr.mxu0 0.0
      %842 = vmatpush1.msra.mxu0 0.0
      %843 = vmatprep.subr.mxu0 0.0
      %844 = vmatpush1.msra.mxu0 0.0
      %845 = vmatprep.subr.mxu0 0.0
      %846 = vmatpush1.msra.mxu0 0.0
      %847 = vmatprep.subr.mxu0 0.0
      %848 = vmatpush1.msra.mxu0 0.0
      %849 = vmatprep.subr.mxu0 0.0
      %850 = vmatpush1.msra.mxu0 0.0
      %851 = vmatprep.subr.mxu0 0.0
      %852 = vmatpush1.msra.mxu0 0.0
      %853 = vmatprep.subr.mxu0 0.0
      %854 = vmatpush1.msra.mxu0 %v729
      %855 = vmatprep.subr.mxu0 0.0
      %856 = vmatpush2.msra.mxu0 0.0
      %857 = vmatprep.subr.mxu0 0.0
      %858 = vmatpush2.msra.mxu0 0.0
      %859 = vmatprep.subr.mxu0 0.0
      %860 = vmatpush2.msra.mxu0 0.0
      %861 = vmatprep.subr.mxu0 0.0
      %862 = vmatpush2.msra.mxu0 0.0
      %863 = vmatprep.subr.mxu0 0.0
      %864 = vmatpush2.msra.mxu0 0.0
      %865 = vmatprep.subr.mxu0 0.0
      %866 = vmatpush2.msra.mxu0 0.0
      %867 = vmatprep.subr.mxu0 0.0
      %868 = vmatpush2.msra.mxu0 0.0
      %869 = vmatprep.subr.mxu0 0.0
      %870 = vmatpush2.msra.mxu0 0.0
      %871 = vmatprep.subr.mxu0 0.0
      %872 = vmatpush2.msra.mxu0 0.0
      %873 = vmatprep.subr.mxu0 0.0
      %874 = vmatpush2.msra.mxu0 0.0
      %875 = vmatprep.subr.mxu0 0.0
      %876 = vmatpush2.msra.mxu0 0.0
      %877 = vmatprep.subr.mxu0 0.0
      %878 = vmatpush2.msra.mxu0 0.0
      %879 = vmatprep.subr.mxu0 0.0
      %880 = vmatpush2.msra.mxu0 0.0
      %881 = vmatprep.subr.mxu0 0.0
      %882 = vmatpush2.msra.mxu0 0.0
      %883 = vmatprep.subr.mxu0 0.0
      %884 = vmatpush2.msra.mxu0 0.0
      %885 = vmatprep.subr.mxu0 0.0
      %886 = vmatpush2.msra.mxu0 0.0
      %887 = vmatprep.mubr.f32.mxu0 0.0
      %888 = vmatmul.mubr.f32.gmra.mxu0 %v821
      %v889 = vpop.f32.mrf.mxu0
      %v890 = vadd.f32 0.0, %v889
      %v891 = vpop.f32.mrf.mxu0
      %892 = vdwg.mxu0
      %v893 = vld [vmem:[%s8] sm:$0xff]
      %s894 = scalar_lea.vmem %s2, 32
      %v895 = vld [vmem:[%s894] sm:$0xff]
      %v896 = vld [vmem:[%s894 + $0x8] sm:$0xff]
      %v897 = vld [vmem:[%s894 + $0x10] sm:$0xff]
      %v898 = vld [vmem:[%s894 + $0x18] sm:$0xff]
      %s899 = scalar_lea.vmem %s3, 1
      %v900 = vld [vmem:[%s899] sm:$0x1]
      %v902 = vlaneseq
      %v903 = vshrl.u32 %v902, 7
      %v904 = vsub.s32 0, %v903
      %v905 = vrot.slane %v900, %v904
      %907 = vmatprep.subr.mxu0 0.0
      %908 = vmatpush1.msra.mxu0 0.0
      %909 = vmatprep.subr.mxu0 0.0
      %910 = vmatpush1.msra.mxu0 0.0
      %911 = vmatprep.subr.mxu0 0.0
      %912 = vmatpush1.msra.mxu0 0.0
      %913 = vmatprep.subr.mxu0 0.0
      %914 = vmatpush1.msra.mxu0 0.0
      %915 = vmatprep.subr.mxu0 0.0
      %916 = vmatpush1.msra.mxu0 0.0
      %917 = vmatprep.subr.mxu0 0.0
      %918 = vmatpush1.msra.mxu0 0.0
      %919 = vmatprep.subr.mxu0 0.0
      %920 = vmatpush1.msra.mxu0 0.0
      %921 = vmatprep.subr.mxu0 0.0
      %922 = vmatpush1.msra.mxu0 0.0
      %923 = vmatprep.subr.mxu0 0.0
      %924 = vmatpush1.msra.mxu0 0.0
      %925 = vmatprep.subr.mxu0 0.0
      %926 = vmatpush1.msra.mxu0 0.0
      %927 = vmatprep.subr.mxu0 0.0
      %928 = vmatpush1.msra.mxu0 0.0
      %929 = vmatprep.subr.mxu0 0.0
      %930 = vmatpush1.msra.mxu0 0.0
      %931 = vmatprep.subr.mxu0 0.0
      %932 = vmatpush1.msra.mxu0 %v898
      %933 = vmatprep.subr.mxu0 0.0
      %934 = vmatpush1.msra.mxu0 %v897
      %935 = vmatprep.subr.mxu0 0.0
      %936 = vmatpush1.msra.mxu0 %v896
      %937 = vmatprep.subr.mxu0 0.0
      %938 = vmatpush1.msra.mxu0 %v895
      %939 = vmatprep.subr.mxu0 0.0
      %940 = vmatpush2.msra.mxu0 0.0
      %941 = vmatprep.subr.mxu0 0.0
      %942 = vmatpush2.msra.mxu0 0.0
      %943 = vmatprep.subr.mxu0 0.0
      %944 = vmatpush2.msra.mxu0 0.0
      %945 = vmatprep.subr.mxu0 0.0
      %946 = vmatpush2.msra.mxu0 0.0
      %947 = vmatprep.subr.mxu0 0.0
      %948 = vmatpush2.msra.mxu0 0.0
      %949 = vmatprep.subr.mxu0 0.0
      %950 = vmatpush2.msra.mxu0 0.0
      %951 = vmatprep.subr.mxu0 0.0
      %952 = vmatpush2.msra.mxu0 0.0
      %953 = vmatprep.subr.mxu0 0.0
      %954 = vmatpush2.msra.mxu0 0.0
      %955 = vmatprep.subr.mxu0 0.0
      %956 = vmatpush2.msra.mxu0 0.0
      %957 = vmatprep.subr.mxu0 0.0
      %958 = vmatpush2.msra.mxu0 0.0
      %959 = vmatprep.subr.mxu0 0.0
      %960 = vmatpush2.msra.mxu0 0.0
      %961 = vmatprep.subr.mxu0 0.0
      %962 = vmatpush2.msra.mxu0 0.0
      %963 = vmatprep.subr.mxu0 0.0
      %964 = vmatpush2.msra.mxu0 0.0
      %965 = vmatprep.subr.mxu0 0.0
      %966 = vmatpush2.msra.mxu0 0.0
      %967 = vmatprep.subr.mxu0 0.0
      %968 = vmatpush2.msra.mxu0 0.0
      %969 = vmatprep.subr.mxu0 0.0
      %970 = vmatpush2.msra.mxu0 0.0
      %971 = vmatprep.mubr.f32.mxu0 0.0
      %972 = vmatmul.mubr.f32.gmra.mxu0 %v495
      %v973 = vpop.f32.mrf.mxu0
      %v974 = vadd.f32 %v905, %v973
      %v975 = vpop.f32.mrf.mxu0
      %976 = vdwg.mxu0
      %s977 = scalar_lea.vmem %s4, 32
      %v978 = vld [vmem:[%s977] sm:$0xff]
      %v979 = vld [vmem:[%s977 + $0x8] sm:$0xff]
      %v980 = vld [vmem:[%s977 + $0x10] sm:$0xff]
      %v981 = vld [vmem:[%s977 + $0x18] sm:$0xff]
      %s982 = scalar_lea.vmem %s5, 1
      %v983 = vld [vmem:[%s982] sm:$0x1]
      %v985 = vlaneseq
      %v986 = vshrl.u32 %v985, 7
      %v987 = vsub.s32 0, %v986
      %v988 = vrot.slane %v983, %v987
      %990 = vmatprep.subr.mxu0 0.0
      %991 = vmatpush1.msra.mxu0 0.0
      %992 = vmatprep.subr.mxu0 0.0
      %993 = vmatpush1.msra.mxu0 0.0
      %994 = vmatprep.subr.mxu0 0.0
      %995 = vmatpush1.msra.mxu0 0.0
      %996 = vmatprep.subr.mxu0 0.0
      %997 = vmatpush1.msra.mxu0 0.0
      %998 = vmatprep.subr.mxu0 0.0
      %999 = vmatpush1.msra.mxu0 0.0
      %1000 = vmatprep.subr.mxu0 0.0
      %1001 = vmatpush1.msra.mxu0 0.0
      %1002 = vmatprep.subr.mxu0 0.0
      %1003 = vmatpush1.msra.mxu0 0.0
      %1004 = vmatprep.subr.mxu0 0.0
      %1005 = vmatpush1.msra.mxu0 0.0
      %1006 = vmatprep.subr.mxu0 0.0
      %1007 = vmatpush1.msra.mxu0 0.0
      %1008 = vmatprep.subr.mxu0 0.0
      %1009 = vmatpush1.msra.mxu0 0.0
      %1010 = vmatprep.subr.mxu0 0.0
      %1011 = vmatpush1.msra.mxu0 0.0
      %1012 = vmatprep.subr.mxu0 0.0
      %1013 = vmatpush1.msra.mxu0 0.0
      %1014 = vmatprep.subr.mxu0 0.0
      %1015 = vmatpush1.msra.mxu0 %v981
      %1016 = vmatprep.subr.mxu0 0.0
      %1017 = vmatpush1.msra.mxu0 %v980
      %1018 = vmatprep.subr.mxu0 0.0
      %1019 = vmatpush1.msra.mxu0 %v979
      %1020 = vmatprep.subr.mxu0 0.0
      %1021 = vmatpush1.msra.mxu0 %v978
      %1022 = vmatprep.subr.mxu0 0.0
      %1023 = vmatpush2.msra.mxu0 0.0
      %1024 = vmatprep.subr.mxu0 0.0
      %1025 = vmatpush2.msra.mxu0 0.0
      %1026 = vmatprep.subr.mxu0 0.0
      %1027 = vmatpush2.msra.mxu0 0.0
      %1028 = vmatprep.subr.mxu0 0.0
      %1029 = vmatpush2.msra.mxu0 0.0
      %1030 = vmatprep.subr.mxu0 0.0
      %1031 = vmatpush2.msra.mxu0 0.0
      %1032 = vmatprep.subr.mxu0 0.0
      %1033 = vmatpush2.msra.mxu0 0.0
      %1034 = vmatprep.subr.mxu0 0.0
      %1035 = vmatpush2.msra.mxu0 0.0
      %1036 = vmatprep.subr.mxu0 0.0
      %1037 = vmatpush2.msra.mxu0 0.0
      %1038 = vmatprep.subr.mxu0 0.0
      %1039 = vmatpush2.msra.mxu0 0.0
      %1040 = vmatprep.subr.mxu0 0.0
      %1041 = vmatpush2.msra.mxu0 0.0
      %1042 = vmatprep.subr.mxu0 0.0
      %1043 = vmatpush2.msra.mxu0 0.0
      %1044 = vmatprep.subr.mxu0 0.0
      %1045 = vmatpush2.msra.mxu0 0.0
      %1046 = vmatprep.subr.mxu0 0.0
      %1047 = vmatpush2.msra.mxu0 0.0
      %1048 = vmatprep.subr.mxu0 0.0
      %1049 = vmatpush2.msra.mxu0 0.0
      %1050 = vmatprep.subr.mxu0 0.0
      %1051 = vmatpush2.msra.mxu0 0.0
      %1052 = vmatprep.subr.mxu0 0.0
      %1053 = vmatpush2.msra.mxu0 0.0
      %1054 = vmatprep.mubr.f32.mxu0 0.0
      %1055 = vmatmul.mubr.f32.gmra.mxu0 %v579
      %v1056 = vpop.f32.mrf.mxu0
      %v1057 = vadd.f32 %v988, %v1056
      %v1058 = vpop.f32.mrf.mxu0
      %1059 = vdwg.mxu0
      %s1060 = scalar_lea.vmem %s6, 32
      %v1061 = vld [vmem:[%s1060] sm:$0xff]
      %v1062 = vld [vmem:[%s1060 + $0x8] sm:$0xff]
      %v1063 = vld [vmem:[%s1060 + $0x10] sm:$0xff]
      %v1064 = vld [vmem:[%s1060 + $0x18] sm:$0xff]
      %s1065 = scalar_lea.vmem %s7, 1
      %v1066 = vld [vmem:[%s1065] sm:$0x1]
      %v1068 = vlaneseq
      %v1069 = vshrl.u32 %v1068, 7
      %v1070 = vsub.s32 0, %v1069
      %v1071 = vrot.slane %v1066, %v1070
      %1073 = vmatprep.subr.mxu0 0.0
      %1074 = vmatpush1.msra.mxu0 0.0
      %1075 = vmatprep.subr.mxu0 0.0
      %1076 = vmatpush1.msra.mxu0 0.0
      %1077 = vmatprep.subr.mxu0 0.0
      %1078 = vmatpush1.msra.mxu0 0.0
      %1079 = vmatprep.subr.mxu0 0.0
      %1080 = vmatpush1.msra.mxu0 0.0
      %1081 = vmatprep.subr.mxu0 0.0
      %1082 = vmatpush1.msra.mxu0 0.0
      %1083 = vmatprep.subr.mxu0 0.0
      %1084 = vmatpush1.msra.mxu0 0.0
      %1085 = vmatprep.subr.mxu0 0.0
      %1086 = vmatpush1.msra.mxu0 0.0
      %1087 = vmatprep.subr.mxu0 0.0
      %1088 = vmatpush1.msra.mxu0 0.0
      %1089 = vmatprep.subr.mxu0 0.0
      %1090 = vmatpush1.msra.mxu0 0.0
      %1091 = vmatprep.subr.mxu0 0.0
      %1092 = vmatpush1.msra.mxu0 0.0
      %1093 = vmatprep.subr.mxu0 0.0
      %1094 = vmatpush1.msra.mxu0 0.0
      %1095 = vmatprep.subr.mxu0 0.0
      %1096 = vmatpush1.msra.mxu0 0.0
      %1097 = vmatprep.subr.mxu0 0.0
      %1098 = vmatpush1.msra.mxu0 %v1064
      %1099 = vmatprep.subr.mxu0 0.0
      %1100 = vmatpush1.msra.mxu0 %v1063
      %1101 = vmatprep.subr.mxu0 0.0
      %1102 = vmatpush1.msra.mxu0 %v1062
      %1103 = vmatprep.subr.mxu0 0.0
      %1104 = vmatpush1.msra.mxu0 %v1061
      %1105 = vmatprep.subr.mxu0 0.0
      %1106 = vmatpush2.msra.mxu0 0.0
      %1107 = vmatprep.subr.mxu0 0.0
      %1108 = vmatpush2.msra.mxu0 0.0
      %1109 = vmatprep.subr.mxu0 0.0
      %1110 = vmatpush2.msra.mxu0 0.0
      %1111 = vmatprep.subr.mxu0 0.0
      %1112 = vmatpush2.msra.mxu0 0.0
      %1113 = vmatprep.subr.mxu0 0.0
      %1114 = vmatpush2.msra.mxu0 0.0
      %1115 = vmatprep.subr.mxu0 0.0
      %1116 = vmatpush2.msra.mxu0 0.0
      %1117 = vmatprep.subr.mxu0 0.0
      %1118 = vmatpush2.msra.mxu0 0.0
      %1119 = vmatprep.subr.mxu0 0.0
      %1120 = vmatpush2.msra.mxu0 0.0
      %1121 = vmatprep.subr.mxu0 0.0
      %1122 = vmatpush2.msra.mxu0 0.0
      %1123 = vmatprep.subr.mxu0 0.0
      %1124 = vmatpush2.msra.mxu0 0.0
      %1125 = vmatprep.subr.mxu0 0.0
      %1126 = vmatpush2.msra.mxu0 0.0
      %1127 = vmatprep.subr.mxu0 0.0
      %1128 = vmatpush2.msra.mxu0 0.0
      %1129 = vmatprep.subr.mxu0 0.0
      %1130 = vmatpush2.msra.mxu0 0.0
      %1131 = vmatprep.subr.mxu0 0.0
      %1132 = vmatpush2.msra.mxu0 0.0
      %1133 = vmatprep.subr.mxu0 0.0
      %1134 = vmatpush2.msra.mxu0 0.0
      %1135 = vmatprep.subr.mxu0 0.0
      %1136 = vmatpush2.msra.mxu0 0.0
      %1137 = vmatprep.mubr.f32.mxu0 0.0
      %1138 = vmatmul.mubr.f32.gmra.mxu0 %v579
      %v1139 = vpop.f32.mrf.mxu0
      %v1140 = vadd.f32 %v1071, %v1139
      %v1141 = vpop.f32.mrf.mxu0
      %1142 = vdwg.mxu0
      %v1144 = vsel %vm732, %v974, 0
      %v1147 = vsel %vm732, %v1057, 0
      %1149 = vmatprep.subr.mxu0 0.0
      %1150 = vmatpush1.xpose.msra.mxu0 0.0
      %1151 = vmatprep.subr.mxu0 0.0
      %1152 = vmatpush1.xpose.msra.mxu0 0.0
      %1153 = vmatprep.subr.mxu0 0.0
      %1154 = vmatpush1.xpose.msra.mxu0 0.0
      %1155 = vmatprep.subr.mxu0 0.0
      %1156 = vmatpush1.xpose.msra.mxu0 0.0
      %1157 = vmatprep.subr.mxu0 0.0
      %1158 = vmatpush1.xpose.msra.mxu0 0.0
      %1159 = vmatprep.subr.mxu0 0.0
      %1160 = vmatpush1.xpose.msra.mxu0 0.0
      %1161 = vmatprep.subr.mxu0 0.0
      %1162 = vmatpush1.xpose.msra.mxu0 0.0
      %1163 = vmatprep.subr.mxu0 0.0
      %1164 = vmatpush1.xpose.msra.mxu0 0.0
      %1165 = vmatprep.subr.mxu0 0.0
      %1166 = vmatpush1.xpose.msra.mxu0 0.0
      %1167 = vmatprep.subr.mxu0 0.0
      %1168 = vmatpush1.xpose.msra.mxu0 0.0
      %1169 = vmatprep.subr.mxu0 0.0
      %1170 = vmatpush1.xpose.msra.mxu0 0.0
      %1171 = vmatprep.subr.mxu0 0.0
      %1172 = vmatpush1.xpose.msra.mxu0 0.0
      %1173 = vmatprep.subr.mxu0 0.0
      %1174 = vmatpush1.xpose.msra.mxu0 0.0
      %1175 = vmatprep.subr.mxu0 0.0
      %1176 = vmatpush1.xpose.msra.mxu0 0.0
      %1177 = vmatprep.subr.mxu0 0.0
      %1178 = vmatpush1.xpose.msra.mxu0 0.0
      %1179 = vmatprep.subr.mxu0 0.0
      %1180 = vmatpush1.xpose.msra.mxu0 %v1147
      %1181 = vmatprep.subr.mxu0 0.0
      %1182 = vmatpush2.xpose.msra.mxu0 0.0
      %1183 = vmatprep.subr.mxu0 0.0
      %1184 = vmatpush2.xpose.msra.mxu0 0.0
      %1185 = vmatprep.subr.mxu0 0.0
      %1186 = vmatpush2.xpose.msra.mxu0 0.0
      %1187 = vmatprep.subr.mxu0 0.0
      %1188 = vmatpush2.xpose.msra.mxu0 0.0
      %1189 = vmatprep.subr.mxu0 0.0
      %1190 = vmatpush2.xpose.msra.mxu0 0.0
      %1191 = vmatprep.subr.mxu0 0.0
      %1192 = vmatpush2.xpose.msra.mxu0 0.0
      %1193 = vmatprep.subr.mxu0 0.0
      %1194 = vmatpush2.xpose.msra.mxu0 0.0
      %1195 = vmatprep.subr.mxu0 0.0
      %1196 = vmatpush2.xpose.msra.mxu0 0.0
      %1197 = vmatprep.subr.mxu0 0.0
      %1198 = vmatpush2.xpose.msra.mxu0 0.0
      %1199 = vmatprep.subr.mxu0 0.0
      %1200 = vmatpush2.xpose.msra.mxu0 0.0
      %1201 = vmatprep.subr.mxu0 0.0
      %1202 = vmatpush2.xpose.msra.mxu0 0.0
      %1203 = vmatprep.subr.mxu0 0.0
      %1204 = vmatpush2.xpose.msra.mxu0 0.0
      %1205 = vmatprep.subr.mxu0 0.0
      %1206 = vmatpush2.xpose.msra.mxu0 0.0
      %1207 = vmatprep.subr.mxu0 0.0
      %1208 = vmatpush2.xpose.msra.mxu0 0.0
      %1209 = vmatprep.subr.mxu0 0.0
      %1210 = vmatpush2.xpose.msra.mxu0 0.0
      %1211 = vmatprep.subr.mxu0 0.0
      %1212 = vmatpush2.xpose.msra.mxu0 0.0
      %1213 = vmatprep.mubr.f32.mxu0 0.0
      %1214 = vmatmul.mubr.f32.gmra.mxu0 %v1144
      %v1215 = vpop.f32.mrf.mxu0
      %v1216 = vadd.f32 %v481, %v1215
      %v1217 = vpop.f32.mrf.mxu0
      %1218 = vdwg.mxu0
      %v1219 = vsel %vm732, %v1216, -inf
      %1220 = vmax.xlane.f32.xlu0 %v1219
      %v1221 = vpop.xlane.xlu0 %1220
      %v1222 = vsub.f32 %v1216, %v1221
      %v1223 = vmul.f32 %v1222, 1.442695
      %v1224 = vpow.pop %v1223
      %v1225 = vsel %vm732, %v1224, 0.0
      %1226 = vadd.xlane.f32.xlu0 %v1225
      %v1227 = vpop.xlane.xlu0 %1226
      %v1228 = vrcp.pop %v1227
      %v1229 = vmul.f32 %v1224, %v1228
      %v1231 = vsel %vm732, %v1229, 0
      %1233 = vmatprep.subr.mxu0 0.0
      %1234 = vmatpush1.msra.mxu0 0.0
      %1235 = vmatprep.subr.mxu0 0.0
      %1236 = vmatpush1.msra.mxu0 0.0
      %1237 = vmatprep.subr.mxu0 0.0
      %1238 = vmatpush1.msra.mxu0 0.0
      %1239 = vmatprep.subr.mxu0 0.0
      %1240 = vmatpush1.msra.mxu0 0.0
      %1241 = vmatprep.subr.mxu0 0.0
      %1242 = vmatpush1.msra.mxu0 0.0
      %1243 = vmatprep.subr.mxu0 0.0
      %1244 = vmatpush1.msra.mxu0 0.0
      %1245 = vmatprep.subr.mxu0 0.0
      %1246 = vmatpush1.msra.mxu0 0.0
      %1247 = vmatprep.subr.mxu0 0.0
      %1248 = vmatpush1.msra.mxu0 0.0
      %1249 = vmatprep.subr.mxu0 0.0
      %1250 = vmatpush1.msra.mxu0 0.0
      %1251 = vmatprep.subr.mxu0 0.0
      %1252 = vmatpush1.msra.mxu0 0.0
      %1253 = vmatprep.subr.mxu0 0.0
      %1254 = vmatpush1.msra.mxu0 0.0
      %1255 = vmatprep.subr.mxu0 0.0
      %1256 = vmatpush1.msra.mxu0 0.0
      %1257 = vmatprep.subr.mxu0 0.0
      %1258 = vmatpush1.msra.mxu0 0.0
      %1259 = vmatprep.subr.mxu0 0.0
      %1260 = vmatpush1.msra.mxu0 0.0
      %1261 = vmatprep.subr.mxu0 0.0
      %1262 = vmatpush1.msra.mxu0 0.0
      %1263 = vmatprep.subr.mxu0 0.0
      %1264 = vmatpush1.msra.mxu0 %v1140
      %1265 = vmatprep.subr.mxu0 0.0
      %1266 = vmatpush2.msra.mxu0 0.0
      %1267 = vmatprep.subr.mxu0 0.0
      %1268 = vmatpush2.msra.mxu0 0.0
      %1269 = vmatprep.subr.mxu0 0.0
      %1270 = vmatpush2.msra.mxu0 0.0
      %1271 = vmatprep.subr.mxu0 0.0
      %1272 = vmatpush2.msra.mxu0 0.0
      %1273 = vmatprep.subr.mxu0 0.0
      %1274 = vmatpush2.msra.mxu0 0.0
      %1275 = vmatprep.subr.mxu0 0.0
      %1276 = vmatpush2.msra.mxu0 0.0
      %1277 = vmatprep.subr.mxu0 0.0
      %1278 = vmatpush2.msra.mxu0 0.0
      %1279 = vmatprep.subr.mxu0 0.0
      %1280 = vmatpush2.msra.mxu0 0.0
      %1281 = vmatprep.subr.mxu0 0.0
      %1282 = vmatpush2.msra.mxu0 0.0
      %1283 = vmatprep.subr.mxu0 0.0
      %1284 = vmatpush2.msra.mxu0 0.0
      %1285 = vmatprep.subr.mxu0 0.0
      %1286 = vmatpush2.msra.mxu0 0.0
      %1287 = vmatprep.subr.mxu0 0.0
      %1288 = vmatpush2.msra.mxu0 0.0
      %1289 = vmatprep.subr.mxu0 0.0
      %1290 = vmatpush2.msra.mxu0 0.0
      %1291 = vmatprep.subr.mxu0 0.0
      %1292 = vmatpush2.msra.mxu0 0.0
      %1293 = vmatprep.subr.mxu0 0.0
      %1294 = vmatpush2.msra.mxu0 0.0
      %1295 = vmatprep.subr.mxu0 0.0
      %1296 = vmatpush2.msra.mxu0 0.0
      %1297 = vmatprep.mubr.f32.mxu0 0.0
      %1298 = vmatmul.mubr.f32.gmra.mxu0 %v1231
      %v1299 = vpop.f32.mrf.mxu0
      %v1300 = vadd.f32 0.0, %v1299
      %v1301 = vpop.f32.mrf.mxu0
      %1302 = vdwg.mxu0
      %s1303 = scalar_lea.vmem %s8, 8
      %v1304 = vld [vmem:[%s1303] sm:$0xff]
      %v1306 = vsel %vm732, %v1300, 0
      %1308 = vmatprep.subr.mxu0 0.0
      %1309 = vmatpush1.msra.mxu0 0.0
      %1310 = vmatprep.subr.mxu0 0.0
      %1311 = vmatpush1.msra.mxu0 0.0
      %1312 = vmatprep.subr.mxu0 0.0
      %1313 = vmatpush1.msra.mxu0 0.0
      %1314 = vmatprep.subr.mxu0 0.0
      %1315 = vmatpush1.msra.mxu0 0.0
      %1316 = vmatprep.subr.mxu0 0.0
      %1317 = vmatpush1.msra.mxu0 0.0
      %1318 = vmatprep.subr.mxu0 0.0
      %1319 = vmatpush1.msra.mxu0 0.0
      %1320 = vmatprep.subr.mxu0 0.0
      %1321 = vmatpush1.msra.mxu0 0.0
      %1322 = vmatprep.subr.mxu0 0.0
      %1323 = vmatpush1.msra.mxu0 0.0
      %1324 = vmatprep.subr.mxu0 0.0
      %1325 = vmatpush1.msra.mxu0 0.0
      %1326 = vmatprep.subr.mxu0 0.0
      %1327 = vmatpush1.msra.mxu0 0.0
      %1328 = vmatprep.subr.mxu0 0.0
      %1329 = vmatpush1.msra.mxu0 0.0
      %1330 = vmatprep.subr.mxu0 0.0
      %1331 = vmatpush1.msra.mxu0 0.0
      %1332 = vmatprep.subr.mxu0 0.0
      %1333 = vmatpush1.msra.mxu0 0.0
      %1334 = vmatprep.subr.mxu0 0.0
      %1335 = vmatpush1.msra.mxu0 0.0
      %1336 = vmatprep.subr.mxu0 0.0
      %1337 = vmatpush1.msra.mxu0 0.0
      %1338 = vmatprep.subr.mxu0 0.0
      %1339 = vmatpush1.msra.mxu0 %v1304
      %1340 = vmatprep.subr.mxu0 0.0
      %1341 = vmatpush2.msra.mxu0 0.0
      %1342 = vmatprep.subr.mxu0 0.0
      %1343 = vmatpush2.msra.mxu0 0.0
      %1344 = vmatprep.subr.mxu0 0.0
      %1345 = vmatpush2.msra.mxu0 0.0
      %1346 = vmatprep.subr.mxu0 0.0
      %1347 = vmatpush2.msra.mxu0 0.0
      %1348 = vmatprep.subr.mxu0 0.0
      %1349 = vmatpush2.msra.mxu0 0.0
      %1350 = vmatprep.subr.mxu0 0.0
      %1351 = vmatpush2.msra.mxu0 0.0
      %1352 = vmatprep.subr.mxu0 0.0
      %1353 = vmatpush2.msra.mxu0 0.0
      %1354 = vmatprep.subr.mxu0 0.0
      %1355 = vmatpush2.msra.mxu0 0.0
      %1356 = vmatprep.subr.mxu0 0.0
      %1357 = vmatpush2.msra.mxu0 0.0
      %1358 = vmatprep.subr.mxu0 0.0
      %1359 = vmatpush2.msra.mxu0 0.0
      %1360 = vmatprep.subr.mxu0 0.0
      %1361 = vmatpush2.msra.mxu0 0.0
      %1362 = vmatprep.subr.mxu0 0.0
      %1363 = vmatpush2.msra.mxu0 0.0
      %1364 = vmatprep.subr.mxu0 0.0
      %1365 = vmatpush2.msra.mxu0 0.0
      %1366 = vmatprep.subr.mxu0 0.0
      %1367 = vmatpush2.msra.mxu0 0.0
      %1368 = vmatprep.subr.mxu0 0.0
      %1369 = vmatpush2.msra.mxu0 0.0
      %1370 = vmatprep.subr.mxu0 0.0
      %1371 = vmatpush2.msra.mxu0 0.0
      %1372 = vmatprep.mubr.f32.mxu0 0.0
      %1373 = vmatmul.mubr.f32.gmra.mxu0 %v1306
      %v1374 = vpop.f32.mrf.mxu0
      %v1375 = vadd.f32 0.0, %v1374
      %v1376 = vpop.f32.mrf.mxu0
      %1377 = vdwg.mxu0
      %v1379 = vsel %vm732, %v890, 0
      %1381 = vmatprep.subr.mxu0 0.0
      %1382 = vmatpush1.msra.mxu0 0.0
      %1383 = vmatprep.subr.mxu0 0.0
      %1384 = vmatpush1.msra.mxu0 0.0
      %1385 = vmatprep.subr.mxu0 0.0
      %1386 = vmatpush1.msra.mxu0 0.0
      %1387 = vmatprep.subr.mxu0 0.0
      %1388 = vmatpush1.msra.mxu0 0.0
      %1389 = vmatprep.subr.mxu0 0.0
      %1390 = vmatpush1.msra.mxu0 0.0
      %1391 = vmatprep.subr.mxu0 0.0
      %1392 = vmatpush1.msra.mxu0 0.0
      %1393 = vmatprep.subr.mxu0 0.0
      %1394 = vmatpush1.msra.mxu0 0.0
      %1395 = vmatprep.subr.mxu0 0.0
      %1396 = vmatpush1.msra.mxu0 0.0
      %1397 = vmatprep.subr.mxu0 0.0
      %1398 = vmatpush1.msra.mxu0 0.0
      %1399 = vmatprep.subr.mxu0 0.0
      %1400 = vmatpush1.msra.mxu0 0.0
      %1401 = vmatprep.subr.mxu0 0.0
      %1402 = vmatpush1.msra.mxu0 0.0
      %1403 = vmatprep.subr.mxu0 0.0
      %1404 = vmatpush1.msra.mxu0 0.0
      %1405 = vmatprep.subr.mxu0 0.0
      %1406 = vmatpush1.msra.mxu0 0.0
      %1407 = vmatprep.subr.mxu0 0.0
      %1408 = vmatpush1.msra.mxu0 0.0
      %1409 = vmatprep.subr.mxu0 0.0
      %1410 = vmatpush1.msra.mxu0 0.0
      %1411 = vmatprep.subr.mxu0 0.0
      %1412 = vmatpush1.msra.mxu0 %v893
      %1413 = vmatprep.subr.mxu0 0.0
      %1414 = vmatpush2.msra.mxu0 0.0
      %1415 = vmatprep.subr.mxu0 0.0
      %1416 = vmatpush2.msra.mxu0 0.0
      %1417 = vmatprep.subr.mxu0 0.0
      %1418 = vmatpush2.msra.mxu0 0.0
      %1419 = vmatprep.subr.mxu0 0.0
      %1420 = vmatpush2.msra.mxu0 0.0
      %1421 = vmatprep.subr.mxu0 0.0
      %1422 = vmatpush2.msra.mxu0 0.0
      %1423 = vmatprep.subr.mxu0 0.0
      %1424 = vmatpush2.msra.mxu0 0.0
      %1425 = vmatprep.subr.mxu0 0.0
      %1426 = vmatpush2.msra.mxu0 0.0
      %1427 = vmatprep.subr.mxu0 0.0
      %1428 = vmatpush2.msra.mxu0 0.0
      %1429 = vmatprep.subr.mxu0 0.0
      %1430 = vmatpush2.msra.mxu0 0.0
      %1431 = vmatprep.subr.mxu0 0.0
      %1432 = vmatpush2.msra.mxu0 0.0
      %1433 = vmatprep.subr.mxu0 0.0
      %1434 = vmatpush2.msra.mxu0 0.0
      %1435 = vmatprep.subr.mxu0 0.0
      %1436 = vmatpush2.msra.mxu0 0.0
      %1437 = vmatprep.subr.mxu0 0.0
      %1438 = vmatpush2.msra.mxu0 0.0
      %1439 = vmatprep.subr.mxu0 0.0
      %1440 = vmatpush2.msra.mxu0 0.0
      %1441 = vmatprep.subr.mxu0 0.0
      %1442 = vmatpush2.msra.mxu0 0.0
      %1443 = vmatprep.subr.mxu0 0.0
      %1444 = vmatpush2.msra.mxu0 0.0
      %1445 = vmatprep.mubr.f32.mxu0 0.0
      %1446 = vmatmul.mubr.f32.gmra.mxu0 %v1379
      %v1447 = vpop.f32.mrf.mxu0
      %v1448 = vadd.f32 %v1375, %v1447
      %v1449 = vpop.f32.mrf.mxu0
      %1450 = vdwg.mxu0
      %s1451 = scalar_lea.vmem %s2, 64
      %v1452 = vld [vmem:[%s1451] sm:$0xff]
      %v1453 = vld [vmem:[%s1451 + $0x8] sm:$0xff]
      %v1454 = vld [vmem:[%s1451 + $0x10] sm:$0xff]
      %v1455 = vld [vmem:[%s1451 + $0x18] sm:$0xff]
      %s1456 = scalar_lea.vmem %s3, 2
      %v1457 = vld [vmem:[%s1456] sm:$0x1]
      %v1459 = vlaneseq
      %v1460 = vshrl.u32 %v1459, 7
      %v1461 = vsub.s32 0, %v1460
      %v1462 = vrot.slane %v1457, %v1461
      %1464 = vmatprep.subr.mxu0 0.0
      %1465 = vmatpush1.msra.mxu0 0.0
      %1466 = vmatprep.subr.mxu0 0.0
      %1467 = vmatpush1.msra.mxu0 0.0
      %1468 = vmatprep.subr.mxu0 0.0
      %1469 = vmatpush1.msra.mxu0 0.0
      %1470 = vmatprep.subr.mxu0 0.0
      %1471 = vmatpush1.msra.mxu0 0.0
      %1472 = vmatprep.subr.mxu0 0.0
      %1473 = vmatpush1.msra.mxu0 0.0
      %1474 = vmatprep.subr.mxu0 0.0
      %1475 = vmatpush1.msra.mxu0 0.0
      %1476 = vmatprep.subr.mxu0 0.0
      %1477 = vmatpush1.msra.mxu0 0.0
      %1478 = vmatprep.subr.mxu0 0.0
      %1479 = vmatpush1.msra.mxu0 0.0
      %1480 = vmatprep.subr.mxu0 0.0
      %1481 = vmatpush1.msra.mxu0 0.0
      %1482 = vmatprep.subr.mxu0 0.0
      %1483 = vmatpush1.msra.mxu0 0.0
      %1484 = vmatprep.subr.mxu0 0.0
      %1485 = vmatpush1.msra.mxu0 0.0
      %1486 = vmatprep.subr.mxu0 0.0
      %1487 = vmatpush1.msra.mxu0 0.0
      %1488 = vmatprep.subr.mxu0 0.0
      %1489 = vmatpush1.msra.mxu0 %v1455
      %1490 = vmatprep.subr.mxu0 0.0
      %1491 = vmatpush1.msra.mxu0 %v1454
      %1492 = vmatprep.subr.mxu0 0.0
      %1493 = vmatpush1.msra.mxu0 %v1453
      %1494 = vmatprep.subr.mxu0 0.0
      %1495 = vmatpush1.msra.mxu0 %v1452
      %1496 = vmatprep.subr.mxu0 0.0
      %1497 = vmatpush2.msra.mxu0 0.0
      %1498 = vmatprep.subr.mxu0 0.0
      %1499 = vmatpush2.msra.mxu0 0.0
      %1500 = vmatprep.subr.mxu0 0.0
      %1501 = vmatpush2.msra.mxu0 0.0
      %1502 = vmatprep.subr.mxu0 0.0
      %1503 = vmatpush2.msra.mxu0 0.0
      %1504 = vmatprep.subr.mxu0 0.0
      %1505 = vmatpush2.msra.mxu0 0.0
      %1506 = vmatprep.subr.mxu0 0.0
      %1507 = vmatpush2.msra.mxu0 0.0
      %1508 = vmatprep.subr.mxu0 0.0
      %1509 = vmatpush2.msra.mxu0 0.0
      %1510 = vmatprep.subr.mxu0 0.0
      %1511 = vmatpush2.msra.mxu0 0.0
      %1512 = vmatprep.subr.mxu0 0.0
      %1513 = vmatpush2.msra.mxu0 0.0
      %1514 = vmatprep.subr.mxu0 0.0
      %1515 = vmatpush2.msra.mxu0 0.0
      %1516 = vmatprep.subr.mxu0 0.0
      %1517 = vmatpush2.msra.mxu0 0.0
      %1518 = vmatprep.subr.mxu0 0.0
      %1519 = vmatpush2.msra.mxu0 0.0
      %1520 = vmatprep.subr.mxu0 0.0
      %1521 = vmatpush2.msra.mxu0 0.0
      %1522 = vmatprep.subr.mxu0 0.0
      %1523 = vmatpush2.msra.mxu0 0.0
      %1524 = vmatprep.subr.mxu0 0.0
      %1525 = vmatpush2.msra.mxu0 0.0
      %1526 = vmatprep.subr.mxu0 0.0
      %1527 = vmatpush2.msra.mxu0 0.0
      %1528 = vmatprep.mubr.f32.mxu0 0.0
      %1529 = vmatmul.mubr.f32.gmra.mxu0 %v495
      %v1530 = vpop.f32.mrf.mxu0
      %v1531 = vadd.f32 %v1462, %v1530
      %v1532 = vpop.f32.mrf.mxu0
      %1533 = vdwg.mxu0
      %s1534 = scalar_lea.vmem %s4, 64
      %v1535 = vld [vmem:[%s1534] sm:$0xff]
      %v1536 = vld [vmem:[%s1534 + $0x8] sm:$0xff]
      %v1537 = vld [vmem:[%s1534 + $0x10] sm:$0xff]
      %v1538 = vld [vmem:[%s1534 + $0x18] sm:$0xff]
      %s1539 = scalar_lea.vmem %s5, 2
      %v1540 = vld [vmem:[%s1539] sm:$0x1]
      %v1542 = vlaneseq
      %v1543 = vshrl.u32 %v1542, 7
      %v1544 = vsub.s32 0, %v1543
      %v1545 = vrot.slane %v1540, %v1544
      %1547 = vmatprep.subr.mxu0 0.0
      %1548 = vmatpush1.msra.mxu0 0.0
      %1549 = vmatprep.subr.mxu0 0.0
      %1550 = vmatpush1.msra.mxu0 0.0
      %1551 = vmatprep.subr.mxu0 0.0
      %1552 = vmatpush1.msra.mxu0 0.0
      %1553 = vmatprep.subr.mxu0 0.0
      %1554 = vmatpush1.msra.mxu0 0.0
      %1555 = vmatprep.subr.mxu0 0.0
      %1556 = vmatpush1.msra.mxu0 0.0
      %1557 = vmatprep.subr.mxu0 0.0
      %1558 = vmatpush1.msra.mxu0 0.0
      %1559 = vmatprep.subr.mxu0 0.0
      %1560 = vmatpush1.msra.mxu0 0.0
      %1561 = vmatprep.subr.mxu0 0.0
      %1562 = vmatpush1.msra.mxu0 0.0
      %1563 = vmatprep.subr.mxu0 0.0
      %1564 = vmatpush1.msra.mxu0 0.0
      %1565 = vmatprep.subr.mxu0 0.0
      %1566 = vmatpush1.msra.mxu0 0.0
      %1567 = vmatprep.subr.mxu0 0.0
      %1568 = vmatpush1.msra.mxu0 0.0
      %1569 = vmatprep.subr.mxu0 0.0
      %1570 = vmatpush1.msra.mxu0 0.0
      %1571 = vmatprep.subr.mxu0 0.0
      %1572 = vmatpush1.msra.mxu0 %v1538
      %1573 = vmatprep.subr.mxu0 0.0
      %1574 = vmatpush1.msra.mxu0 %v1537
      %1575 = vmatprep.subr.mxu0 0.0
      %1576 = vmatpush1.msra.mxu0 %v1536
      %1577 = vmatprep.subr.mxu0 0.0
      %1578 = vmatpush1.msra.mxu0 %v1535
      %1579 = vmatprep.subr.mxu0 0.0
      %1580 = vmatpush2.msra.mxu0 0.0
      %1581 = vmatprep.subr.mxu0 0.0
      %1582 = vmatpush2.msra.mxu0 0.0
      %1583 = vmatprep.subr.mxu0 0.0
      %1584 = vmatpush2.msra.mxu0 0.0
      %1585 = vmatprep.subr.mxu0 0.0
      %1586 = vmatpush2.msra.mxu0 0.0
      %1587 = vmatprep.subr.mxu0 0.0
      %1588 = vmatpush2.msra.mxu0 0.0
      %1589 = vmatprep.subr.mxu0 0.0
      %1590 = vmatpush2.msra.mxu0 0.0
      %1591 = vmatprep.subr.mxu0 0.0
      %1592 = vmatpush2.msra.mxu0 0.0
      %1593 = vmatprep.subr.mxu0 0.0
      %1594 = vmatpush2.msra.mxu0 0.0
      %1595 = vmatprep.subr.mxu0 0.0
      %1596 = vmatpush2.msra.mxu0 0.0
      %1597 = vmatprep.subr.mxu0 0.0
      %1598 = vmatpush2.msra.mxu0 0.0
      %1599 = vmatprep.subr.mxu0 0.0
      %1600 = vmatpush2.msra.mxu0 0.0
      %1601 = vmatprep.subr.mxu0 0.0
      %1602 = vmatpush2.msra.mxu0 0.0
      %1603 = vmatprep.subr.mxu0 0.0
      %1604 = vmatpush2.msra.mxu0 0.0
      %1605 = vmatprep.subr.mxu0 0.0
      %1606 = vmatpush2.msra.mxu0 0.0
      %1607 = vmatprep.subr.mxu0 0.0
      %1608 = vmatpush2.msra.mxu0 0.0
      %1609 = vmatprep.subr.mxu0 0.0
      %1610 = vmatpush2.msra.mxu0 0.0
      %1611 = vmatprep.mubr.f32.mxu0 0.0
      %1612 = vmatmul.mubr.f32.gmra.mxu0 %v579
      %v1613 = vpop.f32.mrf.mxu0
      %v1614 = vadd.f32 %v1545, %v1613
      %v1615 = vpop.f32.mrf.mxu0
      %1616 = vdwg.mxu0
      %s1617 = scalar_lea.vmem %s6, 64
      %v1618 = vld [vmem:[%s1617] sm:$0xff]
      %v1619 = vld [vmem:[%s1617 + $0x8] sm:$0xff]
      %v1620 = vld [vmem:[%s1617 + $0x10] sm:$0xff]
      %v1621 = vld [vmem:[%s1617 + $0x18] sm:$0xff]
      %s1622 = scalar_lea.vmem %s7, 2
      %v1623 = vld [vmem:[%s1622] sm:$0x1]
      %v1625 = vlaneseq
      %v1626 = vshrl.u32 %v1625, 7
      %v1627 = vsub.s32 0, %v1626
      %v1628 = vrot.slane %v1623, %v1627
      %1630 = vmatprep.subr.mxu0 0.0
      %1631 = vmatpush1.msra.mxu0 0.0
      %1632 = vmatprep.subr.mxu0 0.0
      %1633 = vmatpush1.msra.mxu0 0.0
      %1634 = vmatprep.subr.mxu0 0.0
      %1635 = vmatpush1.msra.mxu0 0.0
      %1636 = vmatprep.subr.mxu0 0.0
      %1637 = vmatpush1.msra.mxu0 0.0
      %1638 = vmatprep.subr.mxu0 0.0
      %1639 = vmatpush1.msra.mxu0 0.0
      %1640 = vmatprep.subr.mxu0 0.0
      %1641 = vmatpush1.msra.mxu0 0.0
      %1642 = vmatprep.subr.mxu0 0.0
      %1643 = vmatpush1.msra.mxu0 0.0
      %1644 = vmatprep.subr.mxu0 0.0
      %1645 = vmatpush1.msra.mxu0 0.0
      %1646 = vmatprep.subr.mxu0 0.0
      %1647 = vmatpush1.msra.mxu0 0.0
      %1648 = vmatprep.subr.mxu0 0.0
      %1649 = vmatpush1.msra.mxu0 0.0
      %1650 = vmatprep.subr.mxu0 0.0
      %1651 = vmatpush1.msra.mxu0 0.0
      %1652 = vmatprep.subr.mxu0 0.0
      %1653 = vmatpush1.msra.mxu0 0.0
      %1654 = vmatprep.subr.mxu0 0.0
      %1655 = vmatpush1.msra.mxu0 %v1621
      %1656 = vmatprep.subr.mxu0 0.0
      %1657 = vmatpush1.msra.mxu0 %v1620
      %1658 = vmatprep.subr.mxu0 0.0
      %1659 = vmatpush1.msra.mxu0 %v1619
      %1660 = vmatprep.subr.mxu0 0.0
      %1661 = vmatpush1.msra.mxu0 %v1618
      %1662 = vmatprep.subr.mxu0 0.0
      %1663 = vmatpush2.msra.mxu0 0.0
      %1664 = vmatprep.subr.mxu0 0.0
      %1665 = vmatpush2.msra.mxu0 0.0
      %1666 = vmatprep.subr.mxu0 0.0
      %1667 = vmatpush2.msra.mxu0 0.0
      %1668 = vmatprep.subr.mxu0 0.0
      %1669 = vmatpush2.msra.mxu0 0.0
      %1670 = vmatprep.subr.mxu0 0.0
      %1671 = vmatpush2.msra.mxu0 0.0
      %1672 = vmatprep.subr.mxu0 0.0
      %1673 = vmatpush2.msra.mxu0 0.0
      %1674 = vmatprep.subr.mxu0 0.0
      %1675 = vmatpush2.msra.mxu0 0.0
      %1676 = vmatprep.subr.mxu0 0.0
      %1677 = vmatpush2.msra.mxu0 0.0
      %1678 = vmatprep.subr.mxu0 0.0
      %1679 = vmatpush2.msra.mxu0 0.0
      %1680 = vmatprep.subr.mxu0 0.0
      %1681 = vmatpush2.msra.mxu0 0.0
      %1682 = vmatprep.subr.mxu0 0.0
      %1683 = vmatpush2.msra.mxu0 0.0
      %1684 = vmatprep.subr.mxu0 0.0
      %1685 = vmatpush2.msra.mxu0 0.0
      %1686 = vmatprep.subr.mxu0 0.0
      %1687 = vmatpush2.msra.mxu0 0.0
      %1688 = vmatprep.subr.mxu0 0.0
      %1689 = vmatpush2.msra.mxu0 0.0
      %1690 = vmatprep.subr.mxu0 0.0
      %1691 = vmatpush2.msra.mxu0 0.0
      %1692 = vmatprep.subr.mxu0 0.0
      %1693 = vmatpush2.msra.mxu0 0.0
      %1694 = vmatprep.mubr.f32.mxu0 0.0
      %1695 = vmatmul.mubr.f32.gmra.mxu0 %v579
      %v1696 = vpop.f32.mrf.mxu0
      %v1697 = vadd.f32 %v1628, %v1696
      %v1698 = vpop.f32.mrf.mxu0
      %1699 = vdwg.mxu0
      %v1701 = vsel %vm732, %v1531, 0
      %v1704 = vsel %vm732, %v1614, 0
      %1706 = vmatprep.subr.mxu0 0.0
      %1707 = vmatpush1.xpose.msra.mxu0 0.0
      %1708 = vmatprep.subr.mxu0 0.0
      %1709 = vmatpush1.xpose.msra.mxu0 0.0
      %1710 = vmatprep.subr.mxu0 0.0
      %1711 = vmatpush1.xpose.msra.mxu0 0.0
      %1712 = vmatprep.subr.mxu0 0.0
      %1713 = vmatpush1.xpose.msra.mxu0 0.0
      %1714 = vmatprep.subr.mxu0 0.0
      %1715 = vmatpush1.xpose.msra.mxu0 0.0
      %1716 = vmatprep.subr.mxu0 0.0
      %1717 = vmatpush1.xpose.msra.mxu0 0.0
      %1718 = vmatprep.subr.mxu0 0.0
      %1719 = vmatpush1.xpose.msra.mxu0 0.0
      %1720 = vmatprep.subr.mxu0 0.0
      %1721 = vmatpush1.xpose.msra.mxu0 0.0
      %1722 = vmatprep.subr.mxu0 0.0
      %1723 = vmatpush1.xpose.msra.mxu0 0.0
      %1724 = vmatprep.subr.mxu0 0.0
      %1725 = vmatpush1.xpose.msra.mxu0 0.0
      %1726 = vmatprep.subr.mxu0 0.0
      %1727 = vmatpush1.xpose.msra.mxu0 0.0
      %1728 = vmatprep.subr.mxu0 0.0
      %1729 = vmatpush1.xpose.msra.mxu0 0.0
      %1730 = vmatprep.subr.mxu0 0.0
      %1731 = vmatpush1.xpose.msra.mxu0 0.0
      %1732 = vmatprep.subr.mxu0 0.0
      %1733 = vmatpush1.xpose.msra.mxu0 0.0
      %1734 = vmatprep.subr.mxu0 0.0
      %1735 = vmatpush1.xpose.msra.mxu0 0.0
      %1736 = vmatprep.subr.mxu0 0.0
      %1737 = vmatpush1.xpose.msra.mxu0 %v1704
      %1738 = vmatprep.subr.mxu0 0.0
      %1739 = vmatpush2.xpose.msra.mxu0 0.0
      %1740 = vmatprep.subr.mxu0 0.0
      %1741 = vmatpush2.xpose.msra.mxu0 0.0
      %1742 = vmatprep.subr.mxu0 0.0
      %1743 = vmatpush2.xpose.msra.mxu0 0.0
      %1744 = vmatprep.subr.mxu0 0.0
      %1745 = vmatpush2.xpose.msra.mxu0 0.0
      %1746 = vmatprep.subr.mxu0 0.0
      %1747 = vmatpush2.xpose.msra.mxu0 0.0
      %1748 = vmatprep.subr.mxu0 0.0
      %1749 = vmatpush2.xpose.msra.mxu0 0.0
      %1750 = vmatprep.subr.mxu0 0.0
      %1751 = vmatpush2.xpose.msra.mxu0 0.0
      %1752 = vmatprep.subr.mxu0 0.0
      %1753 = vmatpush2.xpose.msra.mxu0 0.0
      %1754 = vmatprep.subr.mxu0 0.0
      %1755 = vmatpush2.xpose.msra.mxu0 0.0
      %1756 = vmatprep.subr.mxu0 0.0
      %1757 = vmatpush2.xpose.msra.mxu0 0.0
      %1758 = vmatprep.subr.mxu0 0.0
      %1759 = vmatpush2.xpose.msra.mxu0 0.0
      %1760 = vmatprep.subr.mxu0 0.0
      %1761 = vmatpush2.xpose.msra.mxu0 0.0
      %1762 = vmatprep.subr.mxu0 0.0
      %1763 = vmatpush2.xpose.msra.mxu0 0.0
      %1764 = vmatprep.subr.mxu0 0.0
      %1765 = vmatpush2.xpose.msra.mxu0 0.0
      %1766 = vmatprep.subr.mxu0 0.0
      %1767 = vmatpush2.xpose.msra.mxu0 0.0
      %1768 = vmatprep.subr.mxu0 0.0
      %1769 = vmatpush2.xpose.msra.mxu0 0.0
      %1770 = vmatprep.mubr.f32.mxu0 0.0
      %1771 = vmatmul.mubr.f32.gmra.mxu0 %v1701
      %v1772 = vpop.f32.mrf.mxu0
      %v1773 = vadd.f32 %v481, %v1772
      %v1774 = vpop.f32.mrf.mxu0
      %1775 = vdwg.mxu0
      %v1776 = vsel %vm732, %v1773, -inf
      %1777 = vmax.xlane.f32.xlu0 %v1776
      %v1778 = vpop.xlane.xlu0 %1777
      %v1779 = vsub.f32 %v1773, %v1778
      %v1780 = vmul.f32 %v1779, 1.442695
      %v1781 = vpow.pop %v1780
      %v1782 = vsel %vm732, %v1781, 0.0
      %1783 = vadd.xlane.f32.xlu0 %v1782
      %v1784 = vpop.xlane.xlu0 %1783
      %v1785 = vrcp.pop %v1784
      %v1786 = vmul.f32 %v1781, %v1785
      %v1788 = vsel %vm732, %v1786, 0
      %1790 = vmatprep.subr.mxu0 0.0
      %1791 = vmatpush1.msra.mxu0 0.0
      %1792 = vmatprep.subr.mxu0 0.0
      %1793 = vmatpush1.msra.mxu0 0.0
      %1794 = vmatprep.subr.mxu0 0.0
      %1795 = vmatpush1.msra.mxu0 0.0
      %1796 = vmatprep.subr.mxu0 0.0
      %1797 = vmatpush1.msra.mxu0 0.0
      %1798 = vmatprep.subr.mxu0 0.0
      %1799 = vmatpush1.msra.mxu0 0.0
      %1800 = vmatprep.subr.mxu0 0.0
      %1801 = vmatpush1.msra.mxu0 0.0
      %1802 = vmatprep.subr.mxu0 0.0
      %1803 = vmatpush1.msra.mxu0 0.0
      %1804 = vmatprep.subr.mxu0 0.0
      %1805 = vmatpush1.msra.mxu0 0.0
      %1806 = vmatprep.subr.mxu0 0.0
      %1807 = vmatpush1.msra.mxu0 0.0
      %1808 = vmatprep.subr.mxu0 0.0
      %1809 = vmatpush1.msra.mxu0 0.0
      %1810 = vmatprep.subr.mxu0 0.0
      %1811 = vmatpush1.msra.mxu0 0.0
      %1812 = vmatprep.subr.mxu0 0.0
      %1813 = vmatpush1.msra.mxu0 0.0
      %1814 = vmatprep.subr.mxu0 0.0
      %1815 = vmatpush1.msra.mxu0 0.0
      %1816 = vmatprep.subr.mxu0 0.0
      %1817 = vmatpush1.msra.mxu0 0.0
      %1818 = vmatprep.subr.mxu0 0.0
      %1819 = vmatpush1.msra.mxu0 0.0
      %1820 = vmatprep.subr.mxu0 0.0
      %1821 = vmatpush1.msra.mxu0 %v1697
      %1822 = vmatprep.subr.mxu0 0.0
      %1823 = vmatpush2.msra.mxu0 0.0
      %1824 = vmatprep.subr.mxu0 0.0
      %1825 = vmatpush2.msra.mxu0 0.0
      %1826 = vmatprep.subr.mxu0 0.0
      %1827 = vmatpush2.msra.mxu0 0.0
      %1828 = vmatprep.subr.mxu0 0.0
      %1829 = vmatpush2.msra.mxu0 0.0
      %1830 = vmatprep.subr.mxu0 0.0
      %1831 = vmatpush2.msra.mxu0 0.0
      %1832 = vmatprep.subr.mxu0 0.0
      %1833 = vmatpush2.msra.mxu0 0.0
      %1834 = vmatprep.subr.mxu0 0.0
      %1835 = vmatpush2.msra.mxu0 0.0
      %1836 = vmatprep.subr.mxu0 0.0
      %1837 = vmatpush2.msra.mxu0 0.0
      %1838 = vmatprep.subr.mxu0 0.0
      %1839 = vmatpush2.msra.mxu0 0.0
      %1840 = vmatprep.subr.mxu0 0.0
      %1841 = vmatpush2.msra.mxu0 0.0
      %1842 = vmatprep.subr.mxu0 0.0
      %1843 = vmatpush2.msra.mxu0 0.0
      %1844 = vmatprep.subr.mxu0 0.0
      %1845 = vmatpush2.msra.mxu0 0.0
      %1846 = vmatprep.subr.mxu0 0.0
      %1847 = vmatpush2.msra.mxu0 0.0
      %1848 = vmatprep.subr.mxu0 0.0
      %1849 = vmatpush2.msra.mxu0 0.0
      %1850 = vmatprep.subr.mxu0 0.0
      %1851 = vmatpush2.msra.mxu0 0.0
      %1852 = vmatprep.subr.mxu0 0.0
      %1853 = vmatpush2.msra.mxu0 0.0
      %1854 = vmatprep.mubr.f32.mxu0 0.0
      %1855 = vmatmul.mubr.f32.gmra.mxu0 %v1788
      %v1856 = vpop.f32.mrf.mxu0
      %v1857 = vadd.f32 0.0, %v1856
      %v1858 = vpop.f32.mrf.mxu0
      %1859 = vdwg.mxu0
      %s1860 = scalar_lea.vmem %s8, 16
      %v1861 = vld [vmem:[%s1860] sm:$0xff]
      %v1863 = vsel %vm732, %v1857, 0
      %1865 = vmatprep.subr.mxu0 0.0
      %1866 = vmatpush1.msra.mxu0 0.0
      %1867 = vmatprep.subr.mxu0 0.0
      %1868 = vmatpush1.msra.mxu0 0.0
      %1869 = vmatprep.subr.mxu0 0.0
      %1870 = vmatpush1.msra.mxu0 0.0
      %1871 = vmatprep.subr.mxu0 0.0
      %1872 = vmatpush1.msra.mxu0 0.0
      %1873 = vmatprep.subr.mxu0 0.0
      %1874 = vmatpush1.msra.mxu0 0.0
      %1875 = vmatprep.subr.mxu0 0.0
      %1876 = vmatpush1.msra.mxu0 0.0
      %1877 = vmatprep.subr.mxu0 0.0
      %1878 = vmatpush1.msra.mxu0 0.0
      %1879 = vmatprep.subr.mxu0 0.0
      %1880 = vmatpush1.msra.mxu0 0.0
      %1881 = vmatprep.subr.mxu0 0.0
      %1882 = vmatpush1.msra.mxu0 0.0
      %1883 = vmatprep.subr.mxu0 0.0
      %1884 = vmatpush1.msra.mxu0 0.0
      %1885 = vmatprep.subr.mxu0 0.0
      %1886 = vmatpush1.msra.mxu0 0.0
      %1887 = vmatprep.subr.mxu0 0.0
      %1888 = vmatpush1.msra.mxu0 0.0
      %1889 = vmatprep.subr.mxu0 0.0
      %1890 = vmatpush1.msra.mxu0 0.0
      %1891 = vmatprep.subr.mxu0 0.0
      %1892 = vmatpush1.msra.mxu0 0.0
      %1893 = vmatprep.subr.mxu0 0.0
      %1894 = vmatpush1.msra.mxu0 0.0
      %1895 = vmatprep.subr.mxu0 0.0
      %1896 = vmatpush1.msra.mxu0 %v1861
      %1897 = vmatprep.subr.mxu0 0.0
      %1898 = vmatpush2.msra.mxu0 0.0
      %1899 = vmatprep.subr.mxu0 0.0
      %1900 = vmatpush2.msra.mxu0 0.0
      %1901 = vmatprep.subr.mxu0 0.0
      %1902 = vmatpush2.msra.mxu0 0.0
      %1903 = vmatprep.subr.mxu0 0.0
      %1904 = vmatpush2.msra.mxu0 0.0
      %1905 = vmatprep.subr.mxu0 0.0
      %1906 = vmatpush2.msra.mxu0 0.0
      %1907 = vmatprep.subr.mxu0 0.0
      %1908 = vmatpush2.msra.mxu0 0.0
      %1909 = vmatprep.subr.mxu0 0.0
      %1910 = vmatpush2.msra.mxu0 0.0
      %1911 = vmatprep.subr.mxu0 0.0
      %1912 = vmatpush2.msra.mxu0 0.0
      %1913 = vmatprep.subr.mxu0 0.0
      %1914 = vmatpush2.msra.mxu0 0.0
      %1915 = vmatprep.subr.mxu0 0.0
      %1916 = vmatpush2.msra.mxu0 0.0
      %1917 = vmatprep.subr.mxu0 0.0
      %1918 = vmatpush2.msra.mxu0 0.0
      %1919 = vmatprep.subr.mxu0 0.0
      %1920 = vmatpush2.msra.mxu0 0.0
      %1921 = vmatprep.subr.mxu0 0.0
      %1922 = vmatpush2.msra.mxu0 0.0
      %1923 = vmatprep.subr.mxu0 0.0
      %1924 = vmatpush2.msra.mxu0 0.0
      %1925 = vmatprep.subr.mxu0 0.0
      %1926 = vmatpush2.msra.mxu0 0.0
      %1927 = vmatprep.subr.mxu0 0.0
      %1928 = vmatpush2.msra.mxu0 0.0
      %1929 = vmatprep.mubr.f32.mxu0 0.0
      %1930 = vmatmul.mubr.f32.gmra.mxu0 %v1863
      %v1931 = vpop.f32.mrf.mxu0
      %v1932 = vadd.f32 0.0, %v1931
      %v1933 = vpop.f32.mrf.mxu0
      %1934 = vdwg.mxu0
      %v1935 = vadd.f32 %v1448, %v1932
      %s1936 = scalar_lea.vmem %s2, 96
      %v1937 = vld [vmem:[%s1936] sm:$0xff]
      %v1938 = vld [vmem:[%s1936 + $0x8] sm:$0xff]
      %v1939 = vld [vmem:[%s1936 + $0x10] sm:$0xff]
      %v1940 = vld [vmem:[%s1936 + $0x18] sm:$0xff]
      %s1941 = scalar_lea.vmem %s3, 3
      %v1942 = vld [vmem:[%s1941] sm:$0x1]
      %v1944 = vlaneseq
      %v1945 = vshrl.u32 %v1944, 7
      %v1946 = vsub.s32 0, %v1945
      %v1947 = vrot.slane %v1942, %v1946
      %1949 = vmatprep.subr.mxu0 0.0
      %1950 = vmatpush1.msra.mxu0 0.0
      %1951 = vmatprep.subr.mxu0 0.0
      %1952 = vmatpush1.msra.mxu0 0.0
      %1953 = vmatprep.subr.mxu0 0.0
      %1954 = vmatpush1.msra.mxu0 0.0
      %1955 = vmatprep.subr.mxu0 0.0
      %1956 = vmatpush1.msra.mxu0 0.0
      %1957 = vmatprep.subr.mxu0 0.0
      %1958 = vmatpush1.msra.mxu0 0.0
      %1959 = vmatprep.subr.mxu0 0.0
      %1960 = vmatpush1.msra.mxu0 0.0
      %1961 = vmatprep.subr.mxu0 0.0
      %1962 = vmatpush1.msra.mxu0 0.0
      %1963 = vmatprep.subr.mxu0 0.0
      %1964 = vmatpush1.msra.mxu0 0.0
      %1965 = vmatprep.subr.mxu0 0.0
      %1966 = vmatpush1.msra.mxu0 0.0
      %1967 = vmatprep.subr.mxu0 0.0
      %1968 = vmatpush1.msra.mxu0 0.0
      %1969 = vmatprep.subr.mxu0 0.0
      %1970 = vmatpush1.msra.mxu0 0.0
      %1971 = vmatprep.subr.mxu0 0.0
      %1972 = vmatpush1.msra.mxu0 0.0
      %1973 = vmatprep.subr.mxu0 0.0
      %1974 = vmatpush1.msra.mxu0 %v1940
      %1975 = vmatprep.subr.mxu0 0.0
      %1976 = vmatpush1.msra.mxu0 %v1939
      %1977 = vmatprep.subr.mxu0 0.0
      %1978 = vmatpush1.msra.mxu0 %v1938
      %1979 = vmatprep.subr.mxu0 0.0
      %1980 = vmatpush1.msra.mxu0 %v1937
      %1981 = vmatprep.subr.mxu0 0.0
      %1982 = vmatpush2.msra.mxu0 0.0
      %1983 = vmatprep.subr.mxu0 0.0
      %1984 = vmatpush2.msra.mxu0 0.0
      %1985 = vmatprep.subr.mxu0 0.0
      %1986 = vmatpush2.msra.mxu0 0.0
      %1987 = vmatprep.subr.mxu0 0.0
      %1988 = vmatpush2.msra.mxu0 0.0
      %1989 = vmatprep.subr.mxu0 0.0
      %1990 = vmatpush2.msra.mxu0 0.0
      %1991 = vmatprep.subr.mxu0 0.0
      %1992 = vmatpush2.msra.mxu0 0.0
      %1993 = vmatprep.subr.mxu0 0.0
      %1994 = vmatpush2.msra.mxu0 0.0
      %1995 = vmatprep.subr.mxu0 0.0
      %1996 = vmatpush2.msra.mxu0 0.0
      %1997 = vmatprep.subr.mxu0 0.0
      %1998 = vmatpush2.msra.mxu0 0.0
      %1999 = vmatprep.subr.mxu0 0.0
      %2000 = vmatpush2.msra.mxu0 0.0
      %2001 = vmatprep.subr.mxu0 0.0
      %2002 = vmatpush2.msra.mxu0 0.0
      %2003 = vmatprep.subr.mxu0 0.0
      %2004 = vmatpush2.msra.mxu0 0.0
      %2005 = vmatprep.subr.mxu0 0.0
      %2006 = vmatpush2.msra.mxu0 0.0
      %2007 = vmatprep.subr.mxu0 0.0
      %2008 = vmatpush2.msra.mxu0 0.0
      %2009 = vmatprep.subr.mxu0 0.0
      %2010 = vmatpush2.msra.mxu0 0.0
      %2011 = vmatprep.subr.mxu0 0.0
      %2012 = vmatpush2.msra.mxu0 0.0
      %2013 = vmatprep.mubr.f32.mxu0 0.0
      %2014 = vmatmul.mubr.f32.gmra.mxu0 %v495
      %v2015 = vpop.f32.mrf.mxu0
      %v2016 = vadd.f32 %v1947, %v2015
      %v2017 = vpop.f32.mrf.mxu0
      %2018 = vdwg.mxu0
      %s2019 = scalar_lea.vmem %s4, 96
      %v2020 = vld [vmem:[%s2019] sm:$0xff]
      %v2021 = vld [vmem:[%s2019 + $0x8] sm:$0xff]
      %v2022 = vld [vmem:[%s2019 + $0x10] sm:$0xff]
      %v2023 = vld [vmem:[%s2019 + $0x18] sm:$0xff]
      %s2024 = scalar_lea.vmem %s5, 3
      %v2025 = vld [vmem:[%s2024] sm:$0x1]
      %v2027 = vlaneseq
      %v2028 = vshrl.u32 %v2027, 7
      %v2029 = vsub.s32 0, %v2028
      %v2030 = vrot.slane %v2025, %v2029
      %2032 = vmatprep.subr.mxu0 0.0
      %2033 = vmatpush1.msra.mxu0 0.0
      %2034 = vmatprep.subr.mxu0 0.0
      %2035 = vmatpush1.msra.mxu0 0.0
      %2036 = vmatprep.subr.mxu0 0.0
      %2037 = vmatpush1.msra.mxu0 0.0
      %2038 = vmatprep.subr.mxu0 0.0
      %2039 = vmatpush1.msra.mxu0 0.0
      %2040 = vmatprep.subr.mxu0 0.0
      %2041 = vmatpush1.msra.mxu0 0.0
      %2042 = vmatprep.subr.mxu0 0.0
      %2043 = vmatpush1.msra.mxu0 0.0
      %2044 = vmatprep.subr.mxu0 0.0
      %2045 = vmatpush1.msra.mxu0 0.0
      %2046 = vmatprep.subr.mxu0 0.0
      %2047 = vmatpush1.msra.mxu0 0.0
      %2048 = vmatprep.subr.mxu0 0.0
      %2049 = vmatpush1.msra.mxu0 0.0
      %2050 = vmatprep.subr.mxu0 0.0
      %2051 = vmatpush1.msra.mxu0 0.0
      %2052 = vmatprep.subr.mxu0 0.0
      %2053 = vmatpush1.msra.mxu0 0.0
      %2054 = vmatprep.subr.mxu0 0.0
      %2055 = vmatpush1.msra.mxu0 0.0
      %2056 = vmatprep.subr.mxu0 0.0
      %2057 = vmatpush1.msra.mxu0 %v2023
      %2058 = vmatprep.subr.mxu0 0.0
      %2059 = vmatpush1.msra.mxu0 %v2022
      %2060 = vmatprep.subr.mxu0 0.0
      %2061 = vmatpush1.msra.mxu0 %v2021
      %2062 = vmatprep.subr.mxu0 0.0
      %2063 = vmatpush1.msra.mxu0 %v2020
      %2064 = vmatprep.subr.mxu0 0.0
      %2065 = vmatpush2.msra.mxu0 0.0
      %2066 = vmatprep.subr.mxu0 0.0
      %2067 = vmatpush2.msra.mxu0 0.0
      %2068 = vmatprep.subr.mxu0 0.0
      %2069 = vmatpush2.msra.mxu0 0.0
      %2070 = vmatprep.subr.mxu0 0.0
      %2071 = vmatpush2.msra.mxu0 0.0
      %2072 = vmatprep.subr.mxu0 0.0
      %2073 = vmatpush2.msra.mxu0 0.0
      %2074 = vmatprep.subr.mxu0 0.0
      %2075 = vmatpush2.msra.mxu0 0.0
      %2076 = vmatprep.subr.mxu0 0.0
      %2077 = vmatpush2.msra.mxu0 0.0
      %2078 = vmatprep.subr.mxu0 0.0
      %2079 = vmatpush2.msra.mxu0 0.0
      %2080 = vmatprep.subr.mxu0 0.0
      %2081 = vmatpush2.msra.mxu0 0.0
      %2082 = vmatprep.subr.mxu0 0.0
      %2083 = vmatpush2.msra.mxu0 0.0
      %2084 = vmatprep.subr.mxu0 0.0
      %2085 = vmatpush2.msra.mxu0 0.0
      %2086 = vmatprep.subr.mxu0 0.0
      %2087 = vmatpush2.msra.mxu0 0.0
      %2088 = vmatprep.subr.mxu0 0.0
      %2089 = vmatpush2.msra.mxu0 0.0
      %2090 = vmatprep.subr.mxu0 0.0
      %2091 = vmatpush2.msra.mxu0 0.0
      %2092 = vmatprep.subr.mxu0 0.0
      %2093 = vmatpush2.msra.mxu0 0.0
      %2094 = vmatprep.subr.mxu0 0.0
      %2095 = vmatpush2.msra.mxu0 0.0
      %2096 = vmatprep.mubr.f32.mxu0 0.0
      %2097 = vmatmul.mubr.f32.gmra.mxu0 %v579
      %v2098 = vpop.f32.mrf.mxu0
      %v2099 = vadd.f32 %v2030, %v2098
      %v2100 = vpop.f32.mrf.mxu0
      %2101 = vdwg.mxu0
      %s2102 = scalar_lea.vmem %s6, 96
      %v2103 = vld [vmem:[%s2102] sm:$0xff]
      %v2104 = vld [vmem:[%s2102 + $0x8] sm:$0xff]
      %v2105 = vld [vmem:[%s2102 + $0x10] sm:$0xff]
      %v2106 = vld [vmem:[%s2102 + $0x18] sm:$0xff]
      %s2107 = scalar_lea.vmem %s7, 3
      %v2108 = vld [vmem:[%s2107] sm:$0x1]
      %v2110 = vlaneseq
      %v2111 = vshrl.u32 %v2110, 7
      %v2112 = vsub.s32 0, %v2111
      %v2113 = vrot.slane %v2108, %v2112
      %2115 = vmatprep.subr.mxu0 0.0
      %2116 = vmatpush1.msra.mxu0 0.0
      %2117 = vmatprep.subr.mxu0 0.0
      %2118 = vmatpush1.msra.mxu0 0.0
      %2119 = vmatprep.subr.mxu0 0.0
      %2120 = vmatpush1.msra.mxu0 0.0
      %2121 = vmatprep.subr.mxu0 0.0
      %2122 = vmatpush1.msra.mxu0 0.0
      %2123 = vmatprep.subr.mxu0 0.0
      %2124 = vmatpush1.msra.mxu0 0.0
      %2125 = vmatprep.subr.mxu0 0.0
      %2126 = vmatpush1.msra.mxu0 0.0
      %2127 = vmatprep.subr.mxu0 0.0
      %2128 = vmatpush1.msra.mxu0 0.0
      %2129 = vmatprep.subr.mxu0 0.0
      %2130 = vmatpush1.msra.mxu0 0.0
      %2131 = vmatprep.subr.mxu0 0.0
      %2132 = vmatpush1.msra.mxu0 0.0
      %2133 = vmatprep.subr.mxu0 0.0
      %2134 = vmatpush1.msra.mxu0 0.0
      %2135 = vmatprep.subr.mxu0 0.0
      %2136 = vmatpush1.msra.mxu0 0.0
      %2137 = vmatprep.subr.mxu0 0.0
      %2138 = vmatpush1.msra.mxu0 0.0
      %2139 = vmatprep.subr.mxu0 0.0
      %2140 = vmatpush1.msra.mxu0 %v2106
      %2141 = vmatprep.subr.mxu0 0.0
      %2142 = vmatpush1.msra.mxu0 %v2105
      %2143 = vmatprep.subr.mxu0 0.0
      %2144 = vmatpush1.msra.mxu0 %v2104
      %2145 = vmatprep.subr.mxu0 0.0
      %2146 = vmatpush1.msra.mxu0 %v2103
      %2147 = vmatprep.subr.mxu0 0.0
      %2148 = vmatpush2.msra.mxu0 0.0
      %2149 = vmatprep.subr.mxu0 0.0
      %2150 = vmatpush2.msra.mxu0 0.0
      %2151 = vmatprep.subr.mxu0 0.0
      %2152 = vmatpush2.msra.mxu0 0.0
      %2153 = vmatprep.subr.mxu0 0.0
      %2154 = vmatpush2.msra.mxu0 0.0
      %2155 = vmatprep.subr.mxu0 0.0
      %2156 = vmatpush2.msra.mxu0 0.0
      %2157 = vmatprep.subr.mxu0 0.0
      %2158 = vmatpush2.msra.mxu0 0.0
      %2159 = vmatprep.subr.mxu0 0.0
      %2160 = vmatpush2.msra.mxu0 0.0
      %2161 = vmatprep.subr.mxu0 0.0
      %2162 = vmatpush2.msra.mxu0 0.0
      %2163 = vmatprep.subr.mxu0 0.0
      %2164 = vmatpush2.msra.mxu0 0.0
      %2165 = vmatprep.subr.mxu0 0.0
      %2166 = vmatpush2.msra.mxu0 0.0
      %2167 = vmatprep.subr.mxu0 0.0
      %2168 = vmatpush2.msra.mxu0 0.0
      %2169 = vmatprep.subr.mxu0 0.0
      %2170 = vmatpush2.msra.mxu0 0.0
      %2171 = vmatprep.subr.mxu0 0.0
      %2172 = vmatpush2.msra.mxu0 0.0
      %2173 = vmatprep.subr.mxu0 0.0
      %2174 = vmatpush2.msra.mxu0 0.0
      %2175 = vmatprep.subr.mxu0 0.0
      %2176 = vmatpush2.msra.mxu0 0.0
      %2177 = vmatprep.subr.mxu0 0.0
      %2178 = vmatpush2.msra.mxu0 0.0
      %2179 = vmatprep.mubr.f32.mxu0 0.0
      %2180 = vmatmul.mubr.f32.gmra.mxu0 %v579
      %v2181 = vpop.f32.mrf.mxu0
      %v2182 = vadd.f32 %v2113, %v2181
      %v2183 = vpop.f32.mrf.mxu0
      %2184 = vdwg.mxu0
      %v2186 = vsel %vm732, %v2016, 0
      %v2189 = vsel %vm732, %v2099, 0
      %2191 = vmatprep.subr.mxu0 0.0
      %2192 = vmatpush1.xpose.msra.mxu0 0.0
      %2193 = vmatprep.subr.mxu0 0.0
      %2194 = vmatpush1.xpose.msra.mxu0 0.0
      %2195 = vmatprep.subr.mxu0 0.0
      %2196 = vmatpush1.xpose.msra.mxu0 0.0
      %2197 = vmatprep.subr.mxu0 0.0
      %2198 = vmatpush1.xpose.msra.mxu0 0.0
      %2199 = vmatprep.subr.mxu0 0.0
      %2200 = vmatpush1.xpose.msra.mxu0 0.0
      %2201 = vmatprep.subr.mxu0 0.0
      %2202 = vmatpush1.xpose.msra.mxu0 0.0
      %2203 = vmatprep.subr.mxu0 0.0
      %2204 = vmatpush1.xpose.msra.mxu0 0.0
      %2205 = vmatprep.subr.mxu0 0.0
      %2206 = vmatpush1.xpose.msra.mxu0 0.0
      %2207 = vmatprep.subr.mxu0 0.0
      %2208 = vmatpush1.xpose.msra.mxu0 0.0
      %2209 = vmatprep.subr.mxu0 0.0
      %2210 = vmatpush1.xpose.msra.mxu0 0.0
      %2211 = vmatprep.subr.mxu0 0.0
      %2212 = vmatpush1.xpose.msra.mxu0 0.0
      %2213 = vmatprep.subr.mxu0 0.0
      %2214 = vmatpush1.xpose.msra.mxu0 0.0
      %2215 = vmatprep.subr.mxu0 0.0
      %2216 = vmatpush1.xpose.msra.mxu0 0.0
      %2217 = vmatprep.subr.mxu0 0.0
      %2218 = vmatpush1.xpose.msra.mxu0 0.0
      %2219 = vmatprep.subr.mxu0 0.0
      %2220 = vmatpush1.xpose.msra.mxu0 0.0
      %2221 = vmatprep.subr.mxu0 0.0
      %2222 = vmatpush1.xpose.msra.mxu0 %v2189
      %2223 = vmatprep.subr.mxu0 0.0
      %2224 = vmatpush2.xpose.msra.mxu0 0.0
      %2225 = vmatprep.subr.mxu0 0.0
      %2226 = vmatpush2.xpose.msra.mxu0 0.0
      %2227 = vmatprep.subr.mxu0 0.0
      %2228 = vmatpush2.xpose.msra.mxu0 0.0
      %2229 = vmatprep.subr.mxu0 0.0
      %2230 = vmatpush2.xpose.msra.mxu0 0.0
      %2231 = vmatprep.subr.mxu0 0.0
      %2232 = vmatpush2.xpose.msra.mxu0 0.0
      %2233 = vmatprep.subr.mxu0 0.0
      %2234 = vmatpush2.xpose.msra.mxu0 0.0
      %2235 = vmatprep.subr.mxu0 0.0
      %2236 = vmatpush2.xpose.msra.mxu0 0.0
      %2237 = vmatprep.subr.mxu0 0.0
      %2238 = vmatpush2.xpose.msra.mxu0 0.0
      %2239 = vmatprep.subr.mxu0 0.0
      %2240 = vmatpush2.xpose.msra.mxu0 0.0
      %2241 = vmatprep.subr.mxu0 0.0
      %2242 = vmatpush2.xpose.msra.mxu0 0.0
      %2243 = vmatprep.subr.mxu0 0.0
      %2244 = vmatpush2.xpose.msra.mxu0 0.0
      %2245 = vmatprep.subr.mxu0 0.0
      %2246 = vmatpush2.xpose.msra.mxu0 0.0
      %2247 = vmatprep.subr.mxu0 0.0
      %2248 = vmatpush2.xpose.msra.mxu0 0.0
      %2249 = vmatprep.subr.mxu0 0.0
      %2250 = vmatpush2.xpose.msra.mxu0 0.0
      %2251 = vmatprep.subr.mxu0 0.0
      %2252 = vmatpush2.xpose.msra.mxu0 0.0
      %2253 = vmatprep.subr.mxu0 0.0
      %2254 = vmatpush2.xpose.msra.mxu0 0.0
      %2255 = vmatprep.mubr.f32.mxu0 0.0
      %2256 = vmatmul.mubr.f32.gmra.mxu0 %v2186
      %v2257 = vpop.f32.mrf.mxu0
      %v2258 = vadd.f32 %v481, %v2257
      %v2259 = vpop.f32.mrf.mxu0
      %2260 = vdwg.mxu0
      %v2261 = vsel %vm732, %v2258, -inf
      %2262 = vmax.xlane.f32.xlu0 %v2261
      %v2263 = vpop.xlane.xlu0 %2262
      %v2264 = vsub.f32 %v2258, %v2263
      %v2265 = vmul.f32 %v2264, 1.442695
      %v2266 = vpow.pop %v2265
      %v2267 = vsel %vm732, %v2266, 0.0
      %2268 = vadd.xlane.f32.xlu0 %v2267
      %v2269 = vpop.xlane.xlu0 %2268
      %v2270 = vrcp.pop %v2269
      %v2271 = vmul.f32 %v2266, %v2270
      %v2273 = vsel %vm732, %v2271, 0
      %2275 = vmatprep.subr.mxu0 0.0
      %2276 = vmatpush1.msra.mxu0 0.0
      %2277 = vmatprep.subr.mxu0 0.0
      %2278 = vmatpush1.msra.mxu0 0.0
      %2279 = vmatprep.subr.mxu0 0.0
      %2280 = vmatpush1.msra.mxu0 0.0
      %2281 = vmatprep.subr.mxu0 0.0
      %2282 = vmatpush1.msra.mxu0 0.0
      %2283 = vmatprep.subr.mxu0 0.0
      %2284 = vmatpush1.msra.mxu0 0.0
      %2285 = vmatprep.subr.mxu0 0.0
      %2286 = vmatpush1.msra.mxu0 0.0
      %2287 = vmatprep.subr.mxu0 0.0
      %2288 = vmatpush1.msra.mxu0 0.0
      %2289 = vmatprep.subr.mxu0 0.0
      %2290 = vmatpush1.msra.mxu0 0.0
      %2291 = vmatprep.subr.mxu0 0.0
      %2292 = vmatpush1.msra.mxu0 0.0
      %2293 = vmatprep.subr.mxu0 0.0
      %2294 = vmatpush1.msra.mxu0 0.0
      %2295 = vmatprep.subr.mxu0 0.0
      %2296 = vmatpush1.msra.mxu0 0.0
      %2297 = vmatprep.subr.mxu0 0.0
      %2298 = vmatpush1.msra.mxu0 0.0
      %2299 = vmatprep.subr.mxu0 0.0
      %2300 = vmatpush1.msra.mxu0 0.0
      %2301 = vmatprep.subr.mxu0 0.0
      %2302 = vmatpush1.msra.mxu0 0.0
      %2303 = vmatprep.subr.mxu0 0.0
      %2304 = vmatpush1.msra.mxu0 0.0
      %2305 = vmatprep.subr.mxu0 0.0
      %2306 = vmatpush1.msra.mxu0 %v2182
      %2307 = vmatprep.subr.mxu0 0.0
      %2308 = vmatpush2.msra.mxu0 0.0
      %2309 = vmatprep.subr.mxu0 0.0
      %2310 = vmatpush2.msra.mxu0 0.0
      %2311 = vmatprep.subr.mxu0 0.0
      %2312 = vmatpush2.msra.mxu0 0.0
      %2313 = vmatprep.subr.mxu0 0.0
      %2314 = vmatpush2.msra.mxu0 0.0
      %2315 = vmatprep.subr.mxu0 0.0
      %2316 = vmatpush2.msra.mxu0 0.0
      %2317 = vmatprep.subr.mxu0 0.0
      %2318 = vmatpush2.msra.mxu0 0.0
      %2319 = vmatprep.subr.mxu0 0.0
      %2320 = vmatpush2.msra.mxu0 0.0
      %2321 = vmatprep.subr.mxu0 0.0
      %2322 = vmatpush2.msra.mxu0 0.0
      %2323 = vmatprep.subr.mxu0 0.0
      %2324 = vmatpush2.msra.mxu0 0.0
      %2325 = vmatprep.subr.mxu0 0.0
      %2326 = vmatpush2.msra.mxu0 0.0
      %2327 = vmatprep.subr.mxu0 0.0
      %2328 = vmatpush2.msra.mxu0 0.0
      %2329 = vmatprep.subr.mxu0 0.0
      %2330 = vmatpush2.msra.mxu0 0.0
      %2331 = vmatprep.subr.mxu0 0.0
      %2332 = vmatpush2.msra.mxu0 0.0
      %2333 = vmatprep.subr.mxu0 0.0
      %2334 = vmatpush2.msra.mxu0 0.0
      %2335 = vmatprep.subr.mxu0 0.0
      %2336 = vmatpush2.msra.mxu0 0.0
      %2337 = vmatprep.subr.mxu0 0.0
      %2338 = vmatpush2.msra.mxu0 0.0
      %2339 = vmatprep.mubr.f32.mxu0 0.0
      %2340 = vmatmul.mubr.f32.gmra.mxu0 %v2273
      %v2341 = vpop.f32.mrf.mxu0
      %v2342 = vadd.f32 0.0, %v2341
      %v2343 = vpop.f32.mrf.mxu0
      %2344 = vdwg.mxu0
      %s2345 = scalar_lea.vmem %s8, 24
      %v2346 = vld [vmem:[%s2345] sm:$0xff]
      %v2348 = vsel %vm732, %v2342, 0
      %2350 = vmatprep.subr.mxu0 0.0
      %2351 = vmatpush1.msra.mxu0 0.0
      %2352 = vmatprep.subr.mxu0 0.0
      %2353 = vmatpush1.msra.mxu0 0.0
      %2354 = vmatprep.subr.mxu0 0.0
      %2355 = vmatpush1.msra.mxu0 0.0
      %2356 = vmatprep.subr.mxu0 0.0
      %2357 = vmatpush1.msra.mxu0 0.0
      %2358 = vmatprep.subr.mxu0 0.0
      %2359 = vmatpush1.msra.mxu0 0.0
      %2360 = vmatprep.subr.mxu0 0.0
      %2361 = vmatpush1.msra.mxu0 0.0
      %2362 = vmatprep.subr.mxu0 0.0
      %2363 = vmatpush1.msra.mxu0 0.0
      %2364 = vmatprep.subr.mxu0 0.0
      %2365 = vmatpush1.msra.mxu0 0.0
      %2366 = vmatprep.subr.mxu0 0.0
      %2367 = vmatpush1.msra.mxu0 0.0
      %2368 = vmatprep.subr.mxu0 0.0
      %2369 = vmatpush1.msra.mxu0 0.0
      %2370 = vmatprep.subr.mxu0 0.0
      %2371 = vmatpush1.msra.mxu0 0.0
      %2372 = vmatprep.subr.mxu0 0.0
      %2373 = vmatpush1.msra.mxu0 0.0
      %2374 = vmatprep.subr.mxu0 0.0
      %2375 = vmatpush1.msra.mxu0 0.0
      %2376 = vmatprep.subr.mxu0 0.0
      %2377 = vmatpush1.msra.mxu0 0.0
      %2378 = vmatprep.subr.mxu0 0.0
      %2379 = vmatpush1.msra.mxu0 0.0
      %2380 = vmatprep.subr.mxu0 0.0
      %2381 = vmatpush1.msra.mxu0 %v2346
      %2382 = vmatprep.subr.mxu0 0.0
      %2383 = vmatpush2.msra.mxu0 0.0
      %2384 = vmatprep.subr.mxu0 0.0
      %2385 = vmatpush2.msra.mxu0 0.0
      %2386 = vmatprep.subr.mxu0 0.0
      %2387 = vmatpush2.msra.mxu0 0.0
      %2388 = vmatprep.subr.mxu0 0.0
      %2389 = vmatpush2.msra.mxu0 0.0
      %2390 = vmatprep.subr.mxu0 0.0
      %2391 = vmatpush2.msra.mxu0 0.0
      %2392 = vmatprep.subr.mxu0 0.0
      %2393 = vmatpush2.msra.mxu0 0.0
      %2394 = vmatprep.subr.mxu0 0.0
      %2395 = vmatpush2.msra.mxu0 0.0
      %2396 = vmatprep.subr.mxu0 0.0
      %2397 = vmatpush2.msra.mxu0 0.0
      %2398 = vmatprep.subr.mxu0 0.0
      %2399 = vmatpush2.msra.mxu0 0.0
      %2400 = vmatprep.subr.mxu0 0.0
      %2401 = vmatpush2.msra.mxu0 0.0
      %2402 = vmatprep.subr.mxu0 0.0
      %2403 = vmatpush2.msra.mxu0 0.0
      %2404 = vmatprep.subr.mxu0 0.0
      %2405 = vmatpush2.msra.mxu0 0.0
      %2406 = vmatprep.subr.mxu0 0.0
      %2407 = vmatpush2.msra.mxu0 0.0
      %2408 = vmatprep.subr.mxu0 0.0
      %2409 = vmatpush2.msra.mxu0 0.0
      %2410 = vmatprep.subr.mxu0 0.0
      %2411 = vmatpush2.msra.mxu0 0.0
      %2412 = vmatprep.subr.mxu0 0.0
      %2413 = vmatpush2.msra.mxu0 0.0
      %2414 = vmatprep.mubr.f32.mxu0 0.0
      %2415 = vmatmul.mubr.f32.gmra.mxu0 %v2348
      %v2416 = vpop.f32.mrf.mxu0
      %v2417 = vadd.f32 0.0, %v2416
      %v2418 = vpop.f32.mrf.mxu0
      %2419 = vdwg.mxu0
      %v2420 = vadd.f32 %v1935, %v2417
      %v2421 = vadd.f32 %v467, %v2420
      %v2422 = vld [vmem:[%s9] sm:$0x1]
      %v2424 = vlaneseq
      %v2425 = vshrl.u32 %v2424, 7
      %v2426 = vsub.s32 0, %v2425
      %v2427 = vrot.slane %v2422, %v2426
      %v2429 = vadd.f32 %v2421, %v2427
      %v2430 = vsel %vm493, %v2429, 0.0
      %2431 = vadd.xlane.f32.xlu0 %v2430
      %v2432 = vpop.xlane.xlu0 %2431
      %v2433 = vrcp.pop 32.0
      %v2434 = vmul.f32 %v2432, %v2433
      %v2435 = vsub.f32 %v2429, %v2434
      %v2436 = vmul.f32 %v2435, %v2435
      %v2437 = vsel %vm493, %v2436, 0.0
      %2438 = vadd.xlane.f32.xlu0 %v2437
      %v2439 = vpop.xlane.xlu0 %2438
      %v2440 = vmul.f32 %v2439, %v2433
      %v2441 = vadd.f32 %v2440, 1e-05
      %v2442 = vrsqrt.pop %v2441
      %v2443 = vmul.f32 %v2435, %v2442
      %v2444 = vld [vmem:[%s10] sm:$0x1]
      %v2446 = vlaneseq
      %v2447 = vshrl.u32 %v2446, 7
      %v2448 = vsub.s32 0, %v2447
      %v2449 = vrot.slane %v2444, %v2448
      %v2451 = vmul.f32 %v2443, %v2449
      %v2452 = vld [vmem:[%s11] sm:$0x1]
      %v2454 = vlaneseq
      %v2455 = vshrl.u32 %v2454, 7
      %v2456 = vsub.s32 0, %v2455
      %v2457 = vrot.slane %v2452, %v2456
      %v2459 = vadd.f32 %v2451, %v2457
      %2460 = vst.msk [vmem:[%s466] sm:$0xff] %vm493, %v2459
      %p2461 = scmp.lt.s32.totalorder %s24, 1
      %s2462 = scalar_select %p2461, %s24, 1
      %s2463 = smul.addr %s2462, 8
      %s2464 = scalar_lea.vmem %s13, %s2463
      // Predicated region
      $region73: #{seq2seq_forward.19} parent=71 // pred_check
        %p2465 = pneg %p330
      $region74: #{seq2seq_forward.19} parent=71 // pred_check_branch
        %2467 = sbr.rel (%p2465) target = $region76
      $region75: #{seq2seq_forward.19} parent=71 // pred_region
        _
      $region76: #{seq2seq_forward.19} parent=71 // pred_fallthru
        _
    $region72: #{seq2seq_forward.19} parent=5 // pred_fallthru
      _
    %p2468 = scmp.le.s32.totalorder 2, %s19
    // Predicated region
    $region77: #{seq2seq_forward.19} parent=5 // pred_check
      %p2469 = pneg %p2468
    $region78: #{seq2seq_forward.19} parent=5 // pred_check_branch
      %2471 = sbr.rel (%p2469) target = $region80
    $region79: #{seq2seq_forward.19} parent=5 // pred_region
      %s2472 = ssub.s32 %s19, 2
      // Predicated region
      $region81: #{seq2seq_forward.19} parent=79 // pred_check
        %p2473 = pneg %p336
      $region82: #{seq2seq_forward.19} parent=79 // pred_check_branch
        %2475 = sbr.rel (%p2473) target = $region84
      $region83: #{seq2seq_forward.19} parent=79 // pred_region
        %p2476 = scmp.lt.s32.totalorder %s25, 1
        %s2477 = scalar_select %p2476, %s25, 1
        %s2478 = smul.addr %s2477, 8
        %s2479 = scalar_lea.vmem %s13, %s2478
      $region84: #{seq2seq_forward.19} parent=79 // pred_fallthru
        _
    $region80: #{seq2seq_forward.19} parent=5 // pred_fallthru
      _
  $region6: #{seq2seq_forward.19} parent=0 // loop_footer
    %s23 = sadd.s32 1, %s19
  $region7: #{seq2seq_forward.19} parent=0 // loop_footer_branch
    %18 = sbr.rel target = $region3
  $region8: #{seq2seq_forward.19} parent=0 // loop_exit
    _

// kernel: seq2seq_forward.15
$region0: #{seq2seq_forward.15}
  #allocation0 [shape = 'u32[]', space=smem, size = 0x4, offset = 0x4, fixed_abs, tag = 'smem constant byte address 0x4 - core index']
  #allocation1 [shape = 'u32[144,128]{1,0:T(1,128)}', space=vmem, size = 0x12000, scoped, tag = 'internal scratch']
  %s0 = inlined_call_operand.vmem [shape: f32[16,32], index: 0, kind: input, shape index: {}]
  %s1 = inlined_call_operand.vmem [shape: f32[32,64], index: 1, kind: input, shape index: {}]
  %s2 = inlined_call_operand.vmem [shape: f32[1,64], index: 2, kind: input, shape index: {}]
  %s3 = inlined_call_operand.vmem [shape: f32[64,32], index: 3, kind: input, shape index: {}]
  %s4 = inlined_call_operand.vmem [shape: f32[1,32], index: 4, kind: input, shape index: {}]
  %s5 = inlined_call_operand.vmem [shape: f32[1,32], index: 5, kind: input, shape index: {}]
  %s6 = inlined_call_operand.vmem [shape: f32[1,32], index: 6, kind: input, shape index: {}]
  %s7 = inlined_call_operand.vmem [shape: f32[16,32], index: 7, kind: output, shape index: {}]
  %s8 = sld [smem:[#allocation0]]
  $region61: #{seq2seq_forward.15} parent=0
    _
  %s10 = ssub.s32 1, %s8
  %s11 = scalar_select 0, %s10, %s8
  loop: start=0, step=1, limit=4
  $region2: #{seq2seq_forward.15} parent=0 // loop_pre_header
    _
  $region3: #{seq2seq_forward.15} parent=0 // loop_header
    %s13 = sphi 0, %s17
    %p14 = scmp.ge.s32.totalorder %s13, 4
    %s23 = sphi 0, %s25
    %s26 = sphi 0, %s23
    %s27 = sphi 0, %s26
    %s43 = sphi 0, %s27
    %s47 = sphi 0, %s47
    %s49 = sphi 0, %s47
    %s50 = sphi 0, %s49
    %s64 = sphi 0, %s50
    %s68 = sphi 0, %s68
    %s70 = sphi 0, %s68
    %s71 = sphi 0, %s70
    %s85 = sphi 0, %s71
    %s89 = sphi 0, %s89
    %s91 = sphi 0, %s89
    %s92 = sphi 0, %s91
    %s106 = sphi 0, %s92
    %s110 = sphi 0, %s110
    %s112 = sphi 0, %s110
    %s113 = sphi 0, %s112
    %s127 = sphi 0, %s113
    %s131 = sphi 0, %s131
    %s133 = sphi 0, %s131
    %s134 = sphi 0, %s133
    %s148 = sphi 0, %s134
    %s152 = sphi 0, %s152
    %s154 = sphi 0, %s152
    %s155 = sphi 0, %s154
    %s169 = sphi 0, %s155
    %s175 = sphi 0, %s177
    %s178 = sphi 0, %s175
    %s179 = sphi 0, %s178
    %s195 = sphi 0, %s179
  $region4: #{seq2seq_forward.15} parent=0 // loop_header_branch
    %16 = sbr.rel (%p14) target = $region8
  $region5: #{seq2seq_forward.15} parent=0 // loop_body
    %s18 = ssub.s32 %s13, 1
    %s19 = ssub.s32 %s13, 2
    %s20 = sadd.s32 %s13, 1
    %s21 = ssub.s32 %s13, %s20
    %p22 = scmp.eq.s32.totalorder %s21, 0
    %s24 = sadd.s32 %s23, 1
    %s25 = scalar_select %p22, %s23, %s24
    %p28 = pneg %p22
    %p29 = scmp.eq.s32.totalorder %s13, 1
    %p30 = por %p28, %p29
    %p31 = scmp.ne.s32.totalorder %s23, %s26
    %p32 = scmp.eq.s32.totalorder %s13, 0
    %p33 = por %p31, %p32
    %p34 = scmp.ne.s32.totalorder %s23, %s26
    %p35 = scmp.eq.s32.totalorder %s18, 1
    %p36 = por %p34, %p35
    %p37 = scmp.ne.s32.totalorder %s26, %s27
    %p38 = scmp.eq.s32.totalorder %s18, 0
    %p39 = por %p37, %p38
    %p40 = scmp.ne.s32.totalorder %s26, %s27
    %p41 = scmp.eq.s32.totalorder %s19, 1
    %p42 = por %p40, %p41
    %p44 = scmp.ne.s32.totalorder %s27, %s43
    %p45 = scmp.eq.s32.totalorder %s19, 0
    %p46 = por %p44, %p45
    %s48 = sadd.s32 %s47, 1
    %p51 = scmp.eq.s32.totalorder %s13, 1
    %p52 = scmp.ne.s32.totalorder %s47, %s49
    %p53 = scmp.eq.s32.totalorder %s13, 0
    %p54 = por %p52, %p53
    %p55 = scmp.ne.s32.totalorder %s47, %s49
    %p56 = scmp.eq.s32.totalorder %s18, 1
    %p57 = por %p55, %p56
    %p58 = scmp.ne.s32.totalorder %s49, %s50
    %p59 = scmp.eq.s32.totalorder %s18, 0
    %p60 = por %p58, %p59
    %p61 = scmp.ne.s32.totalorder %s49, %s50
    %p62 = scmp.eq.s32.totalorder %s19, 1
    %p63 = por %p61, %p62
    %p65 = scmp.ne.s32.totalorder %s50, %s64
    %p66 = scmp.eq.s32.totalorder %s19, 0
    %p67 = por %p65, %p66
    %s69 = sadd.s32 %s68, 1
    %p72 = scmp.eq.s32.totalorder %s13, 1
    %p73 = scmp.ne.s32.totalorder %s68, %s70
    %p74 = scmp.eq.s32.totalorder %s13, 0
    %p75 = por %p73, %p74
    %p76 = scmp.ne.s32.totalorder %s68, %s70
    %p77 = scmp.eq.s32.totalorder %s18, 1
    %p78 = por %p76, %p77
    %p79 = scmp.ne.s32.totalorder %s70, %s71
    %p80 = scmp.eq.s32.totalorder %s18, 0
    %p81 = por %p79, %p80
    %p82 = scmp.ne.s32.totalorder %s70, %s71
    %p83 = scmp.eq.s32.totalorder %s19, 1
    %p84 = por %p82, %p83
    %p86 = scmp.ne.s32.totalorder %s71, %s85
    %p87 = scmp.eq.s32.totalorder %s19, 0
    %p88 = por %p86, %p87
    %s90 = sadd.s32 %s89, 1
    %p93 = scmp.eq.s32.totalorder %s13, 1
    %p94 = scmp.ne.s32.totalorder %s89, %s91
    %p95 = scmp.eq.s32.totalorder %s13, 0
    %p96 = por %p94, %p95
    %p97 = scmp.ne.s32.totalorder %s89, %s91
    %p98 = scmp.eq.s32.totalorder %s18, 1
    %p99 = por %p97, %p98
    %p100 = scmp.ne.s32.totalorder %s91, %s92
    %p101 = scmp.eq.s32.totalorder %s18, 0
    %p102 = por %p100, %p101
    %p103 = scmp.ne.s32.totalorder %s91, %s92
    %p104 = scmp.eq.s32.totalorder %s19, 1
    %p105 = por %p103, %p104
    %p107 = scmp.ne.s32.totalorder %s92, %s106
    %p108 = scmp.eq.s32.totalorder %s19, 0
    %p109 = por %p107, %p108
    %s111 = sadd.s32 %s110, 1
    %p114 = scmp.eq.s32.totalorder %s13, 1
    %p115 = scmp.ne.s32.totalorder %s110, %s112
    %p116 = scmp.eq.s32.totalorder %s13, 0
    %p117 = por %p115, %p116
    %p118 = scmp.ne.s32.totalorder %s110, %s112
    %p119 = scmp.eq.s32.totalorder %s18, 1
    %p120 = por %p118, %p119
    %p121 = scmp.ne.s32.totalorder %s112, %s113
    %p122 = scmp.eq.s32.totalorder %s18, 0
    %p123 = por %p121, %p122
    %p124 = scmp.ne.s32.totalorder %s112, %s113
    %p125 = scmp.eq.s32.totalorder %s19, 1
    %p126 = por %p124, %p125
    %p128 = scmp.ne.s32.totalorder %s113, %s127
    %p129 = scmp.eq.s32.totalorder %s19, 0
    %p130 = por %p128, %p129
    %s132 = sadd.s32 %s131, 1
    %p135 = scmp.eq.s32.totalorder %s13, 1
    %p136 = scmp.ne.s32.totalorder %s131, %s133
    %p137 = scmp.eq.s32.totalorder %s13, 0
    %p138 = por %p136, %p137
    %p139 = scmp.ne.s32.totalorder %s131, %s133
    %p140 = scmp.eq.s32.totalorder %s18, 1
    %p141 = por %p139, %p140
    %p142 = scmp.ne.s32.totalorder %s133, %s134
    %p143 = scmp.eq.s32.totalorder %s18, 0
    %p144 = por %p142, %p143
    %p145 = scmp.ne.s32.totalorder %s133, %s134
    %p146 = scmp.eq.s32.totalorder %s19, 1
    %p147 = por %p145, %p146
    %p149 = scmp.ne.s32.totalorder %s134, %s148
    %p150 = scmp.eq.s32.totalorder %s19, 0
    %p151 = por %p149, %p150
    %s153 = sadd.s32 %s152, 1
    %p156 = scmp.eq.s32.totalorder %s13, 1
    %p157 = scmp.ne.s32.totalorder %s152, %s154
    %p158 = scmp.eq.s32.totalorder %s13, 0
    %p159 = por %p157, %p158
    %p160 = scmp.ne.s32.totalorder %s152, %s154
    %p161 = scmp.eq.s32.totalorder %s18, 1
    %p162 = por %p160, %p161
    %p163 = scmp.ne.s32.totalorder %s154, %s155
    %p164 = scmp.eq.s32.totalorder %s18, 0
    %p165 = por %p163, %p164
    %p166 = scmp.ne.s32.totalorder %s154, %s155
    %p167 = scmp.eq.s32.totalorder %s19, 1
    %p168 = por %p166, %p167
    %p170 = scmp.ne.s32.totalorder %s155, %s169
    %p171 = scmp.eq.s32.totalorder %s19, 0
    %p172 = por %p170, %p171
    %s173 = ssub.s32 %s13, %s20
    %p174 = scmp.eq.s32.totalorder %s173, 0
    %s176 = sadd.s32 %s175, 1
    %s177 = scalar_select %p174, %s175, %s176
    %p180 = pneg %p174
    %p181 = scmp.eq.s32.totalorder %s13, 1
    %p182 = por %p180, %p181
    %p183 = scmp.ne.s32.totalorder %s175, %s178
    %p184 = scmp.eq.s32.totalorder %s13, 0
    %p185 = por %p183, %p184
    %p186 = scmp.ne.s32.totalorder %s175, %s178
    %p187 = scmp.eq.s32.totalorder %s18, 1
    %p188 = por %p186, %p187
    %p189 = scmp.ne.s32.totalorder %s178, %s179
    %p190 = scmp.eq.s32.totalorder %s18, 0
    %p191 = por %p189, %p190
    %p192 = scmp.ne.s32.totalorder %s178, %s179
    %p193 = scmp.eq.s32.totalorder %s19, 1
    %p194 = por %p192, %p193
    %p196 = scmp.ne.s32.totalorder %s179, %s195
    %p197 = scmp.eq.s32.totalorder %s19, 0
    %p198 = por %p196, %p197
    %p199 = scmp.le.s32.totalorder 1, %s13
    %p200 = scmp.lt.s32.totalorder %s13, 3
    %p201 = pnand %p199, %p200
    %p202 = pneg %p201
    // Predicated region
    $region9: #{seq2seq_forward.15} parent=5 // pred_check
      _
    $region10: #{seq2seq_forward.15} parent=5 // pred_check_branch
      %204 = sbr.rel (%p201) target = $region12
    $region11: #{seq2seq_forward.15} parent=5 // pred_region
      %s205 = ssub.s32 %s13, 1
      // Predicated region
      $region13: #{seq2seq_forward.15} parent=11 // pred_check
        %p206 = pneg %p60
      $region14: #{seq2seq_forward.15} parent=11 // pred_check_branch
        %208 = sbr.rel (%p206) target = $region16
      $region15: #{seq2seq_forward.15} parent=11 // pred_region
        _
      $region16: #{seq2seq_forward.15} parent=11 // pred_fallthru
        _
      // Predicated region
      $region17: #{seq2seq_forward.15} parent=11 // pred_check
        %p209 = pneg %p81
      $region18: #{seq2seq_forward.15} parent=11 // pred_check_branch
        %211 = sbr.rel (%p209) target = $region20
      $region19: #{seq2seq_forward.15} parent=11 // pred_region
        _
      $region20: #{seq2seq_forward.15} parent=11 // pred_fallthru
        _
      // Predicated region
      $region21: #{seq2seq_forward.15} parent=11 // pred_check
        %p212 = pneg %p102
      $region22: #{seq2seq_forward.15} parent=11 // pred_check_branch
        %214 = sbr.rel (%p212) target = $region24
      $region23: #{seq2seq_forward.15} parent=11 // pred_region
        _
      $region24: #{seq2seq_forward.15} parent=11 // pred_fallthru
        _
      // Predicated region
      $region25: #{seq2seq_forward.15} parent=11 // pred_check
        %p215 = pneg %p123
      $region26: #{seq2seq_forward.15} parent=11 // pred_check_branch
        %217 = sbr.rel (%p215) target = $region28
      $region27: #{seq2seq_forward.15} parent=11 // pred_region
        _
      $region28: #{seq2seq_forward.15} parent=11 // pred_fallthru
        _
      // Predicated region
      $region29: #{seq2seq_forward.15} parent=11 // pred_check
        %p218 = pneg %p144
      $region30: #{seq2seq_forward.15} parent=11 // pred_check_branch
        %220 = sbr.rel (%p218) target = $region32
      $region31: #{seq2seq_forward.15} parent=11 // pred_region
        _
      $region32: #{seq2seq_forward.15} parent=11 // pred_fallthru
        _
      // Predicated region
      $region33: #{seq2seq_forward.15} parent=11 // pred_check
        %p221 = pneg %p165
      $region34: #{seq2seq_forward.15} parent=11 // pred_check_branch
        %223 = sbr.rel (%p221) target = $region36
      $region35: #{seq2seq_forward.15} parent=11 // pred_region
        _
      $region36: #{seq2seq_forward.15} parent=11 // pred_fallthru
        _
    $region12: #{seq2seq_forward.15} parent=5 // pred_fallthru
      _
    %p224 = scmp.lt.s32.totalorder %s13, 2
    // Predicated region
    $region37: #{seq2seq_forward.15} parent=5 // pred_check
      %p225 = pneg %p224
    $region38: #{seq2seq_forward.15} parent=5 // pred_check_branch
      %227 = sbr.rel (%p225) target = $region40
    $region39: #{seq2seq_forward.15} parent=5 // pred_region
      // Predicated region
      $region41: #{seq2seq_forward.15} parent=39 // pred_check
        %p228 = pneg %p33
      $region42: #{seq2seq_forward.15} parent=39 // pred_check_branch
        %230 = sbr.rel (%p228) target = $region44
      $region43: #{seq2seq_forward.15} parent=39 // pred_region
        %p231 = scmp.lt.s32.totalorder %s13, 1
        %s232 = scalar_select %p231, %s13, 1
        %s233 = smul.addr %s232, 8
        %s234 = scalar_lea.vmem %s0, %s233
      $region44: #{seq2seq_forward.15} parent=39 // pred_fallthru
        _
    $region40: #{seq2seq_forward.15} parent=5 // pred_fallthru
      _
    %p235 = scmp.le.s32.totalorder 1, %s13
    %p236 = scmp.lt.s32.totalorder %s13, 3
    %p237 = pnand %p235, %p236
    %p238 = pneg %p237
    // Predicated region
    $region45: #{seq2seq_forward.15} parent=5 // pred_check
      _
    $region46: #{seq2seq_forward.15} parent=5 // pred_check_branch
      %240 = sbr.rel (%p237) target = $region48
    $region47: #{seq2seq_forward.15} parent=5 // pred_region
      %s241 = ssub.s32 %s13, 1
      %p242 = scmp.lt.s32.totalorder %s18, 1
      %s243 = scalar_select %p242, %s18, 1
      %s244 = smul.addr %s243, 8
      %s245 = scalar_lea.vmem %s0, %s244
      %p246 = pneg %p39
      %p247 = pneg %p36
      %p248 = pneg %p60
      %p249 = pneg %p57
      %p250 = pneg %p81
      %p251 = pneg %p78
      %p252 = pneg %p102
      %p253 = pneg %p99
      %p254 = pneg %p123
      %p255 = pneg %p120
      %p256 = pneg %p144
      %p257 = pneg %p141
      %p258 = pneg %p165
      %p259 = pneg %p162
      %p260 = pneg %p191
      %p261 = pneg %p188
      %p262 = scmp.lt.s32.totalorder %s18, 1
      %s263 = scalar_select %p262, %s18, 1
      %s264 = smul.addr %s263, 8
      %s265 = scalar_lea.vmem %s7, %s264
      %p266 = scmp.lt.s32.totalorder %s18, 1
      %s267 = scalar_select %p266, %s18, 1
      %s268 = smul.addr %s267, 8
      %s269 = scalar_lea.vmem %s0, %s268
      %p270 = scmp.lt.s32.totalorder %s18, 1
      %s271 = scalar_select %p270, %s18, 1
      %s272 = smul.addr %s271, 8
      %s273 = scalar_lea.vmem %s7, %s272
      %v274 = vld [vmem:[%s269] sm:$0xff]
      %v275 = vld [vmem:[%s1] sm:$0xff]
      %v276 = vld [vmem:[%s1 + $0x8] sm:$0xff]
      %v277 = vld [vmem:[%s1 + $0x10] sm:$0xff]
      %v278 = vld [vmem:[%s1 + $0x18] sm:$0xff]
      %v279 = vld [vmem:[%s2] sm:$0x1]
      %v281 = vlaneseq
      %v282 = vshrl.u32 %v281, 7
      %v283 = vsub.s32 0, %v282
      %v284 = vrot.slane %v279, %v283
      %vm286 = vcmask 261120
      %v288 = vsel %vm286, %v274, 0
      %290 = vmatprep.subr.mxu0 0.0
      %291 = vmatpush1.msra.mxu0 0.0
      %292 = vmatprep.subr.mxu0 0.0
      %293 = vmatpush1.msra.mxu0 0.0
      %294 = vmatprep.subr.mxu0 0.0
      %295 = vmatpush1.msra.mxu0 0.0
      %296 = vmatprep.subr.mxu0 0.0
      %297 = vmatpush1.msra.mxu0 0.0
      %298 = vmatprep.subr.mxu0 0.0
      %299 = vmatpush1.msra.mxu0 0.0
      %300 = vmatprep.subr.mxu0 0.0
      %301 = vmatpush1.msra.mxu0 0.0
      %302 = vmatprep.subr.mxu0 0.0
      %303 = vmatpush1.msra.mxu0 0.0
      %304 = vmatprep.subr.mxu0 0.0
      %305 = vmatpush1.msra.mxu0 0.0
      %306 = vmatprep.subr.mxu0 0.0
      %307 = vmatpush1.msra.mxu0 0.0
      %308 = vmatprep.subr.mxu0 0.0
      %309 = vmatpush1.msra.mxu0 0.0
      %310 = vmatprep.subr.mxu0 0.0
      %311 = vmatpush1.msra.mxu0 0.0
      %312 = vmatprep.subr.mxu0 0.0
      %313 = vmatpush1.msra.mxu0 0.0
      %314 = vmatprep.subr.mxu0 0.0
      %315 = vmatpush1.msra.mxu0 %v278
      %316 = vmatprep.subr.mxu0 0.0
      %317 = vmatpush1.msra.mxu0 %v277
      %318 = vmatprep.subr.mxu0 0.0
      %319 = vmatpush1.msra.mxu0 %v276
      %320 = vmatprep.subr.mxu0 0.0
      %321 = vmatpush1.msra.mxu0 %v275
      %322 = vmatprep.subr.mxu0 0.0
      %323 = vmatpush2.msra.mxu0 0.0
      %324 = vmatprep.subr.mxu0 0.0
      %325 = vmatpush2.msra.mxu0 0.0
      %326 = vmatprep.subr.mxu0 0.0
      %327 = vmatpush2.msra.mxu0 0.0
      %328 = vmatprep.subr.mxu0 0.0
      %329 = vmatpush2.msra.mxu0 0.0
      %330 = vmatprep.subr.mxu0 0.0
      %331 = vmatpush2.msra.mxu0 0.0
      %332 = vmatprep.subr.mxu0 0.0
      %333 = vmatpush2.msra.mxu0 0.0
      %334 = vmatprep.subr.mxu0 0.0
      %335 = vmatpush2.msra.mxu0 0.0
      %336 = vmatprep.subr.mxu0 0.0
      %337 = vmatpush2.msra.mxu0 0.0
      %338 = vmatprep.subr.mxu0 0.0
      %339 = vmatpush2.msra.mxu0 0.0
      %340 = vmatprep.subr.mxu0 0.0
      %341 = vmatpush2.msra.mxu0 0.0
      %342 = vmatprep.subr.mxu0 0.0
      %343 = vmatpush2.msra.mxu0 0.0
      %344 = vmatprep.subr.mxu0 0.0
      %345 = vmatpush2.msra.mxu0 0.0
      %346 = vmatprep.subr.mxu0 0.0
      %347 = vmatpush2.msra.mxu0 0.0
      %348 = vmatprep.subr.mxu0 0.0
      %349 = vmatpush2.msra.mxu0 0.0
      %350 = vmatprep.subr.mxu0 0.0
      %351 = vmatpush2.msra.mxu0 0.0
      %352 = vmatprep.subr.mxu0 0.0
      %353 = vmatpush2.msra.mxu0 0.0
      %354 = vmatprep.mubr.f32.mxu0 0.0
      %355 = vmatmul.mubr.f32.gmra.mxu0 %v288
      %v356 = vpop.f32.mrf.mxu0
      %v357 = vadd.f32 %v284, %v356
      %v358 = vpop.f32.mrf.mxu0
      %359 = vdwg.mxu0
      %v360 = vmax.f32 %v357, 0.0
      %v361 = vld [vmem:[%s3] sm:$0xff]
      %v362 = vld [vmem:[%s3 + $0x8] sm:$0xff]
      %v363 = vld [vmem:[%s3 + $0x10] sm:$0xff]
      %v364 = vld [vmem:[%s3 + $0x18] sm:$0xff]
      %v365 = vld [vmem:[%s3 + $0x20] sm:$0xff]
      %v366 = vld [vmem:[%s3 + $0x28] sm:$0xff]
      %v367 = vld [vmem:[%s3 + $0x30] sm:$0xff]
      %v368 = vld [vmem:[%s3 + $0x38] sm:$0xff]
      %vm369 = vcmask 523264
      %v371 = vsel %vm369, %v360, 0
      %373 = vmatprep.subr.mxu0 0.0
      %374 = vmatpush1.msra.mxu0 0.0
      %375 = vmatprep.subr.mxu0 0.0
      %376 = vmatpush1.msra.mxu0 0.0
      %377 = vmatprep.subr.mxu0 0.0
      %378 = vmatpush1.msra.mxu0 0.0
      %379 = vmatprep.subr.mxu0 0.0
      %380 = vmatpush1.msra.mxu0 0.0
      %381 = vmatprep.subr.mxu0 0.0
      %382 = vmatpush1.msra.mxu0 0.0
      %383 = vmatprep.subr.mxu0 0.0
      %384 = vmatpush1.msra.mxu0 0.0
      %385 = vmatprep.subr.mxu0 0.0
      %386 = vmatpush1.msra.mxu0 0.0
      %387 = vmatprep.subr.mxu0 0.0
      %388 = vmatpush1.msra.mxu0 0.0
      %389 = vmatprep.subr.mxu0 0.0
      %390 = vmatpush1.msra.mxu0 %v368
      %391 = vmatprep.subr.mxu0 0.0
      %392 = vmatpush1.msra.mxu0 %v367
      %393 = vmatprep.subr.mxu0 0.0
      %394 = vmatpush1.msra.mxu0 %v366
      %395 = vmatprep.subr.mxu0 0.0
      %396 = vmatpush1.msra.mxu0 %v365
      %397 = vmatprep.subr.mxu0 0.0
      %398 = vmatpush1.msra.mxu0 %v364
      %399 = vmatprep.subr.mxu0 0.0
      %400 = vmatpush1.msra.mxu0 %v363
      %401 = vmatprep.subr.mxu0 0.0
      %402 = vmatpush1.msra.mxu0 %v362
      %403 = vmatprep.subr.mxu0 0.0
      %404 = vmatpush1.msra.mxu0 %v361
      %405 = vmatprep.subr.mxu0 0.0
      %406 = vmatpush2.msra.mxu0 0.0
      %407 = vmatprep.subr.mxu0 0.0
      %408 = vmatpush2.msra.mxu0 0.0
      %409 = vmatprep.subr.mxu0 0.0
      %410 = vmatpush2.msra.mxu0 0.0
      %411 = vmatprep.subr.mxu0 0.0
      %412 = vmatpush2.msra.mxu0 0.0
      %413 = vmatprep.subr.mxu0 0.0
      %414 = vmatpush2.msra.mxu0 0.0
      %415 = vmatprep.subr.mxu0 0.0
      %416 = vmatpush2.msra.mxu0 0.0
      %417 = vmatprep.subr.mxu0 0.0
      %418 = vmatpush2.msra.mxu0 0.0
      %419 = vmatprep.subr.mxu0 0.0
      %420 = vmatpush2.msra.mxu0 0.0
      %421 = vmatprep.subr.mxu0 0.0
      %422 = vmatpush2.msra.mxu0 0.0
      %423 = vmatprep.subr.mxu0 0.0
      %424 = vmatpush2.msra.mxu0 0.0
      %425 = vmatprep.subr.mxu0 0.0
      %426 = vmatpush2.msra.mxu0 0.0
      %427 = vmatprep.subr.mxu0 0.0
      %428 = vmatpush2.msra.mxu0 0.0
      %429 = vmatprep.subr.mxu0 0.0
      %430 = vmatpush2.msra.mxu0 0.0
      %431 = vmatprep.subr.mxu0 0.0
      %432 = vmatpush2.msra.mxu0 0.0
      %433 = vmatprep.subr.mxu0 0.0
      %434 = vmatpush2.msra.mxu0 0.0
      %435 = vmatprep.subr.mxu0 0.0
      %436 = vmatpush2.msra.mxu0 0.0
      %437 = vmatprep.mubr.f32.mxu0 0.0
      %438 = vmatmul.mubr.f32.gmra.mxu0 %v371
      %v439 = vpop.f32.mrf.mxu0
      %v440 = vadd.f32 0.0, %v439
      %v441 = vpop.f32.mrf.mxu0
      %442 = vdwg.mxu0
      %v443 = vadd.f32 %v274, %v440
      %v444 = vld [vmem:[%s4] sm:$0x1]
      %v446 = vlaneseq
      %v447 = vshrl.u32 %v446, 7
      %v448 = vsub.s32 0, %v447
      %v449 = vrot.slane %v444, %v448
      %v451 = vadd.f32 %v443, %v449
      %v452 = vsel %vm286, %v451, 0.0
      %453 = vadd.xlane.f32.xlu0 %v452
      %v454 = vpop.xlane.xlu0 %453
      %v455 = vrcp.pop 32.0
      %v456 = vmul.f32 %v454, %v455
      %v457 = vsub.f32 %v451, %v456
      %v458 = vmul.f32 %v457, %v457
      %v459 = vsel %vm286, %v458, 0.0
      %460 = vadd.xlane.f32.xlu0 %v459
      %v461 = vpop.xlane.xlu0 %460
      %v462 = vmul.f32 %v461, %v455
      %v463 = vadd.f32 %v462, 1e-05
      %v464 = vrsqrt.pop %v463
      %v465 = vmul.f32 %v457, %v464
      %v466 = vld [vmem:[%s5] sm:$0x1]
      %v468 = vlaneseq
      %v469 = vshrl.u32 %v468, 7
      %v470 = vsub.s32 0, %v469
      %v471 = vrot.slane %v466, %v470
      %v473 = vmul.f32 %v465, %v471
      %v474 = vld [vmem:[%s6] sm:$0x1]
      %v476 = vlaneseq
      %v477 = vshrl.u32 %v476, 7
      %v478 = vsub.s32 0, %v477
      %v479 = vrot.slane %v474, %v478
      %v481 = vadd.f32 %v473, %v479
      %482 = vst.msk [vmem:[%s273] sm:$0xff] %vm286, %v481
      %p483 = scmp.lt.s32.totalorder %s18, 1
      %s484 = scalar_select %p483, %s18, 1
      %s485 = smul.addr %s484, 8
      %s486 = scalar_lea.vmem %s7, %s485
      // Predicated region
      $region49: #{seq2seq_forward.15} parent=47 // pred_check
        %p487 = pneg %p188
      $region50: #{seq2seq_forward.15} parent=47 // pred_check_branch
        %489 = sbr.rel (%p487) target = $region52
      $region51: #{seq2seq_forward.15} parent=47 // pred_region
        _
      $region52: #{seq2seq_forward.15} parent=47 // pred_fallthru
        _
    $region48: #{seq2seq_forward.15} parent=5 // pred_fallthru
      _
    %p490 = scmp.le.s32.totalorder 2, %s13
    // Predicated region
    $region53: #{seq2seq_forward.15} parent=5 // pred_check
      %p491 = pneg %p490
    $region54: #{seq2seq_forward.15} parent=5 // pred_check_branch
      %493 = sbr.rel (%p491) target = $region56
    $region55: #{seq2seq_forward.15} parent=5 // pred_region
      %s494 = ssub.s32 %s13, 2
      // Predicated region
      $region57: #{seq2seq_forward.15} parent=55 // pred_check
        %p495 = pneg %p194
      $region58: #{seq2seq_forward.15} parent=55 // pred_check_branch
        %497 = sbr.rel (%p495) target = $region60
      $region59: #{seq2seq_forward.15} parent=55 // pred_region
        %p498 = scmp.lt.s32.totalorder %s19, 1
        %s499 = scalar_select %p498, %s19, 1
        %s500 = smul.addr %s499, 8
        %s501 = scalar_lea.vmem %s7, %s500
      $region60: #{seq2seq_forward.15} parent=55 // pred_fallthru
        _
    $region56: #{seq2seq_forward.15} parent=5 // pred_fallthru
      _
  $region6: #{seq2seq_forward.15} parent=0 // loop_footer
    %s17 = sadd.s32 1, %s13
  $region7: #{seq2seq_forward.15} parent=0 // loop_footer_branch
    %12 = sbr.rel target = $region3
  $region8: #{seq2seq_forward.15} parent=0 // loop_exit
    _

// kernel: seq2seq_forward.14
$region0: #{seq2seq_forward.14}
  #allocation0 [shape = 'u32[]', space=smem, size = 0x4, offset = 0x4, fixed_abs, tag = 'smem constant byte address 0x4 - core index']
  #allocation1 [shape = 'u32[144,128]{1,0:T(1,128)}', space=vmem, size = 0x12000, scoped, tag = 'internal scratch']
  %s0 = inlined_call_operand.vmem [shape: f32[2,8,32], index: 0, kind: input, shape index: {}, may-alias: {0,1}]
  %s1 = inlined_call_operand.vmem [shape: f32[2,8,32], index: 1, kind: input, shape index: {}, may-alias: {0,1}]
  %s2 = inlined_call_operand.vmem [shape: f32[4,32,8], index: 2, kind: input, shape index: {}]
  %s3 = inlined_call_operand.vmem [shape: f32[4,1,8], index: 3, kind: input, shape index: {}]
  %s4 = inlined_call_operand.vmem [shape: f32[4,32,8], index: 4, kind: input, shape index: {}]
  %s5 = inlined_call_operand.vmem [shape: f32[4,1,8], index: 5, kind: input, shape index: {}]
  %s6 = inlined_call_operand.vmem [shape: f32[4,32,8], index: 6, kind: input, shape index: {}]
  %s7 = inlined_call_operand.vmem [shape: f32[4,1,8], index: 7, kind: input, shape index: {}]
  %s8 = inlined_call_operand.vmem [shape: f32[4,8,32], index: 8, kind: input, shape index: {}]
  %s9 = inlined_call_operand.vmem [shape: f32[1,32], index: 9, kind: input, shape index: {}]
  %s10 = inlined_call_operand.vmem [shape: f32[1,32], index: 10, kind: input, shape index: {}]
  %s11 = inlined_call_operand.vmem [shape: f32[1,32], index: 11, kind: input, shape index: {}]
  %s12 = inlined_call_operand.vmem [shape: f32[2,1,8], index: 12, kind: input, shape index: {}]
  %s13 = inlined_call_operand.vmem [shape: f32[2,8,32], index: 13, kind: output, shape index: {}]
  %s14 = sld [smem:[#allocation0]]
  $region85: #{seq2seq_forward.14} parent=0
    _
  %s16 = ssub.s32 1, %s14
  %s17 = scalar_select 0, %s16, %s14
  loop: start=0, step=1, limit=4
  $region2: #{seq2seq_forward.14} parent=0 // loop_pre_header
    _
  $region3: #{seq2seq_forward.14} parent=0 // loop_header
    %s19 = sphi 0, %s23
    %p20 = scmp.ge.s32.totalorder %s19, 4
    %s29 = sphi 0, %s31
    %s32 = sphi 0, %s29
    %s33 = sphi 0, %s32
    %s49 = sphi 0, %s33
    %s55 = sphi 0, %s57
    %s58 = sphi 0, %s55
    %s59 = sphi 0, %s58
    %s75 = sphi 0, %s59
    %s79 = sphi 0, %s79
    %s81 = sphi 0, %s79
    %s82 = sphi 0, %s81
    %s96 = sphi 0, %s82
    %s100 = sphi 0, %s100
    %s102 = sphi 0, %s100
    %s103 = sphi 0, %s102
    %s117 = sphi 0, %s103
    %s121 = sphi 0, %s121
    %s123 = sphi 0, %s121
    %s124 = sphi 0, %s123
    %s138 = sphi 0, %s124
    %s142 = sphi 0, %s142
    %s144 = sphi 0, %s142
    %s145 = sphi 0, %s144
    %s159 = sphi 0, %s145
    %s163 = sphi 0, %s163
    %s165 = sphi 0, %s163
    %s166 = sphi 0, %s165
    %s180 = sphi 0, %s166
    %s184 = sphi 0, %s184
    %s186 = sphi 0, %s184
    %s187 = sphi 0, %s186
    %s201 = sphi 0, %s187
    %s205 = sphi 0, %s205
    %s207 = sphi 0, %s205
    %s208 = sphi 0, %s207
    %s222 = sphi 0, %s208
    %s226 = sphi 0, %s226
    %s228 = sphi 0, %s226
    %s229 = sphi 0, %s228
    %s243 = sphi 0, %s229
    %s247 = sphi 0, %s247
    %s249 = sphi 0, %s247
    %s250 = sphi 0, %s249
    %s264 = sphi 0, %s250
    %s268 = sphi 0, %s268
    %s270 = sphi 0, %s268
    %s271 = sphi 0, %s270
    %s285 = sphi 0, %s271
    %s291 = sphi 0, %s293
    %s294 = sphi 0, %s291
    %s295 = sphi 0, %s294
    %s311 = sphi 0, %s295
    %s317 = sphi 0, %s319
    %s320 = sphi 0, %s317
    %s321 = sphi 0, %s320
    %s337 = sphi 0, %s321
  $region4: #{seq2seq_forward.14} parent=0 // loop_header_branch
    %22 = sbr.rel (%p20) target = $region8
  $region5: #{seq2seq_forward.14} parent=0 // loop_body
    %s24 = ssub.s32 %s19, 1
    %s25 = ssub.s32 %s19, 2
    %s26 = sadd.s32 %s19, 1
    %s27 = ssub.s32 %s19, %s26
    %p28 = scmp.eq.s32.totalorder %s27, 0
    %s30 = sadd.s32 %s29, 1
    %s31 = scalar_select %p28, %s29, %s30
    %p34 = pneg %p28
    %p35 = scmp.eq.s32.totalorder %s19, 1
    %p36 = por %p34, %p35
    %p37 = scmp.ne.s32.totalorder %s29, %s32
    %p38 = scmp.eq.s32.totalorder %s19, 0
    %p39 = por %p37, %p38
    %p40 = scmp.ne.s32.totalorder %s29, %s32
    %p41 = scmp.eq.s32.totalorder %s24, 1
    %p42 = por %p40, %p41
    %p43 = scmp.ne.s32.totalorder %s32, %s33
    %p44 = scmp.eq.s32.totalorder %s24, 0
    %p45 = por %p43, %p44
    %p46 = scmp.ne.s32.totalorder %s32, %s33
    %p47 = scmp.eq.s32.totalorder %s25, 1
    %p48 = por %p46, %p47
    %p50 = scmp.ne.s32.totalorder %s33, %s49
    %p51 = scmp.eq.s32.totalorder %s25, 0
    %p52 = por %p50, %p51
    %s53 = ssub.s32 %s19, %s26
    %p54 = scmp.eq.s32.totalorder %s53, 0
    %s56 = sadd.s32 %s55, 1
    %s57 = scalar_select %p54, %s55, %s56
    %p60 = pneg %p54
    %p61 = scmp.eq.s32.totalorder %s19, 1
    %p62 = por %p60, %p61
    %p63 = scmp.ne.s32.totalorder %s55, %s58
    %p64 = scmp.eq.s32.totalorder %s19, 0
    %p65 = por %p63, %p64
    %p66 = scmp.ne.s32.totalorder %s55, %s58
    %p67 = scmp.eq.s32.totalorder %s24, 1
    %p68 = por %p66, %p67
    %p69 = scmp.ne.s32.totalorder %s58, %s59
    %p70 = scmp.eq.s32.totalorder %s24, 0
    %p71 = por %p69, %p70
    %p72 = scmp.ne.s32.totalorder %s58, %s59
    %p73 = scmp.eq.s32.totalorder %s25, 1
    %p74 = por %p72, %p73
    %p76 = scmp.ne.s32.totalorder %s59, %s75
    %p77 = scmp.eq.s32.totalorder %s25, 0
    %p78 = por %p76, %p77
    %s80 = sadd.s32 %s79, 1
    %p83 = scmp.eq.s32.totalorder %s19, 1
    %p84 = scmp.ne.s32.totalorder %s79, %s81
    %p85 = scmp.eq.s32.totalorder %s19, 0
    %p86 = por %p84, %p85
    %p87 = scmp.ne.s32.totalorder %s79, %s81
    %p88 = scmp.eq.s32.totalorder %s24, 1
    %p89 = por %p87, %p88
    %p90 = scmp.ne.s32.totalorder %s81, %s82
    %p91 = scmp.eq.s32.totalorder %s24, 0
    %p92 = por %p90, %p91
    %p93 = scmp.ne.s32.totalorder %s81, %s82
    %p94 = scmp.eq.s32.totalorder %s25, 1
    %p95 = por %p93, %p94
    %p97 = scmp.ne.s32.totalorder %s82, %s96
    %p98 = scmp.eq.s32.totalorder %s25, 0
    %p99 = por %p97, %p98
    %s101 = sadd.s32 %s100, 1
    %p104 = scmp.eq.s32.totalorder %s19, 1
    %p105 = scmp.ne.s32.totalorder %s100, %s102
    %p106 = scmp.eq.s32.totalorder %s19, 0
    %p107 = por %p105, %p106
    %p108 = scmp.ne.s32.totalorder %s100, %s102
    %p109 = scmp.eq.s32.totalorder %s24, 1
    %p110 = por %p108, %p109
    %p111 = scmp.ne.s32.totalorder %s102, %s103
    %p112 = scmp.eq.s32.totalorder %s24, 0
    %p113 = por %p111, %p112
    %p114 = scmp.ne.s32.totalorder %s102, %s103
    %p115 = scmp.eq.s32.totalorder %s25, 1
    %p116 = por %p114, %p115
    %p118 = scmp.ne.s32.totalorder %s103, %s117
    %p119 = scmp.eq.s32.totalorder %s25, 0
    %p120 = por %p118, %p119
    %s122 = sadd.s32 %s121, 1
    %p125 = scmp.eq.s32.totalorder %s19, 1
    %p126 = scmp.ne.s32.totalorder %s121, %s123
    %p127 = scmp.eq.s32.totalorder %s19, 0
    %p128 = por %p126, %p127
    %p129 = scmp.ne.s32.totalorder %s121, %s123
    %p130 = scmp.eq.s32.totalorder %s24, 1
    %p131 = por %p129, %p130
    %p132 = scmp.ne.s32.totalorder %s123, %s124
    %p133 = scmp.eq.s32.totalorder %s24, 0
    %p134 = por %p132, %p133
    %p135 = scmp.ne.s32.totalorder %s123, %s124
    %p136 = scmp.eq.s32.totalorder %s25, 1
    %p137 = por %p135, %p136
    %p139 = scmp.ne.s32.totalorder %s124, %s138
    %p140 = scmp.eq.s32.totalorder %s25, 0
    %p141 = por %p139, %p140
    %s143 = sadd.s32 %s142, 1
    %p146 = scmp.eq.s32.totalorder %s19, 1
    %p147 = scmp.ne.s32.totalorder %s142, %s144
    %p148 = scmp.eq.s32.totalorder %s19, 0
    %p149 = por %p147, %p148
    %p150 = scmp.ne.s32.totalorder %s142, %s144
    %p151 = scmp.eq.s32.totalorder %s24, 1
    %p152 = por %p150, %p151
    %p153 = scmp.ne.s32.totalorder %s144, %s145
    %p154 = scmp.eq.s32.totalorder %s24, 0
    %p155 = por %p153, %p154
    %p156 = scmp.ne.s32.totalorder %s144, %s145
    %p157 = scmp.eq.s32.totalorder %s25, 1
    %p158 = por %p156, %p157
    %p160 = scmp.ne.s32.totalorder %s145, %s159
    %p161 = scmp.eq.s32.totalorder %s25, 0
    %p162 = por %p160, %p161
    %s164 = sadd.s32 %s163, 1
    %p167 = scmp.eq.s32.totalorder %s19, 1
    %p168 = scmp.ne.s32.totalorder %s163, %s165
    %p169 = scmp.eq.s32.totalorder %s19, 0
    %p170 = por %p168, %p169
    %p171 = scmp.ne.s32.totalorder %s163, %s165
    %p172 = scmp.eq.s32.totalorder %s24, 1
    %p173 = por %p171, %p172
    %p174 = scmp.ne.s32.totalorder %s165, %s166
    %p175 = scmp.eq.s32.totalorder %s24, 0
    %p176 = por %p174, %p175
    %p177 = scmp.ne.s32.totalorder %s165, %s166
    %p178 = scmp.eq.s32.totalorder %s25, 1
    %p179 = por %p177, %p178
    %p181 = scmp.ne.s32.totalorder %s166, %s180
    %p182 = scmp.eq.s32.totalorder %s25, 0
    %p183 = por %p181, %p182
    %s185 = sadd.s32 %s184, 1
    %p188 = scmp.eq.s32.totalorder %s19, 1
    %p189 = scmp.ne.s32.totalorder %s184, %s186
    %p190 = scmp.eq.s32.totalorder %s19, 0
    %p191 = por %p189, %p190
    %p192 = scmp.ne.s32.totalorder %s184, %s186
    %p193 = scmp.eq.s32.totalorder %s24, 1
    %p194 = por %p192, %p193
    %p195 = scmp.ne.s32.totalorder %s186, %s187
    %p196 = scmp.eq.s32.totalorder %s24, 0
    %p197 = por %p195, %p196
    %p198 = scmp.ne.s32.totalorder %s186, %s187
    %p199 = scmp.eq.s32.totalorder %s25, 1
    %p200 = por %p198, %p199
    %p202 = scmp.ne.s32.totalorder %s187, %s201
    %p203 = scmp.eq.s32.totalorder %s25, 0
    %p204 = por %p202, %p203
    %s206 = sadd.s32 %s205, 1
    %p209 = scmp.eq.s32.totalorder %s19, 1
    %p210 = scmp.ne.s32.totalorder %s205, %s207
    %p211 = scmp.eq.s32.totalorder %s19, 0
    %p212 = por %p210, %p211
    %p213 = scmp.ne.s32.totalorder %s205, %s207
    %p214 = scmp.eq.s32.totalorder %s24, 1
    %p215 = por %p213, %p214
    %p216 = scmp.ne.s32.totalorder %s207, %s208
    %p217 = scmp.eq.s32.totalorder %s24, 0
    %p218 = por %p216, %p217
    %p219 = scmp.ne.s32.totalorder %s207, %s208
    %p220 = scmp.eq.s32.totalorder %s25, 1
    %p221 = por %p219, %p220
    %p223 = scmp.ne.s32.totalorder %s208, %s222
    %p224 = scmp.eq.s32.totalorder %s25, 0
    %p225 = por %p223, %p224
    %s227 = sadd.s32 %s226, 1
    %p230 = scmp.eq.s32.totalorder %s19, 1
    %p231 = scmp.ne.s32.totalorder %s226, %s228
    %p232 = scmp.eq.s32.totalorder %s19, 0
    %p233 = por %p231, %p232
    %p234 = scmp.ne.s32.totalorder %s226, %s228
    %p235 = scmp.eq.s32.totalorder %s24, 1
    %p236 = por %p234, %p235
    %p237 = scmp.ne.s32.totalorder %s228, %s229
    %p238 = scmp.eq.s32.totalorder %s24, 0
    %p239 = por %p237, %p238
    %p240 = scmp.ne.s32.totalorder %s228, %s229
    %p241 = scmp.eq.s32.totalorder %s25, 1
    %p242 = por %p240, %p241
    %p244 = scmp.ne.s32.totalorder %s229, %s243
    %p245 = scmp.eq.s32.totalorder %s25, 0
    %p246 = por %p244, %p245
    %s248 = sadd.s32 %s247, 1
    %p251 = scmp.eq.s32.totalorder %s19, 1
    %p252 = scmp.ne.s32.totalorder %s247, %s249
    %p253 = scmp.eq.s32.totalorder %s19, 0
    %p254 = por %p252, %p253
    %p255 = scmp.ne.s32.totalorder %s247, %s249
    %p256 = scmp.eq.s32.totalorder %s24, 1
    %p257 = por %p255, %p256
    %p258 = scmp.ne.s32.totalorder %s249, %s250
    %p259 = scmp.eq.s32.totalorder %s24, 0
    %p260 = por %p258, %p259
    %p261 = scmp.ne.s32.totalorder %s249, %s250
    %p262 = scmp.eq.s32.totalorder %s25, 1
    %p263 = por %p261, %p262
    %p265 = scmp.ne.s32.totalorder %s250, %s264
    %p266 = scmp.eq.s32.totalorder %s25, 0
    %p267 = por %p265, %p266
    %s269 = sadd.s32 %s268, 1
    %p272 = scmp.eq.s32.totalorder %s19, 1
    %p273 = scmp.ne.s32.totalorder %s268, %s270
    %p274 = scmp.eq.s32.totalorder %s19, 0
    %p275 = por %p273, %p274
    %p276 = scmp.ne.s32.totalorder %s268, %s270
    %p277 = scmp.eq.s32.totalorder %s24, 1
    %p278 = por %p276, %p277
    %p279 = scmp.ne.s32.totalorder %s270, %s271
    %p280 = scmp.eq.s32.totalorder %s24, 0
    %p281 = por %p279, %p280
    %p282 = scmp.ne.s32.totalorder %s270, %s271
    %p283 = scmp.eq.s32.totalorder %s25, 1
    %p284 = por %p282, %p283
    %p286 = scmp.ne.s32.totalorder %s271, %s285
    %p287 = scmp.eq.s32.totalorder %s25, 0
    %p288 = por %p286, %p287
    %s289 = ssub.s32 %s19, %s26
    %p290 = scmp.eq.s32.totalorder %s289, 0
    %s292 = sadd.s32 %s291, 1
    %s293 = scalar_select %p290, %s291, %s292
    %p296 = pneg %p290
    %p297 = scmp.eq.s32.totalorder %s19, 1
    %p298 = por %p296, %p297
    %p299 = scmp.ne.s32.totalorder %s291, %s294
    %p300 = scmp.eq.s32.totalorder %s19, 0
    %p301 = por %p299, %p300
    %p302 = scmp.ne.s32.totalorder %s291, %s294
    %p303 = scmp.eq.s32.totalorder %s24, 1
    %p304 = por %p302, %p303
    %p305 = scmp.ne.s32.totalorder %s294, %s295
    %p306 = scmp.eq.s32.totalorder %s24, 0
    %p307 = por %p305, %p306
    %p308 = scmp.ne.s32.totalorder %s294, %s295
    %p309 = scmp.eq.s32.totalorder %s25, 1
    %p310 = por %p308, %p309
    %p312 = scmp.ne.s32.totalorder %s295, %s311
    %p313 = scmp.eq.s32.totalorder %s25, 0
    %p314 = por %p312, %p313
    %s315 = ssub.s32 %s19, %s26
    %p316 = scmp.eq.s32.totalorder %s315, 0
    %s318 = sadd.s32 %s317, 1
    %s319 = scalar_select %p316, %s317, %s318
    %p322 = pneg %p316
    %p323 = scmp.eq.s32.totalorder %s19, 1
    %p324 = por %p322, %p323
    %p325 = scmp.ne.s32.totalorder %s317, %s320
    %p326 = scmp.eq.s32.totalorder %s19, 0
    %p327 = por %p325, %p326
    %p328 = scmp.ne.s32.totalorder %s317, %s320
    %p329 = scmp.eq.s32.totalorder %s24, 1
    %p330 = por %p328, %p329
    %p331 = scmp.ne.s32.totalorder %s320, %s321
    %p332 = scmp.eq.s32.totalorder %s24, 0
    %p333 = por %p331, %p332
    %p334 = scmp.ne.s32.totalorder %s320, %s321
    %p335 = scmp.eq.s32.totalorder %s25, 1
    %p336 = por %p334, %p335
    %p338 = scmp.ne.s32.totalorder %s321, %s337
    %p339 = scmp.eq.s32.totalorder %s25, 0
    %p340 = por %p338, %p339
    %p341 = scmp.le.s32.totalorder 1, %s19
    %p342 = scmp.lt.s32.totalorder %s19, 3
    %p343 = pnand %p341, %p342
    %p344 = pneg %p343
    // Predicated region
    $region9: #{seq2seq_forward.14} parent=5 // pred_check
      _
    $region10: #{seq2seq_forward.14} parent=5 // pred_check_branch
      %346 = sbr.rel (%p343) target = $region12
    $region11: #{seq2seq_forward.14} parent=5 // pred_region
      %s347 = ssub.s32 %s19, 1
      // Predicated region
      $region13: #{seq2seq_forward.14} parent=11 // pred_check
        %p348 = pneg %p92
      $region14: #{seq2seq_forward.14} parent=11 // pred_check_branch
        %350 = sbr.rel (%p348) target = $region16
      $region15: #{seq2seq_forward.14} parent=11 // pred_region
        _
      $region16: #{seq2seq_forward.14} parent=11 // pred_fallthru
        _
      // Predicated region
      $region17: #{seq2seq_forward.14} parent=11 // pred_check
        %p351 = pneg %p113
      $region18: #{seq2seq_forward.14} parent=11 // pred_check_branch
        %353 = sbr.rel (%p351) target = $region20
      $region19: #{seq2seq_forward.14} parent=11 // pred_region
        _
      $region20: #{seq2seq_forward.14} parent=11 // pred_fallthru
        _
      // Predicated region
      $region21: #{seq2seq_forward.14} parent=11 // pred_check
        %p354 = pneg %p134
      $region22: #{seq2seq_forward.14} parent=11 // pred_check_branch
        %356 = sbr.rel (%p354) target = $region24
      $region23: #{seq2seq_forward.14} parent=11 // pred_region
        _
      $region24: #{seq2seq_forward.14} parent=11 // pred_fallthru
        _
      // Predicated region
      $region25: #{seq2seq_forward.14} parent=11 // pred_check
        %p357 = pneg %p155
      $region26: #{seq2seq_forward.14} parent=11 // pred_check_branch
        %359 = sbr.rel (%p357) target = $region28
      $region27: #{seq2seq_forward.14} parent=11 // pred_region
        _
      $region28: #{seq2seq_forward.14} parent=11 // pred_fallthru
        _
      // Predicated region
      $region29: #{seq2seq_forward.14} parent=11 // pred_check
        %p360 = pneg %p176
      $region30: #{seq2seq_forward.14} parent=11 // pred_check_branch
        %362 = sbr.rel (%p360) target = $region32
      $region31: #{seq2seq_forward.14} parent=11 // pred_region
        _
      $region32: #{seq2seq_forward.14} parent=11 // pred_fallthru
        _
      // Predicated region
      $region33: #{seq2seq_forward.14} parent=11 // pred_check
        %p363 = pneg %p197
      $region34: #{seq2seq_forward.14} parent=11 // pred_check_branch
        %365 = sbr.rel (%p363) target = $region36
      $region35: #{seq2seq_forward.14} parent=11 // pred_region
        _
      $region36: #{seq2seq_forward.14} parent=11 // pred_fallthru
        _
      // Predicated region
      $region37: #{seq2seq_forward.14} parent=11 // pred_check
        %p366 = pneg %p218
      $region38: #{seq2seq_forward.14} parent=11 // pred_check_branch
        %368 = sbr.rel (%p366) target = $region40
      $region39: #{seq2seq_forward.14} parent=11 // pred_region
        _
      $region40: #{seq2seq_forward.14} parent=11 // pred_fallthru
        _
      // Predicated region
      $region41: #{seq2seq_forward.14} parent=11 // pred_check
        %p369 = pneg %p239
      $region42: #{seq2seq_forward.14} parent=11 // pred_check_branch
        %371 = sbr.rel (%p369) target = $region44
      $region43: #{seq2seq_forward.14} parent=11 // pred_region
        _
      $region44: #{seq2seq_forward.14} parent=11 // pred_fallthru
        _
      // Predicated region
      $region45: #{seq2seq_forward.14} parent=11 // pred_check
        %p372 = pneg %p260
      $region46: #{seq2seq_forward.14} parent=11 // pred_check_branch
        %374 = sbr.rel (%p372) target = $region48
      $region47: #{seq2seq_forward.14} parent=11 // pred_region
        _
      $region48: #{seq2seq_forward.14} parent=11 // pred_fallthru
        _
      // Predicated region
      $region49: #{seq2seq_forward.14} parent=11 // pred_check
        %p375 = pneg %p281
      $region50: #{seq2seq_forward.14} parent=11 // pred_check_branch
        %377 = sbr.rel (%p375) target = $region52
      $region51: #{seq2seq_forward.14} parent=11 // pred_region
        _
      $region52: #{seq2seq_forward.14} parent=11 // pred_fallthru
        _
    $region12: #{seq2seq_forward.14} parent=5 // pred_fallthru
      _
    %p378 = scmp.lt.s32.totalorder %s19, 2
    // Predicated region
    $region53: #{seq2seq_forward.14} parent=5 // pred_check
      %p379 = pneg %p378
    $region54: #{seq2seq_forward.14} parent=5 // pred_check_branch
      %381 = sbr.rel (%p379) target = $region56
    $region55: #{seq2seq_forward.14} parent=5 // pred_region
      // Predicated region
      $region57: #{seq2seq_forward.14} parent=55 // pred_check
        %p382 = pneg %p39
      $region58: #{seq2seq_forward.14} parent=55 // pred_check_branch
        %384 = sbr.rel (%p382) target = $region60
      $region59: #{seq2seq_forward.14} parent=55 // pred_region
        %p385 = scmp.lt.s32.totalorder %s19, 1
        %s386 = scalar_select %p385, %s19, 1
        %s387 = smul.addr %s386, 8
        %s388 = scalar_lea.vmem %s0, %s387
      $region60: #{seq2seq_forward.14} parent=55 // pred_fallthru
        _
      // Predicated region
      $region61: #{seq2seq_forward.14} parent=55 // pred_check
        %p389 = pneg %p65
      $region62: #{seq2seq_forward.14} parent=55 // pred_check_branch
        %391 = sbr.rel (%p389) target = $region64
      $region63: #{seq2seq_forward.14} parent=55 // pred_region
        %p392 = scmp.lt.s32.totalorder %s19, 1
        %s393 = scalar_select %p392, %s19, 1
        %s394 = smul.addr %s393, 8
        %s395 = scalar_lea.vmem %s1, %s394
      $region64: #{seq2seq_forward.14} parent=55 // pred_fallthru
        _
      // Predicated region
      $region65: #{seq2seq_forward.14} parent=55 // pred_check
        %p396 = pneg %p301
      $region66: #{seq2seq_forward.14} parent=55 // pred_check_branch
        %398 = sbr.rel (%p396) target = $region68
      $region67: #{seq2seq_forward.14} parent=55 // pred_region
        %p399 = scmp.lt.s32.totalorder %s19, 1
        %s400 = scalar_select %p399, %s19, 1
        %s401 = scalar_lea.vmem %s12, %s400
      $region68: #{seq2seq_forward.14} parent=55 // pred_fallthru
        _
    $region56: #{seq2seq_forward.14} parent=5 // pred_fallthru
      _
    %p402 = scmp.le.s32.totalorder 1, %s19
    %p403 = scmp.lt.s32.totalorder %s19, 3
    %p404 = pnand %p402, %p403
    %p405 = pneg %p404
    // Predicated region
    $region69: #{seq2seq_forward.14} parent=5 // pred_check
      _
    $region70: #{seq2seq_forward.14} parent=5 // pred_check_branch
      %407 = sbr.rel (%p404) target = $region72
    $region71: #{seq2seq_forward.14} parent=5 // pred_region
      %s408 = ssub.s32 %s19, 1
      %p409 = scmp.lt.s32.totalorder %s24, 1
      %s410 = scalar_select %p409, %s24, 1
      %s411 = smul.addr %s410, 8
      %s412 = scalar_lea.vmem %s0, %s411
      %p413 = pneg %p45
      %p414 = pneg %p42
      %p415 = scmp.lt.s32.totalorder %s24, 1
      %s416 = scalar_select %p415, %s24, 1
      %s417 = smul.addr %s416, 8
      %s418 = scalar_lea.vmem %s1, %s417
      %p419 = pneg %p71
      %p420 = pneg %p68
      %p421 = pneg %p92
      %p422 = pneg %p89
      %p423 = pneg %p113
      %p424 = pneg %p110
      %p425 = pneg %p134
      %p426 = pneg %p131
      %p427 = pneg %p155
      %p428 = pneg %p152
      %p429 = pneg %p176
      %p430 = pneg %p173
      %p431 = pneg %p197
      %p432 = pneg %p194
      %p433 = pneg %p218
      %p434 = pneg %p215
      %p435 = pneg %p239
      %p436 = pneg %p236
      %p437 = pneg %p260
      %p438 = pneg %p257
      %p439 = pneg %p281
      %p440 = pneg %p278
      %p441 = scmp.lt.s32.totalorder %s24, 1
      %s442 = scalar_select %p441, %s24, 1
      %s443 = scalar_lea.vmem %s12, %s442
      %p444 = pneg %p307
      %p445 = pneg %p304
      %p446 = pneg %p333
      %p447 = pneg %p330
      %p448 = scmp.lt.s32.totalorder %s24, 1
      %s449 = scalar_select %p448, %s24, 1
      %s450 = smul.addr %s449, 8
      %s451 = scalar_lea.vmem %s13, %s450
      %p452 = scmp.lt.s32.totalorder %s24, 1
      %s453 = scalar_select %p452, %s24, 1
      %s454 = smul.addr %s453, 8
      %s455 = scalar_lea.vmem %s0, %s454
      %p456 = scmp.lt.s32.totalorder %s24, 1
      %s457 = scalar_select %p456, %s24, 1
      %s458 = smul.addr %s457, 8
      %s459 = scalar_lea.vmem %s1, %s458
      %p460 = scmp.lt.s32.totalorder %s24, 1
      %s461 = scalar_select %p460, %s24, 1
      %s462 = scalar_lea.vmem %s12, %s461
      %p463 = scmp.lt.s32.totalorder %s24, 1
      %s464 = scalar_select %p463, %s24, 1
      %s465 = smul.addr %s464, 8
      %s466 = scalar_lea.vmem %s13, %s465
      %v467 = vld [vmem:[%s455] sm:$0xff]
      %v468 = vld [vmem:[%s459] sm:$0xff]
      %v469 = vld [vmem:[%s462] sm:$0x1]
      %v471 = vlaneseq
      %v472 = vshrl.u32 %v471, 7
      %v473 = vsub.s32 0, %v472
      %v474 = vrot.slane %v469, %v473
      %v476 = vld [vmem:[%s2] sm:$0xff]
      %v477 = vld [vmem:[%s2 + $0x8] sm:$0xff]
      %v478 = vld [vmem:[%s2 + $0x10] sm:$0xff]
      %v479 = vld [vmem:[%s2 + $0x18] sm:$0xff]
      %v480 = vld [vmem:[%s3] sm:$0x1]
      %v482 = vlaneseq
      %v483 = vshrl.u32 %v482, 7
      %v484 = vsub.s32 0, %v483
      %v485 = vrot.slane %v480, %v484
      %vm487 = vcmask 261120
      %v489 = vsel %vm487, %v467, 0
      %491 = vmatprep.subr.mxu0 0.0
      %492 = vmatpush1.msra.mxu0 0.0
      %493 = vmatprep.subr.mxu0 0.0
      %494 = vmatpush1.msra.mxu0 0.0
      %495 = vmatprep.subr.mxu0 0.0
      %496 = vmatpush1.msra.mxu0 0.0
      %497 = vmatprep.subr.mxu0 0.0
      %498 = vmatpush1.msra.mxu0 0.0
      %499 = vmatprep.subr.mxu0 0.0
      %500 = vmatpush1.msra.mxu0 0.0
      %501 = vmatprep.subr.mxu0 0.0
      %502 = vmatpush1.msra.mxu0 0.0
      %503 = vmatprep.subr.mxu0 0.0
      %504 = vmatpush1.msra.mxu0 0.0
      %505 = vmatprep.subr.mxu0 0.0
      %506 = vmatpush1.msra.mxu0 0.0
      %507 = vmatprep.subr.mxu0 0.0
      %508 = vmatpush1.msra.mxu0 0.0
      %509 = vmatprep.subr.mxu0 0.0
      %510 = vmatpush1.msra.mxu0 0.0
      %511 = vmatprep.subr.mxu0 0.0
      %512 = vmatpush1.msra.mxu0 0.0
      %513 = vmatprep.subr.mxu0 0.0
      %514 = vmatpush1.msra.mxu0 0.0
      %515 = vmatprep.subr.mxu0 0.0
      %516 = vmatpush1.msra.mxu0 %v479
      %517 = vmatprep.subr.mxu0 0.0
      %518 = vmatpush1.msra.mxu0 %v478
      %519 = vmatprep.subr.mxu0 0.0
      %520 = vmatpush1.msra.mxu0 %v477
      %521 = vmatprep.subr.mxu0 0.0
      %522 = vmatpush1.msra.mxu0 %v476
      %523 = vmatprep.subr.mxu0 0.0
      %524 = vmatpush2.msra.mxu0 0.0
      %525 = vmatprep.subr.mxu0 0.0
      %526 = vmatpush2.msra.mxu0 0.0
      %527 = vmatprep.subr.mxu0 0.0
      %528 = vmatpush2.msra.mxu0 0.0
      %529 = vmatprep.subr.mxu0 0.0
      %530 = vmatpush2.msra.mxu0 0.0
      %531 = vmatprep.subr.mxu0 0.0
      %532 = vmatpush2.msra.mxu0 0.0
      %533 = vmatprep.subr.mxu0 0.0
      %534 = vmatpush2.msra.mxu0 0.0
      %535 = vmatprep.subr.mxu0 0.0
      %536 = vmatpush2.msra.mxu0 0.0
      %537 = vmatprep.subr.mxu0 0.0
      %538 = vmatpush2.msra.mxu0 0.0
      %539 = vmatprep.subr.mxu0 0.0
      %540 = vmatpush2.msra.mxu0 0.0
      %541 = vmatprep.subr.mxu0 0.0
      %542 = vmatpush2.msra.mxu0 0.0
      %543 = vmatprep.subr.mxu0 0.0
      %544 = vmatpush2.msra.mxu0 0.0
      %545 = vmatprep.subr.mxu0 0.0
      %546 = vmatpush2.msra.mxu0 0.0
      %547 = vmatprep.subr.mxu0 0.0
      %548 = vmatpush2.msra.mxu0 0.0
      %549 = vmatprep.subr.mxu0 0.0
      %550 = vmatpush2.msra.mxu0 0.0
      %551 = vmatprep.subr.mxu0 0.0
      %552 = vmatpush2.msra.mxu0 0.0
      %553 = vmatprep.subr.mxu0 0.0
      %554 = vmatpush2.msra.mxu0 0.0
      %555 = vmatprep.mubr.f32.mxu0 0.0
      %556 = vmatmul.mubr.f32.gmra.mxu0 %v489
      %v557 = vpop.f32.mrf.mxu0
      %v558 = vadd.f32 %v485, %v557
      %v559 = vpop.f32.mrf.mxu0
      %560 = vdwg.mxu0
      %v561 = vld [vmem:[%s4] sm:$0xff]
      %v562 = vld [vmem:[%s4 + $0x8] sm:$0xff]
      %v563 = vld [vmem:[%s4 + $0x10] sm:$0xff]
      %v564 = vld [vmem:[%s4 + $0x18] sm:$0xff]
      %v565 = vld [vmem:[%s5] sm:$0x1]
      %v567 = vlaneseq
      %v568 = vshrl.u32 %v567, 7
      %v569 = vsub.s32 0, %v568
      %v570 = vrot.slane %v565, %v569
      %v573 = vsel %vm487, %v468, 0
      %575 = vmatprep.subr.mxu0 0.0
      %576 = vmatpush1.msra.mxu0 0.0
      %577 = vmatprep.subr.mxu0 0.0
      %578 = vmatpush1.msra.mxu0 0.0
      %579 = vmatprep.subr.mxu0 0.0
      %580 = vmatpush1.msra.mxu0 0.0
      %581 = vmatprep.subr.mxu0 0.0
      %582 = vmatpush1.msra.mxu0 0.0
      %583 = vmatprep.subr.mxu0 0.0
      %584 = vmatpush1.msra.mxu0 0.0
      %585 = vmatprep.subr.mxu0 0.0
      %586 = vmatpush1.msra.mxu0 0.0
      %587 = vmatprep.subr.mxu0 0.0
      %588 = vmatpush1.msra.mxu0 0.0
      %589 = vmatprep.subr.mxu0 0.0
      %590 = vmatpush1.msra.mxu0 0.0
      %591 = vmatprep.subr.mxu0 0.0
      %592 = vmatpush1.msra.mxu0 0.0
      %593 = vmatprep.subr.mxu0 0.0
      %594 = vmatpush1.msra.mxu0 0.0
      %595 = vmatprep.subr.mxu0 0.0
      %596 = vmatpush1.msra.mxu0 0.0
      %597 = vmatprep.subr.mxu0 0.0
      %598 = vmatpush1.msra.mxu0 0.0
      %599 = vmatprep.subr.mxu0 0.0
      %600 = vmatpush1.msra.mxu0 %v564
      %601 = vmatprep.subr.mxu0 0.0
      %602 = vmatpush1.msra.mxu0 %v563
      %603 = vmatprep.subr.mxu0 0.0
      %604 = vmatpush1.msra.mxu0 %v562
      %605 = vmatprep.subr.mxu0 0.0
      %606 = vmatpush1.msra.mxu0 %v561
      %607 = vmatprep.subr.mxu0 0.0
      %608 = vmatpush2.msra.mxu0 0.0
      %609 = vmatprep.subr.mxu0 0.0
      %610 = vmatpush2.msra.mxu0 0.0
      %611 = vmatprep.subr.mxu0 0.0
      %612 = vmatpush2.msra.mxu0 0.0
      %613 = vmatprep.subr.mxu0 0.0
      %614 = vmatpush2.msra.mxu0 0.0
      %615 = vmatprep.subr.mxu0 0.0
      %616 = vmatpush2.msra.mxu0 0.0
      %617 = vmatprep.subr.mxu0 0.0
      %618 = vmatpush2.msra.mxu0 0.0
      %619 = vmatprep.subr.mxu0 0.0
      %620 = vmatpush2.msra.mxu0 0.0
      %621 = vmatprep.subr.mxu0 0.0
      %622 = vmatpush2.msra.mxu0 0.0
      %623 = vmatprep.subr.mxu0 0.0
      %624 = vmatpush2.msra.mxu0 0.0
      %625 = vmatprep.subr.mxu0 0.0
      %626 = vmatpush2.msra.mxu0 0.0
      %627 = vmatprep.subr.mxu0 0.0
      %628 = vmatpush2.msra.mxu0 0.0
      %629 = vmatprep.subr.mxu0 0.0
      %630 = vmatpush2.msra.mxu0 0.0
      %631 = vmatprep.subr.mxu0 0.0
      %632 = vmatpush2.msra.mxu0 0.0
      %633 = vmatprep.subr.mxu0 0.0
      %634 = vmatpush2.msra.mxu0 0.0
      %635 = vmatprep.subr.mxu0 0.0
      %636 = vmatpush2.msra.mxu0 0.0
      %637 = vmatprep.subr.mxu0 0.0
      %638 = vmatpush2.msra.mxu0 0.0
      %639 = vmatprep.mubr.f32.mxu0 0.0
      %640 = vmatmul.mubr.f32.gmra.mxu0 %v573
      %v641 = vpop.f32.mrf.mxu0
      %v642 = vadd.f32 %v570, %v641
      %v643 = vpop.f32.mrf.mxu0
      %644 = vdwg.mxu0
      %v645 = vld [vmem:[%s6] sm:$0xff]
      %v646 = vld [vmem:[%s6 + $0x8] sm:$0xff]
      %v647 = vld [vmem:[%s6 + $0x10] sm:$0xff]
      %v648 = vld [vmem:[%s6 + $0x18] sm:$0xff]
      %v649 = vld [vmem:[%s7] sm:$0x1]
      %v651 = vlaneseq
      %v652 = vshrl.u32 %v651, 7
      %v653 = vsub.s32 0, %v652
      %v654 = vrot.slane %v649, %v653
      %656 = vmatprep.subr.mxu0 0.0
      %657 = vmatpush1.msra.mxu0 0.0
      %658 = vmatprep.subr.mxu0 0.0
      %659 = vmatpush1.msra.mxu0 0.0
      %660 = vmatprep.subr.mxu0 0.0
      %661 = vmatpush1.msra.mxu0 0.0
      %662 = vmatprep.subr.mxu0 0.0
      %663 = vmatpush1.msra.mxu0 0.0
      %664 = vmatprep.subr.mxu0 0.0
      %665 = vmatpush1.msra.mxu0 0.0
      %666 = vmatprep.subr.mxu0 0.0
      %667 = vmatpush1.msra.mxu0 0.0
      %668 = vmatprep.subr.mxu0 0.0
      %669 = vmatpush1.msra.mxu0 0.0
      %670 = vmatprep.subr.mxu0 0.0
      %671 = vmatpush1.msra.mxu0 0.0
      %672 = vmatprep.subr.mxu0 0.0
      %673 = vmatpush1.msra.mxu0 0.0
      %674 = vmatprep.subr.mxu0 0.0
      %675 = vmatpush1.msra.mxu0 0.0
      %676 = vmatprep.subr.mxu0 0.0
      %677 = vmatpush1.msra.mxu0 0.0
      %678 = vmatprep.subr.mxu0 0.0
      %679 = vmatpush1.msra.mxu0 0.0
      %680 = vmatprep.subr.mxu0 0.0
      %681 = vmatpush1.msra.mxu0 %v648
      %682 = vmatprep.subr.mxu0 0.0
      %683 = vmatpush1.msra.mxu0 %v647
      %684 = vmatprep.subr.mxu0 0.0
      %685 = vmatpush1.msra.mxu0 %v646
      %686 = vmatprep.subr.mxu0 0.0
      %687 = vmatpush1.msra.mxu0 %v645
      %688 = vmatprep.subr.mxu0 0.0
      %689 = vmatpush2.msra.mxu0 0.0
      %690 = vmatprep.subr.mxu0 0.0
      %691 = vmatpush2.msra.mxu0 0.0
      %692 = vmatprep.subr.mxu0 0.0
      %693 = vmatpush2.msra.mxu0 0.0
      %694 = vmatprep.subr.mxu0 0.0
      %695 = vmatpush2.msra.mxu0 0.0
      %696 = vmatprep.subr.mxu0 0.0
      %697 = vmatpush2.msra.mxu0 0.0
      %698 = vmatprep.subr.mxu0 0.0
      %699 = vmatpush2.msra.mxu0 0.0
      %700 = vmatprep.subr.mxu0 0.0
      %701 = vmatpush2.msra.mxu0 0.0
      %702 = vmatprep.subr.mxu0 0.0
      %703 = vmatpush2.msra.mxu0 0.0
      %704 = vmatprep.subr.mxu0 0.0
      %705 = vmatpush2.msra.mxu0 0.0
      %706 = vmatprep.subr.mxu0 0.0
      %707 = vmatpush2.msra.mxu0 0.0
      %708 = vmatprep.subr.mxu0 0.0
      %709 = vmatpush2.msra.mxu0 0.0
      %710 = vmatprep.subr.mxu0 0.0
      %711 = vmatpush2.msra.mxu0 0.0
      %712 = vmatprep.subr.mxu0 0.0
      %713 = vmatpush2.msra.mxu0 0.0
      %714 = vmatprep.subr.mxu0 0.0
      %715 = vmatpush2.msra.mxu0 0.0
      %716 = vmatprep.subr.mxu0 0.0
      %717 = vmatpush2.msra.mxu0 0.0
      %718 = vmatprep.subr.mxu0 0.0
      %719 = vmatpush2.msra.mxu0 0.0
      %720 = vmatprep.mubr.f32.mxu0 0.0
      %721 = vmatmul.mubr.f32.gmra.mxu0 %v573
      %v722 = vpop.f32.mrf.mxu0
      %v723 = vadd.f32 %v654, %v722
      %v724 = vpop.f32.mrf.mxu0
      %725 = vdwg.mxu0
      %vm726 = vcmask 64512
      %v728 = vsel %vm726, %v558, 0
      %v731 = vsel %vm726, %v642, 0
      %733 = vmatprep.subr.mxu0 0.0
      %734 = vmatpush1.xpose.msra.mxu0 0.0
      %735 = vmatprep.subr.mxu0 0.0
      %736 = vmatpush1.xpose.msra.mxu0 0.0
      %737 = vmatprep.subr.mxu0 0.0
      %738 = vmatpush1.xpose.msra.mxu0 0.0
      %739 = vmatprep.subr.mxu0 0.0
      %740 = vmatpush1.xpose.msra.mxu0 0.0
      %741 = vmatprep.subr.mxu0 0.0
      %742 = vmatpush1.xpose.msra.mxu0 0.0
      %743 = vmatprep.subr.mxu0 0.0
      %744 = vmatpush1.xpose.msra.mxu0 0.0
      %745 = vmatprep.subr.mxu0 0.0
      %746 = vmatpush1.xpose.msra.mxu0 0.0
      %747 = vmatprep.subr.mxu0 0.0
      %748 = vmatpush1.xpose.msra.mxu0 0.0
      %749 = vmatprep.subr.mxu0 0.0
      %750 = vmatpush1.xpose.msra.mxu0 0.0
      %751 = vmatprep.subr.mxu0 0.0
      %752 = vmatpush1.xpose.msra.mxu0 0.0
      %753 = vmatprep.subr.mxu0 0.0
      %754 = vmatpush1.xpose.msra.mxu0 0.0
      %755 = vmatprep.subr.mxu0 0.0
      %756 = vmatpush1.xpose.msra.mxu0 0.0
      %757 = vmatprep.subr.mxu0 0.0
      %758 = vmatpush1.xpose.msra.mxu0 0.0
      %759 = vmatprep.subr.mxu0 0.0
      %760 = vmatpush1.xpose.msra.mxu0 0.0
      %761 = vmatprep.subr.mxu0 0.0
      %762 = vmatpush1.xpose.msra.mxu0 0.0
      %763 = vmatprep.subr.mxu0 0.0
      %764 = vmatpush1.xpose.msra.mxu0 %v731
      %765 = vmatprep.subr.mxu0 0.0
      %766 = vmatpush2.xpose.msra.mxu0 0.0
      %767 = vmatprep.subr.mxu0 0.0
      %768 = vmatpush2.xpose.msra.mxu0 0.0
      %769 = vmatprep.subr.mxu0 0.0
      %770 = vmatpush2.xpose.msra.mxu0 0.0
      %771 = vmatprep.subr.mxu0 0.0
      %772 = vmatpush2.xpose.msra.mxu0 0.0
      %773 = vmatprep.subr.mxu0 0.0
      %774 = vmatpush2.xpose.msra.mxu0 0.0
      %775 = vmatprep.subr.mxu0 0.0
      %776 = vmatpush2.xpose.msra.mxu0 0.0
      %777 = vmatprep.subr.mxu0 0.0
      %778 = vmatpush2.xpose.msra.mxu0 0.0
      %779 = vmatprep.subr.mxu0 0.0
      %780 = vmatpush2.xpose.msra.mxu0 0.0
      %781 = vmatprep.subr.mxu0 0.0
      %782 = vmatpush2.xpose.msra.mxu0 0.0
      %783 = vmatprep.subr.mxu0 0.0
      %784 = vmatpush2.xpose.msra.mxu0 0.0
      %785 = vmatprep.subr.mxu0 0.0
      %786 = vmatpush2.xpose.msra.mxu0 0.0
      %787 = vmatprep.subr.mxu0 0.0
      %788 = vmatpush2.xpose.msra.mxu0 0.0
      %789 = vmatprep.subr.mxu0 0.0
      %790 = vmatpush2.xpose.msra.mxu0 0.0
      %791 = vmatprep.subr.mxu0 0.0
      %792 = vmatpush2.xpose.msra.mxu0 0.0
      %793 = vmatprep.subr.mxu0 0.0
      %794 = vmatpush2.xpose.msra.mxu0 0.0
      %795 = vmatprep.subr.mxu0 0.0
      %796 = vmatpush2.xpose.msra.mxu0 0.0
      %797 = vmatprep.mubr.f32.mxu0 0.0
      %798 = vmatmul.mubr.f32.gmra.mxu0 %v728
      %v799 = vpop.f32.mrf.mxu0
      %v800 = vadd.f32 %v474, %v799
      %v801 = vpop.f32.mrf.mxu0
      %802 = vdwg.mxu0
      %v803 = vsel %vm726, %v800, -inf
      %804 = vmax.xlane.f32.xlu0 %v803
      %v805 = vpop.xlane.xlu0 %804
      %v806 = vsub.f32 %v800, %v805
      %v807 = vmul.f32 %v806, 1.442695
      %v808 = vpow.pop %v807
      %v809 = vsel %vm726, %v808, 0.0
      %810 = vadd.xlane.f32.xlu0 %v809
      %v811 = vpop.xlane.xlu0 %810
      %v812 = vrcp.pop %v811
      %v813 = vmul.f32 %v808, %v812
      %v815 = vsel %vm726, %v813, 0
      %817 = vmatprep.subr.mxu0 0.0
      %818 = vmatpush1.msra.mxu0 0.0
      %819 = vmatprep.subr.mxu0 0.0
      %820 = vmatpush1.msra.mxu0 0.0
      %821 = vmatprep.subr.mxu0 0.0
      %822 = vmatpush1.msra.mxu0 0.0
      %823 = vmatprep.subr.mxu0 0.0
      %824 = vmatpush1.msra.mxu0 0.0
      %825 = vmatprep.subr.mxu0 0.0
      %826 = vmatpush1.msra.mxu0 0.0
      %827 = vmatprep.subr.mxu0 0.0
      %828 = vmatpush1.msra.mxu0 0.0
      %829 = vmatprep.subr.mxu0 0.0
      %830 = vmatpush1.msra.mxu0 0.0
      %831 = vmatprep.subr.mxu0 0.0
      %832 = vmatpush1.msra.mxu0 0.0
      %833 = vmatprep.subr.mxu0 0.0
      %834 = vmatpush1.msra.mxu0 0.0
      %835 = vmatprep.subr.mxu0 0.0
      %836 = vmatpush1.msra.mxu0 0.0
      %837 = vmatprep.subr.mxu0 0.0
      %838 = vmatpush1.msra.mxu0 0.0
      %839 = vmatprep.subr.mxu0 0.0
      %840 = vmatpush1.msra.mxu0 0.0
      %841 = vmatprep.subr.mxu0 0.0
      %842 = vmatpush1.msra.mxu0 0.0
      %843 = vmatprep.subr.mxu0 0.0
      %844 = vmatpush1.msra.mxu0 0.0
      %845 = vmatprep.subr.mxu0 0.0
      %846 = vmatpush1.msra.mxu0 0.0
      %847 = vmatprep.subr.mxu0 0.0
      %848 = vmatpush1.msra.mxu0 %v723
      %849 = vmatprep.subr.mxu0 0.0
      %850 = vmatpush2.msra.mxu0 0.0
      %851 = vmatprep.subr.mxu0 0.0
      %852 = vmatpush2.msra.mxu0 0.0
      %853 = vmatprep.subr.mxu0 0.0
      %854 = vmatpush2.msra.mxu0 0.0
      %855 = vmatprep.subr.mxu0 0.0
      %856 = vmatpush2.msra.mxu0 0.0
      %857 = vmatprep.subr.mxu0 0.0
      %858 = vmatpush2.msra.mxu0 0.0
      %859 = vmatprep.subr.mxu0 0.0
      %860 = vmatpush2.msra.mxu0 0.0
      %861 = vmatprep.subr.mxu0 0.0
      %862 = vmatpush2.msra.mxu0 0.0
      %863 = vmatprep.subr.mxu0 0.0
      %864 = vmatpush2.msra.mxu0 0.0
      %865 = vmatprep.subr.mxu0 0.0
      %866 = vmatpush2.msra.mxu0 0.0
      %867 = vmatprep.subr.mxu0 0.0
      %868 = vmatpush2.msra.mxu0 0.0
      %869 = vmatprep.subr.mxu0 0.0
      %870 = vmatpush2.msra.mxu0 0.0
      %871 = vmatprep.subr.mxu0 0.0
      %872 = vmatpush2.msra.mxu0 0.0
      %873 = vmatprep.subr.mxu0 0.0
      %874 = vmatpush2.msra.mxu0 0.0
      %875 = vmatprep.subr.mxu0 0.0
      %876 = vmatpush2.msra.mxu0 0.0
      %877 = vmatprep.subr.mxu0 0.0
      %878 = vmatpush2.msra.mxu0 0.0
      %879 = vmatprep.subr.mxu0 0.0
      %880 = vmatpush2.msra.mxu0 0.0
      %881 = vmatprep.mubr.f32.mxu0 0.0
      %882 = vmatmul.mubr.f32.gmra.mxu0 %v815
      %v883 = vpop.f32.mrf.mxu0
      %v884 = vadd.f32 0.0, %v883
      %v885 = vpop.f32.mrf.mxu0
      %886 = vdwg.mxu0
      %v887 = vld [vmem:[%s8] sm:$0xff]
      %s888 = scalar_lea.vmem %s2, 32
      %v889 = vld [vmem:[%s888] sm:$0xff]
      %v890 = vld [vmem:[%s888 + $0x8] sm:$0xff]
      %v891 = vld [vmem:[%s888 + $0x10] sm:$0xff]
      %v892 = vld [vmem:[%s888 + $0x18] sm:$0xff]
      %s893 = scalar_lea.vmem %s3, 1
      %v894 = vld [vmem:[%s893] sm:$0x1]
      %v896 = vlaneseq
      %v897 = vshrl.u32 %v896, 7
      %v898 = vsub.s32 0, %v897
      %v899 = vrot.slane %v894, %v898
      %901 = vmatprep.subr.mxu0 0.0
      %902 = vmatpush1.msra.mxu0 0.0
      %903 = vmatprep.subr.mxu0 0.0
      %904 = vmatpush1.msra.mxu0 0.0
      %905 = vmatprep.subr.mxu0 0.0
      %906 = vmatpush1.msra.mxu0 0.0
      %907 = vmatprep.subr.mxu0 0.0
      %908 = vmatpush1.msra.mxu0 0.0
      %909 = vmatprep.subr.mxu0 0.0
      %910 = vmatpush1.msra.mxu0 0.0
      %911 = vmatprep.subr.mxu0 0.0
      %912 = vmatpush1.msra.mxu0 0.0
      %913 = vmatprep.subr.mxu0 0.0
      %914 = vmatpush1.msra.mxu0 0.0
      %915 = vmatprep.subr.mxu0 0.0
      %916 = vmatpush1.msra.mxu0 0.0
      %917 = vmatprep.subr.mxu0 0.0
      %918 = vmatpush1.msra.mxu0 0.0
      %919 = vmatprep.subr.mxu0 0.0
      %920 = vmatpush1.msra.mxu0 0.0
      %921 = vmatprep.subr.mxu0 0.0
      %922 = vmatpush1.msra.mxu0 0.0
      %923 = vmatprep.subr.mxu0 0.0
      %924 = vmatpush1.msra.mxu0 0.0
      %925 = vmatprep.subr.mxu0 0.0
      %926 = vmatpush1.msra.mxu0 %v892
      %927 = vmatprep.subr.mxu0 0.0
      %928 = vmatpush1.msra.mxu0 %v891
      %929 = vmatprep.subr.mxu0 0.0
      %930 = vmatpush1.msra.mxu0 %v890
      %931 = vmatprep.subr.mxu0 0.0
      %932 = vmatpush1.msra.mxu0 %v889
      %933 = vmatprep.subr.mxu0 0.0
      %934 = vmatpush2.msra.mxu0 0.0
      %935 = vmatprep.subr.mxu0 0.0
      %936 = vmatpush2.msra.mxu0 0.0
      %937 = vmatprep.subr.mxu0 0.0
      %938 = vmatpush2.msra.mxu0 0.0
      %939 = vmatprep.subr.mxu0 0.0
      %940 = vmatpush2.msra.mxu0 0.0
      %941 = vmatprep.subr.mxu0 0.0
      %942 = vmatpush2.msra.mxu0 0.0
      %943 = vmatprep.subr.mxu0 0.0
      %944 = vmatpush2.msra.mxu0 0.0
      %945 = vmatprep.subr.mxu0 0.0
      %946 = vmatpush2.msra.mxu0 0.0
      %947 = vmatprep.subr.mxu0 0.0
      %948 = vmatpush2.msra.mxu0 0.0
      %949 = vmatprep.subr.mxu0 0.0
      %950 = vmatpush2.msra.mxu0 0.0
      %951 = vmatprep.subr.mxu0 0.0
      %952 = vmatpush2.msra.mxu0 0.0
      %953 = vmatprep.subr.mxu0 0.0
      %954 = vmatpush2.msra.mxu0 0.0
      %955 = vmatprep.subr.mxu0 0.0
      %956 = vmatpush2.msra.mxu0 0.0
      %957 = vmatprep.subr.mxu0 0.0
      %958 = vmatpush2.msra.mxu0 0.0
      %959 = vmatprep.subr.mxu0 0.0
      %960 = vmatpush2.msra.mxu0 0.0
      %961 = vmatprep.subr.mxu0 0.0
      %962 = vmatpush2.msra.mxu0 0.0
      %963 = vmatprep.subr.mxu0 0.0
      %964 = vmatpush2.msra.mxu0 0.0
      %965 = vmatprep.mubr.f32.mxu0 0.0
      %966 = vmatmul.mubr.f32.gmra.mxu0 %v489
      %v967 = vpop.f32.mrf.mxu0
      %v968 = vadd.f32 %v899, %v967
      %v969 = vpop.f32.mrf.mxu0
      %970 = vdwg.mxu0
      %s971 = scalar_lea.vmem %s4, 32
      %v972 = vld [vmem:[%s971] sm:$0xff]
      %v973 = vld [vmem:[%s971 + $0x8] sm:$0xff]
      %v974 = vld [vmem:[%s971 + $0x10] sm:$0xff]
      %v975 = vld [vmem:[%s971 + $0x18] sm:$0xff]
      %s976 = scalar_lea.vmem %s5, 1
      %v977 = vld [vmem:[%s976] sm:$0x1]
      %v979 = vlaneseq
      %v980 = vshrl.u32 %v979, 7
      %v981 = vsub.s32 0, %v980
      %v982 = vrot.slane %v977, %v981
      %984 = vmatprep.subr.mxu0 0.0
      %985 = vmatpush1.msra.mxu0 0.0
      %986 = vmatprep.subr.mxu0 0.0
      %987 = vmatpush1.msra.mxu0 0.0
      %988 = vmatprep.subr.mxu0 0.0
      %989 = vmatpush1.msra.mxu0 0.0
      %990 = vmatprep.subr.mxu0 0.0
      %991 = vmatpush1.msra.mxu0 0.0
      %992 = vmatprep.subr.mxu0 0.0
      %993 = vmatpush1.msra.mxu0 0.0
      %994 = vmatprep.subr.mxu0 0.0
      %995 = vmatpush1.msra.mxu0 0.0
      %996 = vmatprep.subr.mxu0 0.0
      %997 = vmatpush1.msra.mxu0 0.0
      %998 = vmatprep.subr.mxu0 0.0
      %999 = vmatpush1.msra.mxu0 0.0
      %1000 = vmatprep.subr.mxu0 0.0
      %1001 = vmatpush1.msra.mxu0 0.0
      %1002 = vmatprep.subr.mxu0 0.0
      %1003 = vmatpush1.msra.mxu0 0.0
      %1004 = vmatprep.subr.mxu0 0.0
      %1005 = vmatpush1.msra.mxu0 0.0
      %1006 = vmatprep.subr.mxu0 0.0
      %1007 = vmatpush1.msra.mxu0 0.0
      %1008 = vmatprep.subr.mxu0 0.0
      %1009 = vmatpush1.msra.mxu0 %v975
      %1010 = vmatprep.subr.mxu0 0.0
      %1011 = vmatpush1.msra.mxu0 %v974
      %1012 = vmatprep.subr.mxu0 0.0
      %1013 = vmatpush1.msra.mxu0 %v973
      %1014 = vmatprep.subr.mxu0 0.0
      %1015 = vmatpush1.msra.mxu0 %v972
      %1016 = vmatprep.subr.mxu0 0.0
      %1017 = vmatpush2.msra.mxu0 0.0
      %1018 = vmatprep.subr.mxu0 0.0
      %1019 = vmatpush2.msra.mxu0 0.0
      %1020 = vmatprep.subr.mxu0 0.0
      %1021 = vmatpush2.msra.mxu0 0.0
      %1022 = vmatprep.subr.mxu0 0.0
      %1023 = vmatpush2.msra.mxu0 0.0
      %1024 = vmatprep.subr.mxu0 0.0
      %1025 = vmatpush2.msra.mxu0 0.0
      %1026 = vmatprep.subr.mxu0 0.0
      %1027 = vmatpush2.msra.mxu0 0.0
      %1028 = vmatprep.subr.mxu0 0.0
      %1029 = vmatpush2.msra.mxu0 0.0
      %1030 = vmatprep.subr.mxu0 0.0
      %1031 = vmatpush2.msra.mxu0 0.0
      %1032 = vmatprep.subr.mxu0 0.0
      %1033 = vmatpush2.msra.mxu0 0.0
      %1034 = vmatprep.subr.mxu0 0.0
      %1035 = vmatpush2.msra.mxu0 0.0
      %1036 = vmatprep.subr.mxu0 0.0
      %1037 = vmatpush2.msra.mxu0 0.0
      %1038 = vmatprep.subr.mxu0 0.0
      %1039 = vmatpush2.msra.mxu0 0.0
      %1040 = vmatprep.subr.mxu0 0.0
      %1041 = vmatpush2.msra.mxu0 0.0
      %1042 = vmatprep.subr.mxu0 0.0
      %1043 = vmatpush2.msra.mxu0 0.0
      %1044 = vmatprep.subr.mxu0 0.0
      %1045 = vmatpush2.msra.mxu0 0.0
      %1046 = vmatprep.subr.mxu0 0.0
      %1047 = vmatpush2.msra.mxu0 0.0
      %1048 = vmatprep.mubr.f32.mxu0 0.0
      %1049 = vmatmul.mubr.f32.gmra.mxu0 %v573
      %v1050 = vpop.f32.mrf.mxu0
      %v1051 = vadd.f32 %v982, %v1050
      %v1052 = vpop.f32.mrf.mxu0
      %1053 = vdwg.mxu0
      %s1054 = scalar_lea.vmem %s6, 32
      %v1055 = vld [vmem:[%s1054] sm:$0xff]
      %v1056 = vld [vmem:[%s1054 + $0x8] sm:$0xff]
      %v1057 = vld [vmem:[%s1054 + $0x10] sm:$0xff]
      %v1058 = vld [vmem:[%s1054 + $0x18] sm:$0xff]
      %s1059 = scalar_lea.vmem %s7, 1
      %v1060 = vld [vmem:[%s1059] sm:$0x1]
      %v1062 = vlaneseq
      %v1063 = vshrl.u32 %v1062, 7
      %v1064 = vsub.s32 0, %v1063
      %v1065 = vrot.slane %v1060, %v1064
      %1067 = vmatprep.subr.mxu0 0.0
      %1068 = vmatpush1.msra.mxu0 0.0
      %1069 = vmatprep.subr.mxu0 0.0
      %1070 = vmatpush1.msra.mxu0 0.0
      %1071 = vmatprep.subr.mxu0 0.0
      %1072 = vmatpush1.msra.mxu0 0.0
      %1073 = vmatprep.subr.mxu0 0.0
      %1074 = vmatpush1.msra.mxu0 0.0
      %1075 = vmatprep.subr.mxu0 0.0
      %1076 = vmatpush1.msra.mxu0 0.0
      %1077 = vmatprep.subr.mxu0 0.0
      %1078 = vmatpush1.msra.mxu0 0.0
      %1079 = vmatprep.subr.mxu0 0.0
      %1080 = vmatpush1.msra.mxu0 0.0
      %1081 = vmatprep.subr.mxu0 0.0
      %1082 = vmatpush1.msra.mxu0 0.0
      %1083 = vmatprep.subr.mxu0 0.0
      %1084 = vmatpush1.msra.mxu0 0.0
      %1085 = vmatprep.subr.mxu0 0.0
      %1086 = vmatpush1.msra.mxu0 0.0
      %1087 = vmatprep.subr.mxu0 0.0
      %1088 = vmatpush1.msra.mxu0 0.0
      %1089 = vmatprep.subr.mxu0 0.0
      %1090 = vmatpush1.msra.mxu0 0.0
      %1091 = vmatprep.subr.mxu0 0.0
      %1092 = vmatpush1.msra.mxu0 %v1058
      %1093 = vmatprep.subr.mxu0 0.0
      %1094 = vmatpush1.msra.mxu0 %v1057
      %1095 = vmatprep.subr.mxu0 0.0
      %1096 = vmatpush1.msra.mxu0 %v1056
      %1097 = vmatprep.subr.mxu0 0.0
      %1098 = vmatpush1.msra.mxu0 %v1055
      %1099 = vmatprep.subr.mxu0 0.0
      %1100 = vmatpush2.msra.mxu0 0.0
      %1101 = vmatprep.subr.mxu0 0.0
      %1102 = vmatpush2.msra.mxu0 0.0
      %1103 = vmatprep.subr.mxu0 0.0
      %1104 = vmatpush2.msra.mxu0 0.0
      %1105 = vmatprep.subr.mxu0 0.0
      %1106 = vmatpush2.msra.mxu0 0.0
      %1107 = vmatprep.subr.mxu0 0.0
      %1108 = vmatpush2.msra.mxu0 0.0
      %1109 = vmatprep.subr.mxu0 0.0
      %1110 = vmatpush2.msra.mxu0 0.0
      %1111 = vmatprep.subr.mxu0 0.0
      %1112 = vmatpush2.msra.mxu0 0.0
      %1113 = vmatprep.subr.mxu0 0.0
      %1114 = vmatpush2.msra.mxu0 0.0
      %1115 = vmatprep.subr.mxu0 0.0
      %1116 = vmatpush2.msra.mxu0 0.0
      %1117 = vmatprep.subr.mxu0 0.0
      %1118 = vmatpush2.msra.mxu0 0.0
      %1119 = vmatprep.subr.mxu0 0.0
      %1120 = vmatpush2.msra.mxu0 0.0
      %1121 = vmatprep.subr.mxu0 0.0
      %1122 = vmatpush2.msra.mxu0 0.0
      %1123 = vmatprep.subr.mxu0 0.0
      %1124 = vmatpush2.msra.mxu0 0.0
      %1125 = vmatprep.subr.mxu0 0.0
      %1126 = vmatpush2.msra.mxu0 0.0
      %1127 = vmatprep.subr.mxu0 0.0
      %1128 = vmatpush2.msra.mxu0 0.0
      %1129 = vmatprep.subr.mxu0 0.0
      %1130 = vmatpush2.msra.mxu0 0.0
      %1131 = vmatprep.mubr.f32.mxu0 0.0
      %1132 = vmatmul.mubr.f32.gmra.mxu0 %v573
      %v1133 = vpop.f32.mrf.mxu0
      %v1134 = vadd.f32 %v1065, %v1133
      %v1135 = vpop.f32.mrf.mxu0
      %1136 = vdwg.mxu0
      %v1138 = vsel %vm726, %v968, 0
      %v1141 = vsel %vm726, %v1051, 0
      %1143 = vmatprep.subr.mxu0 0.0
      %1144 = vmatpush1.xpose.msra.mxu0 0.0
      %1145 = vmatprep.subr.mxu0 0.0
      %1146 = vmatpush1.xpose.msra.mxu0 0.0
      %1147 = vmatprep.subr.mxu0 0.0
      %1148 = vmatpush1.xpose.msra.mxu0 0.0
      %1149 = vmatprep.subr.mxu0 0.0
      %1150 = vmatpush1.xpose.msra.mxu0 0.0
      %1151 = vmatprep.subr.mxu0 0.0
      %1152 = vmatpush1.xpose.msra.mxu0 0.0
      %1153 = vmatprep.subr.mxu0 0.0
      %1154 = vmatpush1.xpose.msra.mxu0 0.0
      %1155 = vmatprep.subr.mxu0 0.0
      %1156 = vmatpush1.xpose.msra.mxu0 0.0
      %1157 = vmatprep.subr.mxu0 0.0
      %1158 = vmatpush1.xpose.msra.mxu0 0.0
      %1159 = vmatprep.subr.mxu0 0.0
      %1160 = vmatpush1.xpose.msra.mxu0 0.0
      %1161 = vmatprep.subr.mxu0 0.0
      %1162 = vmatpush1.xpose.msra.mxu0 0.0
      %1163 = vmatprep.subr.mxu0 0.0
      %1164 = vmatpush1.xpose.msra.mxu0 0.0
      %1165 = vmatprep.subr.mxu0 0.0
      %1166 = vmatpush1.xpose.msra.mxu0 0.0
      %1167 = vmatprep.subr.mxu0 0.0
      %1168 = vmatpush1.xpose.msra.mxu0 0.0
      %1169 = vmatprep.subr.mxu0 0.0
      %1170 = vmatpush1.xpose.msra.mxu0 0.0
      %1171 = vmatprep.subr.mxu0 0.0
      %1172 = vmatpush1.xpose.msra.mxu0 0.0
      %1173 = vmatprep.subr.mxu0 0.0
      %1174 = vmatpush1.xpose.msra.mxu0 %v1141
      %1175 = vmatprep.subr.mxu0 0.0
      %1176 = vmatpush2.xpose.msra.mxu0 0.0
      %1177 = vmatprep.subr.mxu0 0.0
      %1178 = vmatpush2.xpose.msra.mxu0 0.0
      %1179 = vmatprep.subr.mxu0 0.0
      %1180 = vmatpush2.xpose.msra.mxu0 0.0
      %1181 = vmatprep.subr.mxu0 0.0
      %1182 = vmatpush2.xpose.msra.mxu0 0.0
      %1183 = vmatprep.subr.mxu0 0.0
      %1184 = vmatpush2.xpose.msra.mxu0 0.0
      %1185 = vmatprep.subr.mxu0 0.0
      %1186 = vmatpush2.xpose.msra.mxu0 0.0
      %1187 = vmatprep.subr.mxu0 0.0
      %1188 = vmatpush2.xpose.msra.mxu0 0.0
      %1189 = vmatprep.subr.mxu0 0.0
      %1190 = vmatpush2.xpose.msra.mxu0 0.0
      %1191 = vmatprep.subr.mxu0 0.0
      %1192 = vmatpush2.xpose.msra.mxu0 0.0
      %1193 = vmatprep.subr.mxu0 0.0
      %1194 = vmatpush2.xpose.msra.mxu0 0.0
      %1195 = vmatprep.subr.mxu0 0.0
      %1196 = vmatpush2.xpose.msra.mxu0 0.0
      %1197 = vmatprep.subr.mxu0 0.0
      %1198 = vmatpush2.xpose.msra.mxu0 0.0
      %1199 = vmatprep.subr.mxu0 0.0
      %1200 = vmatpush2.xpose.msra.mxu0 0.0
      %1201 = vmatprep.subr.mxu0 0.0
      %1202 = vmatpush2.xpose.msra.mxu0 0.0
      %1203 = vmatprep.subr.mxu0 0.0
      %1204 = vmatpush2.xpose.msra.mxu0 0.0
      %1205 = vmatprep.subr.mxu0 0.0
      %1206 = vmatpush2.xpose.msra.mxu0 0.0
      %1207 = vmatprep.mubr.f32.mxu0 0.0
      %1208 = vmatmul.mubr.f32.gmra.mxu0 %v1138
      %v1209 = vpop.f32.mrf.mxu0
      %v1210 = vadd.f32 %v474, %v1209
      %v1211 = vpop.f32.mrf.mxu0
      %1212 = vdwg.mxu0
      %v1213 = vsel %vm726, %v1210, -inf
      %1214 = vmax.xlane.f32.xlu0 %v1213
      %v1215 = vpop.xlane.xlu0 %1214
      %v1216 = vsub.f32 %v1210, %v1215
      %v1217 = vmul.f32 %v1216, 1.442695
      %v1218 = vpow.pop %v1217
      %v1219 = vsel %vm726, %v1218, 0.0
      %1220 = vadd.xlane.f32.xlu0 %v1219
      %v1221 = vpop.xlane.xlu0 %1220
      %v1222 = vrcp.pop %v1221
      %v1223 = vmul.f32 %v1218, %v1222
      %v1225 = vsel %vm726, %v1223, 0
      %1227 = vmatprep.subr.mxu0 0.0
      %1228 = vmatpush1.msra.mxu0 0.0
      %1229 = vmatprep.subr.mxu0 0.0
      %1230 = vmatpush1.msra.mxu0 0.0
      %1231 = vmatprep.subr.mxu0 0.0
      %1232 = vmatpush1.msra.mxu0 0.0
      %1233 = vmatprep.subr.mxu0 0.0
      %1234 = vmatpush1.msra.mxu0 0.0
      %1235 = vmatprep.subr.mxu0 0.0
      %1236 = vmatpush1.msra.mxu0 0.0
      %1237 = vmatprep.subr.mxu0 0.0
      %1238 = vmatpush1.msra.mxu0 0.0
      %1239 = vmatprep.subr.mxu0 0.0
      %1240 = vmatpush1.msra.mxu0 0.0
      %1241 = vmatprep.subr.mxu0 0.0
      %1242 = vmatpush1.msra.mxu0 0.0
      %1243 = vmatprep.subr.mxu0 0.0
      %1244 = vmatpush1.msra.mxu0 0.0
      %1245 = vmatprep.subr.mxu0 0.0
      %1246 = vmatpush1.msra.mxu0 0.0
      %1247 = vmatprep.subr.mxu0 0.0
      %1248 = vmatpush1.msra.mxu0 0.0
      %1249 = vmatprep.subr.mxu0 0.0
      %1250 = vmatpush1.msra.mxu0 0.0
      %1251 = vmatprep.subr.mxu0 0.0
      %1252 = vmatpush1.msra.mxu0 0.0
      %1253 = vmatprep.subr.mxu0 0.0
      %1254 = vmatpush1.msra.mxu0 0.0
      %1255 = vmatprep.subr.mxu0 0.0
      %1256 = vmatpush1.msra.mxu0 0.0
      %1257 = vmatprep.subr.mxu0 0.0
      %1258 = vmatpush1.msra.mxu0 %v1134
      %1259 = vmatprep.subr.mxu0 0.0
      %1260 = vmatpush2.msra.mxu0 0.0
      %1261 = vmatprep.subr.mxu0 0.0
      %1262 = vmatpush2.msra.mxu0 0.0
      %1263 = vmatprep.subr.mxu0 0.0
      %1264 = vmatpush2.msra.mxu0 0.0
      %1265 = vmatprep.subr.mxu0 0.0
      %1266 = vmatpush2.msra.mxu0 0.0
      %1267 = vmatprep.subr.mxu0 0.0
      %1268 = vmatpush2.msra.mxu0 0.0
      %1269 = vmatprep.subr.mxu0 0.0
      %1270 = vmatpush2.msra.mxu0 0.0
      %1271 = vmatprep.subr.mxu0 0.0
      %1272 = vmatpush2.msra.mxu0 0.0
      %1273 = vmatprep.subr.mxu0 0.0
      %1274 = vmatpush2.msra.mxu0 0.0
      %1275 = vmatprep.subr.mxu0 0.0
      %1276 = vmatpush2.msra.mxu0 0.0
      %1277 = vmatprep.subr.mxu0 0.0
      %1278 = vmatpush2.msra.mxu0 0.0
      %1279 = vmatprep.subr.mxu0 0.0
      %1280 = vmatpush2.msra.mxu0 0.0
      %1281 = vmatprep.subr.mxu0 0.0
      %1282 = vmatpush2.msra.mxu0 0.0
      %1283 = vmatprep.subr.mxu0 0.0
      %1284 = vmatpush2.msra.mxu0 0.0
      %1285 = vmatprep.subr.mxu0 0.0
      %1286 = vmatpush2.msra.mxu0 0.0
      %1287 = vmatprep.subr.mxu0 0.0
      %1288 = vmatpush2.msra.mxu0 0.0
      %1289 = vmatprep.subr.mxu0 0.0
      %1290 = vmatpush2.msra.mxu0 0.0
      %1291 = vmatprep.mubr.f32.mxu0 0.0
      %1292 = vmatmul.mubr.f32.gmra.mxu0 %v1225
      %v1293 = vpop.f32.mrf.mxu0
      %v1294 = vadd.f32 0.0, %v1293
      %v1295 = vpop.f32.mrf.mxu0
      %1296 = vdwg.mxu0
      %s1297 = scalar_lea.vmem %s8, 8
      %v1298 = vld [vmem:[%s1297] sm:$0xff]
      %v1300 = vsel %vm726, %v1294, 0
      %1302 = vmatprep.subr.mxu0 0.0
      %1303 = vmatpush1.msra.mxu0 0.0
      %1304 = vmatprep.subr.mxu0 0.0
      %1305 = vmatpush1.msra.mxu0 0.0
      %1306 = vmatprep.subr.mxu0 0.0
      %1307 = vmatpush1.msra.mxu0 0.0
      %1308 = vmatprep.subr.mxu0 0.0
      %1309 = vmatpush1.msra.mxu0 0.0
      %1310 = vmatprep.subr.mxu0 0.0
      %1311 = vmatpush1.msra.mxu0 0.0
      %1312 = vmatprep.subr.mxu0 0.0
      %1313 = vmatpush1.msra.mxu0 0.0
      %1314 = vmatprep.subr.mxu0 0.0
      %1315 = vmatpush1.msra.mxu0 0.0
      %1316 = vmatprep.subr.mxu0 0.0
      %1317 = vmatpush1.msra.mxu0 0.0
      %1318 = vmatprep.subr.mxu0 0.0
      %1319 = vmatpush1.msra.mxu0 0.0
      %1320 = vmatprep.subr.mxu0 0.0
      %1321 = vmatpush1.msra.mxu0 0.0
      %1322 = vmatprep.subr.mxu0 0.0
      %1323 = vmatpush1.msra.mxu0 0.0
      %1324 = vmatprep.subr.mxu0 0.0
      %1325 = vmatpush1.msra.mxu0 0.0
      %1326 = vmatprep.subr.mxu0 0.0
      %1327 = vmatpush1.msra.mxu0 0.0
      %1328 = vmatprep.subr.mxu0 0.0
      %1329 = vmatpush1.msra.mxu0 0.0
      %1330 = vmatprep.subr.mxu0 0.0
      %1331 = vmatpush1.msra.mxu0 0.0
      %1332 = vmatprep.subr.mxu0 0.0
      %1333 = vmatpush1.msra.mxu0 %v1298
      %1334 = vmatprep.subr.mxu0 0.0
      %1335 = vmatpush2.msra.mxu0 0.0
      %1336 = vmatprep.subr.mxu0 0.0
      %1337 = vmatpush2.msra.mxu0 0.0
      %1338 = vmatprep.subr.mxu0 0.0
      %1339 = vmatpush2.msra.mxu0 0.0
      %1340 = vmatprep.subr.mxu0 0.0
      %1341 = vmatpush2.msra.mxu0 0.0
      %1342 = vmatprep.subr.mxu0 0.0
      %1343 = vmatpush2.msra.mxu0 0.0
      %1344 = vmatprep.subr.mxu0 0.0
      %1345 = vmatpush2.msra.mxu0 0.0
      %1346 = vmatprep.subr.mxu0 0.0
      %1347 = vmatpush2.msra.mxu0 0.0
      %1348 = vmatprep.subr.mxu0 0.0
      %1349 = vmatpush2.msra.mxu0 0.0
      %1350 = vmatprep.subr.mxu0 0.0
      %1351 = vmatpush2.msra.mxu0 0.0
      %1352 = vmatprep.subr.mxu0 0.0
      %1353 = vmatpush2.msra.mxu0 0.0
      %1354 = vmatprep.subr.mxu0 0.0
      %1355 = vmatpush2.msra.mxu0 0.0
      %1356 = vmatprep.subr.mxu0 0.0
      %1357 = vmatpush2.msra.mxu0 0.0
      %1358 = vmatprep.subr.mxu0 0.0
      %1359 = vmatpush2.msra.mxu0 0.0
      %1360 = vmatprep.subr.mxu0 0.0
      %1361 = vmatpush2.msra.mxu0 0.0
      %1362 = vmatprep.subr.mxu0 0.0
      %1363 = vmatpush2.msra.mxu0 0.0
      %1364 = vmatprep.subr.mxu0 0.0
      %1365 = vmatpush2.msra.mxu0 0.0
      %1366 = vmatprep.mubr.f32.mxu0 0.0
      %1367 = vmatmul.mubr.f32.gmra.mxu0 %v1300
      %v1368 = vpop.f32.mrf.mxu0
      %v1369 = vadd.f32 0.0, %v1368
      %v1370 = vpop.f32.mrf.mxu0
      %1371 = vdwg.mxu0
      %v1373 = vsel %vm726, %v884, 0
      %1375 = vmatprep.subr.mxu0 0.0
      %1376 = vmatpush1.msra.mxu0 0.0
      %1377 = vmatprep.subr.mxu0 0.0
      %1378 = vmatpush1.msra.mxu0 0.0
      %1379 = vmatprep.subr.mxu0 0.0
      %1380 = vmatpush1.msra.mxu0 0.0
      %1381 = vmatprep.subr.mxu0 0.0
      %1382 = vmatpush1.msra.mxu0 0.0
      %1383 = vmatprep.subr.mxu0 0.0
      %1384 = vmatpush1.msra.mxu0 0.0
      %1385 = vmatprep.subr.mxu0 0.0
      %1386 = vmatpush1.msra.mxu0 0.0
      %1387 = vmatprep.subr.mxu0 0.0
      %1388 = vmatpush1.msra.mxu0 0.0
      %1389 = vmatprep.subr.mxu0 0.0
      %1390 = vmatpush1.msra.mxu0 0.0
      %1391 = vmatprep.subr.mxu0 0.0
      %1392 = vmatpush1.msra.mxu0 0.0
      %1393 = vmatprep.subr.mxu0 0.0
      %1394 = vmatpush1.msra.mxu0 0.0
      %1395 = vmatprep.subr.mxu0 0.0
      %1396 = vmatpush1.msra.mxu0 0.0
      %1397 = vmatprep.subr.mxu0 0.0
      %1398 = vmatpush1.msra.mxu0 0.0
      %1399 = vmatprep.subr.mxu0 0.0
      %1400 = vmatpush1.msra.mxu0 0.0
      %1401 = vmatprep.subr.mxu0 0.0
      %1402 = vmatpush1.msra.mxu0 0.0
      %1403 = vmatprep.subr.mxu0 0.0
      %1404 = vmatpush1.msra.mxu0 0.0
      %1405 = vmatprep.subr.mxu0 0.0
      %1406 = vmatpush1.msra.mxu0 %v887
      %1407 = vmatprep.subr.mxu0 0.0
      %1408 = vmatpush2.msra.mxu0 0.0
      %1409 = vmatprep.subr.mxu0 0.0
      %1410 = vmatpush2.msra.mxu0 0.0
      %1411 = vmatprep.subr.mxu0 0.0
      %1412 = vmatpush2.msra.mxu0 0.0
      %1413 = vmatprep.subr.mxu0 0.0
      %1414 = vmatpush2.msra.mxu0 0.0
      %1415 = vmatprep.subr.mxu0 0.0
      %1416 = vmatpush2.msra.mxu0 0.0
      %1417 = vmatprep.subr.mxu0 0.0
      %1418 = vmatpush2.msra.mxu0 0.0
      %1419 = vmatprep.subr.mxu0 0.0
      %1420 = vmatpush2.msra.mxu0 0.0
      %1421 = vmatprep.subr.mxu0 0.0
      %1422 = vmatpush2.msra.mxu0 0.0
      %1423 = vmatprep.subr.mxu0 0.0
      %1424 = vmatpush2.msra.mxu0 0.0
      %1425 = vmatprep.subr.mxu0 0.0
      %1426 = vmatpush2.msra.mxu0 0.0
      %1427 = vmatprep.subr.mxu0 0.0
      %1428 = vmatpush2.msra.mxu0 0.0
      %1429 = vmatprep.subr.mxu0 0.0
      %1430 = vmatpush2.msra.mxu0 0.0
      %1431 = vmatprep.subr.mxu0 0.0
      %1432 = vmatpush2.msra.mxu0 0.0
      %1433 = vmatprep.subr.mxu0 0.0
      %1434 = vmatpush2.msra.mxu0 0.0
      %1435 = vmatprep.subr.mxu0 0.0
      %1436 = vmatpush2.msra.mxu0 0.0
      %1437 = vmatprep.subr.mxu0 0.0
      %1438 = vmatpush2.msra.mxu0 0.0
      %1439 = vmatprep.mubr.f32.mxu0 0.0
      %1440 = vmatmul.mubr.f32.gmra.mxu0 %v1373
      %v1441 = vpop.f32.mrf.mxu0
      %v1442 = vadd.f32 %v1369, %v1441
      %v1443 = vpop.f32.mrf.mxu0
      %1444 = vdwg.mxu0
      %s1445 = scalar_lea.vmem %s2, 64
      %v1446 = vld [vmem:[%s1445] sm:$0xff]
      %v1447 = vld [vmem:[%s1445 + $0x8] sm:$0xff]
      %v1448 = vld [vmem:[%s1445 + $0x10] sm:$0xff]
      %v1449 = vld [vmem:[%s1445 + $0x18] sm:$0xff]
      %s1450 = scalar_lea.vmem %s3, 2
      %v1451 = vld [vmem:[%s1450] sm:$0x1]
      %v1453 = vlaneseq
      %v1454 = vshrl.u32 %v1453, 7
      %v1455 = vsub.s32 0, %v1454
      %v1456 = vrot.slane %v1451, %v1455
      %1458 = vmatprep.subr.mxu0 0.0
      %1459 = vmatpush1.msra.mxu0 0.0
      %1460 = vmatprep.subr.mxu0 0.0
      %1461 = vmatpush1.msra.mxu0 0.0
      %1462 = vmatprep.subr.mxu0 0.0
      %1463 = vmatpush1.msra.mxu0 0.0
      %1464 = vmatprep.subr.mxu0 0.0
      %1465 = vmatpush1.msra.mxu0 0.0
      %1466 = vmatprep.subr.mxu0 0.0
      %1467 = vmatpush1.msra.mxu0 0.0
      %1468 = vmatprep.subr.mxu0 0.0
      %1469 = vmatpush1.msra.mxu0 0.0
      %1470 = vmatprep.subr.mxu0 0.0
      %1471 = vmatpush1.msra.mxu0 0.0
      %1472 = vmatprep.subr.mxu0 0.0
      %1473 = vmatpush1.msra.mxu0 0.0
      %1474 = vmatprep.subr.mxu0 0.0
      %1475 = vmatpush1.msra.mxu0 0.0
      %1476 = vmatprep.subr.mxu0 0.0
      %1477 = vmatpush1.msra.mxu0 0.0
      %1478 = vmatprep.subr.mxu0 0.0
      %1479 = vmatpush1.msra.mxu0 0.0
      %1480 = vmatprep.subr.mxu0 0.0
      %1481 = vmatpush1.msra.mxu0 0.0
      %1482 = vmatprep.subr.mxu0 0.0
      %1483 = vmatpush1.msra.mxu0 %v1449
      %1484 = vmatprep.subr.mxu0 0.0
      %1485 = vmatpush1.msra.mxu0 %v1448
      %1486 = vmatprep.subr.mxu0 0.0
      %1487 = vmatpush1.msra.mxu0 %v1447
      %1488 = vmatprep.subr.mxu0 0.0
      %1489 = vmatpush1.msra.mxu0 %v1446
      %1490 = vmatprep.subr.mxu0 0.0
      %1491 = vmatpush2.msra.mxu0 0.0
      %1492 = vmatprep.subr.mxu0 0.0
      %1493 = vmatpush2.msra.mxu0 0.0
      %1494 = vmatprep.subr.mxu0 0.0
      %1495 = vmatpush2.msra.mxu0 0.0
      %1496 = vmatprep.subr.mxu0 0.0
      %1497 = vmatpush2.msra.mxu0 0.0
      %1498 = vmatprep.subr.mxu0 0.0
      %1499 = vmatpush2.msra.mxu0 0.0
      %1500 = vmatprep.subr.mxu0 0.0
      %1501 = vmatpush2.msra.mxu0 0.0
      %1502 = vmatprep.subr.mxu0 0.0
      %1503 = vmatpush2.msra.mxu0 0.0
      %1504 = vmatprep.subr.mxu0 0.0
      %1505 = vmatpush2.msra.mxu0 0.0
      %1506 = vmatprep.subr.mxu0 0.0
      %1507 = vmatpush2.msra.mxu0 0.0
      %1508 = vmatprep.subr.mxu0 0.0
      %1509 = vmatpush2.msra.mxu0 0.0
      %1510 = vmatprep.subr.mxu0 0.0
      %1511 = vmatpush2.msra.mxu0 0.0
      %1512 = vmatprep.subr.mxu0 0.0
      %1513 = vmatpush2.msra.mxu0 0.0
      %1514 = vmatprep.subr.mxu0 0.0
      %1515 = vmatpush2.msra.mxu0 0.0
      %1516 = vmatprep.subr.mxu0 0.0
      %1517 = vmatpush2.msra.mxu0 0.0
      %1518 = vmatprep.subr.mxu0 0.0
      %1519 = vmatpush2.msra.mxu0 0.0
      %1520 = vmatprep.subr.mxu0 0.0
      %1521 = vmatpush2.msra.mxu0 0.0
      %1522 = vmatprep.mubr.f32.mxu0 0.0
      %1523 = vmatmul.mubr.f32.gmra.mxu0 %v489
      %v1524 = vpop.f32.mrf.mxu0
      %v1525 = vadd.f32 %v1456, %v1524
      %v1526 = vpop.f32.mrf.mxu0
      %1527 = vdwg.mxu0
      %s1528 = scalar_lea.vmem %s4, 64
      %v1529 = vld [vmem:[%s1528] sm:$0xff]
      %v1530 = vld [vmem:[%s1528 + $0x8] sm:$0xff]
      %v1531 = vld [vmem:[%s1528 + $0x10] sm:$0xff]
      %v1532 = vld [vmem:[%s1528 + $0x18] sm:$0xff]
      %s1533 = scalar_lea.vmem %s5, 2
      %v1534 = vld [vmem:[%s1533] sm:$0x1]
      %v1536 = vlaneseq
      %v1537 = vshrl.u32 %v1536, 7
      %v1538 = vsub.s32 0, %v1537
      %v1539 = vrot.slane %v1534, %v1538
      %1541 = vmatprep.subr.mxu0 0.0
      %1542 = vmatpush1.msra.mxu0 0.0
      %1543 = vmatprep.subr.mxu0 0.0
      %1544 = vmatpush1.msra.mxu0 0.0
      %1545 = vmatprep.subr.mxu0 0.0
      %1546 = vmatpush1.msra.mxu0 0.0
      %1547 = vmatprep.subr.mxu0 0.0
      %1548 = vmatpush1.msra.mxu0 0.0
      %1549 = vmatprep.subr.mxu0 0.0
      %1550 = vmatpush1.msra.mxu0 0.0
      %1551 = vmatprep.subr.mxu0 0.0
      %1552 = vmatpush1.msra.mxu0 0.0
      %1553 = vmatprep.subr.mxu0 0.0
      %1554 = vmatpush1.msra.mxu0 0.0
      %1555 = vmatprep.subr.mxu0 0.0
      %1556 = vmatpush1.msra.mxu0 0.0
      %1557 = vmatprep.subr.mxu0 0.0
      %1558 = vmatpush1.msra.mxu0 0.0
      %1559 = vmatprep.subr.mxu0 0.0
      %1560 = vmatpush1.msra.mxu0 0.0
      %1561 = vmatprep.subr.mxu0 0.0
      %1562 = vmatpush1.msra.mxu0 0.0
      %1563 = vmatprep.subr.mxu0 0.0
      %1564 = vmatpush1.msra.mxu0 0.0
      %1565 = vmatprep.subr.mxu0 0.0
      %1566 = vmatpush1.msra.mxu0 %v1532
      %1567 = vmatprep.subr.mxu0 0.0
      %1568 = vmatpush1.msra.mxu0 %v1531
      %1569 = vmatprep.subr.mxu0 0.0
      %1570 = vmatpush1.msra.mxu0 %v1530
      %1571 = vmatprep.subr.mxu0 0.0
      %1572 = vmatpush1.msra.mxu0 %v1529
      %1573 = vmatprep.subr.mxu0 0.0
      %1574 = vmatpush2.msra.mxu0 0.0
      %1575 = vmatprep.subr.mxu0 0.0
      %1576 = vmatpush2.msra.mxu0 0.0
      %1577 = vmatprep.subr.mxu0 0.0
      %1578 = vmatpush2.msra.mxu0 0.0
      %1579 = vmatprep.subr.mxu0 0.0
      %1580 = vmatpush2.msra.mxu0 0.0
      %1581 = vmatprep.subr.mxu0 0.0
      %1582 = vmatpush2.msra.mxu0 0.0
      %1583 = vmatprep.subr.mxu0 0.0
      %1584 = vmatpush2.msra.mxu0 0.0
      %1585 = vmatprep.subr.mxu0 0.0
      %1586 = vmatpush2.msra.mxu0 0.0
      %1587 = vmatprep.subr.mxu0 0.0
      %1588 = vmatpush2.msra.mxu0 0.0
      %1589 = vmatprep.subr.mxu0 0.0
      %1590 = vmatpush2.msra.mxu0 0.0
      %1591 = vmatprep.subr.mxu0 0.0
      %1592 = vmatpush2.msra.mxu0 0.0
      %1593 = vmatprep.subr.mxu0 0.0
      %1594 = vmatpush2.msra.mxu0 0.0
      %1595 = vmatprep.subr.mxu0 0.0
      %1596 = vmatpush2.msra.mxu0 0.0
      %1597 = vmatprep.subr.mxu0 0.0
      %1598 = vmatpush2.msra.mxu0 0.0
      %1599 = vmatprep.subr.mxu0 0.0
      %1600 = vmatpush2.msra.mxu0 0.0
      %1601 = vmatprep.subr.mxu0 0.0
      %1602 = vmatpush2.msra.mxu0 0.0
      %1603 = vmatprep.subr.mxu0 0.0
      %1604 = vmatpush2.msra.mxu0 0.0
      %1605 = vmatprep.mubr.f32.mxu0 0.0
      %1606 = vmatmul.mubr.f32.gmra.mxu0 %v573
      %v1607 = vpop.f32.mrf.mxu0
      %v1608 = vadd.f32 %v1539, %v1607
      %v1609 = vpop.f32.mrf.mxu0
      %1610 = vdwg.mxu0
      %s1611 = scalar_lea.vmem %s6, 64
      %v1612 = vld [vmem:[%s1611] sm:$0xff]
      %v1613 = vld [vmem:[%s1611 + $0x8] sm:$0xff]
      %v1614 = vld [vmem:[%s1611 + $0x10] sm:$0xff]
      %v1615 = vld [vmem:[%s1611 + $0x18] sm:$0xff]
      %s1616 = scalar_lea.vmem %s7, 2
      %v1617 = vld [vmem:[%s1616] sm:$0x1]
      %v1619 = vlaneseq
      %v1620 = vshrl.u32 %v1619, 7
      %v1621 = vsub.s32 0, %v1620
      %v1622 = vrot.slane %v1617, %v1621
      %1624 = vmatprep.subr.mxu0 0.0
      %1625 = vmatpush1.msra.mxu0 0.0
      %1626 = vmatprep.subr.mxu0 0.0
      %1627 = vmatpush1.msra.mxu0 0.0
      %1628 = vmatprep.subr.mxu0 0.0
      %1629 = vmatpush1.msra.mxu0 0.0
      %1630 = vmatprep.subr.mxu0 0.0
      %1631 = vmatpush1.msra.mxu0 0.0
      %1632 = vmatprep.subr.mxu0 0.0
      %1633 = vmatpush1.msra.mxu0 0.0
      %1634 = vmatprep.subr.mxu0 0.0
      %1635 = vmatpush1.msra.mxu0 0.0
      %1636 = vmatprep.subr.mxu0 0.0
      %1637 = vmatpush1.msra.mxu0 0.0
      %1638 = vmatprep.subr.mxu0 0.0
      %1639 = vmatpush1.msra.mxu0 0.0
      %1640 = vmatprep.subr.mxu0 0.0
      %1641 = vmatpush1.msra.mxu0 0.0
      %1642 = vmatprep.subr.mxu0 0.0
      %1643 = vmatpush1.msra.mxu0 0.0
      %1644 = vmatprep.subr.mxu0 0.0
      %1645 = vmatpush1.msra.mxu0 0.0
      %1646 = vmatprep.subr.mxu0 0.0
      %1647 = vmatpush1.msra.mxu0 0.0
      %1648 = vmatprep.subr.mxu0 0.0
      %1649 = vmatpush1.msra.mxu0 %v1615
      %1650 = vmatprep.subr.mxu0 0.0
      %1651 = vmatpush1.msra.mxu0 %v1614
      %1652 = vmatprep.subr.mxu0 0.0
      %1653 = vmatpush1.msra.mxu0 %v1613
      %1654 = vmatprep.subr.mxu0 0.0
      %1655 = vmatpush1.msra.mxu0 %v1612
      %1656 = vmatprep.subr.mxu0 0.0
      %1657 = vmatpush2.msra.mxu0 0.0
      %1658 = vmatprep.subr.mxu0 0.0
      %1659 = vmatpush2.msra.mxu0 0.0
      %1660 = vmatprep.subr.mxu0 0.0
      %1661 = vmatpush2.msra.mxu0 0.0
      %1662 = vmatprep.subr.mxu0 0.0
      %1663 = vmatpush2.msra.mxu0 0.0
      %1664 = vmatprep.subr.mxu0 0.0
      %1665 = vmatpush2.msra.mxu0 0.0
      %1666 = vmatprep.subr.mxu0 0.0
      %1667 = vmatpush2.msra.mxu0 0.0
      %1668 = vmatprep.subr.mxu0 0.0
      %1669 = vmatpush2.msra.mxu0 0.0
      %1670 = vmatprep.subr.mxu0 0.0
      %1671 = vmatpush2.msra.mxu0 0.0
      %1672 = vmatprep.subr.mxu0 0.0
      %1673 = vmatpush2.msra.mxu0 0.0
      %1674 = vmatprep.subr.mxu0 0.0
      %1675 = vmatpush2.msra.mxu0 0.0
      %1676 = vmatprep.subr.mxu0 0.0
      %1677 = vmatpush2.msra.mxu0 0.0
      %1678 = vmatprep.subr.mxu0 0.0
      %1679 = vmatpush2.msra.mxu0 0.0
      %1680 = vmatprep.subr.mxu0 0.0
      %1681 = vmatpush2.msra.mxu0 0.0
      %1682 = vmatprep.subr.mxu0 0.0
      %1683 = vmatpush2.msra.mxu0 0.0
      %1684 = vmatprep.subr.mxu0 0.0
      %1685 = vmatpush2.msra.mxu0 0.0
      %1686 = vmatprep.subr.mxu0 0.0
      %1687 = vmatpush2.msra.mxu0 0.0
      %1688 = vmatprep.mubr.f32.mxu0 0.0
      %1689 = vmatmul.mubr.f32.gmra.mxu0 %v573
      %v1690 = vpop.f32.mrf.mxu0
      %v1691 = vadd.f32 %v1622, %v1690
      %v1692 = vpop.f32.mrf.mxu0
      %1693 = vdwg.mxu0
      %v1695 = vsel %vm726, %v1525, 0
      %v1698 = vsel %vm726, %v1608, 0
      %1700 = vmatprep.subr.mxu0 0.0
      %1701 = vmatpush1.xpose.msra.mxu0 0.0
      %1702 = vmatprep.subr.mxu0 0.0
      %1703 = vmatpush1.xpose.msra.mxu0 0.0
      %1704 = vmatprep.subr.mxu0 0.0
      %1705 = vmatpush1.xpose.msra.mxu0 0.0
      %1706 = vmatprep.subr.mxu0 0.0
      %1707 = vmatpush1.xpose.msra.mxu0 0.0
      %1708 = vmatprep.subr.mxu0 0.0
      %1709 = vmatpush1.xpose.msra.mxu0 0.0
      %1710 = vmatprep.subr.mxu0 0.0
      %1711 = vmatpush1.xpose.msra.mxu0 0.0
      %1712 = vmatprep.subr.mxu0 0.0
      %1713 = vmatpush1.xpose.msra.mxu0 0.0
      %1714 = vmatprep.subr.mxu0 0.0
      %1715 = vmatpush1.xpose.msra.mxu0 0.0
      %1716 = vmatprep.subr.mxu0 0.0
      %1717 = vmatpush1.xpose.msra.mxu0 0.0
      %1718 = vmatprep.subr.mxu0 0.0
      %1719 = vmatpush1.xpose.msra.mxu0 0.0
      %1720 = vmatprep.subr.mxu0 0.0
      %1721 = vmatpush1.xpose.msra.mxu0 0.0
      %1722 = vmatprep.subr.mxu0 0.0
      %1723 = vmatpush1.xpose.msra.mxu0 0.0
      %1724 = vmatprep.subr.mxu0 0.0
      %1725 = vmatpush1.xpose.msra.mxu0 0.0
      %1726 = vmatprep.subr.mxu0 0.0
      %1727 = vmatpush1.xpose.msra.mxu0 0.0
      %1728 = vmatprep.subr.mxu0 0.0
      %1729 = vmatpush1.xpose.msra.mxu0 0.0
      %1730 = vmatprep.subr.mxu0 0.0
      %1731 = vmatpush1.xpose.msra.mxu0 %v1698
      %1732 = vmatprep.subr.mxu0 0.0
      %1733 = vmatpush2.xpose.msra.mxu0 0.0
      %1734 = vmatprep.subr.mxu0 0.0
      %1735 = vmatpush2.xpose.msra.mxu0 0.0
      %1736 = vmatprep.subr.mxu0 0.0
      %1737 = vmatpush2.xpose.msra.mxu0 0.0
      %1738 = vmatprep.subr.mxu0 0.0
      %1739 = vmatpush2.xpose.msra.mxu0 0.0
      %1740 = vmatprep.subr.mxu0 0.0
      %1741 = vmatpush2.xpose.msra.mxu0 0.0
      %1742 = vmatprep.subr.mxu0 0.0
      %1743 = vmatpush2.xpose.msra.mxu0 0.0
      %1744 = vmatprep.subr.mxu0 0.0
      %1745 = vmatpush2.xpose.msra.mxu0 0.0
      %1746 = vmatprep.subr.mxu0 0.0
      %1747 = vmatpush2.xpose.msra.mxu0 0.0
      %1748 = vmatprep.subr.mxu0 0.0
      %1749 = vmatpush2.xpose.msra.mxu0 0.0
      %1750 = vmatprep.subr.mxu0 0.0
      %1751 = vmatpush2.xpose.msra.mxu0 0.0
      %1752 = vmatprep.subr.mxu0 0.0
      %1753 = vmatpush2.xpose.msra.mxu0 0.0
      %1754 = vmatprep.subr.mxu0 0.0
      %1755 = vmatpush2.xpose.msra.mxu0 0.0
      %1756 = vmatprep.subr.mxu0 0.0
      %1757 = vmatpush2.xpose.msra.mxu0 0.0
      %1758 = vmatprep.subr.mxu0 0.0
      %1759 = vmatpush2.xpose.msra.mxu0 0.0
      %1760 = vmatprep.subr.mxu0 0.0
      %1761 = vmatpush2.xpose.msra.mxu0 0.0
      %1762 = vmatprep.subr.mxu0 0.0
      %1763 = vmatpush2.xpose.msra.mxu0 0.0
      %1764 = vmatprep.mubr.f32.mxu0 0.0
      %1765 = vmatmul.mubr.f32.gmra.mxu0 %v1695
      %v1766 = vpop.f32.mrf.mxu0
      %v1767 = vadd.f32 %v474, %v1766
      %v1768 = vpop.f32.mrf.mxu0
      %1769 = vdwg.mxu0
      %v1770 = vsel %vm726, %v1767, -inf
      %1771 = vmax.xlane.f32.xlu0 %v1770
      %v1772 = vpop.xlane.xlu0 %1771
      %v1773 = vsub.f32 %v1767, %v1772
      %v1774 = vmul.f32 %v1773, 1.442695
      %v1775 = vpow.pop %v1774
      %v1776 = vsel %vm726, %v1775, 0.0
      %1777 = vadd.xlane.f32.xlu0 %v1776
      %v1778 = vpop.xlane.xlu0 %1777
      %v1779 = vrcp.pop %v1778
      %v1780 = vmul.f32 %v1775, %v1779
      %v1782 = vsel %vm726, %v1780, 0
      %1784 = vmatprep.subr.mxu0 0.0
      %1785 = vmatpush1.msra.mxu0 0.0
      %1786 = vmatprep.subr.mxu0 0.0
      %1787 = vmatpush1.msra.mxu0 0.0
      %1788 = vmatprep.subr.mxu0 0.0
      %1789 = vmatpush1.msra.mxu0 0.0
      %1790 = vmatprep.subr.mxu0 0.0
      %1791 = vmatpush1.msra.mxu0 0.0
      %1792 = vmatprep.subr.mxu0 0.0
      %1793 = vmatpush1.msra.mxu0 0.0
      %1794 = vmatprep.subr.mxu0 0.0
      %1795 = vmatpush1.msra.mxu0 0.0
      %1796 = vmatprep.subr.mxu0 0.0
      %1797 = vmatpush1.msra.mxu0 0.0
      %1798 = vmatprep.subr.mxu0 0.0
      %1799 = vmatpush1.msra.mxu0 0.0
      %1800 = vmatprep.subr.mxu0 0.0
      %1801 = vmatpush1.msra.mxu0 0.0
      %1802 = vmatprep.subr.mxu0 0.0
      %1803 = vmatpush1.msra.mxu0 0.0
      %1804 = vmatprep.subr.mxu0 0.0
      %1805 = vmatpush1.msra.mxu0 0.0
      %1806 = vmatprep.subr.mxu0 0.0
      %1807 = vmatpush1.msra.mxu0 0.0
      %1808 = vmatprep.subr.mxu0 0.0
      %1809 = vmatpush1.msra.mxu0 0.0
      %1810 = vmatprep.subr.mxu0 0.0
      %1811 = vmatpush1.msra.mxu0 0.0
      %1812 = vmatprep.subr.mxu0 0.0
      %1813 = vmatpush1.msra.mxu0 0.0
      %1814 = vmatprep.subr.mxu0 0.0
      %1815 = vmatpush1.msra.mxu0 %v1691
      %1816 = vmatprep.subr.mxu0 0.0
      %1817 = vmatpush2.msra.mxu0 0.0
      %1818 = vmatprep.subr.mxu0 0.0
      %1819 = vmatpush2.msra.mxu0 0.0
      %1820 = vmatprep.subr.mxu0 0.0
      %1821 = vmatpush2.msra.mxu0 0.0
      %1822 = vmatprep.subr.mxu0 0.0
      %1823 = vmatpush2.msra.mxu0 0.0
      %1824 = vmatprep.subr.mxu0 0.0
      %1825 = vmatpush2.msra.mxu0 0.0
      %1826 = vmatprep.subr.mxu0 0.0
      %1827 = vmatpush2.msra.mxu0 0.0
      %1828 = vmatprep.subr.mxu0 0.0
      %1829 = vmatpush2.msra.mxu0 0.0
      %1830 = vmatprep.subr.mxu0 0.0
      %1831 = vmatpush2.msra.mxu0 0.0
      %1832 = vmatprep.subr.mxu0 0.0
      %1833 = vmatpush2.msra.mxu0 0.0
      %1834 = vmatprep.subr.mxu0 0.0
      %1835 = vmatpush2.msra.mxu0 0.0
      %1836 = vmatprep.subr.mxu0 0.0
      %1837 = vmatpush2.msra.mxu0 0.0
      %1838 = vmatprep.subr.mxu0 0.0
      %1839 = vmatpush2.msra.mxu0 0.0
      %1840 = vmatprep.subr.mxu0 0.0
      %1841 = vmatpush2.msra.mxu0 0.0
      %1842 = vmatprep.subr.mxu0 0.0
      %1843 = vmatpush2.msra.mxu0 0.0
      %1844 = vmatprep.subr.mxu0 0.0
      %1845 = vmatpush2.msra.mxu0 0.0
      %1846 = vmatprep.subr.mxu0 0.0
      %1847 = vmatpush2.msra.mxu0 0.0
      %1848 = vmatprep.mubr.f32.mxu0 0.0
      %1849 = vmatmul.mubr.f32.gmra.mxu0 %v1782
      %v1850 = vpop.f32.mrf.mxu0
      %v1851 = vadd.f32 0.0, %v1850
      %v1852 = vpop.f32.mrf.mxu0
      %1853 = vdwg.mxu0
      %s1854 = scalar_lea.vmem %s8, 16
      %v1855 = vld [vmem:[%s1854] sm:$0xff]
      %v1857 = vsel %vm726, %v1851, 0
      %1859 = vmatprep.subr.mxu0 0.0
      %1860 = vmatpush1.msra.mxu0 0.0
      %1861 = vmatprep.subr.mxu0 0.0
      %1862 = vmatpush1.msra.mxu0 0.0
      %1863 = vmatprep.subr.mxu0 0.0
      %1864 = vmatpush1.msra.mxu0 0.0
      %1865 = vmatprep.subr.mxu0 0.0
      %1866 = vmatpush1.msra.mxu0 0.0
      %1867 = vmatprep.subr.mxu0 0.0
      %1868 = vmatpush1.msra.mxu0 0.0
      %1869 = vmatprep.subr.mxu0 0.0
      %1870 = vmatpush1.msra.mxu0 0.0
      %1871 = vmatprep.subr.mxu0 0.0
      %1872 = vmatpush1.msra.mxu0 0.0
      %1873 = vmatprep.subr.mxu0 0.0
      %1874 = vmatpush1.msra.mxu0 0.0
      %1875 = vmatprep.subr.mxu0 0.0
      %1876 = vmatpush1.msra.mxu0 0.0
      %1877 = vmatprep.subr.mxu0 0.0
      %1878 = vmatpush1.msra.mxu0 0.0
      %1879 = vmatprep.subr.mxu0 0.0
      %1880 = vmatpush1.msra.mxu0 0.0
      %1881 = vmatprep.subr.mxu0 0.0
      %1882 = vmatpush1.msra.mxu0 0.0
      %1883 = vmatprep.subr.mxu0 0.0
      %1884 = vmatpush1.msra.mxu0 0.0
      %1885 = vmatprep.subr.mxu0 0.0
      %1886 = vmatpush1.msra.mxu0 0.0
      %1887 = vmatprep.subr.mxu0 0.0
      %1888 = vmatpush1.msra.mxu0 0.0
      %1889 = vmatprep.subr.mxu0 0.0
      %1890 = vmatpush1.msra.mxu0 %v1855
      %1891 = vmatprep.subr.mxu0 0.0
      %1892 = vmatpush2.msra.mxu0 0.0
      %1893 = vmatprep.subr.mxu0 0.0
      %1894 = vmatpush2.msra.mxu0 0.0
      %1895 = vmatprep.subr.mxu0 0.0
      %1896 = vmatpush2.msra.mxu0 0.0
      %1897 = vmatprep.subr.mxu0 0.0
      %1898 = vmatpush2.msra.mxu0 0.0
      %1899 = vmatprep.subr.mxu0 0.0
      %1900 = vmatpush2.msra.mxu0 0.0
      %1901 = vmatprep.subr.mxu0 0.0
      %1902 = vmatpush2.msra.mxu0 0.0
      %1903 = vmatprep.subr.mxu0 0.0
      %1904 = vmatpush2.msra.mxu0 0.0
      %1905 = vmatprep.subr.mxu0 0.0
      %1906 = vmatpush2.msra.mxu0 0.0
      %1907 = vmatprep.subr.mxu0 0.0
      %1908 = vmatpush2.msra.mxu0 0.0
      %1909 = vmatprep.subr.mxu0 0.0
      %1910 = vmatpush2.msra.mxu0 0.0
      %1911 = vmatprep.subr.mxu0 0.0
      %1912 = vmatpush2.msra.mxu0 0.0
      %1913 = vmatprep.subr.mxu0 0.0
      %1914 = vmatpush2.msra.mxu0 0.0
      %1915 = vmatprep.subr.mxu0 0.0
      %1916 = vmatpush2.msra.mxu0 0.0
      %1917 = vmatprep.subr.mxu0 0.0
      %1918 = vmatpush2.msra.mxu0 0.0
      %1919 = vmatprep.subr.mxu0 0.0
      %1920 = vmatpush2.msra.mxu0 0.0
      %1921 = vmatprep.subr.mxu0 0.0
      %1922 = vmatpush2.msra.mxu0 0.0
      %1923 = vmatprep.mubr.f32.mxu0 0.0
      %1924 = vmatmul.mubr.f32.gmra.mxu0 %v1857
      %v1925 = vpop.f32.mrf.mxu0
      %v1926 = vadd.f32 0.0, %v1925
      %v1927 = vpop.f32.mrf.mxu0
      %1928 = vdwg.mxu0
      %v1929 = vadd.f32 %v1442, %v1926
      %s1930 = scalar_lea.vmem %s2, 96
      %v1931 = vld [vmem:[%s1930] sm:$0xff]
      %v1932 = vld [vmem:[%s1930 + $0x8] sm:$0xff]
      %v1933 = vld [vmem:[%s1930 + $0x10] sm:$0xff]
      %v1934 = vld [vmem:[%s1930 + $0x18] sm:$0xff]
      %s1935 = scalar_lea.vmem %s3, 3
      %v1936 = vld [vmem:[%s1935] sm:$0x1]
      %v1938 = vlaneseq
      %v1939 = vshrl.u32 %v1938, 7
      %v1940 = vsub.s32 0, %v1939
      %v1941 = vrot.slane %v1936, %v1940
      %1943 = vmatprep.subr.mxu0 0.0
      %1944 = vmatpush1.msra.mxu0 0.0
      %1945 = vmatprep.subr.mxu0 0.0
      %1946 = vmatpush1.msra.mxu0 0.0
      %1947 = vmatprep.subr.mxu0 0.0
      %1948 = vmatpush1.msra.mxu0 0.0
      %1949 = vmatprep.subr.mxu0 0.0
      %1950 = vmatpush1.msra.mxu0 0.0
      %1951 = vmatprep.subr.mxu0 0.0
      %1952 = vmatpush1.msra.mxu0 0.0
      %1953 = vmatprep.subr.mxu0 0.0
      %1954 = vmatpush1.msra.mxu0 0.0
      %1955 = vmatprep.subr.mxu0 0.0
      %1956 = vmatpush1.msra.mxu0 0.0
      %1957 = vmatprep.subr.mxu0 0.0
      %1958 = vmatpush1.msra.mxu0 0.0
      %1959 = vmatprep.subr.mxu0 0.0
      %1960 = vmatpush1.msra.mxu0 0.0
      %1961 = vmatprep.subr.mxu0 0.0
      %1962 = vmatpush1.msra.mxu0 0.0
      %1963 = vmatprep.subr.mxu0 0.0
      %1964 = vmatpush1.msra.mxu0 0.0
      %1965 = vmatprep.subr.mxu0 0.0
      %1966 = vmatpush1.msra.mxu0 0.0
      %1967 = vmatprep.subr.mxu0 0.0
      %1968 = vmatpush1.msra.mxu0 %v1934
      %1969 = vmatprep.subr.mxu0 0.0
      %1970 = vmatpush1.msra.mxu0 %v1933
      %1971 = vmatprep.subr.mxu0 0.0
      %1972 = vmatpush1.msra.mxu0 %v1932
      %1973 = vmatprep.subr.mxu0 0.0
      %1974 = vmatpush1.msra.mxu0 %v1931
      %1975 = vmatprep.subr.mxu0 0.0
      %1976 = vmatpush2.msra.mxu0 0.0
      %1977 = vmatprep.subr.mxu0 0.0
      %1978 = vmatpush2.msra.mxu0 0.0
      %1979 = vmatprep.subr.mxu0 0.0
      %1980 = vmatpush2.msra.mxu0 0.0
      %1981 = vmatprep.subr.mxu0 0.0
      %1982 = vmatpush2.msra.mxu0 0.0
      %1983 = vmatprep.subr.mxu0 0.0
      %1984 = vmatpush2.msra.mxu0 0.0
      %1985 = vmatprep.subr.mxu0 0.0
      %1986 = vmatpush2.msra.mxu0 0.0
      %1987 = vmatprep.subr.mxu0 0.0
      %1988 = vmatpush2.msra.mxu0 0.0
      %1989 = vmatprep.subr.mxu0 0.0
      %1990 = vmatpush2.msra.mxu0 0.0
      %1991 = vmatprep.subr.mxu0 0.0
      %1992 = vmatpush2.msra.mxu0 0.0
      %1993 = vmatprep.subr.mxu0 0.0
      %1994 = vmatpush2.msra.mxu0 0.0
      %1995 = vmatprep.subr.mxu0 0.0
      %1996 = vmatpush2.msra.mxu0 0.0
      %1997 = vmatprep.subr.mxu0 0.0
      %1998 = vmatpush2.msra.mxu0 0.0
      %1999 = vmatprep.subr.mxu0 0.0
      %2000 = vmatpush2.msra.mxu0 0.0
      %2001 = vmatprep.subr.mxu0 0.0
      %2002 = vmatpush2.msra.mxu0 0.0
      %2003 = vmatprep.subr.mxu0 0.0
      %2004 = vmatpush2.msra.mxu0 0.0
      %2005 = vmatprep.subr.mxu0 0.0
      %2006 = vmatpush2.msra.mxu0 0.0
      %2007 = vmatprep.mubr.f32.mxu0 0.0
      %2008 = vmatmul.mubr.f32.gmra.mxu0 %v489
      %v2009 = vpop.f32.mrf.mxu0
      %v2010 = vadd.f32 %v1941, %v2009
      %v2011 = vpop.f32.mrf.mxu0
      %2012 = vdwg.mxu0
      %s2013 = scalar_lea.vmem %s4, 96
      %v2014 = vld [vmem:[%s2013] sm:$0xff]
      %v2015 = vld [vmem:[%s2013 + $0x8] sm:$0xff]
      %v2016 = vld [vmem:[%s2013 + $0x10] sm:$0xff]
      %v2017 = vld [vmem:[%s2013 + $0x18] sm:$0xff]
      %s2018 = scalar_lea.vmem %s5, 3
      %v2019 = vld [vmem:[%s2018] sm:$0x1]
      %v2021 = vlaneseq
      %v2022 = vshrl.u32 %v2021, 7
      %v2023 = vsub.s32 0, %v2022
      %v2024 = vrot.slane %v2019, %v2023
      %2026 = vmatprep.subr.mxu0 0.0
      %2027 = vmatpush1.msra.mxu0 0.0
      %2028 = vmatprep.subr.mxu0 0.0
      %2029 = vmatpush1.msra.mxu0 0.0
      %2030 = vmatprep.subr.mxu0 0.0
      %2031 = vmatpush1.msra.mxu0 0.0
      %2032 = vmatprep.subr.mxu0 0.0
      %2033 = vmatpush1.msra.mxu0 0.0
      %2034 = vmatprep.subr.mxu0 0.0
      %2035 = vmatpush1.msra.mxu0 0.0
      %2036 = vmatprep.subr.mxu0 0.0
      %2037 = vmatpush1.msra.mxu0 0.0
      %2038 = vmatprep.subr.mxu0 0.0
      %2039 = vmatpush1.msra.mxu0 0.0
      %2040 = vmatprep.subr.mxu0 0.0
      %2041 = vmatpush1.msra.mxu0 0.0
      %2042 = vmatprep.subr.mxu0 0.0
      %2043 = vmatpush1.msra.mxu0 0.0
      %2044 = vmatprep.subr.mxu0 0.0
      %2045 = vmatpush1.msra.mxu0 0.0
      %2046 = vmatprep.subr.mxu0 0.0
      %2047 = vmatpush1.msra.mxu0 0.0
      %2048 = vmatprep.subr.mxu0 0.0
      %2049 = vmatpush1.msra.mxu0 0.0
      %2050 = vmatprep.subr.mxu0 0.0
      %2051 = vmatpush1.msra.mxu0 %v2017
      %2052 = vmatprep.subr.mxu0 0.0
      %2053 = vmatpush1.msra.mxu0 %v2016
      %2054 = vmatprep.subr.mxu0 0.0
      %2055 = vmatpush1.msra.mxu0 %v2015
      %2056 = vmatprep.subr.mxu0 0.0
      %2057 = vmatpush1.msra.mxu0 %v2014
      %2058 = vmatprep.subr.mxu0 0.0
      %2059 = vmatpush2.msra.mxu0 0.0
      %2060 = vmatprep.subr.mxu0 0.0
      %2061 = vmatpush2.msra.mxu0 0.0
      %2062 = vmatprep.subr.mxu0 0.0
      %2063 = vmatpush2.msra.mxu0 0.0
      %2064 = vmatprep.subr.mxu0 0.0
      %2065 = vmatpush2.msra.mxu0 0.0
      %2066 = vmatprep.subr.mxu0 0.0
      %2067 = vmatpush2.msra.mxu0 0.0
      %2068 = vmatprep.subr.mxu0 0.0
      %2069 = vmatpush2.msra.mxu0 0.0
      %2070 = vmatprep.subr.mxu0 0.0
      %2071 = vmatpush2.msra.mxu0 0.0
      %2072 = vmatprep.subr.mxu0 0.0
      %2073 = vmatpush2.msra.mxu0 0.0
      %2074 = vmatprep.subr.mxu0 0.0
      %2075 = vmatpush2.msra.mxu0 0.0
      %2076 = vmatprep.subr.mxu0 0.0
      %2077 = vmatpush2.msra.mxu0 0.0
      %2078 = vmatprep.subr.mxu0 0.0
      %2079 = vmatpush2.msra.mxu0 0.0
      %2080 = vmatprep.subr.mxu0 0.0
      %2081 = vmatpush2.msra.mxu0 0.0
      %2082 = vmatprep.subr.mxu0 0.0
      %2083 = vmatpush2.msra.mxu0 0.0
      %2084 = vmatprep.subr.mxu0 0.0
      %2085 = vmatpush2.msra.mxu0 0.0
      %2086 = vmatprep.subr.mxu0 0.0
      %2087 = vmatpush2.msra.mxu0 0.0
      %2088 = vmatprep.subr.mxu0 0.0
      %2089 = vmatpush2.msra.mxu0 0.0
      %2090 = vmatprep.mubr.f32.mxu0 0.0
      %2091 = vmatmul.mubr.f32.gmra.mxu0 %v573
      %v2092 = vpop.f32.mrf.mxu0
      %v2093 = vadd.f32 %v2024, %v2092
      %v2094 = vpop.f32.mrf.mxu0
      %2095 = vdwg.mxu0
      %s2096 = scalar_lea.vmem %s6, 96
      %v2097 = vld [vmem:[%s2096] sm:$0xff]
      %v2098 = vld [vmem:[%s2096 + $0x8] sm:$0xff]
      %v2099 = vld [vmem:[%s2096 + $0x10] sm:$0xff]
      %v2100 = vld [vmem:[%s2096 + $0x18] sm:$0xff]
      %s2101 = scalar_lea.vmem %s7, 3
      %v2102 = vld [vmem:[%s2101] sm:$0x1]
      %v2104 = vlaneseq
      %v2105 = vshrl.u32 %v2104, 7
      %v2106 = vsub.s32 0, %v2105
      %v2107 = vrot.slane %v2102, %v2106
      %2109 = vmatprep.subr.mxu0 0.0
      %2110 = vmatpush1.msra.mxu0 0.0
      %2111 = vmatprep.subr.mxu0 0.0
      %2112 = vmatpush1.msra.mxu0 0.0
      %2113 = vmatprep.subr.mxu0 0.0
      %2114 = vmatpush1.msra.mxu0 0.0
      %2115 = vmatprep.subr.mxu0 0.0
      %2116 = vmatpush1.msra.mxu0 0.0
      %2117 = vmatprep.subr.mxu0 0.0
      %2118 = vmatpush1.msra.mxu0 0.0
      %2119 = vmatprep.subr.mxu0 0.0
      %2120 = vmatpush1.msra.mxu0 0.0
      %2121 = vmatprep.subr.mxu0 0.0
      %2122 = vmatpush1.msra.mxu0 0.0
      %2123 = vmatprep.subr.mxu0 0.0
      %2124 = vmatpush1.msra.mxu0 0.0
      %2125 = vmatprep.subr.mxu0 0.0
      %2126 = vmatpush1.msra.mxu0 0.0
      %2127 = vmatprep.subr.mxu0 0.0
      %2128 = vmatpush1.msra.mxu0 0.0
      %2129 = vmatprep.subr.mxu0 0.0
      %2130 = vmatpush1.msra.mxu0 0.0
      %2131 = vmatprep.subr.mxu0 0.0
      %2132 = vmatpush1.msra.mxu0 0.0
      %2133 = vmatprep.subr.mxu0 0.0
      %2134 = vmatpush1.msra.mxu0 %v2100
      %2135 = vmatprep.subr.mxu0 0.0
      %2136 = vmatpush1.msra.mxu0 %v2099
      %2137 = vmatprep.subr.mxu0 0.0
      %2138 = vmatpush1.msra.mxu0 %v2098
      %2139 = vmatprep.subr.mxu0 0.0
      %2140 = vmatpush1.msra.mxu0 %v2097
      %2141 = vmatprep.subr.mxu0 0.0
      %2142 = vmatpush2.msra.mxu0 0.0
      %2143 = vmatprep.subr.mxu0 0.0
      %2144 = vmatpush2.msra.mxu0 0.0
      %2145 = vmatprep.subr.mxu0 0.0
      %2146 = vmatpush2.msra.mxu0 0.0
      %2147 = vmatprep.subr.mxu0 0.0
      %2148 = vmatpush2.msra.mxu0 0.0
      %2149 = vmatprep.subr.mxu0 0.0
      %2150 = vmatpush2.msra.mxu0 0.0
      %2151 = vmatprep.subr.mxu0 0.0
      %2152 = vmatpush2.msra.mxu0 0.0
      %2153 = vmatprep.subr.mxu0 0.0
      %2154 = vmatpush2.msra.mxu0 0.0
      %2155 = vmatprep.subr.mxu0 0.0
      %2156 = vmatpush2.msra.mxu0 0.0
      %2157 = vmatprep.subr.mxu0 0.0
      %2158 = vmatpush2.msra.mxu0 0.0
      %2159 = vmatprep.subr.mxu0 0.0
      %2160 = vmatpush2.msra.mxu0 0.0
      %2161 = vmatprep.subr.mxu0 0.0
      %2162 = vmatpush2.msra.mxu0 0.0
      %2163 = vmatprep.subr.mxu0 0.0
      %2164 = vmatpush2.msra.mxu0 0.0
      %2165 = vmatprep.subr.mxu0 0.0
      %2166 = vmatpush2.msra.mxu0 0.0
      %2167 = vmatprep.subr.mxu0 0.0
      %2168 = vmatpush2.msra.mxu0 0.0
      %2169 = vmatprep.subr.mxu0 0.0
      %2170 = vmatpush2.msra.mxu0 0.0
      %2171 = vmatprep.subr.mxu0 0.0
      %2172 = vmatpush2.msra.mxu0 0.0
      %2173 = vmatprep.mubr.f32.mxu0 0.0
      %2174 = vmatmul.mubr.f32.gmra.mxu0 %v573
      %v2175 = vpop.f32.mrf.mxu0
      %v2176 = vadd.f32 %v2107, %v2175
      %v2177 = vpop.f32.mrf.mxu0
      %2178 = vdwg.mxu0
      %v2180 = vsel %vm726, %v2010, 0
      %v2183 = vsel %vm726, %v2093, 0
      %2185 = vmatprep.subr.mxu0 0.0
      %2186 = vmatpush1.xpose.msra.mxu0 0.0
      %2187 = vmatprep.subr.mxu0 0.0
      %2188 = vmatpush1.xpose.msra.mxu0 0.0
      %2189 = vmatprep.subr.mxu0 0.0
      %2190 = vmatpush1.xpose.msra.mxu0 0.0
      %2191 = vmatprep.subr.mxu0 0.0
      %2192 = vmatpush1.xpose.msra.mxu0 0.0
      %2193 = vmatprep.subr.mxu0 0.0
      %2194 = vmatpush1.xpose.msra.mxu0 0.0
      %2195 = vmatprep.subr.mxu0 0.0
      %2196 = vmatpush1.xpose.msra.mxu0 0.0
      %2197 = vmatprep.subr.mxu0 0.0
      %2198 = vmatpush1.xpose.msra.mxu0 0.0
      %2199 = vmatprep.subr.mxu0 0.0
      %2200 = vmatpush1.xpose.msra.mxu0 0.0
      %2201 = vmatprep.subr.mxu0 0.0
      %2202 = vmatpush1.xpose.msra.mxu0 0.0
      %2203 = vmatprep.subr.mxu0 0.0
      %2204 = vmatpush1.xpose.msra.mxu0 0.0
      %2205 = vmatprep.subr.mxu0 0.0
      %2206 = vmatpush1.xpose.msra.mxu0 0.0
      %2207 = vmatprep.subr.mxu0 0.0
      %2208 = vmatpush1.xpose.msra.mxu0 0.0
      %2209 = vmatprep.subr.mxu0 0.0
      %2210 = vmatpush1.xpose.msra.mxu0 0.0
      %2211 = vmatprep.subr.mxu0 0.0
      %2212 = vmatpush1.xpose.msra.mxu0 0.0
      %2213 = vmatprep.subr.mxu0 0.0
      %2214 = vmatpush1.xpose.msra.mxu0 0.0
      %2215 = vmatprep.subr.mxu0 0.0
      %2216 = vmatpush1.xpose.msra.mxu0 %v2183
      %2217 = vmatprep.subr.mxu0 0.0
      %2218 = vmatpush2.xpose.msra.mxu0 0.0
      %2219 = vmatprep.subr.mxu0 0.0
      %2220 = vmatpush2.xpose.msra.mxu0 0.0
      %2221 = vmatprep.subr.mxu0 0.0
      %2222 = vmatpush2.xpose.msra.mxu0 0.0
      %2223 = vmatprep.subr.mxu0 0.0
      %2224 = vmatpush2.xpose.msra.mxu0 0.0
      %2225 = vmatprep.subr.mxu0 0.0
      %2226 = vmatpush2.xpose.msra.mxu0 0.0
      %2227 = vmatprep.subr.mxu0 0.0
      %2228 = vmatpush2.xpose.msra.mxu0 0.0
      %2229 = vmatprep.subr.mxu0 0.0
      %2230 = vmatpush2.xpose.msra.mxu0 0.0
      %2231 = vmatprep.subr.mxu0 0.0
      %2232 = vmatpush2.xpose.msra.mxu0 0.0
      %2233 = vmatprep.subr.mxu0 0.0
      %2234 = vmatpush2.xpose.msra.mxu0 0.0
      %2235 = vmatprep.subr.mxu0 0.0
      %2236 = vmatpush2.xpose.msra.mxu0 0.0
      %2237 = vmatprep.subr.mxu0 0.0
      %2238 = vmatpush2.xpose.msra.mxu0 0.0
      %2239 = vmatprep.subr.mxu0 0.0
      %2240 = vmatpush2.xpose.msra.mxu0 0.0
      %2241 = vmatprep.subr.mxu0 0.0
      %2242 = vmatpush2.xpose.msra.mxu0 0.0
      %2243 = vmatprep.subr.mxu0 0.0
      %2244 = vmatpush2.xpose.msra.mxu0 0.0
      %2245 = vmatprep.subr.mxu0 0.0
      %2246 = vmatpush2.xpose.msra.mxu0 0.0
      %2247 = vmatprep.subr.mxu0 0.0
      %2248 = vmatpush2.xpose.msra.mxu0 0.0
      %2249 = vmatprep.mubr.f32.mxu0 0.0
      %2250 = vmatmul.mubr.f32.gmra.mxu0 %v2180
      %v2251 = vpop.f32.mrf.mxu0
      %v2252 = vadd.f32 %v474, %v2251
      %v2253 = vpop.f32.mrf.mxu0
      %2254 = vdwg.mxu0
      %v2255 = vsel %vm726, %v2252, -inf
      %2256 = vmax.xlane.f32.xlu0 %v2255
      %v2257 = vpop.xlane.xlu0 %2256
      %v2258 = vsub.f32 %v2252, %v2257
      %v2259 = vmul.f32 %v2258, 1.442695
      %v2260 = vpow.pop %v2259
      %v2261 = vsel %vm726, %v2260, 0.0
      %2262 = vadd.xlane.f32.xlu0 %v2261
      %v2263 = vpop.xlane.xlu0 %2262
      %v2264 = vrcp.pop %v2263
      %v2265 = vmul.f32 %v2260, %v2264
      %v2267 = vsel %vm726, %v2265, 0
      %2269 = vmatprep.subr.mxu0 0.0
      %2270 = vmatpush1.msra.mxu0 0.0
      %2271 = vmatprep.subr.mxu0 0.0
      %2272 = vmatpush1.msra.mxu0 0.0
      %2273 = vmatprep.subr.mxu0 0.0
      %2274 = vmatpush1.msra.mxu0 0.0
      %2275 = vmatprep.subr.mxu0 0.0
      %2276 = vmatpush1.msra.mxu0 0.0
      %2277 = vmatprep.subr.mxu0 0.0
      %2278 = vmatpush1.msra.mxu0 0.0
      %2279 = vmatprep.subr.mxu0 0.0
      %2280 = vmatpush1.msra.mxu0 0.0
      %2281 = vmatprep.subr.mxu0 0.0
      %2282 = vmatpush1.msra.mxu0 0.0
      %2283 = vmatprep.subr.mxu0 0.0
      %2284 = vmatpush1.msra.mxu0 0.0
      %2285 = vmatprep.subr.mxu0 0.0
      %2286 = vmatpush1.msra.mxu0 0.0
      %2287 = vmatprep.subr.mxu0 0.0
      %2288 = vmatpush1.msra.mxu0 0.0
      %2289 = vmatprep.subr.mxu0 0.0
      %2290 = vmatpush1.msra.mxu0 0.0
      %2291 = vmatprep.subr.mxu0 0.0
      %2292 = vmatpush1.msra.mxu0 0.0
      %2293 = vmatprep.subr.mxu0 0.0
      %2294 = vmatpush1.msra.mxu0 0.0
      %2295 = vmatprep.subr.mxu0 0.0
      %2296 = vmatpush1.msra.mxu0 0.0
      %2297 = vmatprep.subr.mxu0 0.0
      %2298 = vmatpush1.msra.mxu0 0.0
      %2299 = vmatprep.subr.mxu0 0.0
      %2300 = vmatpush1.msra.mxu0 %v2176
      %2301 = vmatprep.subr.mxu0 0.0
      %2302 = vmatpush2.msra.mxu0 0.0
      %2303 = vmatprep.subr.mxu0 0.0
      %2304 = vmatpush2.msra.mxu0 0.0
      %2305 = vmatprep.subr.mxu0 0.0
      %2306 = vmatpush2.msra.mxu0 0.0
      %2307 = vmatprep.subr.mxu0 0.0
      %2308 = vmatpush2.msra.mxu0 0.0
      %2309 = vmatprep.subr.mxu0 0.0
      %2310 = vmatpush2.msra.mxu0 0.0
      %2311 = vmatprep.subr.mxu0 0.0
      %2312 = vmatpush2.msra.mxu0 0.0
      %2313 = vmatprep.subr.mxu0 0.0
      %2314 = vmatpush2.msra.mxu0 0.0
      %2315 = vmatprep.subr.mxu0 0.0
      %2316 = vmatpush2.msra.mxu0 0.0
      %2317 = vmatprep.subr.mxu0 0.0
      %2318 = vmatpush2.msra.mxu0 0.0
      %2319 = vmatprep.subr.mxu0 0.0
      %2320 = vmatpush2.msra.mxu0 0.0
      %2321 = vmatprep.subr.mxu0 0.0
      %2322 = vmatpush2.msra.mxu0 0.0
      %2323 = vmatprep.subr.mxu0 0.0
      %2324 = vmatpush2.msra.mxu0 0.0
      %2325 = vmatprep.subr.mxu0 0.0
      %2326 = vmatpush2.msra.mxu0 0.0
      %2327 = vmatprep.subr.mxu0 0.0
      %2328 = vmatpush2.msra.mxu0 0.0
      %2329 = vmatprep.subr.mxu0 0.0
      %2330 = vmatpush2.msra.mxu0 0.0
      %2331 = vmatprep.subr.mxu0 0.0
      %2332 = vmatpush2.msra.mxu0 0.0
      %2333 = vmatprep.mubr.f32.mxu0 0.0
      %2334 = vmatmul.mubr.f32.gmra.mxu0 %v2267
      %v2335 = vpop.f32.mrf.mxu0
      %v2336 = vadd.f32 0.0, %v2335
      %v2337 = vpop.f32.mrf.mxu0
      %2338 = vdwg.mxu0
      %s2339 = scalar_lea.vmem %s8, 24
      %v2340 = vld [vmem:[%s2339] sm:$0xff]
      %v2342 = vsel %vm726, %v2336, 0
      %2344 = vmatprep.subr.mxu0 0.0
      %2345 = vmatpush1.msra.mxu0 0.0
      %2346 = vmatprep.subr.mxu0 0.0
      %2347 = vmatpush1.msra.mxu0 0.0
      %2348 = vmatprep.subr.mxu0 0.0
      %2349 = vmatpush1.msra.mxu0 0.0
      %2350 = vmatprep.subr.mxu0 0.0
      %2351 = vmatpush1.msra.mxu0 0.0
      %2352 = vmatprep.subr.mxu0 0.0
      %2353 = vmatpush1.msra.mxu0 0.0
      %2354 = vmatprep.subr.mxu0 0.0
      %2355 = vmatpush1.msra.mxu0 0.0
      %2356 = vmatprep.subr.mxu0 0.0
      %2357 = vmatpush1.msra.mxu0 0.0
      %2358 = vmatprep.subr.mxu0 0.0
      %2359 = vmatpush1.msra.mxu0 0.0
      %2360 = vmatprep.subr.mxu0 0.0
      %2361 = vmatpush1.msra.mxu0 0.0
      %2362 = vmatprep.subr.mxu0 0.0
      %2363 = vmatpush1.msra.mxu0 0.0
      %2364 = vmatprep.subr.mxu0 0.0
      %2365 = vmatpush1.msra.mxu0 0.0
      %2366 = vmatprep.subr.mxu0 0.0
      %2367 = vmatpush1.msra.mxu0 0.0
      %2368 = vmatprep.subr.mxu0 0.0
      %2369 = vmatpush1.msra.mxu0 0.0
      %2370 = vmatprep.subr.mxu0 0.0
      %2371 = vmatpush1.msra.mxu0 0.0
      %2372 = vmatprep.subr.mxu0 0.0
      %2373 = vmatpush1.msra.mxu0 0.0
      %2374 = vmatprep.subr.mxu0 0.0
      %2375 = vmatpush1.msra.mxu0 %v2340
      %2376 = vmatprep.subr.mxu0 0.0
      %2377 = vmatpush2.msra.mxu0 0.0
      %2378 = vmatprep.subr.mxu0 0.0
      %2379 = vmatpush2.msra.mxu0 0.0
      %2380 = vmatprep.subr.mxu0 0.0
      %2381 = vmatpush2.msra.mxu0 0.0
      %2382 = vmatprep.subr.mxu0 0.0
      %2383 = vmatpush2.msra.mxu0 0.0
      %2384 = vmatprep.subr.mxu0 0.0
      %2385 = vmatpush2.msra.mxu0 0.0
      %2386 = vmatprep.subr.mxu0 0.0
      %2387 = vmatpush2.msra.mxu0 0.0
      %2388 = vmatprep.subr.mxu0 0.0
      %2389 = vmatpush2.msra.mxu0 0.0
      %2390 = vmatprep.subr.mxu0 0.0
      %2391 = vmatpush2.msra.mxu0 0.0
      %2392 = vmatprep.subr.mxu0 0.0
      %2393 = vmatpush2.msra.mxu0 0.0
      %2394 = vmatprep.subr.mxu0 0.0
      %2395 = vmatpush2.msra.mxu0 0.0
      %2396 = vmatprep.subr.mxu0 0.0
      %2397 = vmatpush2.msra.mxu0 0.0
      %2398 = vmatprep.subr.mxu0 0.0
      %2399 = vmatpush2.msra.mxu0 0.0
      %2400 = vmatprep.subr.mxu0 0.0
      %2401 = vmatpush2.msra.mxu0 0.0
      %2402 = vmatprep.subr.mxu0 0.0
      %2403 = vmatpush2.msra.mxu0 0.0
      %2404 = vmatprep.subr.mxu0 0.0
      %2405 = vmatpush2.msra.mxu0 0.0
      %2406 = vmatprep.subr.mxu0 0.0
      %2407 = vmatpush2.msra.mxu0 0.0
      %2408 = vmatprep.mubr.f32.mxu0 0.0
      %2409 = vmatmul.mubr.f32.gmra.mxu0 %v2342
      %v2410 = vpop.f32.mrf.mxu0
      %v2411 = vadd.f32 0.0, %v2410
      %v2412 = vpop.f32.mrf.mxu0
      %2413 = vdwg.mxu0
      %v2414 = vadd.f32 %v1929, %v2411
      %v2415 = vadd.f32 %v467, %v2414
      %v2416 = vld [vmem:[%s9] sm:$0x1]
      %v2418 = vlaneseq
      %v2419 = vshrl.u32 %v2418, 7
      %v2420 = vsub.s32 0, %v2419
      %v2421 = vrot.slane %v2416, %v2420
      %v2423 = vadd.f32 %v2415, %v2421
      %v2424 = vsel %vm487, %v2423, 0.0
      %2425 = vadd.xlane.f32.xlu0 %v2424
      %v2426 = vpop.xlane.xlu0 %2425
      %v2427 = vrcp.pop 32.0
      %v2428 = vmul.f32 %v2426, %v2427
      %v2429 = vsub.f32 %v2423, %v2428
      %v2430 = vmul.f32 %v2429, %v2429
      %v2431 = vsel %vm487, %v2430, 0.0
      %2432 = vadd.xlane.f32.xlu0 %v2431
      %v2433 = vpop.xlane.xlu0 %2432
      %v2434 = vmul.f32 %v2433, %v2427
      %v2435 = vadd.f32 %v2434, 1e-05
      %v2436 = vrsqrt.pop %v2435
      %v2437 = vmul.f32 %v2429, %v2436
      %v2438 = vld [vmem:[%s10] sm:$0x1]
      %v2440 = vlaneseq
      %v2441 = vshrl.u32 %v2440, 7
      %v2442 = vsub.s32 0, %v2441
      %v2443 = vrot.slane %v2438, %v2442
      %v2445 = vmul.f32 %v2437, %v2443
      %v2446 = vld [vmem:[%s11] sm:$0x1]
      %v2448 = vlaneseq
      %v2449 = vshrl.u32 %v2448, 7
      %v2450 = vsub.s32 0, %v2449
      %v2451 = vrot.slane %v2446, %v2450
      %v2453 = vadd.f32 %v2445, %v2451
      %2454 = vst.msk [vmem:[%s466] sm:$0xff] %vm487, %v2453
      %p2455 = scmp.lt.s32.totalorder %s24, 1
      %s2456 = scalar_select %p2455, %s24, 1
      %s2457 = smul.addr %s2456, 8
      %s2458 = scalar_lea.vmem %s13, %s2457
      // Predicated region
      $region73: #{seq2seq_forward.14} parent=71 // pred_check
        %p2459 = pneg %p330
      $region74: #{seq2seq_forward.14} parent=71 // pred_check_branch
        %2461 = sbr.rel (%p2459) target = $region76
      $region75: #{seq2seq_forward.14} parent=71 // pred_region
        _
      $region76: #{seq2seq_forward.14} parent=71 // pred_fallthru
        _
    $region72: #{seq2seq_forward.14} parent=5 // pred_fallthru
      _
    %p2462 = scmp.le.s32.totalorder 2, %s19
    // Predicated region
    $region77: #{seq2seq_forward.14} parent=5 // pred_check
      %p2463 = pneg %p2462
    $region78: #{seq2seq_forward.14} parent=5 // pred_check_branch
      %2465 = sbr.rel (%p2463) target = $region80
    $region79: #{seq2seq_forward.14} parent=5 // pred_region
      %s2466 = ssub.s32 %s19, 2
      // Predicated region
      $region81: #{seq2seq_forward.14} parent=79 // pred_check
        %p2467 = pneg %p336
      $region82: #{seq2seq_forward.14} parent=79 // pred_check_branch
        %2469 = sbr.rel (%p2467) target = $region84
      $region83: #{seq2seq_forward.14} parent=79 // pred_region
        %p2470 = scmp.lt.s32.totalorder %s25, 1
        %s2471 = scalar_select %p2470, %s25, 1
        %s2472 = smul.addr %s2471, 8
        %s2473 = scalar_lea.vmem %s13, %s2472
      $region84: #{seq2seq_forward.14} parent=79 // pred_fallthru
        _
    $region80: #{seq2seq_forward.14} parent=5 // pred_fallthru
      _
  $region6: #{seq2seq_forward.14} parent=0 // loop_footer
    %s23 = sadd.s32 1, %s19
  $region7: #{seq2seq_forward.14} parent=0 // loop_footer_branch
    %18 = sbr.rel target = $region3
  $region8: #{seq2seq_forward.14} parent=0 // loop_exit
    _

// kernel: seq2seq_forward.25
$region0: #{seq2seq_forward.25}
  #allocation0 [shape = 'u32[]', space=smem, size = 0x4, offset = 0x4, fixed_abs, tag = 'smem constant byte address 0x4 - core index']
  #allocation1 [shape = 'u32[144,128]{1,0:T(1,128)}', space=vmem, size = 0x12000, scoped, tag = 'internal scratch']
  %s0 = inlined_call_operand.vmem [shape: f32[16,32], index: 0, kind: input, shape index: {}]
  %s1 = inlined_call_operand.vmem [shape: f32[32,128], index: 1, kind: input, shape index: {}]
  %s2 = inlined_call_operand.vmem [shape: f32[1,128], index: 2, kind: input, shape index: {}]
  %s3 = inlined_call_operand.vmem [shape: f32[16,128], index: 3, kind: output, shape index: {}]
  %s4 = sld [smem:[#allocation0]]
  $region45: #{seq2seq_forward.25} parent=0
    _
  %s6 = ssub.s32 1, %s4
  %s7 = scalar_select 0, %s6, %s4
  loop: start=0, step=1, limit=4
  $region2: #{seq2seq_forward.25} parent=0 // loop_pre_header
    _
  $region3: #{seq2seq_forward.25} parent=0 // loop_header
    %s9 = sphi 0, %s13
    %p10 = scmp.ge.s32.totalorder %s9, 4
    %s19 = sphi 0, %s21
    %s22 = sphi 0, %s19
    %s23 = sphi 0, %s22
    %s39 = sphi 0, %s23
    %s43 = sphi 0, %s43
    %s45 = sphi 0, %s43
    %s46 = sphi 0, %s45
    %s60 = sphi 0, %s46
    %s64 = sphi 0, %s64
    %s66 = sphi 0, %s64
    %s67 = sphi 0, %s66
    %s81 = sphi 0, %s67
    %s87 = sphi 0, %s89
    %s90 = sphi 0, %s87
    %s91 = sphi 0, %s90
    %s107 = sphi 0, %s91
  $region4: #{seq2seq_forward.25} parent=0 // loop_header_branch
    %12 = sbr.rel (%p10) target = $region8
  $region5: #{seq2seq_forward.25} parent=0 // loop_body
    %s14 = ssub.s32 %s9, 1
    %s15 = ssub.s32 %s9, 2
    %s16 = sadd.s32 %s9, 1
    %s17 = ssub.s32 %s9, %s16
    %p18 = scmp.eq.s32.totalorder %s17, 0
    %s20 = sadd.s32 %s19, 1
    %s21 = scalar_select %p18, %s19, %s20
    %p24 = pneg %p18
    %p25 = scmp.eq.s32.totalorder %s9, 1
    %p26 = por %p24, %p25
    %p27 = scmp.ne.s32.totalorder %s19, %s22
    %p28 = scmp.eq.s32.totalorder %s9, 0
    %p29 = por %p27, %p28
    %p30 = scmp.ne.s32.totalorder %s19, %s22
    %p31 = scmp.eq.s32.totalorder %s14, 1
    %p32 = por %p30, %p31
    %p33 = scmp.ne.s32.totalorder %s22, %s23
    %p34 = scmp.eq.s32.totalorder %s14, 0
    %p35 = por %p33, %p34
    %p36 = scmp.ne.s32.totalorder %s22, %s23
    %p37 = scmp.eq.s32.totalorder %s15, 1
    %p38 = por %p36, %p37
    %p40 = scmp.ne.s32.totalorder %s23, %s39
    %p41 = scmp.eq.s32.totalorder %s15, 0
    %p42 = por %p40, %p41
    %s44 = sadd.s32 %s43, 1
    %p47 = scmp.eq.s32.totalorder %s9, 1
    %p48 = scmp.ne.s32.totalorder %s43, %s45
    %p49 = scmp.eq.s32.totalorder %s9, 0
    %p50 = por %p48, %p49
    %p51 = scmp.ne.s32.totalorder %s43, %s45
    %p52 = scmp.eq.s32.totalorder %s14, 1
    %p53 = por %p51, %p52
    %p54 = scmp.ne.s32.totalorder %s45, %s46
    %p55 = scmp.eq.s32.totalorder %s14, 0
    %p56 = por %p54, %p55
    %p57 = scmp.ne.s32.totalorder %s45, %s46
    %p58 = scmp.eq.s32.totalorder %s15, 1
    %p59 = por %p57, %p58
    %p61 = scmp.ne.s32.totalorder %s46, %s60
    %p62 = scmp.eq.s32.totalorder %s15, 0
    %p63 = por %p61, %p62
    %s65 = sadd.s32 %s64, 1
    %p68 = scmp.eq.s32.totalorder %s9, 1
    %p69 = scmp.ne.s32.totalorder %s64, %s66
    %p70 = scmp.eq.s32.totalorder %s9, 0
    %p71 = por %p69, %p70
    %p72 = scmp.ne.s32.totalorder %s64, %s66
    %p73 = scmp.eq.s32.totalorder %s14, 1
    %p74 = por %p72, %p73
    %p75 = scmp.ne.s32.totalorder %s66, %s67
    %p76 = scmp.eq.s32.totalorder %s14, 0
    %p77 = por %p75, %p76
    %p78 = scmp.ne.s32.totalorder %s66, %s67
    %p79 = scmp.eq.s32.totalorder %s15, 1
    %p80 = por %p78, %p79
    %p82 = scmp.ne.s32.totalorder %s67, %s81
    %p83 = scmp.eq.s32.totalorder %s15, 0
    %p84 = por %p82, %p83
    %s85 = ssub.s32 %s9, %s16
    %p86 = scmp.eq.s32.totalorder %s85, 0
    %s88 = sadd.s32 %s87, 1
    %s89 = scalar_select %p86, %s87, %s88
    %p92 = pneg %p86
    %p93 = scmp.eq.s32.totalorder %s9, 1
    %p94 = por %p92, %p93
    %p95 = scmp.ne.s32.totalorder %s87, %s90
    %p96 = scmp.eq.s32.totalorder %s9, 0
    %p97 = por %p95, %p96
    %p98 = scmp.ne.s32.totalorder %s87, %s90
    %p99 = scmp.eq.s32.totalorder %s14, 1
    %p100 = por %p98, %p99
    %p101 = scmp.ne.s32.totalorder %s90, %s91
    %p102 = scmp.eq.s32.totalorder %s14, 0
    %p103 = por %p101, %p102
    %p104 = scmp.ne.s32.totalorder %s90, %s91
    %p105 = scmp.eq.s32.totalorder %s15, 1
    %p106 = por %p104, %p105
    %p108 = scmp.ne.s32.totalorder %s91, %s107
    %p109 = scmp.eq.s32.totalorder %s15, 0
    %p110 = por %p108, %p109
    %p111 = scmp.le.s32.totalorder 1, %s9
    %p112 = scmp.lt.s32.totalorder %s9, 3
    %p113 = pnand %p111, %p112
    %p114 = pneg %p113
    // Predicated region
    $region9: #{seq2seq_forward.25} parent=5 // pred_check
      _
    $region10: #{seq2seq_forward.25} parent=5 // pred_check_branch
      %116 = sbr.rel (%p113) target = $region12
    $region11: #{seq2seq_forward.25} parent=5 // pred_region
      %s117 = ssub.s32 %s9, 1
      // Predicated region
      $region13: #{seq2seq_forward.25} parent=11 // pred_check
        %p118 = pneg %p56
      $region14: #{seq2seq_forward.25} parent=11 // pred_check_branch
        %120 = sbr.rel (%p118) target = $region16
      $region15: #{seq2seq_forward.25} parent=11 // pred_region
        _
      $region16: #{seq2seq_forward.25} parent=11 // pred_fallthru
        _
      // Predicated region
      $region17: #{seq2seq_forward.25} parent=11 // pred_check
        %p121 = pneg %p77
      $region18: #{seq2seq_forward.25} parent=11 // pred_check_branch
        %123 = sbr.rel (%p121) target = $region20
      $region19: #{seq2seq_forward.25} parent=11 // pred_region
        _
      $region20: #{seq2seq_forward.25} parent=11 // pred_fallthru
        _
    $region12: #{seq2seq_forward.25} parent=5 // pred_fallthru
      _
    %p124 = scmp.lt.s32.totalorder %s9, 2
    // Predicated region
    $region21: #{seq2seq_forward.25} parent=5 // pred_check
      %p125 = pneg %p124
    $region22: #{seq2seq_forward.25} parent=5 // pred_check_branch
      %127 = sbr.rel (%p125) target = $region24
    $region23: #{seq2seq_forward.25} parent=5 // pred_region
      // Predicated region
      $region25: #{seq2seq_forward.25} parent=23 // pred_check
        %p128 = pneg %p29
      $region26: #{seq2seq_forward.25} parent=23 // pred_check_branch
        %130 = sbr.rel (%p128) target = $region28
      $region27: #{seq2seq_forward.25} parent=23 // pred_region
        %p131 = scmp.lt.s32.totalorder %s9, 1
        %s132 = scalar_select %p131, %s9, 1
        %s133 = smul.addr %s132, 8
        %s134 = scalar_lea.vmem %s0, %s133
      $region28: #{seq2seq_forward.25} parent=23 // pred_fallthru
        _
    $region24: #{seq2seq_forward.25} parent=5 // pred_fallthru
      _
    %p135 = scmp.le.s32.totalorder 1, %s9
    %p136 = scmp.lt.s32.totalorder %s9, 3
    %p137 = pnand %p135, %p136
    %p138 = pneg %p137
    // Predicated region
    $region29: #{seq2seq_forward.25} parent=5 // pred_check
      _
    $region30: #{seq2seq_forward.25} parent=5 // pred_check_branch
      %140 = sbr.rel (%p137) target = $region32
    $region31: #{seq2seq_forward.25} parent=5 // pred_region
      %s141 = ssub.s32 %s9, 1
      %p142 = scmp.lt.s32.totalorder %s14, 1
      %s143 = scalar_select %p142, %s14, 1
      %s144 = smul.addr %s143, 8
      %s145 = scalar_lea.vmem %s0, %s144
      %p146 = pneg %p35
      %p147 = pneg %p32
      %p148 = pneg %p56
      %p149 = pneg %p53
      %p150 = pneg %p77
      %p151 = pneg %p74
      %p152 = pneg %p103
      %p153 = pneg %p100
      %p154 = scmp.lt.s32.totalorder %s14, 1
      %s155 = scalar_select %p154, %s14, 1
      %s156 = smul.addr %s155, 8
      %s157 = scalar_lea.vmem %s3, %s156
      %p158 = scmp.lt.s32.totalorder %s14, 1
      %s159 = scalar_select %p158, %s14, 1
      %s160 = smul.addr %s159, 8
      %s161 = scalar_lea.vmem %s0, %s160
      %p162 = scmp.lt.s32.totalorder %s14, 1
      %s163 = scalar_select %p162, %s14, 1
      %s164 = smul.addr %s163, 8
      %s165 = scalar_lea.vmem %s3, %s164
      %v166 = vld [vmem:[%s161] sm:$0xff]
      %v167 = vld [vmem:[%s1] sm:$0xff]
      %v168 = vld [vmem:[%s1 + $0x8] sm:$0xff]
      %v169 = vld [vmem:[%s1 + $0x10] sm:$0xff]
      %v170 = vld [vmem:[%s1 + $0x18] sm:$0xff]
      %v171 = vld [vmem:[%s2] sm:$0x1]
      %v173 = vlaneseq
      %v174 = vshrl.u32 %v173, 7
      %v175 = vsub.s32 0, %v174
      %v176 = vrot.slane %v171, %v175
      %vm178 = vcmask 261120
      %v180 = vsel %vm178, %v166, 0
      %182 = vmatprep.subr.mxu0 0.0
      %183 = vmatpush1.msra.mxu0 0.0
      %184 = vmatprep.subr.mxu0 0.0
      %185 = vmatpush1.msra.mxu0 0.0
      %186 = vmatprep.subr.mxu0 0.0
      %187 = vmatpush1.msra.mxu0 0.0
      %188 = vmatprep.subr.mxu0 0.0
      %189 = vmatpush1.msra.mxu0 0.0
      %190 = vmatprep.subr.mxu0 0.0
      %191 = vmatpush1.msra.mxu0 0.0
      %192 = vmatprep.subr.mxu0 0.0
      %193 = vmatpush1.msra.mxu0 0.0
      %194 = vmatprep.subr.mxu0 0.0
      %195 = vmatpush1.msra.mxu0 0.0
      %196 = vmatprep.subr.mxu0 0.0
      %197 = vmatpush1.msra.mxu0 0.0
      %198 = vmatprep.subr.mxu0 0.0
      %199 = vmatpush1.msra.mxu0 0.0
      %200 = vmatprep.subr.mxu0 0.0
      %201 = vmatpush1.msra.mxu0 0.0
      %202 = vmatprep.subr.mxu0 0.0
      %203 = vmatpush1.msra.mxu0 0.0
      %204 = vmatprep.subr.mxu0 0.0
      %205 = vmatpush1.msra.mxu0 0.0
      %206 = vmatprep.subr.mxu0 0.0
      %207 = vmatpush1.msra.mxu0 %v170
      %208 = vmatprep.subr.mxu0 0.0
      %209 = vmatpush1.msra.mxu0 %v169
      %210 = vmatprep.subr.mxu0 0.0
      %211 = vmatpush1.msra.mxu0 %v168
      %212 = vmatprep.subr.mxu0 0.0
      %213 = vmatpush1.msra.mxu0 %v167
      %214 = vmatprep.subr.mxu0 0.0
      %215 = vmatpush2.msra.mxu0 0.0
      %216 = vmatprep.subr.mxu0 0.0
      %217 = vmatpush2.msra.mxu0 0.0
      %218 = vmatprep.subr.mxu0 0.0
      %219 = vmatpush2.msra.mxu0 0.0
      %220 = vmatprep.subr.mxu0 0.0
      %221 = vmatpush2.msra.mxu0 0.0
      %222 = vmatprep.subr.mxu0 0.0
      %223 = vmatpush2.msra.mxu0 0.0
      %224 = vmatprep.subr.mxu0 0.0
      %225 = vmatpush2.msra.mxu0 0.0
      %226 = vmatprep.subr.mxu0 0.0
      %227 = vmatpush2.msra.mxu0 0.0
      %228 = vmatprep.subr.mxu0 0.0
      %229 = vmatpush2.msra.mxu0 0.0
      %230 = vmatprep.subr.mxu0 0.0
      %231 = vmatpush2.msra.mxu0 0.0
      %232 = vmatprep.subr.mxu0 0.0
      %233 = vmatpush2.msra.mxu0 0.0
      %234 = vmatprep.subr.mxu0 0.0
      %235 = vmatpush2.msra.mxu0 0.0
      %236 = vmatprep.subr.mxu0 0.0
      %237 = vmatpush2.msra.mxu0 0.0
      %238 = vmatprep.subr.mxu0 0.0
      %239 = vmatpush2.msra.mxu0 0.0
      %240 = vmatprep.subr.mxu0 0.0
      %241 = vmatpush2.msra.mxu0 0.0
      %242 = vmatprep.subr.mxu0 0.0
      %243 = vmatpush2.msra.mxu0 0.0
      %244 = vmatprep.subr.mxu0 0.0
      %245 = vmatpush2.msra.mxu0 0.0
      %246 = vmatprep.mubr.f32.mxu0 0.0
      %247 = vmatmul.mubr.f32.gmra.mxu0 %v180
      %v248 = vpop.f32.mrf.mxu0
      %v249 = vadd.f32 %v176, %v248
      %v250 = vpop.f32.mrf.mxu0
      %251 = vdwg.mxu0
      %252 = vst [vmem:[%s165] sm:$0xff] %v249
      %p253 = scmp.lt.s32.totalorder %s14, 1
      %s254 = scalar_select %p253, %s14, 1
      %s255 = smul.addr %s254, 8
      %s256 = scalar_lea.vmem %s3, %s255
      // Predicated region
      $region33: #{seq2seq_forward.25} parent=31 // pred_check
        %p257 = pneg %p100
      $region34: #{seq2seq_forward.25} parent=31 // pred_check_branch
        %259 = sbr.rel (%p257) target = $region36
      $region35: #{seq2seq_forward.25} parent=31 // pred_region
        _
      $region36: #{seq2seq_forward.25} parent=31 // pred_fallthru
        _
    $region32: #{seq2seq_forward.25} parent=5 // pred_fallthru
      _
    %p260 = scmp.le.s32.totalorder 2, %s9
    // Predicated region
    $region37: #{seq2seq_forward.25} parent=5 // pred_check
      %p261 = pneg %p260
    $region38: #{seq2seq_forward.25} parent=5 // pred_check_branch
      %263 = sbr.rel (%p261) target = $region40
    $region39: #{seq2seq_forward.25} parent=5 // pred_region
      %s264 = ssub.s32 %s9, 2
      // Predicated region
      $region41: #{seq2seq_forward.25} parent=39 // pred_check
        %p265 = pneg %p106
      $region42: #{seq2seq_forward.25} parent=39 // pred_check_branch
        %267 = sbr.rel (%p265) target = $region44
      $region43: #{seq2seq_forward.25} parent=39 // pred_region
        %p268 = scmp.lt.s32.totalorder %s15, 1
        %s269 = scalar_select %p268, %s15, 1
        %s270 = smul.addr %s269, 8
        %s271 = scalar_lea.vmem %s3, %s270
      $region44: #{seq2seq_forward.25} parent=39 // pred_fallthru
        _
    $region40: #{seq2seq_forward.25} parent=5 // pred_fallthru
      _
  $region6: #{seq2seq_forward.25} parent=0 // loop_footer
    %s13 = sadd.s32 1, %s9
  $region7: #{seq2seq_forward.25} parent=0 // loop_footer_branch
    %8 = sbr.rel target = $region3
  $region8: #{seq2seq_forward.25} parent=0 // loop_exit
    _

// kernel: seq2seq_forward.20
$region0: #{seq2seq_forward.20}
  #allocation0 [shape = 'u32[]', space=smem, size = 0x4, offset = 0x4, fixed_abs, tag = 'smem constant byte address 0x4 - core index']
  #allocation1 [shape = 'u32[144,128]{1,0:T(1,128)}', space=vmem, size = 0x12000, scoped, tag = 'internal scratch']
  %s0 = inlined_call_operand.vmem [shape: f32[2,8,32], index: 0, kind: input, shape index: {}]
  %s1 = inlined_call_operand.vmem [shape: f32[2,8,32], index: 1, kind: input, shape index: {}]
  %s2 = inlined_call_operand.vmem [shape: f32[4,32,8], index: 2, kind: input, shape index: {}]
  %s3 = inlined_call_operand.vmem [shape: f32[4,1,8], index: 3, kind: input, shape index: {}]
  %s4 = inlined_call_operand.vmem [shape: f32[4,32,8], index: 4, kind: input, shape index: {}]
  %s5 = inlined_call_operand.vmem [shape: f32[4,1,8], index: 5, kind: input, shape index: {}]
  %s6 = inlined_call_operand.vmem [shape: f32[4,32,8], index: 6, kind: input, shape index: {}]
  %s7 = inlined_call_operand.vmem [shape: f32[4,1,8], index: 7, kind: input, shape index: {}]
  %s8 = inlined_call_operand.vmem [shape: f32[4,8,32], index: 8, kind: input, shape index: {}]
  %s9 = inlined_call_operand.vmem [shape: f32[1,32], index: 9, kind: input, shape index: {}]
  %s10 = inlined_call_operand.vmem [shape: f32[1,32], index: 10, kind: input, shape index: {}]
  %s11 = inlined_call_operand.vmem [shape: f32[1,32], index: 11, kind: input, shape index: {}]
  %s12 = inlined_call_operand.vmem [shape: f32[2,8,32], index: 12, kind: output, shape index: {}]
  %s13 = sld [smem:[#allocation0]]
  $region81: #{seq2seq_forward.20} parent=0
    _
  %s15 = ssub.s32 1, %s13
  %s16 = scalar_select 0, %s15, %s13
  loop: start=0, step=1, limit=4
  $region2: #{seq2seq_forward.20} parent=0 // loop_pre_header
    _
  $region3: #{seq2seq_forward.20} parent=0 // loop_header
    %s18 = sphi 0, %s22
    %p19 = scmp.ge.s32.totalorder %s18, 4
    %s28 = sphi 0, %s30
    %s31 = sphi 0, %s28
    %s32 = sphi 0, %s31
    %s48 = sphi 0, %s32
    %s54 = sphi 0, %s56
    %s57 = sphi 0, %s54
    %s58 = sphi 0, %s57
    %s74 = sphi 0, %s58
    %s78 = sphi 0, %s78
    %s80 = sphi 0, %s78
    %s81 = sphi 0, %s80
    %s95 = sphi 0, %s81
    %s99 = sphi 0, %s99
    %s101 = sphi 0, %s99
    %s102 = sphi 0, %s101
    %s116 = sphi 0, %s102
    %s120 = sphi 0, %s120
    %s122 = sphi 0, %s120
    %s123 = sphi 0, %s122
    %s137 = sphi 0, %s123
    %s141 = sphi 0, %s141
    %s143 = sphi 0, %s141
    %s144 = sphi 0, %s143
    %s158 = sphi 0, %s144
    %s162 = sphi 0, %s162
    %s164 = sphi 0, %s162
    %s165 = sphi 0, %s164
    %s179 = sphi 0, %s165
    %s183 = sphi 0, %s183
    %s185 = sphi 0, %s183
    %s186 = sphi 0, %s185
    %s200 = sphi 0, %s186
    %s204 = sphi 0, %s204
    %s206 = sphi 0, %s204
    %s207 = sphi 0, %s206
    %s221 = sphi 0, %s207
    %s225 = sphi 0, %s225
    %s227 = sphi 0, %s225
    %s228 = sphi 0, %s227
    %s242 = sphi 0, %s228
    %s246 = sphi 0, %s246
    %s248 = sphi 0, %s246
    %s249 = sphi 0, %s248
    %s263 = sphi 0, %s249
    %s267 = sphi 0, %s267
    %s269 = sphi 0, %s267
    %s270 = sphi 0, %s269
    %s284 = sphi 0, %s270
    %s290 = sphi 0, %s292
    %s293 = sphi 0, %s290
    %s294 = sphi 0, %s293
    %s310 = sphi 0, %s294
  $region4: #{seq2seq_forward.20} parent=0 // loop_header_branch
    %21 = sbr.rel (%p19) target = $region8
  $region5: #{seq2seq_forward.20} parent=0 // loop_body
    %s23 = ssub.s32 %s18, 1
    %s24 = ssub.s32 %s18, 2
    %s25 = sadd.s32 %s18, 1
    %s26 = ssub.s32 %s18, %s25
    %p27 = scmp.eq.s32.totalorder %s26, 0
    %s29 = sadd.s32 %s28, 1
    %s30 = scalar_select %p27, %s28, %s29
    %p33 = pneg %p27
    %p34 = scmp.eq.s32.totalorder %s18, 1
    %p35 = por %p33, %p34
    %p36 = scmp.ne.s32.totalorder %s28, %s31
    %p37 = scmp.eq.s32.totalorder %s18, 0
    %p38 = por %p36, %p37
    %p39 = scmp.ne.s32.totalorder %s28, %s31
    %p40 = scmp.eq.s32.totalorder %s23, 1
    %p41 = por %p39, %p40
    %p42 = scmp.ne.s32.totalorder %s31, %s32
    %p43 = scmp.eq.s32.totalorder %s23, 0
    %p44 = por %p42, %p43
    %p45 = scmp.ne.s32.totalorder %s31, %s32
    %p46 = scmp.eq.s32.totalorder %s24, 1
    %p47 = por %p45, %p46
    %p49 = scmp.ne.s32.totalorder %s32, %s48
    %p50 = scmp.eq.s32.totalorder %s24, 0
    %p51 = por %p49, %p50
    %s52 = ssub.s32 %s18, %s25
    %p53 = scmp.eq.s32.totalorder %s52, 0
    %s55 = sadd.s32 %s54, 1
    %s56 = scalar_select %p53, %s54, %s55
    %p59 = pneg %p53
    %p60 = scmp.eq.s32.totalorder %s18, 1
    %p61 = por %p59, %p60
    %p62 = scmp.ne.s32.totalorder %s54, %s57
    %p63 = scmp.eq.s32.totalorder %s18, 0
    %p64 = por %p62, %p63
    %p65 = scmp.ne.s32.totalorder %s54, %s57
    %p66 = scmp.eq.s32.totalorder %s23, 1
    %p67 = por %p65, %p66
    %p68 = scmp.ne.s32.totalorder %s57, %s58
    %p69 = scmp.eq.s32.totalorder %s23, 0
    %p70 = por %p68, %p69
    %p71 = scmp.ne.s32.totalorder %s57, %s58
    %p72 = scmp.eq.s32.totalorder %s24, 1
    %p73 = por %p71, %p72
    %p75 = scmp.ne.s32.totalorder %s58, %s74
    %p76 = scmp.eq.s32.totalorder %s24, 0
    %p77 = por %p75, %p76
    %s79 = sadd.s32 %s78, 1
    %p82 = scmp.eq.s32.totalorder %s18, 1
    %p83 = scmp.ne.s32.totalorder %s78, %s80
    %p84 = scmp.eq.s32.totalorder %s18, 0
    %p85 = por %p83, %p84
    %p86 = scmp.ne.s32.totalorder %s78, %s80
    %p87 = scmp.eq.s32.totalorder %s23, 1
    %p88 = por %p86, %p87
    %p89 = scmp.ne.s32.totalorder %s80, %s81
    %p90 = scmp.eq.s32.totalorder %s23, 0
    %p91 = por %p89, %p90
    %p92 = scmp.ne.s32.totalorder %s80, %s81
    %p93 = scmp.eq.s32.totalorder %s24, 1
    %p94 = por %p92, %p93
    %p96 = scmp.ne.s32.totalorder %s81, %s95
    %p97 = scmp.eq.s32.totalorder %s24, 0
    %p98 = por %p96, %p97
    %s100 = sadd.s32 %s99, 1
    %p103 = scmp.eq.s32.totalorder %s18, 1
    %p104 = scmp.ne.s32.totalorder %s99, %s101
    %p105 = scmp.eq.s32.totalorder %s18, 0
    %p106 = por %p104, %p105
    %p107 = scmp.ne.s32.totalorder %s99, %s101
    %p108 = scmp.eq.s32.totalorder %s23, 1
    %p109 = por %p107, %p108
    %p110 = scmp.ne.s32.totalorder %s101, %s102
    %p111 = scmp.eq.s32.totalorder %s23, 0
    %p112 = por %p110, %p111
    %p113 = scmp.ne.s32.totalorder %s101, %s102
    %p114 = scmp.eq.s32.totalorder %s24, 1
    %p115 = por %p113, %p114
    %p117 = scmp.ne.s32.totalorder %s102, %s116
    %p118 = scmp.eq.s32.totalorder %s24, 0
    %p119 = por %p117, %p118
    %s121 = sadd.s32 %s120, 1
    %p124 = scmp.eq.s32.totalorder %s18, 1
    %p125 = scmp.ne.s32.totalorder %s120, %s122
    %p126 = scmp.eq.s32.totalorder %s18, 0
    %p127 = por %p125, %p126
    %p128 = scmp.ne.s32.totalorder %s120, %s122
    %p129 = scmp.eq.s32.totalorder %s23, 1
    %p130 = por %p128, %p129
    %p131 = scmp.ne.s32.totalorder %s122, %s123
    %p132 = scmp.eq.s32.totalorder %s23, 0
    %p133 = por %p131, %p132
    %p134 = scmp.ne.s32.totalorder %s122, %s123
    %p135 = scmp.eq.s32.totalorder %s24, 1
    %p136 = por %p134, %p135
    %p138 = scmp.ne.s32.totalorder %s123, %s137
    %p139 = scmp.eq.s32.totalorder %s24, 0
    %p140 = por %p138, %p139
    %s142 = sadd.s32 %s141, 1
    %p145 = scmp.eq.s32.totalorder %s18, 1
    %p146 = scmp.ne.s32.totalorder %s141, %s143
    %p147 = scmp.eq.s32.totalorder %s18, 0
    %p148 = por %p146, %p147
    %p149 = scmp.ne.s32.totalorder %s141, %s143
    %p150 = scmp.eq.s32.totalorder %s23, 1
    %p151 = por %p149, %p150
    %p152 = scmp.ne.s32.totalorder %s143, %s144
    %p153 = scmp.eq.s32.totalorder %s23, 0
    %p154 = por %p152, %p153
    %p155 = scmp.ne.s32.totalorder %s143, %s144
    %p156 = scmp.eq.s32.totalorder %s24, 1
    %p157 = por %p155, %p156
    %p159 = scmp.ne.s32.totalorder %s144, %s158
    %p160 = scmp.eq.s32.totalorder %s24, 0
    %p161 = por %p159, %p160
    %s163 = sadd.s32 %s162, 1
    %p166 = scmp.eq.s32.totalorder %s18, 1
    %p167 = scmp.ne.s32.totalorder %s162, %s164
    %p168 = scmp.eq.s32.totalorder %s18, 0
    %p169 = por %p167, %p168
    %p170 = scmp.ne.s32.totalorder %s162, %s164
    %p171 = scmp.eq.s32.totalorder %s23, 1
    %p172 = por %p170, %p171
    %p173 = scmp.ne.s32.totalorder %s164, %s165
    %p174 = scmp.eq.s32.totalorder %s23, 0
    %p175 = por %p173, %p174
    %p176 = scmp.ne.s32.totalorder %s164, %s165
    %p177 = scmp.eq.s32.totalorder %s24, 1
    %p178 = por %p176, %p177
    %p180 = scmp.ne.s32.totalorder %s165, %s179
    %p181 = scmp.eq.s32.totalorder %s24, 0
    %p182 = por %p180, %p181
    %s184 = sadd.s32 %s183, 1
    %p187 = scmp.eq.s32.totalorder %s18, 1
    %p188 = scmp.ne.s32.totalorder %s183, %s185
    %p189 = scmp.eq.s32.totalorder %s18, 0
    %p190 = por %p188, %p189
    %p191 = scmp.ne.s32.totalorder %s183, %s185
    %p192 = scmp.eq.s32.totalorder %s23, 1
    %p193 = por %p191, %p192
    %p194 = scmp.ne.s32.totalorder %s185, %s186
    %p195 = scmp.eq.s32.totalorder %s23, 0
    %p196 = por %p194, %p195
    %p197 = scmp.ne.s32.totalorder %s185, %s186
    %p198 = scmp.eq.s32.totalorder %s24, 1
    %p199 = por %p197, %p198
    %p201 = scmp.ne.s32.totalorder %s186, %s200
    %p202 = scmp.eq.s32.totalorder %s24, 0
    %p203 = por %p201, %p202
    %s205 = sadd.s32 %s204, 1
    %p208 = scmp.eq.s32.totalorder %s18, 1
    %p209 = scmp.ne.s32.totalorder %s204, %s206
    %p210 = scmp.eq.s32.totalorder %s18, 0
    %p211 = por %p209, %p210
    %p212 = scmp.ne.s32.totalorder %s204, %s206
    %p213 = scmp.eq.s32.totalorder %s23, 1
    %p214 = por %p212, %p213
    %p215 = scmp.ne.s32.totalorder %s206, %s207
    %p216 = scmp.eq.s32.totalorder %s23, 0
    %p217 = por %p215, %p216
    %p218 = scmp.ne.s32.totalorder %s206, %s207
    %p219 = scmp.eq.s32.totalorder %s24, 1
    %p220 = por %p218, %p219
    %p222 = scmp.ne.s32.totalorder %s207, %s221
    %p223 = scmp.eq.s32.totalorder %s24, 0
    %p224 = por %p222, %p223
    %s226 = sadd.s32 %s225, 1
    %p229 = scmp.eq.s32.totalorder %s18, 1
    %p230 = scmp.ne.s32.totalorder %s225, %s227
    %p231 = scmp.eq.s32.totalorder %s18, 0
    %p232 = por %p230, %p231
    %p233 = scmp.ne.s32.totalorder %s225, %s227
    %p234 = scmp.eq.s32.totalorder %s23, 1
    %p235 = por %p233, %p234
    %p236 = scmp.ne.s32.totalorder %s227, %s228
    %p237 = scmp.eq.s32.totalorder %s23, 0
    %p238 = por %p236, %p237
    %p239 = scmp.ne.s32.totalorder %s227, %s228
    %p240 = scmp.eq.s32.totalorder %s24, 1
    %p241 = por %p239, %p240
    %p243 = scmp.ne.s32.totalorder %s228, %s242
    %p244 = scmp.eq.s32.totalorder %s24, 0
    %p245 = por %p243, %p244
    %s247 = sadd.s32 %s246, 1
    %p250 = scmp.eq.s32.totalorder %s18, 1
    %p251 = scmp.ne.s32.totalorder %s246, %s248
    %p252 = scmp.eq.s32.totalorder %s18, 0
    %p253 = por %p251, %p252
    %p254 = scmp.ne.s32.totalorder %s246, %s248
    %p255 = scmp.eq.s32.totalorder %s23, 1
    %p256 = por %p254, %p255
    %p257 = scmp.ne.s32.totalorder %s248, %s249
    %p258 = scmp.eq.s32.totalorder %s23, 0
    %p259 = por %p257, %p258
    %p260 = scmp.ne.s32.totalorder %s248, %s249
    %p261 = scmp.eq.s32.totalorder %s24, 1
    %p262 = por %p260, %p261
    %p264 = scmp.ne.s32.totalorder %s249, %s263
    %p265 = scmp.eq.s32.totalorder %s24, 0
    %p266 = por %p264, %p265
    %s268 = sadd.s32 %s267, 1
    %p271 = scmp.eq.s32.totalorder %s18, 1
    %p272 = scmp.ne.s32.totalorder %s267, %s269
    %p273 = scmp.eq.s32.totalorder %s18, 0
    %p274 = por %p272, %p273
    %p275 = scmp.ne.s32.totalorder %s267, %s269
    %p276 = scmp.eq.s32.totalorder %s23, 1
    %p277 = por %p275, %p276
    %p278 = scmp.ne.s32.totalorder %s269, %s270
    %p279 = scmp.eq.s32.totalorder %s23, 0
    %p280 = por %p278, %p279
    %p281 = scmp.ne.s32.totalorder %s269, %s270
    %p282 = scmp.eq.s32.totalorder %s24, 1
    %p283 = por %p281, %p282
    %p285 = scmp.ne.s32.totalorder %s270, %s284
    %p286 = scmp.eq.s32.totalorder %s24, 0
    %p287 = por %p285, %p286
    %s288 = ssub.s32 %s18, %s25
    %p289 = scmp.eq.s32.totalorder %s288, 0
    %s291 = sadd.s32 %s290, 1
    %s292 = scalar_select %p289, %s290, %s291
    %p295 = pneg %p289
    %p296 = scmp.eq.s32.totalorder %s18, 1
    %p297 = por %p295, %p296
    %p298 = scmp.ne.s32.totalorder %s290, %s293
    %p299 = scmp.eq.s32.totalorder %s18, 0
    %p300 = por %p298, %p299
    %p301 = scmp.ne.s32.totalorder %s290, %s293
    %p302 = scmp.eq.s32.totalorder %s23, 1
    %p303 = por %p301, %p302
    %p304 = scmp.ne.s32.totalorder %s293, %s294
    %p305 = scmp.eq.s32.totalorder %s23, 0
    %p306 = por %p304, %p305
    %p307 = scmp.ne.s32.totalorder %s293, %s294
    %p308 = scmp.eq.s32.totalorder %s24, 1
    %p309 = por %p307, %p308
    %p311 = scmp.ne.s32.totalorder %s294, %s310
    %p312 = scmp.eq.s32.totalorder %s24, 0
    %p313 = por %p311, %p312
    %p314 = scmp.le.s32.totalorder 1, %s18
    %p315 = scmp.lt.s32.totalorder %s18, 3
    %p316 = pnand %p314, %p315
    %p317 = pneg %p316
    // Predicated region
    $region9: #{seq2seq_forward.20} parent=5 // pred_check
      _
    $region10: #{seq2seq_forward.20} parent=5 // pred_check_branch
      %319 = sbr.rel (%p316) target = $region12
    $region11: #{seq2seq_forward.20} parent=5 // pred_region
      %s320 = ssub.s32 %s18, 1
      // Predicated region
      $region13: #{seq2seq_forward.20} parent=11 // pred_check
        %p321 = pneg %p91
      $region14: #{seq2seq_forward.20} parent=11 // pred_check_branch
        %323 = sbr.rel (%p321) target = $region16
      $region15: #{seq2seq_forward.20} parent=11 // pred_region
        _
      $region16: #{seq2seq_forward.20} parent=11 // pred_fallthru
        _
      // Predicated region
      $region17: #{seq2seq_forward.20} parent=11 // pred_check
        %p324 = pneg %p112
      $region18: #{seq2seq_forward.20} parent=11 // pred_check_branch
        %326 = sbr.rel (%p324) target = $region20
      $region19: #{seq2seq_forward.20} parent=11 // pred_region
        _
      $region20: #{seq2seq_forward.20} parent=11 // pred_fallthru
        _
      // Predicated region
      $region21: #{seq2seq_forward.20} parent=11 // pred_check
        %p327 = pneg %p133
      $region22: #{seq2seq_forward.20} parent=11 // pred_check_branch
        %329 = sbr.rel (%p327) target = $region24
      $region23: #{seq2seq_forward.20} parent=11 // pred_region
        _
      $region24: #{seq2seq_forward.20} parent=11 // pred_fallthru
        _
      // Predicated region
      $region25: #{seq2seq_forward.20} parent=11 // pred_check
        %p330 = pneg %p154
      $region26: #{seq2seq_forward.20} parent=11 // pred_check_branch
        %332 = sbr.rel (%p330) target = $region28
      $region27: #{seq2seq_forward.20} parent=11 // pred_region
        _
      $region28: #{seq2seq_forward.20} parent=11 // pred_fallthru
        _
      // Predicated region
      $region29: #{seq2seq_forward.20} parent=11 // pred_check
        %p333 = pneg %p175
      $region30: #{seq2seq_forward.20} parent=11 // pred_check_branch
        %335 = sbr.rel (%p333) target = $region32
      $region31: #{seq2seq_forward.20} parent=11 // pred_region
        _
      $region32: #{seq2seq_forward.20} parent=11 // pred_fallthru
        _
      // Predicated region
      $region33: #{seq2seq_forward.20} parent=11 // pred_check
        %p336 = pneg %p196
      $region34: #{seq2seq_forward.20} parent=11 // pred_check_branch
        %338 = sbr.rel (%p336) target = $region36
      $region35: #{seq2seq_forward.20} parent=11 // pred_region
        _
      $region36: #{seq2seq_forward.20} parent=11 // pred_fallthru
        _
      // Predicated region
      $region37: #{seq2seq_forward.20} parent=11 // pred_check
        %p339 = pneg %p217
      $region38: #{seq2seq_forward.20} parent=11 // pred_check_branch
        %341 = sbr.rel (%p339) target = $region40
      $region39: #{seq2seq_forward.20} parent=11 // pred_region
        _
      $region40: #{seq2seq_forward.20} parent=11 // pred_fallthru
        _
      // Predicated region
      $region41: #{seq2seq_forward.20} parent=11 // pred_check
        %p342 = pneg %p238
      $region42: #{seq2seq_forward.20} parent=11 // pred_check_branch
        %344 = sbr.rel (%p342) target = $region44
      $region43: #{seq2seq_forward.20} parent=11 // pred_region
        _
      $region44: #{seq2seq_forward.20} parent=11 // pred_fallthru
        _
      // Predicated region
      $region45: #{seq2seq_forward.20} parent=11 // pred_check
        %p345 = pneg %p259
      $region46: #{seq2seq_forward.20} parent=11 // pred_check_branch
        %347 = sbr.rel (%p345) target = $region48
      $region47: #{seq2seq_forward.20} parent=11 // pred_region
        _
      $region48: #{seq2seq_forward.20} parent=11 // pred_fallthru
        _
      // Predicated region
      $region49: #{seq2seq_forward.20} parent=11 // pred_check
        %p348 = pneg %p280
      $region50: #{seq2seq_forward.20} parent=11 // pred_check_branch
        %350 = sbr.rel (%p348) target = $region52
      $region51: #{seq2seq_forward.20} parent=11 // pred_region
        _
      $region52: #{seq2seq_forward.20} parent=11 // pred_fallthru
        _
    $region12: #{seq2seq_forward.20} parent=5 // pred_fallthru
      _
    %p351 = scmp.lt.s32.totalorder %s18, 2
    // Predicated region
    $region53: #{seq2seq_forward.20} parent=5 // pred_check
      %p352 = pneg %p351
    $region54: #{seq2seq_forward.20} parent=5 // pred_check_branch
      %354 = sbr.rel (%p352) target = $region56
    $region55: #{seq2seq_forward.20} parent=5 // pred_region
      // Predicated region
      $region57: #{seq2seq_forward.20} parent=55 // pred_check
        %p355 = pneg %p38
      $region58: #{seq2seq_forward.20} parent=55 // pred_check_branch
        %357 = sbr.rel (%p355) target = $region60
      $region59: #{seq2seq_forward.20} parent=55 // pred_region
        %p358 = scmp.lt.s32.totalorder %s18, 1
        %s359 = scalar_select %p358, %s18, 1
        %s360 = smul.addr %s359, 8
        %s361 = scalar_lea.vmem %s0, %s360
      $region60: #{seq2seq_forward.20} parent=55 // pred_fallthru
        _
      // Predicated region
      $region61: #{seq2seq_forward.20} parent=55 // pred_check
        %p362 = pneg %p64
      $region62: #{seq2seq_forward.20} parent=55 // pred_check_branch
        %364 = sbr.rel (%p362) target = $region64
      $region63: #{seq2seq_forward.20} parent=55 // pred_region
        %p365 = scmp.lt.s32.totalorder %s18, 1
        %s366 = scalar_select %p365, %s18, 1
        %s367 = smul.addr %s366, 8
        %s368 = scalar_lea.vmem %s1, %s367
      $region64: #{seq2seq_forward.20} parent=55 // pred_fallthru
        _
    $region56: #{seq2seq_forward.20} parent=5 // pred_fallthru
      _
    %p369 = scmp.le.s32.totalorder 1, %s18
    %p370 = scmp.lt.s32.totalorder %s18, 3
    %p371 = pnand %p369, %p370
    %p372 = pneg %p371
    // Predicated region
    $region65: #{seq2seq_forward.20} parent=5 // pred_check
      _
    $region66: #{seq2seq_forward.20} parent=5 // pred_check_branch
      %374 = sbr.rel (%p371) target = $region68
    $region67: #{seq2seq_forward.20} parent=5 // pred_region
      %s375 = ssub.s32 %s18, 1
      %p376 = scmp.lt.s32.totalorder %s23, 1
      %s377 = scalar_select %p376, %s23, 1
      %s378 = smul.addr %s377, 8
      %s379 = scalar_lea.vmem %s0, %s378
      %p380 = pneg %p44
      %p381 = pneg %p41
      %p382 = scmp.lt.s32.totalorder %s23, 1
      %s383 = scalar_select %p382, %s23, 1
      %s384 = smul.addr %s383, 8
      %s385 = scalar_lea.vmem %s1, %s384
      %p386 = pneg %p70
      %p387 = pneg %p67
      %p388 = pneg %p91
      %p389 = pneg %p88
      %p390 = pneg %p112
      %p391 = pneg %p109
      %p392 = pneg %p133
      %p393 = pneg %p130
      %p394 = pneg %p154
      %p395 = pneg %p151
      %p396 = pneg %p175
      %p397 = pneg %p172
      %p398 = pneg %p196
      %p399 = pneg %p193
      %p400 = pneg %p217
      %p401 = pneg %p214
      %p402 = pneg %p238
      %p403 = pneg %p235
      %p404 = pneg %p259
      %p405 = pneg %p256
      %p406 = pneg %p280
      %p407 = pneg %p277
      %p408 = pneg %p306
      %p409 = pneg %p303
      %p410 = scmp.lt.s32.totalorder %s23, 1
      %s411 = scalar_select %p410, %s23, 1
      %s412 = smul.addr %s411, 8
      %s413 = scalar_lea.vmem %s12, %s412
      %p414 = scmp.lt.s32.totalorder %s23, 1
      %s415 = scalar_select %p414, %s23, 1
      %s416 = smul.addr %s415, 8
      %s417 = scalar_lea.vmem %s0, %s416
      %p418 = scmp.lt.s32.totalorder %s23, 1
      %s419 = scalar_select %p418, %s23, 1
      %s420 = smul.addr %s419, 8
      %s421 = scalar_lea.vmem %s1, %s420
      %p422 = scmp.lt.s32.totalorder %s23, 1
      %s423 = scalar_select %p422, %s23, 1
      %s424 = smul.addr %s423, 8
      %s425 = scalar_lea.vmem %s12, %s424
      %v426 = vld [vmem:[%s417] sm:$0xff]
      %v427 = vld [vmem:[%s421] sm:$0xff]
      %v428 = vld [vmem:[%s2] sm:$0xff]
      %v429 = vld [vmem:[%s2 + $0x8] sm:$0xff]
      %v430 = vld [vmem:[%s2 + $0x10] sm:$0xff]
      %v431 = vld [vmem:[%s2 + $0x18] sm:$0xff]
      %v432 = vld [vmem:[%s3] sm:$0x1]
      %v434 = vlaneseq
      %v435 = vshrl.u32 %v434, 7
      %v436 = vsub.s32 0, %v435
      %v437 = vrot.slane %v432, %v436
      %vm439 = vcmask 261120
      %v441 = vsel %vm439, %v426, 0
      %443 = vmatprep.subr.mxu0 0.0
      %444 = vmatpush1.msra.mxu0 0.0
      %445 = vmatprep.subr.mxu0 0.0
      %446 = vmatpush1.msra.mxu0 0.0
      %447 = vmatprep.subr.mxu0 0.0
      %448 = vmatpush1.msra.mxu0 0.0
      %449 = vmatprep.subr.mxu0 0.0
      %450 = vmatpush1.msra.mxu0 0.0
      %451 = vmatprep.subr.mxu0 0.0
      %452 = vmatpush1.msra.mxu0 0.0
      %453 = vmatprep.subr.mxu0 0.0
      %454 = vmatpush1.msra.mxu0 0.0
      %455 = vmatprep.subr.mxu0 0.0
      %456 = vmatpush1.msra.mxu0 0.0
      %457 = vmatprep.subr.mxu0 0.0
      %458 = vmatpush1.msra.mxu0 0.0
      %459 = vmatprep.subr.mxu0 0.0
      %460 = vmatpush1.msra.mxu0 0.0
      %461 = vmatprep.subr.mxu0 0.0
      %462 = vmatpush1.msra.mxu0 0.0
      %463 = vmatprep.subr.mxu0 0.0
      %464 = vmatpush1.msra.mxu0 0.0
      %465 = vmatprep.subr.mxu0 0.0
      %466 = vmatpush1.msra.mxu0 0.0
      %467 = vmatprep.subr.mxu0 0.0
      %468 = vmatpush1.msra.mxu0 %v431
      %469 = vmatprep.subr.mxu0 0.0
      %470 = vmatpush1.msra.mxu0 %v430
      %471 = vmatprep.subr.mxu0 0.0
      %472 = vmatpush1.msra.mxu0 %v429
      %473 = vmatprep.subr.mxu0 0.0
      %474 = vmatpush1.msra.mxu0 %v428
      %475 = vmatprep.subr.mxu0 0.0
      %476 = vmatpush2.msra.mxu0 0.0
      %477 = vmatprep.subr.mxu0 0.0
      %478 = vmatpush2.msra.mxu0 0.0
      %479 = vmatprep.subr.mxu0 0.0
      %480 = vmatpush2.msra.mxu0 0.0
      %481 = vmatprep.subr.mxu0 0.0
      %482 = vmatpush2.msra.mxu0 0.0
      %483 = vmatprep.subr.mxu0 0.0
      %484 = vmatpush2.msra.mxu0 0.0
      %485 = vmatprep.subr.mxu0 0.0
      %486 = vmatpush2.msra.mxu0 0.0
      %487 = vmatprep.subr.mxu0 0.0
      %488 = vmatpush2.msra.mxu0 0.0
      %489 = vmatprep.subr.mxu0 0.0
      %490 = vmatpush2.msra.mxu0 0.0
      %491 = vmatprep.subr.mxu0 0.0
      %492 = vmatpush2.msra.mxu0 0.0
      %493 = vmatprep.subr.mxu0 0.0
      %494 = vmatpush2.msra.mxu0 0.0
      %495 = vmatprep.subr.mxu0 0.0
      %496 = vmatpush2.msra.mxu0 0.0
      %497 = vmatprep.subr.mxu0 0.0
      %498 = vmatpush2.msra.mxu0 0.0
      %499 = vmatprep.subr.mxu0 0.0
      %500 = vmatpush2.msra.mxu0 0.0
      %501 = vmatprep.subr.mxu0 0.0
      %502 = vmatpush2.msra.mxu0 0.0
      %503 = vmatprep.subr.mxu0 0.0
      %504 = vmatpush2.msra.mxu0 0.0
      %505 = vmatprep.subr.mxu0 0.0
      %506 = vmatpush2.msra.mxu0 0.0
      %507 = vmatprep.mubr.f32.mxu0 0.0
      %508 = vmatmul.mubr.f32.gmra.mxu0 %v441
      %v509 = vpop.f32.mrf.mxu0
      %v510 = vadd.f32 %v437, %v509
      %v511 = vpop.f32.mrf.mxu0
      %512 = vdwg.mxu0
      %v513 = vld [vmem:[%s4] sm:$0xff]
      %v514 = vld [vmem:[%s4 + $0x8] sm:$0xff]
      %v515 = vld [vmem:[%s4 + $0x10] sm:$0xff]
      %v516 = vld [vmem:[%s4 + $0x18] sm:$0xff]
      %v517 = vld [vmem:[%s5] sm:$0x1]
      %v519 = vlaneseq
      %v520 = vshrl.u32 %v519, 7
      %v521 = vsub.s32 0, %v520
      %v522 = vrot.slane %v517, %v521
      %v525 = vsel %vm439, %v427, 0
      %527 = vmatprep.subr.mxu0 0.0
      %528 = vmatpush1.msra.mxu0 0.0
      %529 = vmatprep.subr.mxu0 0.0
      %530 = vmatpush1.msra.mxu0 0.0
      %531 = vmatprep.subr.mxu0 0.0
      %532 = vmatpush1.msra.mxu0 0.0
      %533 = vmatprep.subr.mxu0 0.0
      %534 = vmatpush1.msra.mxu0 0.0
      %535 = vmatprep.subr.mxu0 0.0
      %536 = vmatpush1.msra.mxu0 0.0
      %537 = vmatprep.subr.mxu0 0.0
      %538 = vmatpush1.msra.mxu0 0.0
      %539 = vmatprep.subr.mxu0 0.0
      %540 = vmatpush1.msra.mxu0 0.0
      %541 = vmatprep.subr.mxu0 0.0
      %542 = vmatpush1.msra.mxu0 0.0
      %543 = vmatprep.subr.mxu0 0.0
      %544 = vmatpush1.msra.mxu0 0.0
      %545 = vmatprep.subr.mxu0 0.0
      %546 = vmatpush1.msra.mxu0 0.0
      %547 = vmatprep.subr.mxu0 0.0
      %548 = vmatpush1.msra.mxu0 0.0
      %549 = vmatprep.subr.mxu0 0.0
      %550 = vmatpush1.msra.mxu0 0.0
      %551 = vmatprep.subr.mxu0 0.0
      %552 = vmatpush1.msra.mxu0 %v516
      %553 = vmatprep.subr.mxu0 0.0
      %554 = vmatpush1.msra.mxu0 %v515
      %555 = vmatprep.subr.mxu0 0.0
      %556 = vmatpush1.msra.mxu0 %v514
      %557 = vmatprep.subr.mxu0 0.0
      %558 = vmatpush1.msra.mxu0 %v513
      %559 = vmatprep.subr.mxu0 0.0
      %560 = vmatpush2.msra.mxu0 0.0
      %561 = vmatprep.subr.mxu0 0.0
      %562 = vmatpush2.msra.mxu0 0.0
      %563 = vmatprep.subr.mxu0 0.0
      %564 = vmatpush2.msra.mxu0 0.0
      %565 = vmatprep.subr.mxu0 0.0
      %566 = vmatpush2.msra.mxu0 0.0
      %567 = vmatprep.subr.mxu0 0.0
      %568 = vmatpush2.msra.mxu0 0.0
      %569 = vmatprep.subr.mxu0 0.0
      %570 = vmatpush2.msra.mxu0 0.0
      %571 = vmatprep.subr.mxu0 0.0
      %572 = vmatpush2.msra.mxu0 0.0
      %573 = vmatprep.subr.mxu0 0.0
      %574 = vmatpush2.msra.mxu0 0.0
      %575 = vmatprep.subr.mxu0 0.0
      %576 = vmatpush2.msra.mxu0 0.0
      %577 = vmatprep.subr.mxu0 0.0
      %578 = vmatpush2.msra.mxu0 0.0
      %579 = vmatprep.subr.mxu0 0.0
      %580 = vmatpush2.msra.mxu0 0.0
      %581 = vmatprep.subr.mxu0 0.0
      %582 = vmatpush2.msra.mxu0 0.0
      %583 = vmatprep.subr.mxu0 0.0
      %584 = vmatpush2.msra.mxu0 0.0
      %585 = vmatprep.subr.mxu0 0.0
      %586 = vmatpush2.msra.mxu0 0.0
      %587 = vmatprep.subr.mxu0 0.0
      %588 = vmatpush2.msra.mxu0 0.0
      %589 = vmatprep.subr.mxu0 0.0
      %590 = vmatpush2.msra.mxu0 0.0
      %591 = vmatprep.mubr.f32.mxu0 0.0
      %592 = vmatmul.mubr.f32.gmra.mxu0 %v525
      %v593 = vpop.f32.mrf.mxu0
      %v594 = vadd.f32 %v522, %v593
      %v595 = vpop.f32.mrf.mxu0
      %596 = vdwg.mxu0
      %v597 = vld [vmem:[%s6] sm:$0xff]
      %v598 = vld [vmem:[%s6 + $0x8] sm:$0xff]
      %v599 = vld [vmem:[%s6 + $0x10] sm:$0xff]
      %v600 = vld [vmem:[%s6 + $0x18] sm:$0xff]
      %v601 = vld [vmem:[%s7] sm:$0x1]
      %v603 = vlaneseq
      %v604 = vshrl.u32 %v603, 7
      %v605 = vsub.s32 0, %v604
      %v606 = vrot.slane %v601, %v605
      %608 = vmatprep.subr.mxu0 0.0
      %609 = vmatpush1.msra.mxu0 0.0
      %610 = vmatprep.subr.mxu0 0.0
      %611 = vmatpush1.msra.mxu0 0.0
      %612 = vmatprep.subr.mxu0 0.0
      %613 = vmatpush1.msra.mxu0 0.0
      %614 = vmatprep.subr.mxu0 0.0
      %615 = vmatpush1.msra.mxu0 0.0
      %616 = vmatprep.subr.mxu0 0.0
      %617 = vmatpush1.msra.mxu0 0.0
      %618 = vmatprep.subr.mxu0 0.0
      %619 = vmatpush1.msra.mxu0 0.0
      %620 = vmatprep.subr.mxu0 0.0
      %621 = vmatpush1.msra.mxu0 0.0
      %622 = vmatprep.subr.mxu0 0.0
      %623 = vmatpush1.msra.mxu0 0.0
      %624 = vmatprep.subr.mxu0 0.0
      %625 = vmatpush1.msra.mxu0 0.0
      %626 = vmatprep.subr.mxu0 0.0
      %627 = vmatpush1.msra.mxu0 0.0
      %628 = vmatprep.subr.mxu0 0.0
      %629 = vmatpush1.msra.mxu0 0.0
      %630 = vmatprep.subr.mxu0 0.0
      %631 = vmatpush1.msra.mxu0 0.0
      %632 = vmatprep.subr.mxu0 0.0
      %633 = vmatpush1.msra.mxu0 %v600
      %634 = vmatprep.subr.mxu0 0.0
      %635 = vmatpush1.msra.mxu0 %v599
      %636 = vmatprep.subr.mxu0 0.0
      %637 = vmatpush1.msra.mxu0 %v598
      %638 = vmatprep.subr.mxu0 0.0
      %639 = vmatpush1.msra.mxu0 %v597
      %640 = vmatprep.subr.mxu0 0.0
      %641 = vmatpush2.msra.mxu0 0.0
      %642 = vmatprep.subr.mxu0 0.0
      %643 = vmatpush2.msra.mxu0 0.0
      %644 = vmatprep.subr.mxu0 0.0
      %645 = vmatpush2.msra.mxu0 0.0
      %646 = vmatprep.subr.mxu0 0.0
      %647 = vmatpush2.msra.mxu0 0.0
      %648 = vmatprep.subr.mxu0 0.0
      %649 = vmatpush2.msra.mxu0 0.0
      %650 = vmatprep.subr.mxu0 0.0
      %651 = vmatpush2.msra.mxu0 0.0
      %652 = vmatprep.subr.mxu0 0.0
      %653 = vmatpush2.msra.mxu0 0.0
      %654 = vmatprep.subr.mxu0 0.0
      %655 = vmatpush2.msra.mxu0 0.0
      %656 = vmatprep.subr.mxu0 0.0
      %657 = vmatpush2.msra.mxu0 0.0
      %658 = vmatprep.subr.mxu0 0.0
      %659 = vmatpush2.msra.mxu0 0.0
      %660 = vmatprep.subr.mxu0 0.0
      %661 = vmatpush2.msra.mxu0 0.0
      %662 = vmatprep.subr.mxu0 0.0
      %663 = vmatpush2.msra.mxu0 0.0
      %664 = vmatprep.subr.mxu0 0.0
      %665 = vmatpush2.msra.mxu0 0.0
      %666 = vmatprep.subr.mxu0 0.0
      %667 = vmatpush2.msra.mxu0 0.0
      %668 = vmatprep.subr.mxu0 0.0
      %669 = vmatpush2.msra.mxu0 0.0
      %670 = vmatprep.subr.mxu0 0.0
      %671 = vmatpush2.msra.mxu0 0.0
      %672 = vmatprep.mubr.f32.mxu0 0.0
      %673 = vmatmul.mubr.f32.gmra.mxu0 %v525
      %v674 = vpop.f32.mrf.mxu0
      %v675 = vadd.f32 %v606, %v674
      %v676 = vpop.f32.mrf.mxu0
      %677 = vdwg.mxu0
      %vm678 = vcmask 64512
      %v680 = vsel %vm678, %v510, 0
      %v683 = vsel %vm678, %v594, 0
      %685 = vmatprep.subr.mxu0 0.0
      %686 = vmatpush1.xpose.msra.mxu0 0.0
      %687 = vmatprep.subr.mxu0 0.0
      %688 = vmatpush1.xpose.msra.mxu0 0.0
      %689 = vmatprep.subr.mxu0 0.0
      %690 = vmatpush1.xpose.msra.mxu0 0.0
      %691 = vmatprep.subr.mxu0 0.0
      %692 = vmatpush1.xpose.msra.mxu0 0.0
      %693 = vmatprep.subr.mxu0 0.0
      %694 = vmatpush1.xpose.msra.mxu0 0.0
      %695 = vmatprep.subr.mxu0 0.0
      %696 = vmatpush1.xpose.msra.mxu0 0.0
      %697 = vmatprep.subr.mxu0 0.0
      %698 = vmatpush1.xpose.msra.mxu0 0.0
      %699 = vmatprep.subr.mxu0 0.0
      %700 = vmatpush1.xpose.msra.mxu0 0.0
      %701 = vmatprep.subr.mxu0 0.0
      %702 = vmatpush1.xpose.msra.mxu0 0.0
      %703 = vmatprep.subr.mxu0 0.0
      %704 = vmatpush1.xpose.msra.mxu0 0.0
      %705 = vmatprep.subr.mxu0 0.0
      %706 = vmatpush1.xpose.msra.mxu0 0.0
      %707 = vmatprep.subr.mxu0 0.0
      %708 = vmatpush1.xpose.msra.mxu0 0.0
      %709 = vmatprep.subr.mxu0 0.0
      %710 = vmatpush1.xpose.msra.mxu0 0.0
      %711 = vmatprep.subr.mxu0 0.0
      %712 = vmatpush1.xpose.msra.mxu0 0.0
      %713 = vmatprep.subr.mxu0 0.0
      %714 = vmatpush1.xpose.msra.mxu0 0.0
      %715 = vmatprep.subr.mxu0 0.0
      %716 = vmatpush1.xpose.msra.mxu0 %v683
      %717 = vmatprep.subr.mxu0 0.0
      %718 = vmatpush2.xpose.msra.mxu0 0.0
      %719 = vmatprep.subr.mxu0 0.0
      %720 = vmatpush2.xpose.msra.mxu0 0.0
      %721 = vmatprep.subr.mxu0 0.0
      %722 = vmatpush2.xpose.msra.mxu0 0.0
      %723 = vmatprep.subr.mxu0 0.0
      %724 = vmatpush2.xpose.msra.mxu0 0.0
      %725 = vmatprep.subr.mxu0 0.0
      %726 = vmatpush2.xpose.msra.mxu0 0.0
      %727 = vmatprep.subr.mxu0 0.0
      %728 = vmatpush2.xpose.msra.mxu0 0.0
      %729 = vmatprep.subr.mxu0 0.0
      %730 = vmatpush2.xpose.msra.mxu0 0.0
      %731 = vmatprep.subr.mxu0 0.0
      %732 = vmatpush2.xpose.msra.mxu0 0.0
      %733 = vmatprep.subr.mxu0 0.0
      %734 = vmatpush2.xpose.msra.mxu0 0.0
      %735 = vmatprep.subr.mxu0 0.0
      %736 = vmatpush2.xpose.msra.mxu0 0.0
      %737 = vmatprep.subr.mxu0 0.0
      %738 = vmatpush2.xpose.msra.mxu0 0.0
      %739 = vmatprep.subr.mxu0 0.0
      %740 = vmatpush2.xpose.msra.mxu0 0.0
      %741 = vmatprep.subr.mxu0 0.0
      %742 = vmatpush2.xpose.msra.mxu0 0.0
      %743 = vmatprep.subr.mxu0 0.0
      %744 = vmatpush2.xpose.msra.mxu0 0.0
      %745 = vmatprep.subr.mxu0 0.0
      %746 = vmatpush2.xpose.msra.mxu0 0.0
      %747 = vmatprep.subr.mxu0 0.0
      %748 = vmatpush2.xpose.msra.mxu0 0.0
      %749 = vmatprep.mubr.f32.mxu0 0.0
      %750 = vmatmul.mubr.f32.gmra.mxu0 %v680
      %v751 = vpop.f32.mrf.mxu0
      %v752 = vadd.f32 0.0, %v751
      %v753 = vpop.f32.mrf.mxu0
      %754 = vdwg.mxu0
      %v755 = vsel %vm678, %v752, -inf
      %756 = vmax.xlane.f32.xlu0 %v755
      %v757 = vpop.xlane.xlu0 %756
      %v758 = vsub.f32 %v752, %v757
      %v759 = vmul.f32 %v758, 1.442695
      %v760 = vpow.pop %v759
      %v761 = vsel %vm678, %v760, 0.0
      %762 = vadd.xlane.f32.xlu0 %v761
      %v763 = vpop.xlane.xlu0 %762
      %v764 = vrcp.pop %v763
      %v765 = vmul.f32 %v760, %v764
      %v767 = vsel %vm678, %v765, 0
      %769 = vmatprep.subr.mxu0 0.0
      %770 = vmatpush1.msra.mxu0 0.0
      %771 = vmatprep.subr.mxu0 0.0
      %772 = vmatpush1.msra.mxu0 0.0
      %773 = vmatprep.subr.mxu0 0.0
      %774 = vmatpush1.msra.mxu0 0.0
      %775 = vmatprep.subr.mxu0 0.0
      %776 = vmatpush1.msra.mxu0 0.0
      %777 = vmatprep.subr.mxu0 0.0
      %778 = vmatpush1.msra.mxu0 0.0
      %779 = vmatprep.subr.mxu0 0.0
      %780 = vmatpush1.msra.mxu0 0.0
      %781 = vmatprep.subr.mxu0 0.0
      %782 = vmatpush1.msra.mxu0 0.0
      %783 = vmatprep.subr.mxu0 0.0
      %784 = vmatpush1.msra.mxu0 0.0
      %785 = vmatprep.subr.mxu0 0.0
      %786 = vmatpush1.msra.mxu0 0.0
      %787 = vmatprep.subr.mxu0 0.0
      %788 = vmatpush1.msra.mxu0 0.0
      %789 = vmatprep.subr.mxu0 0.0
      %790 = vmatpush1.msra.mxu0 0.0
      %791 = vmatprep.subr.mxu0 0.0
      %792 = vmatpush1.msra.mxu0 0.0
      %793 = vmatprep.subr.mxu0 0.0
      %794 = vmatpush1.msra.mxu0 0.0
      %795 = vmatprep.subr.mxu0 0.0
      %796 = vmatpush1.msra.mxu0 0.0
      %797 = vmatprep.subr.mxu0 0.0
      %798 = vmatpush1.msra.mxu0 0.0
      %799 = vmatprep.subr.mxu0 0.0
      %800 = vmatpush1.msra.mxu0 %v675
      %801 = vmatprep.subr.mxu0 0.0
      %802 = vmatpush2.msra.mxu0 0.0
      %803 = vmatprep.subr.mxu0 0.0
      %804 = vmatpush2.msra.mxu0 0.0
      %805 = vmatprep.subr.mxu0 0.0
      %806 = vmatpush2.msra.mxu0 0.0
      %807 = vmatprep.subr.mxu0 0.0
      %808 = vmatpush2.msra.mxu0 0.0
      %809 = vmatprep.subr.mxu0 0.0
      %810 = vmatpush2.msra.mxu0 0.0
      %811 = vmatprep.subr.mxu0 0.0
      %812 = vmatpush2.msra.mxu0 0.0
      %813 = vmatprep.subr.mxu0 0.0
      %814 = vmatpush2.msra.mxu0 0.0
      %815 = vmatprep.subr.mxu0 0.0
      %816 = vmatpush2.msra.mxu0 0.0
      %817 = vmatprep.subr.mxu0 0.0
      %818 = vmatpush2.msra.mxu0 0.0
      %819 = vmatprep.subr.mxu0 0.0
      %820 = vmatpush2.msra.mxu0 0.0
      %821 = vmatprep.subr.mxu0 0.0
      %822 = vmatpush2.msra.mxu0 0.0
      %823 = vmatprep.subr.mxu0 0.0
      %824 = vmatpush2.msra.mxu0 0.0
      %825 = vmatprep.subr.mxu0 0.0
      %826 = vmatpush2.msra.mxu0 0.0
      %827 = vmatprep.subr.mxu0 0.0
      %828 = vmatpush2.msra.mxu0 0.0
      %829 = vmatprep.subr.mxu0 0.0
      %830 = vmatpush2.msra.mxu0 0.0
      %831 = vmatprep.subr.mxu0 0.0
      %832 = vmatpush2.msra.mxu0 0.0
      %833 = vmatprep.mubr.f32.mxu0 0.0
      %834 = vmatmul.mubr.f32.gmra.mxu0 %v767
      %v835 = vpop.f32.mrf.mxu0
      %v836 = vadd.f32 0.0, %v835
      %v837 = vpop.f32.mrf.mxu0
      %838 = vdwg.mxu0
      %v839 = vld [vmem:[%s8] sm:$0xff]
      %s840 = scalar_lea.vmem %s2, 32
      %v841 = vld [vmem:[%s840] sm:$0xff]
      %v842 = vld [vmem:[%s840 + $0x8] sm:$0xff]
      %v843 = vld [vmem:[%s840 + $0x10] sm:$0xff]
      %v844 = vld [vmem:[%s840 + $0x18] sm:$0xff]
      %s845 = scalar_lea.vmem %s3, 1
      %v846 = vld [vmem:[%s845] sm:$0x1]
      %v848 = vlaneseq
      %v849 = vshrl.u32 %v848, 7
      %v850 = vsub.s32 0, %v849
      %v851 = vrot.slane %v846, %v850
      %853 = vmatprep.subr.mxu0 0.0
      %854 = vmatpush1.msra.mxu0 0.0
      %855 = vmatprep.subr.mxu0 0.0
      %856 = vmatpush1.msra.mxu0 0.0
      %857 = vmatprep.subr.mxu0 0.0
      %858 = vmatpush1.msra.mxu0 0.0
      %859 = vmatprep.subr.mxu0 0.0
      %860 = vmatpush1.msra.mxu0 0.0
      %861 = vmatprep.subr.mxu0 0.0
      %862 = vmatpush1.msra.mxu0 0.0
      %863 = vmatprep.subr.mxu0 0.0
      %864 = vmatpush1.msra.mxu0 0.0
      %865 = vmatprep.subr.mxu0 0.0
      %866 = vmatpush1.msra.mxu0 0.0
      %867 = vmatprep.subr.mxu0 0.0
      %868 = vmatpush1.msra.mxu0 0.0
      %869 = vmatprep.subr.mxu0 0.0
      %870 = vmatpush1.msra.mxu0 0.0
      %871 = vmatprep.subr.mxu0 0.0
      %872 = vmatpush1.msra.mxu0 0.0
      %873 = vmatprep.subr.mxu0 0.0
      %874 = vmatpush1.msra.mxu0 0.0
      %875 = vmatprep.subr.mxu0 0.0
      %876 = vmatpush1.msra.mxu0 0.0
      %877 = vmatprep.subr.mxu0 0.0
      %878 = vmatpush1.msra.mxu0 %v844
      %879 = vmatprep.subr.mxu0 0.0
      %880 = vmatpush1.msra.mxu0 %v843
      %881 = vmatprep.subr.mxu0 0.0
      %882 = vmatpush1.msra.mxu0 %v842
      %883 = vmatprep.subr.mxu0 0.0
      %884 = vmatpush1.msra.mxu0 %v841
      %885 = vmatprep.subr.mxu0 0.0
      %886 = vmatpush2.msra.mxu0 0.0
      %887 = vmatprep.subr.mxu0 0.0
      %888 = vmatpush2.msra.mxu0 0.0
      %889 = vmatprep.subr.mxu0 0.0
      %890 = vmatpush2.msra.mxu0 0.0
      %891 = vmatprep.subr.mxu0 0.0
      %892 = vmatpush2.msra.mxu0 0.0
      %893 = vmatprep.subr.mxu0 0.0
      %894 = vmatpush2.msra.mxu0 0.0
      %895 = vmatprep.subr.mxu0 0.0
      %896 = vmatpush2.msra.mxu0 0.0
      %897 = vmatprep.subr.mxu0 0.0
      %898 = vmatpush2.msra.mxu0 0.0
      %899 = vmatprep.subr.mxu0 0.0
      %900 = vmatpush2.msra.mxu0 0.0
      %901 = vmatprep.subr.mxu0 0.0
      %902 = vmatpush2.msra.mxu0 0.0
      %903 = vmatprep.subr.mxu0 0.0
      %904 = vmatpush2.msra.mxu0 0.0
      %905 = vmatprep.subr.mxu0 0.0
      %906 = vmatpush2.msra.mxu0 0.0
      %907 = vmatprep.subr.mxu0 0.0
      %908 = vmatpush2.msra.mxu0 0.0
      %909 = vmatprep.subr.mxu0 0.0
      %910 = vmatpush2.msra.mxu0 0.0
      %911 = vmatprep.subr.mxu0 0.0
      %912 = vmatpush2.msra.mxu0 0.0
      %913 = vmatprep.subr.mxu0 0.0
      %914 = vmatpush2.msra.mxu0 0.0
      %915 = vmatprep.subr.mxu0 0.0
      %916 = vmatpush2.msra.mxu0 0.0
      %917 = vmatprep.mubr.f32.mxu0 0.0
      %918 = vmatmul.mubr.f32.gmra.mxu0 %v441
      %v919 = vpop.f32.mrf.mxu0
      %v920 = vadd.f32 %v851, %v919
      %v921 = vpop.f32.mrf.mxu0
      %922 = vdwg.mxu0
      %s923 = scalar_lea.vmem %s4, 32
      %v924 = vld [vmem:[%s923] sm:$0xff]
      %v925 = vld [vmem:[%s923 + $0x8] sm:$0xff]
      %v926 = vld [vmem:[%s923 + $0x10] sm:$0xff]
      %v927 = vld [vmem:[%s923 + $0x18] sm:$0xff]
      %s928 = scalar_lea.vmem %s5, 1
      %v929 = vld [vmem:[%s928] sm:$0x1]
      %v931 = vlaneseq
      %v932 = vshrl.u32 %v931, 7
      %v933 = vsub.s32 0, %v932
      %v934 = vrot.slane %v929, %v933
      %936 = vmatprep.subr.mxu0 0.0
      %937 = vmatpush1.msra.mxu0 0.0
      %938 = vmatprep.subr.mxu0 0.0
      %939 = vmatpush1.msra.mxu0 0.0
      %940 = vmatprep.subr.mxu0 0.0
      %941 = vmatpush1.msra.mxu0 0.0
      %942 = vmatprep.subr.mxu0 0.0
      %943 = vmatpush1.msra.mxu0 0.0
      %944 = vmatprep.subr.mxu0 0.0
      %945 = vmatpush1.msra.mxu0 0.0
      %946 = vmatprep.subr.mxu0 0.0
      %947 = vmatpush1.msra.mxu0 0.0
      %948 = vmatprep.subr.mxu0 0.0
      %949 = vmatpush1.msra.mxu0 0.0
      %950 = vmatprep.subr.mxu0 0.0
      %951 = vmatpush1.msra.mxu0 0.0
      %952 = vmatprep.subr.mxu0 0.0
      %953 = vmatpush1.msra.mxu0 0.0
      %954 = vmatprep.subr.mxu0 0.0
      %955 = vmatpush1.msra.mxu0 0.0
      %956 = vmatprep.subr.mxu0 0.0
      %957 = vmatpush1.msra.mxu0 0.0
      %958 = vmatprep.subr.mxu0 0.0
      %959 = vmatpush1.msra.mxu0 0.0
      %960 = vmatprep.subr.mxu0 0.0
      %961 = vmatpush1.msra.mxu0 %v927
      %962 = vmatprep.subr.mxu0 0.0
      %963 = vmatpush1.msra.mxu0 %v926
      %964 = vmatprep.subr.mxu0 0.0
      %965 = vmatpush1.msra.mxu0 %v925
      %966 = vmatprep.subr.mxu0 0.0
      %967 = vmatpush1.msra.mxu0 %v924
      %968 = vmatprep.subr.mxu0 0.0
      %969 = vmatpush2.msra.mxu0 0.0
      %970 = vmatprep.subr.mxu0 0.0
      %971 = vmatpush2.msra.mxu0 0.0
      %972 = vmatprep.subr.mxu0 0.0
      %973 = vmatpush2.msra.mxu0 0.0
      %974 = vmatprep.subr.mxu0 0.0
      %975 = vmatpush2.msra.mxu0 0.0
      %976 = vmatprep.subr.mxu0 0.0
      %977 = vmatpush2.msra.mxu0 0.0
      %978 = vmatprep.subr.mxu0 0.0
      %979 = vmatpush2.msra.mxu0 0.0
      %980 = vmatprep.subr.mxu0 0.0
      %981 = vmatpush2.msra.mxu0 0.0
      %982 = vmatprep.subr.mxu0 0.0
      %983 = vmatpush2.msra.mxu0 0.0
      %984 = vmatprep.subr.mxu0 0.0
      %985 = vmatpush2.msra.mxu0 0.0
      %986 = vmatprep.subr.mxu0 0.0
      %987 = vmatpush2.msra.mxu0 0.0
      %988 = vmatprep.subr.mxu0 0.0
      %989 = vmatpush2.msra.mxu0 0.0
      %990 = vmatprep.subr.mxu0 0.0
      %991 = vmatpush2.msra.mxu0 0.0
      %992 = vmatprep.subr.mxu0 0.0
      %993 = vmatpush2.msra.mxu0 0.0
      %994 = vmatprep.subr.mxu0 0.0
      %995 = vmatpush2.msra.mxu0 0.0
      %996 = vmatprep.subr.mxu0 0.0
      %997 = vmatpush2.msra.mxu0 0.0
      %998 = vmatprep.subr.mxu0 0.0
      %999 = vmatpush2.msra.mxu0 0.0
      %1000 = vmatprep.mubr.f32.mxu0 0.0
      %1001 = vmatmul.mubr.f32.gmra.mxu0 %v525
      %v1002 = vpop.f32.mrf.mxu0
      %v1003 = vadd.f32 %v934, %v1002
      %v1004 = vpop.f32.mrf.mxu0
      %1005 = vdwg.mxu0
      %s1006 = scalar_lea.vmem %s6, 32
      %v1007 = vld [vmem:[%s1006] sm:$0xff]
      %v1008 = vld [vmem:[%s1006 + $0x8] sm:$0xff]
      %v1009 = vld [vmem:[%s1006 + $0x10] sm:$0xff]
      %v1010 = vld [vmem:[%s1006 + $0x18] sm:$0xff]
      %s1011 = scalar_lea.vmem %s7, 1
      %v1012 = vld [vmem:[%s1011] sm:$0x1]
      %v1014 = vlaneseq
      %v1015 = vshrl.u32 %v1014, 7
      %v1016 = vsub.s32 0, %v1015
      %v1017 = vrot.slane %v1012, %v1016
      %1019 = vmatprep.subr.mxu0 0.0
      %1020 = vmatpush1.msra.mxu0 0.0
      %1021 = vmatprep.subr.mxu0 0.0
      %1022 = vmatpush1.msra.mxu0 0.0
      %1023 = vmatprep.subr.mxu0 0.0
      %1024 = vmatpush1.msra.mxu0 0.0
      %1025 = vmatprep.subr.mxu0 0.0
      %1026 = vmatpush1.msra.mxu0 0.0
      %1027 = vmatprep.subr.mxu0 0.0
      %1028 = vmatpush1.msra.mxu0 0.0
      %1029 = vmatprep.subr.mxu0 0.0
      %1030 = vmatpush1.msra.mxu0 0.0
      %1031 = vmatprep.subr.mxu0 0.0
      %1032 = vmatpush1.msra.mxu0 0.0
      %1033 = vmatprep.subr.mxu0 0.0
      %1034 = vmatpush1.msra.mxu0 0.0
      %1035 = vmatprep.subr.mxu0 0.0
      %1036 = vmatpush1.msra.mxu0 0.0
      %1037 = vmatprep.subr.mxu0 0.0
      %1038 = vmatpush1.msra.mxu0 0.0
      %1039 = vmatprep.subr.mxu0 0.0
      %1040 = vmatpush1.msra.mxu0 0.0
      %1041 = vmatprep.subr.mxu0 0.0
      %1042 = vmatpush1.msra.mxu0 0.0
      %1043 = vmatprep.subr.mxu0 0.0
      %1044 = vmatpush1.msra.mxu0 %v1010
      %1045 = vmatprep.subr.mxu0 0.0
      %1046 = vmatpush1.msra.mxu0 %v1009
      %1047 = vmatprep.subr.mxu0 0.0
      %1048 = vmatpush1.msra.mxu0 %v1008
      %1049 = vmatprep.subr.mxu0 0.0
      %1050 = vmatpush1.msra.mxu0 %v1007
      %1051 = vmatprep.subr.mxu0 0.0
      %1052 = vmatpush2.msra.mxu0 0.0
      %1053 = vmatprep.subr.mxu0 0.0
      %1054 = vmatpush2.msra.mxu0 0.0
      %1055 = vmatprep.subr.mxu0 0.0
      %1056 = vmatpush2.msra.mxu0 0.0
      %1057 = vmatprep.subr.mxu0 0.0
      %1058 = vmatpush2.msra.mxu0 0.0
      %1059 = vmatprep.subr.mxu0 0.0
      %1060 = vmatpush2.msra.mxu0 0.0
      %1061 = vmatprep.subr.mxu0 0.0
      %1062 = vmatpush2.msra.mxu0 0.0
      %1063 = vmatprep.subr.mxu0 0.0
      %1064 = vmatpush2.msra.mxu0 0.0
      %1065 = vmatprep.subr.mxu0 0.0
      %1066 = vmatpush2.msra.mxu0 0.0
      %1067 = vmatprep.subr.mxu0 0.0
      %1068 = vmatpush2.msra.mxu0 0.0
      %1069 = vmatprep.subr.mxu0 0.0
      %1070 = vmatpush2.msra.mxu0 0.0
      %1071 = vmatprep.subr.mxu0 0.0
      %1072 = vmatpush2.msra.mxu0 0.0
      %1073 = vmatprep.subr.mxu0 0.0
      %1074 = vmatpush2.msra.mxu0 0.0
      %1075 = vmatprep.subr.mxu0 0.0
      %1076 = vmatpush2.msra.mxu0 0.0
      %1077 = vmatprep.subr.mxu0 0.0
      %1078 = vmatpush2.msra.mxu0 0.0
      %1079 = vmatprep.subr.mxu0 0.0
      %1080 = vmatpush2.msra.mxu0 0.0
      %1081 = vmatprep.subr.mxu0 0.0
      %1082 = vmatpush2.msra.mxu0 0.0
      %1083 = vmatprep.mubr.f32.mxu0 0.0
      %1084 = vmatmul.mubr.f32.gmra.mxu0 %v525
      %v1085 = vpop.f32.mrf.mxu0
      %v1086 = vadd.f32 %v1017, %v1085
      %v1087 = vpop.f32.mrf.mxu0
      %1088 = vdwg.mxu0
      %v1090 = vsel %vm678, %v920, 0
      %v1093 = vsel %vm678, %v1003, 0
      %1095 = vmatprep.subr.mxu0 0.0
      %1096 = vmatpush1.xpose.msra.mxu0 0.0
      %1097 = vmatprep.subr.mxu0 0.0
      %1098 = vmatpush1.xpose.msra.mxu0 0.0
      %1099 = vmatprep.subr.mxu0 0.0
      %1100 = vmatpush1.xpose.msra.mxu0 0.0
      %1101 = vmatprep.subr.mxu0 0.0
      %1102 = vmatpush1.xpose.msra.mxu0 0.0
      %1103 = vmatprep.subr.mxu0 0.0
      %1104 = vmatpush1.xpose.msra.mxu0 0.0
      %1105 = vmatprep.subr.mxu0 0.0
      %1106 = vmatpush1.xpose.msra.mxu0 0.0
      %1107 = vmatprep.subr.mxu0 0.0
      %1108 = vmatpush1.xpose.msra.mxu0 0.0
      %1109 = vmatprep.subr.mxu0 0.0
      %1110 = vmatpush1.xpose.msra.mxu0 0.0
      %1111 = vmatprep.subr.mxu0 0.0
      %1112 = vmatpush1.xpose.msra.mxu0 0.0
      %1113 = vmatprep.subr.mxu0 0.0
      %1114 = vmatpush1.xpose.msra.mxu0 0.0
      %1115 = vmatprep.subr.mxu0 0.0
      %1116 = vmatpush1.xpose.msra.mxu0 0.0
      %1117 = vmatprep.subr.mxu0 0.0
      %1118 = vmatpush1.xpose.msra.mxu0 0.0
      %1119 = vmatprep.subr.mxu0 0.0
      %1120 = vmatpush1.xpose.msra.mxu0 0.0
      %1121 = vmatprep.subr.mxu0 0.0
      %1122 = vmatpush1.xpose.msra.mxu0 0.0
      %1123 = vmatprep.subr.mxu0 0.0
      %1124 = vmatpush1.xpose.msra.mxu0 0.0
      %1125 = vmatprep.subr.mxu0 0.0
      %1126 = vmatpush1.xpose.msra.mxu0 %v1093
      %1127 = vmatprep.subr.mxu0 0.0
      %1128 = vmatpush2.xpose.msra.mxu0 0.0
      %1129 = vmatprep.subr.mxu0 0.0
      %1130 = vmatpush2.xpose.msra.mxu0 0.0
      %1131 = vmatprep.subr.mxu0 0.0
      %1132 = vmatpush2.xpose.msra.mxu0 0.0
      %1133 = vmatprep.subr.mxu0 0.0
      %1134 = vmatpush2.xpose.msra.mxu0 0.0
      %1135 = vmatprep.subr.mxu0 0.0
      %1136 = vmatpush2.xpose.msra.mxu0 0.0
      %1137 = vmatprep.subr.mxu0 0.0
      %1138 = vmatpush2.xpose.msra.mxu0 0.0
      %1139 = vmatprep.subr.mxu0 0.0
      %1140 = vmatpush2.xpose.msra.mxu0 0.0
      %1141 = vmatprep.subr.mxu0 0.0
      %1142 = vmatpush2.xpose.msra.mxu0 0.0
      %1143 = vmatprep.subr.mxu0 0.0
      %1144 = vmatpush2.xpose.msra.mxu0 0.0
      %1145 = vmatprep.subr.mxu0 0.0
      %1146 = vmatpush2.xpose.msra.mxu0 0.0
      %1147 = vmatprep.subr.mxu0 0.0
      %1148 = vmatpush2.xpose.msra.mxu0 0.0
      %1149 = vmatprep.subr.mxu0 0.0
      %1150 = vmatpush2.xpose.msra.mxu0 0.0
      %1151 = vmatprep.subr.mxu0 0.0
      %1152 = vmatpush2.xpose.msra.mxu0 0.0
      %1153 = vmatprep.subr.mxu0 0.0
      %1154 = vmatpush2.xpose.msra.mxu0 0.0
      %1155 = vmatprep.subr.mxu0 0.0
      %1156 = vmatpush2.xpose.msra.mxu0 0.0
      %1157 = vmatprep.subr.mxu0 0.0
      %1158 = vmatpush2.xpose.msra.mxu0 0.0
      %1159 = vmatprep.mubr.f32.mxu0 0.0
      %1160 = vmatmul.mubr.f32.gmra.mxu0 %v1090
      %v1161 = vpop.f32.mrf.mxu0
      %v1162 = vadd.f32 0.0, %v1161
      %v1163 = vpop.f32.mrf.mxu0
      %1164 = vdwg.mxu0
      %v1165 = vsel %vm678, %v1162, -inf
      %1166 = vmax.xlane.f32.xlu0 %v1165
      %v1167 = vpop.xlane.xlu0 %1166
      %v1168 = vsub.f32 %v1162, %v1167
      %v1169 = vmul.f32 %v1168, 1.442695
      %v1170 = vpow.pop %v1169
      %v1171 = vsel %vm678, %v1170, 0.0
      %1172 = vadd.xlane.f32.xlu0 %v1171
      %v1173 = vpop.xlane.xlu0 %1172
      %v1174 = vrcp.pop %v1173
      %v1175 = vmul.f32 %v1170, %v1174
      %v1177 = vsel %vm678, %v1175, 0
      %1179 = vmatprep.subr.mxu0 0.0
      %1180 = vmatpush1.msra.mxu0 0.0
      %1181 = vmatprep.subr.mxu0 0.0
      %1182 = vmatpush1.msra.mxu0 0.0
      %1183 = vmatprep.subr.mxu0 0.0
      %1184 = vmatpush1.msra.mxu0 0.0
      %1185 = vmatprep.subr.mxu0 0.0
      %1186 = vmatpush1.msra.mxu0 0.0
      %1187 = vmatprep.subr.mxu0 0.0
      %1188 = vmatpush1.msra.mxu0 0.0
      %1189 = vmatprep.subr.mxu0 0.0
      %1190 = vmatpush1.msra.mxu0 0.0
      %1191 = vmatprep.subr.mxu0 0.0
      %1192 = vmatpush1.msra.mxu0 0.0
      %1193 = vmatprep.subr.mxu0 0.0
      %1194 = vmatpush1.msra.mxu0 0.0
      %1195 = vmatprep.subr.mxu0 0.0
      %1196 = vmatpush1.msra.mxu0 0.0
      %1197 = vmatprep.subr.mxu0 0.0
      %1198 = vmatpush1.msra.mxu0 0.0
      %1199 = vmatprep.subr.mxu0 0.0
      %1200 = vmatpush1.msra.mxu0 0.0
      %1201 = vmatprep.subr.mxu0 0.0
      %1202 = vmatpush1.msra.mxu0 0.0
      %1203 = vmatprep.subr.mxu0 0.0
      %1204 = vmatpush1.msra.mxu0 0.0
      %1205 = vmatprep.subr.mxu0 0.0
      %1206 = vmatpush1.msra.mxu0 0.0
      %1207 = vmatprep.subr.mxu0 0.0
      %1208 = vmatpush1.msra.mxu0 0.0
      %1209 = vmatprep.subr.mxu0 0.0
      %1210 = vmatpush1.msra.mxu0 %v1086
      %1211 = vmatprep.subr.mxu0 0.0
      %1212 = vmatpush2.msra.mxu0 0.0
      %1213 = vmatprep.subr.mxu0 0.0
      %1214 = vmatpush2.msra.mxu0 0.0
      %1215 = vmatprep.subr.mxu0 0.0
      %1216 = vmatpush2.msra.mxu0 0.0
      %1217 = vmatprep.subr.mxu0 0.0
      %1218 = vmatpush2.msra.mxu0 0.0
      %1219 = vmatprep.subr.mxu0 0.0
      %1220 = vmatpush2.msra.mxu0 0.0
      %1221 = vmatprep.subr.mxu0 0.0
      %1222 = vmatpush2.msra.mxu0 0.0
      %1223 = vmatprep.subr.mxu0 0.0
      %1224 = vmatpush2.msra.mxu0 0.0
      %1225 = vmatprep.subr.mxu0 0.0
      %1226 = vmatpush2.msra.mxu0 0.0
      %1227 = vmatprep.subr.mxu0 0.0
      %1228 = vmatpush2.msra.mxu0 0.0
      %1229 = vmatprep.subr.mxu0 0.0
      %1230 = vmatpush2.msra.mxu0 0.0
      %1231 = vmatprep.subr.mxu0 0.0
      %1232 = vmatpush2.msra.mxu0 0.0
      %1233 = vmatprep.subr.mxu0 0.0
      %1234 = vmatpush2.msra.mxu0 0.0
      %1235 = vmatprep.subr.mxu0 0.0
      %1236 = vmatpush2.msra.mxu0 0.0
      %1237 = vmatprep.subr.mxu0 0.0
      %1238 = vmatpush2.msra.mxu0 0.0
      %1239 = vmatprep.subr.mxu0 0.0
      %1240 = vmatpush2.msra.mxu0 0.0
      %1241 = vmatprep.subr.mxu0 0.0
      %1242 = vmatpush2.msra.mxu0 0.0
      %1243 = vmatprep.mubr.f32.mxu0 0.0
      %1244 = vmatmul.mubr.f32.gmra.mxu0 %v1177
      %v1245 = vpop.f32.mrf.mxu0
      %v1246 = vadd.f32 0.0, %v1245
      %v1247 = vpop.f32.mrf.mxu0
      %1248 = vdwg.mxu0
      %s1249 = scalar_lea.vmem %s8, 8
      %v1250 = vld [vmem:[%s1249] sm:$0xff]
      %v1252 = vsel %vm678, %v1246, 0
      %1254 = vmatprep.subr.mxu0 0.0
      %1255 = vmatpush1.msra.mxu0 0.0
      %1256 = vmatprep.subr.mxu0 0.0
      %1257 = vmatpush1.msra.mxu0 0.0
      %1258 = vmatprep.subr.mxu0 0.0
      %1259 = vmatpush1.msra.mxu0 0.0
      %1260 = vmatprep.subr.mxu0 0.0
      %1261 = vmatpush1.msra.mxu0 0.0
      %1262 = vmatprep.subr.mxu0 0.0
      %1263 = vmatpush1.msra.mxu0 0.0
      %1264 = vmatprep.subr.mxu0 0.0
      %1265 = vmatpush1.msra.mxu0 0.0
      %1266 = vmatprep.subr.mxu0 0.0
      %1267 = vmatpush1.msra.mxu0 0.0
      %1268 = vmatprep.subr.mxu0 0.0
      %1269 = vmatpush1.msra.mxu0 0.0
      %1270 = vmatprep.subr.mxu0 0.0
      %1271 = vmatpush1.msra.mxu0 0.0
      %1272 = vmatprep.subr.mxu0 0.0
      %1273 = vmatpush1.msra.mxu0 0.0
      %1274 = vmatprep.subr.mxu0 0.0
      %1275 = vmatpush1.msra.mxu0 0.0
      %1276 = vmatprep.subr.mxu0 0.0
      %1277 = vmatpush1.msra.mxu0 0.0
      %1278 = vmatprep.subr.mxu0 0.0
      %1279 = vmatpush1.msra.mxu0 0.0
      %1280 = vmatprep.subr.mxu0 0.0
      %1281 = vmatpush1.msra.mxu0 0.0
      %1282 = vmatprep.subr.mxu0 0.0
      %1283 = vmatpush1.msra.mxu0 0.0
      %1284 = vmatprep.subr.mxu0 0.0
      %1285 = vmatpush1.msra.mxu0 %v1250
      %1286 = vmatprep.subr.mxu0 0.0
      %1287 = vmatpush2.msra.mxu0 0.0
      %1288 = vmatprep.subr.mxu0 0.0
      %1289 = vmatpush2.msra.mxu0 0.0
      %1290 = vmatprep.subr.mxu0 0.0
      %1291 = vmatpush2.msra.mxu0 0.0
      %1292 = vmatprep.subr.mxu0 0.0
      %1293 = vmatpush2.msra.mxu0 0.0
      %1294 = vmatprep.subr.mxu0 0.0
      %1295 = vmatpush2.msra.mxu0 0.0
      %1296 = vmatprep.subr.mxu0 0.0
      %1297 = vmatpush2.msra.mxu0 0.0
      %1298 = vmatprep.subr.mxu0 0.0
      %1299 = vmatpush2.msra.mxu0 0.0
      %1300 = vmatprep.subr.mxu0 0.0
      %1301 = vmatpush2.msra.mxu0 0.0
      %1302 = vmatprep.subr.mxu0 0.0
      %1303 = vmatpush2.msra.mxu0 0.0
      %1304 = vmatprep.subr.mxu0 0.0
      %1305 = vmatpush2.msra.mxu0 0.0
      %1306 = vmatprep.subr.mxu0 0.0
      %1307 = vmatpush2.msra.mxu0 0.0
      %1308 = vmatprep.subr.mxu0 0.0
      %1309 = vmatpush2.msra.mxu0 0.0
      %1310 = vmatprep.subr.mxu0 0.0
      %1311 = vmatpush2.msra.mxu0 0.0
      %1312 = vmatprep.subr.mxu0 0.0
      %1313 = vmatpush2.msra.mxu0 0.0
      %1314 = vmatprep.subr.mxu0 0.0
      %1315 = vmatpush2.msra.mxu0 0.0
      %1316 = vmatprep.subr.mxu0 0.0
      %1317 = vmatpush2.msra.mxu0 0.0
      %1318 = vmatprep.mubr.f32.mxu0 0.0
      %1319 = vmatmul.mubr.f32.gmra.mxu0 %v1252
      %v1320 = vpop.f32.mrf.mxu0
      %v1321 = vadd.f32 0.0, %v1320
      %v1322 = vpop.f32.mrf.mxu0
      %1323 = vdwg.mxu0
      %v1325 = vsel %vm678, %v836, 0
      %1327 = vmatprep.subr.mxu0 0.0
      %1328 = vmatpush1.msra.mxu0 0.0
      %1329 = vmatprep.subr.mxu0 0.0
      %1330 = vmatpush1.msra.mxu0 0.0
      %1331 = vmatprep.subr.mxu0 0.0
      %1332 = vmatpush1.msra.mxu0 0.0
      %1333 = vmatprep.subr.mxu0 0.0
      %1334 = vmatpush1.msra.mxu0 0.0
      %1335 = vmatprep.subr.mxu0 0.0
      %1336 = vmatpush1.msra.mxu0 0.0
      %1337 = vmatprep.subr.mxu0 0.0
      %1338 = vmatpush1.msra.mxu0 0.0
      %1339 = vmatprep.subr.mxu0 0.0
      %1340 = vmatpush1.msra.mxu0 0.0
      %1341 = vmatprep.subr.mxu0 0.0
      %1342 = vmatpush1.msra.mxu0 0.0
      %1343 = vmatprep.subr.mxu0 0.0
      %1344 = vmatpush1.msra.mxu0 0.0
      %1345 = vmatprep.subr.mxu0 0.0
      %1346 = vmatpush1.msra.mxu0 0.0
      %1347 = vmatprep.subr.mxu0 0.0
      %1348 = vmatpush1.msra.mxu0 0.0
      %1349 = vmatprep.subr.mxu0 0.0
      %1350 = vmatpush1.msra.mxu0 0.0
      %1351 = vmatprep.subr.mxu0 0.0
      %1352 = vmatpush1.msra.mxu0 0.0
      %1353 = vmatprep.subr.mxu0 0.0
      %1354 = vmatpush1.msra.mxu0 0.0
      %1355 = vmatprep.subr.mxu0 0.0
      %1356 = vmatpush1.msra.mxu0 0.0
      %1357 = vmatprep.subr.mxu0 0.0
      %1358 = vmatpush1.msra.mxu0 %v839
      %1359 = vmatprep.subr.mxu0 0.0
      %1360 = vmatpush2.msra.mxu0 0.0
      %1361 = vmatprep.subr.mxu0 0.0
      %1362 = vmatpush2.msra.mxu0 0.0
      %1363 = vmatprep.subr.mxu0 0.0
      %1364 = vmatpush2.msra.mxu0 0.0
      %1365 = vmatprep.subr.mxu0 0.0
      %1366 = vmatpush2.msra.mxu0 0.0
      %1367 = vmatprep.subr.mxu0 0.0
      %1368 = vmatpush2.msra.mxu0 0.0
      %1369 = vmatprep.subr.mxu0 0.0
      %1370 = vmatpush2.msra.mxu0 0.0
      %1371 = vmatprep.subr.mxu0 0.0
      %1372 = vmatpush2.msra.mxu0 0.0
      %1373 = vmatprep.subr.mxu0 0.0
      %1374 = vmatpush2.msra.mxu0 0.0
      %1375 = vmatprep.subr.mxu0 0.0
      %1376 = vmatpush2.msra.mxu0 0.0
      %1377 = vmatprep.subr.mxu0 0.0
      %1378 = vmatpush2.msra.mxu0 0.0
      %1379 = vmatprep.subr.mxu0 0.0
      %1380 = vmatpush2.msra.mxu0 0.0
      %1381 = vmatprep.subr.mxu0 0.0
      %1382 = vmatpush2.msra.mxu0 0.0
      %1383 = vmatprep.subr.mxu0 0.0
      %1384 = vmatpush2.msra.mxu0 0.0
      %1385 = vmatprep.subr.mxu0 0.0
      %1386 = vmatpush2.msra.mxu0 0.0
      %1387 = vmatprep.subr.mxu0 0.0
      %1388 = vmatpush2.msra.mxu0 0.0
      %1389 = vmatprep.subr.mxu0 0.0
      %1390 = vmatpush2.msra.mxu0 0.0
      %1391 = vmatprep.mubr.f32.mxu0 0.0
      %1392 = vmatmul.mubr.f32.gmra.mxu0 %v1325
      %v1393 = vpop.f32.mrf.mxu0
      %v1394 = vadd.f32 %v1321, %v1393
      %v1395 = vpop.f32.mrf.mxu0
      %1396 = vdwg.mxu0
      %s1397 = scalar_lea.vmem %s2, 64
      %v1398 = vld [vmem:[%s1397] sm:$0xff]
      %v1399 = vld [vmem:[%s1397 + $0x8] sm:$0xff]
      %v1400 = vld [vmem:[%s1397 + $0x10] sm:$0xff]
      %v1401 = vld [vmem:[%s1397 + $0x18] sm:$0xff]
      %s1402 = scalar_lea.vmem %s3, 2
      %v1403 = vld [vmem:[%s1402] sm:$0x1]
      %v1405 = vlaneseq
      %v1406 = vshrl.u32 %v1405, 7
      %v1407 = vsub.s32 0, %v1406
      %v1408 = vrot.slane %v1403, %v1407
      %1410 = vmatprep.subr.mxu0 0.0
      %1411 = vmatpush1.msra.mxu0 0.0
      %1412 = vmatprep.subr.mxu0 0.0
      %1413 = vmatpush1.msra.mxu0 0.0
      %1414 = vmatprep.subr.mxu0 0.0
      %1415 = vmatpush1.msra.mxu0 0.0
      %1416 = vmatprep.subr.mxu0 0.0
      %1417 = vmatpush1.msra.mxu0 0.0
      %1418 = vmatprep.subr.mxu0 0.0
      %1419 = vmatpush1.msra.mxu0 0.0
      %1420 = vmatprep.subr.mxu0 0.0
      %1421 = vmatpush1.msra.mxu0 0.0
      %1422 = vmatprep.subr.mxu0 0.0
      %1423 = vmatpush1.msra.mxu0 0.0
      %1424 = vmatprep.subr.mxu0 0.0
      %1425 = vmatpush1.msra.mxu0 0.0
      %1426 = vmatprep.subr.mxu0 0.0
      %1427 = vmatpush1.msra.mxu0 0.0
      %1428 = vmatprep.subr.mxu0 0.0
      %1429 = vmatpush1.msra.mxu0 0.0
      %1430 = vmatprep.subr.mxu0 0.0
      %1431 = vmatpush1.msra.mxu0 0.0
      %1432 = vmatprep.subr.mxu0 0.0
      %1433 = vmatpush1.msra.mxu0 0.0
      %1434 = vmatprep.subr.mxu0 0.0
      %1435 = vmatpush1.msra.mxu0 %v1401
      %1436 = vmatprep.subr.mxu0 0.0
      %1437 = vmatpush1.msra.mxu0 %v1400
      %1438 = vmatprep.subr.mxu0 0.0
      %1439 = vmatpush1.msra.mxu0 %v1399
      %1440 = vmatprep.subr.mxu0 0.0
      %1441 = vmatpush1.msra.mxu0 %v1398
      %1442 = vmatprep.subr.mxu0 0.0
      %1443 = vmatpush2.msra.mxu0 0.0
      %1444 = vmatprep.subr.mxu0 0.0
      %1445 = vmatpush2.msra.mxu0 0.0
      %1446 = vmatprep.subr.mxu0 0.0
      %1447 = vmatpush2.msra.mxu0 0.0
      %1448 = vmatprep.subr.mxu0 0.0
      %1449 = vmatpush2.msra.mxu0 0.0
      %1450 = vmatprep.subr.mxu0 0.0
      %1451 = vmatpush2.msra.mxu0 0.0
      %1452 = vmatprep.subr.mxu0 0.0
      %1453 = vmatpush2.msra.mxu0 0.0
      %1454 = vmatprep.subr.mxu0 0.0
      %1455 = vmatpush2.msra.mxu0 0.0
      %1456 = vmatprep.subr.mxu0 0.0
      %1457 = vmatpush2.msra.mxu0 0.0
      %1458 = vmatprep.subr.mxu0 0.0
      %1459 = vmatpush2.msra.mxu0 0.0
      %1460 = vmatprep.subr.mxu0 0.0
      %1461 = vmatpush2.msra.mxu0 0.0
      %1462 = vmatprep.subr.mxu0 0.0
      %1463 = vmatpush2.msra.mxu0 0.0
      %1464 = vmatprep.subr.mxu0 0.0
      %1465 = vmatpush2.msra.mxu0 0.0
      %1466 = vmatprep.subr.mxu0 0.0
      %1467 = vmatpush2.msra.mxu0 0.0
      %1468 = vmatprep.subr.mxu0 0.0
      %1469 = vmatpush2.msra.mxu0 0.0
      %1470 = vmatprep.subr.mxu0 0.0
      %1471 = vmatpush2.msra.mxu0 0.0
      %1472 = vmatprep.subr.mxu0 0.0
      %1473 = vmatpush2.msra.mxu0 0.0
      %1474 = vmatprep.mubr.f32.mxu0 0.0
      %1475 = vmatmul.mubr.f32.gmra.mxu0 %v441
      %v1476 = vpop.f32.mrf.mxu0
      %v1477 = vadd.f32 %v1408, %v1476
      %v1478 = vpop.f32.mrf.mxu0
      %1479 = vdwg.mxu0
      %s1480 = scalar_lea.vmem %s4, 64
      %v1481 = vld [vmem:[%s1480] sm:$0xff]
      %v1482 = vld [vmem:[%s1480 + $0x8] sm:$0xff]
      %v1483 = vld [vmem:[%s1480 + $0x10] sm:$0xff]
      %v1484 = vld [vmem:[%s1480 + $0x18] sm:$0xff]
      %s1485 = scalar_lea.vmem %s5, 2
      %v1486 = vld [vmem:[%s1485] sm:$0x1]
      %v1488 = vlaneseq
      %v1489 = vshrl.u32 %v1488, 7
      %v1490 = vsub.s32 0, %v1489
      %v1491 = vrot.slane %v1486, %v1490
      %1493 = vmatprep.subr.mxu0 0.0
      %1494 = vmatpush1.msra.mxu0 0.0
      %1495 = vmatprep.subr.mxu0 0.0
      %1496 = vmatpush1.msra.mxu0 0.0
      %1497 = vmatprep.subr.mxu0 0.0
      %1498 = vmatpush1.msra.mxu0 0.0
      %1499 = vmatprep.subr.mxu0 0.0
      %1500 = vmatpush1.msra.mxu0 0.0
      %1501 = vmatprep.subr.mxu0 0.0
      %1502 = vmatpush1.msra.mxu0 0.0
      %1503 = vmatprep.subr.mxu0 0.0
      %1504 = vmatpush1.msra.mxu0 0.0
      %1505 = vmatprep.subr.mxu0 0.0
      %1506 = vmatpush1.msra.mxu0 0.0
      %1507 = vmatprep.subr.mxu0 0.0
      %1508 = vmatpush1.msra.mxu0 0.0
      %1509 = vmatprep.subr.mxu0 0.0
      %1510 = vmatpush1.msra.mxu0 0.0
      %1511 = vmatprep.subr.mxu0 0.0
      %1512 = vmatpush1.msra.mxu0 0.0
      %1513 = vmatprep.subr.mxu0 0.0
      %1514 = vmatpush1.msra.mxu0 0.0
      %1515 = vmatprep.subr.mxu0 0.0
      %1516 = vmatpush1.msra.mxu0 0.0
      %1517 = vmatprep.subr.mxu0 0.0
      %1518 = vmatpush1.msra.mxu0 %v1484
      %1519 = vmatprep.subr.mxu0 0.0
      %1520 = vmatpush1.msra.mxu0 %v1483
      %1521 = vmatprep.subr.mxu0 0.0
      %1522 = vmatpush1.msra.mxu0 %v1482
      %1523 = vmatprep.subr.mxu0 0.0
      %1524 = vmatpush1.msra.mxu0 %v1481
      %1525 = vmatprep.subr.mxu0 0.0
      %1526 = vmatpush2.msra.mxu0 0.0
      %1527 = vmatprep.subr.mxu0 0.0
      %1528 = vmatpush2.msra.mxu0 0.0
      %1529 = vmatprep.subr.mxu0 0.0
      %1530 = vmatpush2.msra.mxu0 0.0
      %1531 = vmatprep.subr.mxu0 0.0
      %1532 = vmatpush2.msra.mxu0 0.0
      %1533 = vmatprep.subr.mxu0 0.0
      %1534 = vmatpush2.msra.mxu0 0.0
      %1535 = vmatprep.subr.mxu0 0.0
      %1536 = vmatpush2.msra.mxu0 0.0
      %1537 = vmatprep.subr.mxu0 0.0
      %1538 = vmatpush2.msra.mxu0 0.0
      %1539 = vmatprep.subr.mxu0 0.0
      %1540 = vmatpush2.msra.mxu0 0.0
      %1541 = vmatprep.subr.mxu0 0.0
      %1542 = vmatpush2.msra.mxu0 0.0
      %1543 = vmatprep.subr.mxu0 0.0
      %1544 = vmatpush2.msra.mxu0 0.0
      %1545 = vmatprep.subr.mxu0 0.0
      %1546 = vmatpush2.msra.mxu0 0.0
      %1547 = vmatprep.subr.mxu0 0.0
      %1548 = vmatpush2.msra.mxu0 0.0
      %1549 = vmatprep.subr.mxu0 0.0
      %1550 = vmatpush2.msra.mxu0 0.0
      %1551 = vmatprep.subr.mxu0 0.0
      %1552 = vmatpush2.msra.mxu0 0.0
      %1553 = vmatprep.subr.mxu0 0.0
      %1554 = vmatpush2.msra.mxu0 0.0
      %1555 = vmatprep.subr.mxu0 0.0
      %1556 = vmatpush2.msra.mxu0 0.0
      %1557 = vmatprep.mubr.f32.mxu0 0.0
      %1558 = vmatmul.mubr.f32.gmra.mxu0 %v525
      %v1559 = vpop.f32.mrf.mxu0
      %v1560 = vadd.f32 %v1491, %v1559
      %v1561 = vpop.f32.mrf.mxu0
      %1562 = vdwg.mxu0
      %s1563 = scalar_lea.vmem %s6, 64
      %v1564 = vld [vmem:[%s1563] sm:$0xff]
      %v1565 = vld [vmem:[%s1563 + $0x8] sm:$0xff]
      %v1566 = vld [vmem:[%s1563 + $0x10] sm:$0xff]
      %v1567 = vld [vmem:[%s1563 + $0x18] sm:$0xff]
      %s1568 = scalar_lea.vmem %s7, 2
      %v1569 = vld [vmem:[%s1568] sm:$0x1]
      %v1571 = vlaneseq
      %v1572 = vshrl.u32 %v1571, 7
      %v1573 = vsub.s32 0, %v1572
      %v1574 = vrot.slane %v1569, %v1573
      %1576 = vmatprep.subr.mxu0 0.0
      %1577 = vmatpush1.msra.mxu0 0.0
      %1578 = vmatprep.subr.mxu0 0.0
      %1579 = vmatpush1.msra.mxu0 0.0
      %1580 = vmatprep.subr.mxu0 0.0
      %1581 = vmatpush1.msra.mxu0 0.0
      %1582 = vmatprep.subr.mxu0 0.0
      %1583 = vmatpush1.msra.mxu0 0.0
      %1584 = vmatprep.subr.mxu0 0.0
      %1585 = vmatpush1.msra.mxu0 0.0
      %1586 = vmatprep.subr.mxu0 0.0
      %1587 = vmatpush1.msra.mxu0 0.0
      %1588 = vmatprep.subr.mxu0 0.0
      %1589 = vmatpush1.msra.mxu0 0.0
      %1590 = vmatprep.subr.mxu0 0.0
      %1591 = vmatpush1.msra.mxu0 0.0
      %1592 = vmatprep.subr.mxu0 0.0
      %1593 = vmatpush1.msra.mxu0 0.0
      %1594 = vmatprep.subr.mxu0 0.0
      %1595 = vmatpush1.msra.mxu0 0.0
      %1596 = vmatprep.subr.mxu0 0.0
      %1597 = vmatpush1.msra.mxu0 0.0
      %1598 = vmatprep.subr.mxu0 0.0
      %1599 = vmatpush1.msra.mxu0 0.0
      %1600 = vmatprep.subr.mxu0 0.0
      %1601 = vmatpush1.msra.mxu0 %v1567
      %1602 = vmatprep.subr.mxu0 0.0
      %1603 = vmatpush1.msra.mxu0 %v1566
      %1604 = vmatprep.subr.mxu0 0.0
      %1605 = vmatpush1.msra.mxu0 %v1565
      %1606 = vmatprep.subr.mxu0 0.0
      %1607 = vmatpush1.msra.mxu0 %v1564
      %1608 = vmatprep.subr.mxu0 0.0
      %1609 = vmatpush2.msra.mxu0 0.0
      %1610 = vmatprep.subr.mxu0 0.0
      %1611 = vmatpush2.msra.mxu0 0.0
      %1612 = vmatprep.subr.mxu0 0.0
      %1613 = vmatpush2.msra.mxu0 0.0
      %1614 = vmatprep.subr.mxu0 0.0
      %1615 = vmatpush2.msra.mxu0 0.0
      %1616 = vmatprep.subr.mxu0 0.0
      %1617 = vmatpush2.msra.mxu0 0.0
      %1618 = vmatprep.subr.mxu0 0.0
      %1619 = vmatpush2.msra.mxu0 0.0
      %1620 = vmatprep.subr.mxu0 0.0
      %1621 = vmatpush2.msra.mxu0 0.0
      %1622 = vmatprep.subr.mxu0 0.0
      %1623 = vmatpush2.msra.mxu0 0.0
      %1624 = vmatprep.subr.mxu0 0.0
      %1625 = vmatpush2.msra.mxu0 0.0
      %1626 = vmatprep.subr.mxu0 0.0
      %1627 = vmatpush2.msra.mxu0 0.0
      %1628 = vmatprep.subr.mxu0 0.0
      %1629 = vmatpush2.msra.mxu0 0.0
      %1630 = vmatprep.subr.mxu0 0.0
      %1631 = vmatpush2.msra.mxu0 0.0
      %1632 = vmatprep.subr.mxu0 0.0
      %1633 = vmatpush2.msra.mxu0 0.0
      %1634 = vmatprep.subr.mxu0 0.0
      %1635 = vmatpush2.msra.mxu0 0.0
      %1636 = vmatprep.subr.mxu0 0.0
      %1637 = vmatpush2.msra.mxu0 0.0
      %1638 = vmatprep.subr.mxu0 0.0
      %1639 = vmatpush2.msra.mxu0 0.0
      %1640 = vmatprep.mubr.f32.mxu0 0.0
      %1641 = vmatmul.mubr.f32.gmra.mxu0 %v525
      %v1642 = vpop.f32.mrf.mxu0
      %v1643 = vadd.f32 %v1574, %v1642
      %v1644 = vpop.f32.mrf.mxu0
      %1645 = vdwg.mxu0
      %v1647 = vsel %vm678, %v1477, 0
      %v1650 = vsel %vm678, %v1560, 0
      %1652 = vmatprep.subr.mxu0 0.0
      %1653 = vmatpush1.xpose.msra.mxu0 0.0
      %1654 = vmatprep.subr.mxu0 0.0
      %1655 = vmatpush1.xpose.msra.mxu0 0.0
      %1656 = vmatprep.subr.mxu0 0.0
      %1657 = vmatpush1.xpose.msra.mxu0 0.0
      %1658 = vmatprep.subr.mxu0 0.0
      %1659 = vmatpush1.xpose.msra.mxu0 0.0
      %1660 = vmatprep.subr.mxu0 0.0
      %1661 = vmatpush1.xpose.msra.mxu0 0.0
      %1662 = vmatprep.subr.mxu0 0.0
      %1663 = vmatpush1.xpose.msra.mxu0 0.0
      %1664 = vmatprep.subr.mxu0 0.0
      %1665 = vmatpush1.xpose.msra.mxu0 0.0
      %1666 = vmatprep.subr.mxu0 0.0
      %1667 = vmatpush1.xpose.msra.mxu0 0.0
      %1668 = vmatprep.subr.mxu0 0.0
      %1669 = vmatpush1.xpose.msra.mxu0 0.0
      %1670 = vmatprep.subr.mxu0 0.0
      %1671 = vmatpush1.xpose.msra.mxu0 0.0
      %1672 = vmatprep.subr.mxu0 0.0
      %1673 = vmatpush1.xpose.msra.mxu0 0.0
      %1674 = vmatprep.subr.mxu0 0.0
      %1675 = vmatpush1.xpose.msra.mxu0 0.0
      %1676 = vmatprep.subr.mxu0 0.0
      %1677 = vmatpush1.xpose.msra.mxu0 0.0
      %1678 = vmatprep.subr.mxu0 0.0
      %1679 = vmatpush1.xpose.msra.mxu0 0.0
      %1680 = vmatprep.subr.mxu0 0.0
      %1681 = vmatpush1.xpose.msra.mxu0 0.0
      %1682 = vmatprep.subr.mxu0 0.0
      %1683 = vmatpush1.xpose.msra.mxu0 %v1650
      %1684 = vmatprep.subr.mxu0 0.0
      %1685 = vmatpush2.xpose.msra.mxu0 0.0
      %1686 = vmatprep.subr.mxu0 0.0
      %1687 = vmatpush2.xpose.msra.mxu0 0.0
      %1688 = vmatprep.subr.mxu0 0.0
      %1689 = vmatpush2.xpose.msra.mxu0 0.0
      %1690 = vmatprep.subr.mxu0 0.0
      %1691 = vmatpush2.xpose.msra.mxu0 0.0
      %1692 = vmatprep.subr.mxu0 0.0
      %1693 = vmatpush2.xpose.msra.mxu0 0.0
      %1694 = vmatprep.subr.mxu0 0.0
      %1695 = vmatpush2.xpose.msra.mxu0 0.0
      %1696 = vmatprep.subr.mxu0 0.0
      %1697 = vmatpush2.xpose.msra.mxu0 0.0
      %1698 = vmatprep.subr.mxu0 0.0
      %1699 = vmatpush2.xpose.msra.mxu0 0.0
      %1700 = vmatprep.subr.mxu0 0.0
      %1701 = vmatpush2.xpose.msra.mxu0 0.0
      %1702 = vmatprep.subr.mxu0 0.0
      %1703 = vmatpush2.xpose.msra.mxu0 0.0
      %1704 = vmatprep.subr.mxu0 0.0
      %1705 = vmatpush2.xpose.msra.mxu0 0.0
      %1706 = vmatprep.subr.mxu0 0.0
      %1707 = vmatpush2.xpose.msra.mxu0 0.0
      %1708 = vmatprep.subr.mxu0 0.0
      %1709 = vmatpush2.xpose.msra.mxu0 0.0
      %1710 = vmatprep.subr.mxu0 0.0
      %1711 = vmatpush2.xpose.msra.mxu0 0.0
      %1712 = vmatprep.subr.mxu0 0.0
      %1713 = vmatpush2.xpose.msra.mxu0 0.0
      %1714 = vmatprep.subr.mxu0 0.0
      %1715 = vmatpush2.xpose.msra.mxu0 0.0
      %1716 = vmatprep.mubr.f32.mxu0 0.0
      %1717 = vmatmul.mubr.f32.gmra.mxu0 %v1647
      %v1718 = vpop.f32.mrf.mxu0
      %v1719 = vadd.f32 0.0, %v1718
      %v1720 = vpop.f32.mrf.mxu0
      %1721 = vdwg.mxu0
      %v1722 = vsel %vm678, %v1719, -inf
      %1723 = vmax.xlane.f32.xlu0 %v1722
      %v1724 = vpop.xlane.xlu0 %1723
      %v1725 = vsub.f32 %v1719, %v1724
      %v1726 = vmul.f32 %v1725, 1.442695
      %v1727 = vpow.pop %v1726
      %v1728 = vsel %vm678, %v1727, 0.0
      %1729 = vadd.xlane.f32.xlu0 %v1728
      %v1730 = vpop.xlane.xlu0 %1729
      %v1731 = vrcp.pop %v1730
      %v1732 = vmul.f32 %v1727, %v1731
      %v1734 = vsel %vm678, %v1732, 0
      %1736 = vmatprep.subr.mxu0 0.0
      %1737 = vmatpush1.msra.mxu0 0.0
      %1738 = vmatprep.subr.mxu0 0.0
      %1739 = vmatpush1.msra.mxu0 0.0
      %1740 = vmatprep.subr.mxu0 0.0
      %1741 = vmatpush1.msra.mxu0 0.0
      %1742 = vmatprep.subr.mxu0 0.0
      %1743 = vmatpush1.msra.mxu0 0.0
      %1744 = vmatprep.subr.mxu0 0.0
      %1745 = vmatpush1.msra.mxu0 0.0
      %1746 = vmatprep.subr.mxu0 0.0
      %1747 = vmatpush1.msra.mxu0 0.0
      %1748 = vmatprep.subr.mxu0 0.0
      %1749 = vmatpush1.msra.mxu0 0.0
      %1750 = vmatprep.subr.mxu0 0.0
      %1751 = vmatpush1.msra.mxu0 0.0
      %1752 = vmatprep.subr.mxu0 0.0
      %1753 = vmatpush1.msra.mxu0 0.0
      %1754 = vmatprep.subr.mxu0 0.0
      %1755 = vmatpush1.msra.mxu0 0.0
      %1756 = vmatprep.subr.mxu0 0.0
      %1757 = vmatpush1.msra.mxu0 0.0
      %1758 = vmatprep.subr.mxu0 0.0
      %1759 = vmatpush1.msra.mxu0 0.0
      %1760 = vmatprep.subr.mxu0 0.0
      %1761 = vmatpush1.msra.mxu0 0.0
      %1762 = vmatprep.subr.mxu0 0.0
      %1763 = vmatpush1.msra.mxu0 0.0
      %1764 = vmatprep.subr.mxu0 0.0
      %1765 = vmatpush1.msra.mxu0 0.0
      %1766 = vmatprep.subr.mxu0 0.0
      %1767 = vmatpush1.msra.mxu0 %v1643
      %1768 = vmatprep.subr.mxu0 0.0
      %1769 = vmatpush2.msra.mxu0 0.0
      %1770 = vmatprep.subr.mxu0 0.0
      %1771 = vmatpush2.msra.mxu0 0.0
      %1772 = vmatprep.subr.mxu0 0.0
      %1773 = vmatpush2.msra.mxu0 0.0
      %1774 = vmatprep.subr.mxu0 0.0
      %1775 = vmatpush2.msra.mxu0 0.0
      %1776 = vmatprep.subr.mxu0 0.0
      %1777 = vmatpush2.msra.mxu0 0.0
      %1778 = vmatprep.subr.mxu0 0.0
      %1779 = vmatpush2.msra.mxu0 0.0
      %1780 = vmatprep.subr.mxu0 0.0
      %1781 = vmatpush2.msra.mxu0 0.0
      %1782 = vmatprep.subr.mxu0 0.0
      %1783 = vmatpush2.msra.mxu0 0.0
      %1784 = vmatprep.subr.mxu0 0.0
      %1785 = vmatpush2.msra.mxu0 0.0
      %1786 = vmatprep.subr.mxu0 0.0
      %1787 = vmatpush2.msra.mxu0 0.0
      %1788 = vmatprep.subr.mxu0 0.0
      %1789 = vmatpush2.msra.mxu0 0.0
      %1790 = vmatprep.subr.mxu0 0.0
      %1791 = vmatpush2.msra.mxu0 0.0
      %1792 = vmatprep.subr.mxu0 0.0
      %1793 = vmatpush2.msra.mxu0 0.0
      %1794 = vmatprep.subr.mxu0 0.0
      %1795 = vmatpush2.msra.mxu0 0.0
      %1796 = vmatprep.subr.mxu0 0.0
      %1797 = vmatpush2.msra.mxu0 0.0
      %1798 = vmatprep.subr.mxu0 0.0
      %1799 = vmatpush2.msra.mxu0 0.0
      %1800 = vmatprep.mubr.f32.mxu0 0.0
      %1801 = vmatmul.mubr.f32.gmra.mxu0 %v1734
      %v1802 = vpop.f32.mrf.mxu0
      %v1803 = vadd.f32 0.0, %v1802
      %v1804 = vpop.f32.mrf.mxu0
      %1805 = vdwg.mxu0
      %s1806 = scalar_lea.vmem %s8, 16
      %v1807 = vld [vmem:[%s1806] sm:$0xff]
      %v1809 = vsel %vm678, %v1803, 0
      %1811 = vmatprep.subr.mxu0 0.0
      %1812 = vmatpush1.msra.mxu0 0.0
      %1813 = vmatprep.subr.mxu0 0.0
      %1814 = vmatpush1.msra.mxu0 0.0
      %1815 = vmatprep.subr.mxu0 0.0
      %1816 = vmatpush1.msra.mxu0 0.0
      %1817 = vmatprep.subr.mxu0 0.0
      %1818 = vmatpush1.msra.mxu0 0.0
      %1819 = vmatprep.subr.mxu0 0.0
      %1820 = vmatpush1.msra.mxu0 0.0
      %1821 = vmatprep.subr.mxu0 0.0
      %1822 = vmatpush1.msra.mxu0 0.0
      %1823 = vmatprep.subr.mxu0 0.0
      %1824 = vmatpush1.msra.mxu0 0.0
      %1825 = vmatprep.subr.mxu0 0.0
      %1826 = vmatpush1.msra.mxu0 0.0
      %1827 = vmatprep.subr.mxu0 0.0
      %1828 = vmatpush1.msra.mxu0 0.0
      %1829 = vmatprep.subr.mxu0 0.0
      %1830 = vmatpush1.msra.mxu0 0.0
      %1831 = vmatprep.subr.mxu0 0.0
      %1832 = vmatpush1.msra.mxu0 0.0
      %1833 = vmatprep.subr.mxu0 0.0
      %1834 = vmatpush1.msra.mxu0 0.0
      %1835 = vmatprep.subr.mxu0 0.0
      %1836 = vmatpush1.msra.mxu0 0.0
      %1837 = vmatprep.subr.mxu0 0.0
      %1838 = vmatpush1.msra.mxu0 0.0
      %1839 = vmatprep.subr.mxu0 0.0
      %1840 = vmatpush1.msra.mxu0 0.0
      %1841 = vmatprep.subr.mxu0 0.0
      %1842 = vmatpush1.msra.mxu0 %v1807
      %1843 = vmatprep.subr.mxu0 0.0
      %1844 = vmatpush2.msra.mxu0 0.0
      %1845 = vmatprep.subr.mxu0 0.0
      %1846 = vmatpush2.msra.mxu0 0.0
      %1847 = vmatprep.subr.mxu0 0.0
      %1848 = vmatpush2.msra.mxu0 0.0
      %1849 = vmatprep.subr.mxu0 0.0
      %1850 = vmatpush2.msra.mxu0 0.0
      %1851 = vmatprep.subr.mxu0 0.0
      %1852 = vmatpush2.msra.mxu0 0.0
      %1853 = vmatprep.subr.mxu0 0.0
      %1854 = vmatpush2.msra.mxu0 0.0
      %1855 = vmatprep.subr.mxu0 0.0
      %1856 = vmatpush2.msra.mxu0 0.0
      %1857 = vmatprep.subr.mxu0 0.0
      %1858 = vmatpush2.msra.mxu0 0.0
      %1859 = vmatprep.subr.mxu0 0.0
      %1860 = vmatpush2.msra.mxu0 0.0
      %1861 = vmatprep.subr.mxu0 0.0
      %1862 = vmatpush2.msra.mxu0 0.0
      %1863 = vmatprep.subr.mxu0 0.0
      %1864 = vmatpush2.msra.mxu0 0.0
      %1865 = vmatprep.subr.mxu0 0.0
      %1866 = vmatpush2.msra.mxu0 0.0
      %1867 = vmatprep.subr.mxu0 0.0
      %1868 = vmatpush2.msra.mxu0 0.0
      %1869 = vmatprep.subr.mxu0 0.0
      %1870 = vmatpush2.msra.mxu0 0.0
      %1871 = vmatprep.subr.mxu0 0.0
      %1872 = vmatpush2.msra.mxu0 0.0
      %1873 = vmatprep.subr.mxu0 0.0
      %1874 = vmatpush2.msra.mxu0 0.0
      %1875 = vmatprep.mubr.f32.mxu0 0.0
      %1876 = vmatmul.mubr.f32.gmra.mxu0 %v1809
      %v1877 = vpop.f32.mrf.mxu0
      %v1878 = vadd.f32 0.0, %v1877
      %v1879 = vpop.f32.mrf.mxu0
      %1880 = vdwg.mxu0
      %v1881 = vadd.f32 %v1394, %v1878
      %s1882 = scalar_lea.vmem %s2, 96
      %v1883 = vld [vmem:[%s1882] sm:$0xff]
      %v1884 = vld [vmem:[%s1882 + $0x8] sm:$0xff]
      %v1885 = vld [vmem:[%s1882 + $0x10] sm:$0xff]
      %v1886 = vld [vmem:[%s1882 + $0x18] sm:$0xff]
      %s1887 = scalar_lea.vmem %s3, 3
      %v1888 = vld [vmem:[%s1887] sm:$0x1]
      %v1890 = vlaneseq
      %v1891 = vshrl.u32 %v1890, 7
      %v1892 = vsub.s32 0, %v1891
      %v1893 = vrot.slane %v1888, %v1892
      %1895 = vmatprep.subr.mxu0 0.0
      %1896 = vmatpush1.msra.mxu0 0.0
      %1897 = vmatprep.subr.mxu0 0.0
      %1898 = vmatpush1.msra.mxu0 0.0
      %1899 = vmatprep.subr.mxu0 0.0
      %1900 = vmatpush1.msra.mxu0 0.0
      %1901 = vmatprep.subr.mxu0 0.0
      %1902 = vmatpush1.msra.mxu0 0.0
      %1903 = vmatprep.subr.mxu0 0.0
      %1904 = vmatpush1.msra.mxu0 0.0
      %1905 = vmatprep.subr.mxu0 0.0
      %1906 = vmatpush1.msra.mxu0 0.0
      %1907 = vmatprep.subr.mxu0 0.0
      %1908 = vmatpush1.msra.mxu0 0.0
      %1909 = vmatprep.subr.mxu0 0.0
      %1910 = vmatpush1.msra.mxu0 0.0
      %1911 = vmatprep.subr.mxu0 0.0
      %1912 = vmatpush1.msra.mxu0 0.0
      %1913 = vmatprep.subr.mxu0 0.0
      %1914 = vmatpush1.msra.mxu0 0.0
      %1915 = vmatprep.subr.mxu0 0.0
      %1916 = vmatpush1.msra.mxu0 0.0
      %1917 = vmatprep.subr.mxu0 0.0
      %1918 = vmatpush1.msra.mxu0 0.0
      %1919 = vmatprep.subr.mxu0 0.0
      %1920 = vmatpush1.msra.mxu0 %v1886
      %1921 = vmatprep.subr.mxu0 0.0
      %1922 = vmatpush1.msra.mxu0 %v1885
      %1923 = vmatprep.subr.mxu0 0.0
      %1924 = vmatpush1.msra.mxu0 %v1884
      %1925 = vmatprep.subr.mxu0 0.0
      %1926 = vmatpush1.msra.mxu0 %v1883
      %1927 = vmatprep.subr.mxu0 0.0
      %1928 = vmatpush2.msra.mxu0 0.0
      %1929 = vmatprep.subr.mxu0 0.0
      %1930 = vmatpush2.msra.mxu0 0.0
      %1931 = vmatprep.subr.mxu0 0.0
      %1932 = vmatpush2.msra.mxu0 0.0
      %1933 = vmatprep.subr.mxu0 0.0
      %1934 = vmatpush2.msra.mxu0 0.0
      %1935 = vmatprep.subr.mxu0 0.0
      %1936 = vmatpush2.msra.mxu0 0.0
      %1937 = vmatprep.subr.mxu0 0.0
      %1938 = vmatpush2.msra.mxu0 0.0
      %1939 = vmatprep.subr.mxu0 0.0
      %1940 = vmatpush2.msra.mxu0 0.0
      %1941 = vmatprep.subr.mxu0 0.0
      %1942 = vmatpush2.msra.mxu0 0.0
      %1943 = vmatprep.subr.mxu0 0.0
      %1944 = vmatpush2.msra.mxu0 0.0
      %1945 = vmatprep.subr.mxu0 0.0
      %1946 = vmatpush2.msra.mxu0 0.0
      %1947 = vmatprep.subr.mxu0 0.0
      %1948 = vmatpush2.msra.mxu0 0.0
      %1949 = vmatprep.subr.mxu0 0.0
      %1950 = vmatpush2.msra.mxu0 0.0
      %1951 = vmatprep.subr.mxu0 0.0
      %1952 = vmatpush2.msra.mxu0 0.0
      %1953 = vmatprep.subr.mxu0 0.0
      %1954 = vmatpush2.msra.mxu0 0.0
      %1955 = vmatprep.subr.mxu0 0.0
      %1956 = vmatpush2.msra.mxu0 0.0
      %1957 = vmatprep.subr.mxu0 0.0
      %1958 = vmatpush2.msra.mxu0 0.0
      %1959 = vmatprep.mubr.f32.mxu0 0.0
      %1960 = vmatmul.mubr.f32.gmra.mxu0 %v441
      %v1961 = vpop.f32.mrf.mxu0
      %v1962 = vadd.f32 %v1893, %v1961
      %v1963 = vpop.f32.mrf.mxu0
      %1964 = vdwg.mxu0
      %s1965 = scalar_lea.vmem %s4, 96
      %v1966 = vld [vmem:[%s1965] sm:$0xff]
      %v1967 = vld [vmem:[%s1965 + $0x8] sm:$0xff]
      %v1968 = vld [vmem:[%s1965 + $0x10] sm:$0xff]
      %v1969 = vld [vmem:[%s1965 + $0x18] sm:$0xff]
      %s1970 = scalar_lea.vmem %s5, 3
      %v1971 = vld [vmem:[%s1970] sm:$0x1]
      %v1973 = vlaneseq
      %v1974 = vshrl.u32 %v1973, 7
      %v1975 = vsub.s32 0, %v1974
      %v1976 = vrot.slane %v1971, %v1975
      %1978 = vmatprep.subr.mxu0 0.0
      %1979 = vmatpush1.msra.mxu0 0.0
      %1980 = vmatprep.subr.mxu0 0.0
      %1981 = vmatpush1.msra.mxu0 0.0
      %1982 = vmatprep.subr.mxu0 0.0
      %1983 = vmatpush1.msra.mxu0 0.0
      %1984 = vmatprep.subr.mxu0 0.0
      %1985 = vmatpush1.msra.mxu0 0.0
      %1986 = vmatprep.subr.mxu0 0.0
      %1987 = vmatpush1.msra.mxu0 0.0
      %1988 = vmatprep.subr.mxu0 0.0
      %1989 = vmatpush1.msra.mxu0 0.0
      %1990 = vmatprep.subr.mxu0 0.0
      %1991 = vmatpush1.msra.mxu0 0.0
      %1992 = vmatprep.subr.mxu0 0.0
      %1993 = vmatpush1.msra.mxu0 0.0
      %1994 = vmatprep.subr.mxu0 0.0
      %1995 = vmatpush1.msra.mxu0 0.0
      %1996 = vmatprep.subr.mxu0 0.0
      %1997 = vmatpush1.msra.mxu0 0.0
      %1998 = vmatprep.subr.mxu0 0.0
      %1999 = vmatpush1.msra.mxu0 0.0
      %2000 = vmatprep.subr.mxu0 0.0
      %2001 = vmatpush1.msra.mxu0 0.0
      %2002 = vmatprep.subr.mxu0 0.0
      %2003 = vmatpush1.msra.mxu0 %v1969
      %2004 = vmatprep.subr.mxu0 0.0
      %2005 = vmatpush1.msra.mxu0 %v1968
      %2006 = vmatprep.subr.mxu0 0.0
      %2007 = vmatpush1.msra.mxu0 %v1967
      %2008 = vmatprep.subr.mxu0 0.0
      %2009 = vmatpush1.msra.mxu0 %v1966
      %2010 = vmatprep.subr.mxu0 0.0
      %2011 = vmatpush2.msra.mxu0 0.0
      %2012 = vmatprep.subr.mxu0 0.0
      %2013 = vmatpush2.msra.mxu0 0.0
      %2014 = vmatprep.subr.mxu0 0.0
      %2015 = vmatpush2.msra.mxu0 0.0
      %2016 = vmatprep.subr.mxu0 0.0
      %2017 = vmatpush2.msra.mxu0 0.0
      %2018 = vmatprep.subr.mxu0 0.0
      %2019 = vmatpush2.msra.mxu0 0.0
      %2020 = vmatprep.subr.mxu0 0.0
      %2021 = vmatpush2.msra.mxu0 0.0
      %2022 = vmatprep.subr.mxu0 0.0
      %2023 = vmatpush2.msra.mxu0 0.0
      %2024 = vmatprep.subr.mxu0 0.0
      %2025 = vmatpush2.msra.mxu0 0.0
      %2026 = vmatprep.subr.mxu0 0.0
      %2027 = vmatpush2.msra.mxu0 0.0
      %2028 = vmatprep.subr.mxu0 0.0
      %2029 = vmatpush2.msra.mxu0 0.0
      %2030 = vmatprep.subr.mxu0 0.0
      %2031 = vmatpush2.msra.mxu0 0.0
      %2032 = vmatprep.subr.mxu0 0.0
      %2033 = vmatpush2.msra.mxu0 0.0
      %2034 = vmatprep.subr.mxu0 0.0
      %2035 = vmatpush2.msra.mxu0 0.0
      %2036 = vmatprep.subr.mxu0 0.0
      %2037 = vmatpush2.msra.mxu0 0.0
      %2038 = vmatprep.subr.mxu0 0.0
      %2039 = vmatpush2.msra.mxu0 0.0
      %2040 = vmatprep.subr.mxu0 0.0
      %2041 = vmatpush2.msra.mxu0 0.0
      %2042 = vmatprep.mubr.f32.mxu0 0.0
      %2043 = vmatmul.mubr.f32.gmra.mxu0 %v525
      %v2044 = vpop.f32.mrf.mxu0
      %v2045 = vadd.f32 %v1976, %v2044
      %v2046 = vpop.f32.mrf.mxu0
      %2047 = vdwg.mxu0
      %s2048 = scalar_lea.vmem %s6, 96
      %v2049 = vld [vmem:[%s2048] sm:$0xff]
      %v2050 = vld [vmem:[%s2048 + $0x8] sm:$0xff]
      %v2051 = vld [vmem:[%s2048 + $0x10] sm:$0xff]
      %v2052 = vld [vmem:[%s2048 + $0x18] sm:$0xff]
      %s2053 = scalar_lea.vmem %s7, 3
      %v2054 = vld [vmem:[%s2053] sm:$0x1]
      %v2056 = vlaneseq
      %v2057 = vshrl.u32 %v2056, 7
      %v2058 = vsub.s32 0, %v2057
      %v2059 = vrot.slane %v2054, %v2058
      %2061 = vmatprep.subr.mxu0 0.0
      %2062 = vmatpush1.msra.mxu0 0.0
      %2063 = vmatprep.subr.mxu0 0.0
      %2064 = vmatpush1.msra.mxu0 0.0
      %2065 = vmatprep.subr.mxu0 0.0
      %2066 = vmatpush1.msra.mxu0 0.0
      %2067 = vmatprep.subr.mxu0 0.0
      %2068 = vmatpush1.msra.mxu0 0.0
      %2069 = vmatprep.subr.mxu0 0.0
      %2070 = vmatpush1.msra.mxu0 0.0
      %2071 = vmatprep.subr.mxu0 0.0
      %2072 = vmatpush1.msra.mxu0 0.0
      %2073 = vmatprep.subr.mxu0 0.0
      %2074 = vmatpush1.msra.mxu0 0.0
      %2075 = vmatprep.subr.mxu0 0.0
      %2076 = vmatpush1.msra.mxu0 0.0
      %2077 = vmatprep.subr.mxu0 0.0
      %2078 = vmatpush1.msra.mxu0 0.0
      %2079 = vmatprep.subr.mxu0 0.0
      %2080 = vmatpush1.msra.mxu0 0.0
      %2081 = vmatprep.subr.mxu0 0.0
      %2082 = vmatpush1.msra.mxu0 0.0
      %2083 = vmatprep.subr.mxu0 0.0
      %2084 = vmatpush1.msra.mxu0 0.0
      %2085 = vmatprep.subr.mxu0 0.0
      %2086 = vmatpush1.msra.mxu0 %v2052
      %2087 = vmatprep.subr.mxu0 0.0
      %2088 = vmatpush1.msra.mxu0 %v2051
      %2089 = vmatprep.subr.mxu0 0.0
      %2090 = vmatpush1.msra.mxu0 %v2050
      %2091 = vmatprep.subr.mxu0 0.0
      %2092 = vmatpush1.msra.mxu0 %v2049
      %2093 = vmatprep.subr.mxu0 0.0
      %2094 = vmatpush2.msra.mxu0 0.0
      %2095 = vmatprep.subr.mxu0 0.0
      %2096 = vmatpush2.msra.mxu0 0.0
      %2097 = vmatprep.subr.mxu0 0.0
      %2098 = vmatpush2.msra.mxu0 0.0
      %2099 = vmatprep.subr.mxu0 0.0
      %2100 = vmatpush2.msra.mxu0 0.0
      %2101 = vmatprep.subr.mxu0 0.0
      %2102 = vmatpush2.msra.mxu0 0.0
      %2103 = vmatprep.subr.mxu0 0.0
      %2104 = vmatpush2.msra.mxu0 0.0
      %2105 = vmatprep.subr.mxu0 0.0
      %2106 = vmatpush2.msra.mxu0 0.0
      %2107 = vmatprep.subr.mxu0 0.0
      %2108 = vmatpush2.msra.mxu0 0.0
      %2109 = vmatprep.subr.mxu0 0.0
      %2110 = vmatpush2.msra.mxu0 0.0
      %2111 = vmatprep.subr.mxu0 0.0
      %2112 = vmatpush2.msra.mxu0 0.0
      %2113 = vmatprep.subr.mxu0 0.0
      %2114 = vmatpush2.msra.mxu0 0.0
      %2115 = vmatprep.subr.mxu0 0.0
      %2116 = vmatpush2.msra.mxu0 0.0
      %2117 = vmatprep.subr.mxu0 0.0
      %2118 = vmatpush2.msra.mxu0 0.0
      %2119 = vmatprep.subr.mxu0 0.0
      %2120 = vmatpush2.msra.mxu0 0.0
      %2121 = vmatprep.subr.mxu0 0.0
      %2122 = vmatpush2.msra.mxu0 0.0
      %2123 = vmatprep.subr.mxu0 0.0
      %2124 = vmatpush2.msra.mxu0 0.0
      %2125 = vmatprep.mubr.f32.mxu0 0.0
      %2126 = vmatmul.mubr.f32.gmra.mxu0 %v525
      %v2127 = vpop.f32.mrf.mxu0
      %v2128 = vadd.f32 %v2059, %v2127
      %v2129 = vpop.f32.mrf.mxu0
      %2130 = vdwg.mxu0
      %v2132 = vsel %vm678, %v1962, 0
      %v2135 = vsel %vm678, %v2045, 0
      %2137 = vmatprep.subr.mxu0 0.0
      %2138 = vmatpush1.xpose.msra.mxu0 0.0
      %2139 = vmatprep.subr.mxu0 0.0
      %2140 = vmatpush1.xpose.msra.mxu0 0.0
      %2141 = vmatprep.subr.mxu0 0.0
      %2142 = vmatpush1.xpose.msra.mxu0 0.0
      %2143 = vmatprep.subr.mxu0 0.0
      %2144 = vmatpush1.xpose.msra.mxu0 0.0
      %2145 = vmatprep.subr.mxu0 0.0
      %2146 = vmatpush1.xpose.msra.mxu0 0.0
      %2147 = vmatprep.subr.mxu0 0.0
      %2148 = vmatpush1.xpose.msra.mxu0 0.0
      %2149 = vmatprep.subr.mxu0 0.0
      %2150 = vmatpush1.xpose.msra.mxu0 0.0
      %2151 = vmatprep.subr.mxu0 0.0
      %2152 = vmatpush1.xpose.msra.mxu0 0.0
      %2153 = vmatprep.subr.mxu0 0.0
      %2154 = vmatpush1.xpose.msra.mxu0 0.0
      %2155 = vmatprep.subr.mxu0 0.0
      %2156 = vmatpush1.xpose.msra.mxu0 0.0
      %2157 = vmatprep.subr.mxu0 0.0
      %2158 = vmatpush1.xpose.msra.mxu0 0.0
      %2159 = vmatprep.subr.mxu0 0.0
      %2160 = vmatpush1.xpose.msra.mxu0 0.0
      %2161 = vmatprep.subr.mxu0 0.0
      %2162 = vmatpush1.xpose.msra.mxu0 0.0
      %2163 = vmatprep.subr.mxu0 0.0
      %2164 = vmatpush1.xpose.msra.mxu0 0.0
      %2165 = vmatprep.subr.mxu0 0.0
      %2166 = vmatpush1.xpose.msra.mxu0 0.0
      %2167 = vmatprep.subr.mxu0 0.0
      %2168 = vmatpush1.xpose.msra.mxu0 %v2135
      %2169 = vmatprep.subr.mxu0 0.0
      %2170 = vmatpush2.xpose.msra.mxu0 0.0
      %2171 = vmatprep.subr.mxu0 0.0
      %2172 = vmatpush2.xpose.msra.mxu0 0.0
      %2173 = vmatprep.subr.mxu0 0.0
      %2174 = vmatpush2.xpose.msra.mxu0 0.0
      %2175 = vmatprep.subr.mxu0 0.0
      %2176 = vmatpush2.xpose.msra.mxu0 0.0
      %2177 = vmatprep.subr.mxu0 0.0
      %2178 = vmatpush2.xpose.msra.mxu0 0.0
      %2179 = vmatprep.subr.mxu0 0.0
      %2180 = vmatpush2.xpose.msra.mxu0 0.0
      %2181 = vmatprep.subr.mxu0 0.0
      %2182 = vmatpush2.xpose.msra.mxu0 0.0
      %2183 = vmatprep.subr.mxu0 0.0
      %2184 = vmatpush2.xpose.msra.mxu0 0.0
      %2185 = vmatprep.subr.mxu0 0.0
      %2186 = vmatpush2.xpose.msra.mxu0 0.0
      %2187 = vmatprep.subr.mxu0 0.0
      %2188 = vmatpush2.xpose.msra.mxu0 0.0
      %2189 = vmatprep.subr.mxu0 0.0
      %2190 = vmatpush2.xpose.msra.mxu0 0.0
      %2191 = vmatprep.subr.mxu0 0.0
      %2192 = vmatpush2.xpose.msra.mxu0 0.0
      %2193 = vmatprep.subr.mxu0 0.0
      %2194 = vmatpush2.xpose.msra.mxu0 0.0
      %2195 = vmatprep.subr.mxu0 0.0
      %2196 = vmatpush2.xpose.msra.mxu0 0.0
      %2197 = vmatprep.subr.mxu0 0.0
      %2198 = vmatpush2.xpose.msra.mxu0 0.0
      %2199 = vmatprep.subr.mxu0 0.0
      %2200 = vmatpush2.xpose.msra.mxu0 0.0
      %2201 = vmatprep.mubr.f32.mxu0 0.0
      %2202 = vmatmul.mubr.f32.gmra.mxu0 %v2132
      %v2203 = vpop.f32.mrf.mxu0
      %v2204 = vadd.f32 0.0, %v2203
      %v2205 = vpop.f32.mrf.mxu0
      %2206 = vdwg.mxu0
      %v2207 = vsel %vm678, %v2204, -inf
      %2208 = vmax.xlane.f32.xlu0 %v2207
      %v2209 = vpop.xlane.xlu0 %2208
      %v2210 = vsub.f32 %v2204, %v2209
      %v2211 = vmul.f32 %v2210, 1.442695
      %v2212 = vpow.pop %v2211
      %v2213 = vsel %vm678, %v2212, 0.0
      %2214 = vadd.xlane.f32.xlu0 %v2213
      %v2215 = vpop.xlane.xlu0 %2214
      %v2216 = vrcp.pop %v2215
      %v2217 = vmul.f32 %v2212, %v2216
      %v2219 = vsel %vm678, %v2217, 0
      %2221 = vmatprep.subr.mxu0 0.0
      %2222 = vmatpush1.msra.mxu0 0.0
      %2223 = vmatprep.subr.mxu0 0.0
      %2224 = vmatpush1.msra.mxu0 0.0
      %2225 = vmatprep.subr.mxu0 0.0
      %2226 = vmatpush1.msra.mxu0 0.0
      %2227 = vmatprep.subr.mxu0 0.0
      %2228 = vmatpush1.msra.mxu0 0.0
      %2229 = vmatprep.subr.mxu0 0.0
      %2230 = vmatpush1.msra.mxu0 0.0
      %2231 = vmatprep.subr.mxu0 0.0
      %2232 = vmatpush1.msra.mxu0 0.0
      %2233 = vmatprep.subr.mxu0 0.0
      %2234 = vmatpush1.msra.mxu0 0.0
      %2235 = vmatprep.subr.mxu0 0.0
      %2236 = vmatpush1.msra.mxu0 0.0
      %2237 = vmatprep.subr.mxu0 0.0
      %2238 = vmatpush1.msra.mxu0 0.0
      %2239 = vmatprep.subr.mxu0 0.0
      %2240 = vmatpush1.msra.mxu0 0.0
      %2241 = vmatprep.subr.mxu0 0.0
      %2242 = vmatpush1.msra.mxu0 0.0
      %2243 = vmatprep.subr.mxu0 0.0
      %2244 = vmatpush1.msra.mxu0 0.0
      %2245 = vmatprep.subr.mxu0 0.0
      %2246 = vmatpush1.msra.mxu0 0.0
      %2247 = vmatprep.subr.mxu0 0.0
      %2248 = vmatpush1.msra.mxu0 0.0
      %2249 = vmatprep.subr.mxu0 0.0
      %2250 = vmatpush1.msra.mxu0 0.0
      %2251 = vmatprep.subr.mxu0 0.0
      %2252 = vmatpush1.msra.mxu0 %v2128
      %2253 = vmatprep.subr.mxu0 0.0
      %2254 = vmatpush2.msra.mxu0 0.0
      %2255 = vmatprep.subr.mxu0 0.0
      %2256 = vmatpush2.msra.mxu0 0.0
      %2257 = vmatprep.subr.mxu0 0.0
      %2258 = vmatpush2.msra.mxu0 0.0
      %2259 = vmatprep.subr.mxu0 0.0
      %2260 = vmatpush2.msra.mxu0 0.0
      %2261 = vmatprep.subr.mxu0 0.0
      %2262 = vmatpush2.msra.mxu0 0.0
      %2263 = vmatprep.subr.mxu0 0.0
      %2264 = vmatpush2.msra.mxu0 0.0
      %2265 = vmatprep.subr.mxu0 0.0
      %2266 = vmatpush2.msra.mxu0 0.0
      %2267 = vmatprep.subr.mxu0 0.0
      %2268 = vmatpush2.msra.mxu0 0.0
      %2269 = vmatprep.subr.mxu0 0.0
      %2270 = vmatpush2.msra.mxu0 0.0
      %2271 = vmatprep.subr.mxu0 0.0
      %2272 = vmatpush2.msra.mxu0 0.0
      %2273 = vmatprep.subr.mxu0 0.0
      %2274 = vmatpush2.msra.mxu0 0.0
      %2275 = vmatprep.subr.mxu0 0.0
      %2276 = vmatpush2.msra.mxu0 0.0
      %2277 = vmatprep.subr.mxu0 0.0
      %2278 = vmatpush2.msra.mxu0 0.0
      %2279 = vmatprep.subr.mxu0 0.0
      %2280 = vmatpush2.msra.mxu0 0.0
      %2281 = vmatprep.subr.mxu0 0.0
      %2282 = vmatpush2.msra.mxu0 0.0
      %2283 = vmatprep.subr.mxu0 0.0
      %2284 = vmatpush2.msra.mxu0 0.0
      %2285 = vmatprep.mubr.f32.mxu0 0.0
      %2286 = vmatmul.mubr.f32.gmra.mxu0 %v2219
      %v2287 = vpop.f32.mrf.mxu0
      %v2288 = vadd.f32 0.0, %v2287
      %v2289 = vpop.f32.mrf.mxu0
      %2290 = vdwg.mxu0
      %s2291 = scalar_lea.vmem %s8, 24
      %v2292 = vld [vmem:[%s2291] sm:$0xff]
      %v2294 = vsel %vm678, %v2288, 0
      %2296 = vmatprep.subr.mxu0 0.0
      %2297 = vmatpush1.msra.mxu0 0.0
      %2298 = vmatprep.subr.mxu0 0.0
      %2299 = vmatpush1.msra.mxu0 0.0
      %2300 = vmatprep.subr.mxu0 0.0
      %2301 = vmatpush1.msra.mxu0 0.0
      %2302 = vmatprep.subr.mxu0 0.0
      %2303 = vmatpush1.msra.mxu0 0.0
      %2304 = vmatprep.subr.mxu0 0.0
      %2305 = vmatpush1.msra.mxu0 0.0
      %2306 = vmatprep.subr.mxu0 0.0
      %2307 = vmatpush1.msra.mxu0 0.0
      %2308 = vmatprep.subr.mxu0 0.0
      %2309 = vmatpush1.msra.mxu0 0.0
      %2310 = vmatprep.subr.mxu0 0.0
      %2311 = vmatpush1.msra.mxu0 0.0
      %2312 = vmatprep.subr.mxu0 0.0
      %2313 = vmatpush1.msra.mxu0 0.0
      %2314 = vmatprep.subr.mxu0 0.0
      %2315 = vmatpush1.msra.mxu0 0.0
      %2316 = vmatprep.subr.mxu0 0.0
      %2317 = vmatpush1.msra.mxu0 0.0
      %2318 = vmatprep.subr.mxu0 0.0
      %2319 = vmatpush1.msra.mxu0 0.0
      %2320 = vmatprep.subr.mxu0 0.0
      %2321 = vmatpush1.msra.mxu0 0.0
      %2322 = vmatprep.subr.mxu0 0.0
      %2323 = vmatpush1.msra.mxu0 0.0
      %2324 = vmatprep.subr.mxu0 0.0
      %2325 = vmatpush1.msra.mxu0 0.0
      %2326 = vmatprep.subr.mxu0 0.0
      %2327 = vmatpush1.msra.mxu0 %v2292
      %2328 = vmatprep.subr.mxu0 0.0
      %2329 = vmatpush2.msra.mxu0 0.0
      %2330 = vmatprep.subr.mxu0 0.0
      %2331 = vmatpush2.msra.mxu0 0.0
      %2332 = vmatprep.subr.mxu0 0.0
      %2333 = vmatpush2.msra.mxu0 0.0
      %2334 = vmatprep.subr.mxu0 0.0
      %2335 = vmatpush2.msra.mxu0 0.0
      %2336 = vmatprep.subr.mxu0 0.0
      %2337 = vmatpush2.msra.mxu0 0.0
      %2338 = vmatprep.subr.mxu0 0.0
      %2339 = vmatpush2.msra.mxu0 0.0
      %2340 = vmatprep.subr.mxu0 0.0
      %2341 = vmatpush2.msra.mxu0 0.0
      %2342 = vmatprep.subr.mxu0 0.0
      %2343 = vmatpush2.msra.mxu0 0.0
      %2344 = vmatprep.subr.mxu0 0.0
      %2345 = vmatpush2.msra.mxu0 0.0
      %2346 = vmatprep.subr.mxu0 0.0
      %2347 = vmatpush2.msra.mxu0 0.0
      %2348 = vmatprep.subr.mxu0 0.0
      %2349 = vmatpush2.msra.mxu0 0.0
      %2350 = vmatprep.subr.mxu0 0.0
      %2351 = vmatpush2.msra.mxu0 0.0
      %2352 = vmatprep.subr.mxu0 0.0
      %2353 = vmatpush2.msra.mxu0 0.0
      %2354 = vmatprep.subr.mxu0 0.0
      %2355 = vmatpush2.msra.mxu0 0.0
      %2356 = vmatprep.subr.mxu0 0.0
      %2357 = vmatpush2.msra.mxu0 0.0
      %2358 = vmatprep.subr.mxu0 0.0
      %2359 = vmatpush2.msra.mxu0 0.0
      %2360 = vmatprep.mubr.f32.mxu0 0.0
      %2361 = vmatmul.mubr.f32.gmra.mxu0 %v2294
      %v2362 = vpop.f32.mrf.mxu0
      %v2363 = vadd.f32 0.0, %v2362
      %v2364 = vpop.f32.mrf.mxu0
      %2365 = vdwg.mxu0
      %v2366 = vadd.f32 %v1881, %v2363
      %v2367 = vadd.f32 %v426, %v2366
      %v2368 = vld [vmem:[%s9] sm:$0x1]
      %v2370 = vlaneseq
      %v2371 = vshrl.u32 %v2370, 7
      %v2372 = vsub.s32 0, %v2371
      %v2373 = vrot.slane %v2368, %v2372
      %v2375 = vadd.f32 %v2367, %v2373
      %v2376 = vsel %vm439, %v2375, 0.0
      %2377 = vadd.xlane.f32.xlu0 %v2376
      %v2378 = vpop.xlane.xlu0 %2377
      %v2379 = vrcp.pop 32.0
      %v2380 = vmul.f32 %v2378, %v2379
      %v2381 = vsub.f32 %v2375, %v2380
      %v2382 = vmul.f32 %v2381, %v2381
      %v2383 = vsel %vm439, %v2382, 0.0
      %2384 = vadd.xlane.f32.xlu0 %v2383
      %v2385 = vpop.xlane.xlu0 %2384
      %v2386 = vmul.f32 %v2385, %v2379
      %v2387 = vadd.f32 %v2386, 1e-05
      %v2388 = vrsqrt.pop %v2387
      %v2389 = vmul.f32 %v2381, %v2388
      %v2390 = vld [vmem:[%s10] sm:$0x1]
      %v2392 = vlaneseq
      %v2393 = vshrl.u32 %v2392, 7
      %v2394 = vsub.s32 0, %v2393
      %v2395 = vrot.slane %v2390, %v2394
      %v2397 = vmul.f32 %v2389, %v2395
      %v2398 = vld [vmem:[%s11] sm:$0x1]
      %v2400 = vlaneseq
      %v2401 = vshrl.u32 %v2400, 7
      %v2402 = vsub.s32 0, %v2401
      %v2403 = vrot.slane %v2398, %v2402
      %v2405 = vadd.f32 %v2397, %v2403
      %2406 = vst.msk [vmem:[%s425] sm:$0xff] %vm439, %v2405
      %p2407 = scmp.lt.s32.totalorder %s23, 1
      %s2408 = scalar_select %p2407, %s23, 1
      %s2409 = smul.addr %s2408, 8
      %s2410 = scalar_lea.vmem %s12, %s2409
      // Predicated region
      $region69: #{seq2seq_forward.20} parent=67 // pred_check
        %p2411 = pneg %p303
      $region70: #{seq2seq_forward.20} parent=67 // pred_check_branch
        %2413 = sbr.rel (%p2411) target = $region72
      $region71: #{seq2seq_forward.20} parent=67 // pred_region
        _
      $region72: #{seq2seq_forward.20} parent=67 // pred_fallthru
        _
    $region68: #{seq2seq_forward.20} parent=5 // pred_fallthru
      _
    %p2414 = scmp.le.s32.totalorder 2, %s18
    // Predicated region
    $region73: #{seq2seq_forward.20} parent=5 // pred_check
      %p2415 = pneg %p2414
    $region74: #{seq2seq_forward.20} parent=5 // pred_check_branch
      %2417 = sbr.rel (%p2415) target = $region76
    $region75: #{seq2seq_forward.20} parent=5 // pred_region
      %s2418 = ssub.s32 %s18, 2
      // Predicated region
      $region77: #{seq2seq_forward.20} parent=75 // pred_check
        %p2419 = pneg %p309
      $region78: #{seq2seq_forward.20} parent=75 // pred_check_branch
        %2421 = sbr.rel (%p2419) target = $region80
      $region79: #{seq2seq_forward.20} parent=75 // pred_region
        %p2422 = scmp.lt.s32.totalorder %s24, 1
        %s2423 = scalar_select %p2422, %s24, 1
        %s2424 = smul.addr %s2423, 8
        %s2425 = scalar_lea.vmem %s12, %s2424
      $region80: #{seq2seq_forward.20} parent=75 // pred_fallthru
        _
    $region76: #{seq2seq_forward.20} parent=5 // pred_fallthru
      _
  $region6: #{seq2seq_forward.20} parent=0 // loop_footer
    %s22 = sadd.s32 1, %s18
  $region7: #{seq2seq_forward.20} parent=0 // loop_footer_branch
    %17 = sbr.rel target = $region3
  $region8: #{seq2seq_forward.20} parent=0 // loop_exit
    _

</llo_original>
